<compile_context>
chip_gen: v6e
topology: v6e:2x2x1
jax: 0.10.0
libtpu: 0.0.40
codegen_flags: <defaults>
</compile_context>

<pallas_src>
import math

import jax
import jax.numpy as jnp
from jax.experimental import pallas as pl
from jax.experimental.pallas import tpu as pltpu

# ----------------------------- config (small) --------------------------------
EMBED_DIM = 32          # config['embed_dim']
HIDDEN_DIM = 64         # config['hidden_dim']
NUM_HEADS = 4           # config['num_heads']
NUM_LAYERS = 2          # config['num_layers']
MAX_LEN = 8             # CondARModel(max_len=8)
CLASSES = 512           # CondARModel(classes=512)
HEAD_DIM = EMBED_DIM // NUM_HEADS
LN_EPS = 1e-5
NEG_INF = -1e9          # causal-mask fill (PyTorch uses -inf; negligible diff)


# ----------------------------- in-kernel math ---------------------------------
def _layer_norm(x, g, b):
    mean = jnp.mean(x, axis=-1, keepdims=True)
    var = jnp.mean((x - mean) ** 2, axis=-1, keepdims=True)
    return (x - mean) * jax.lax.rsqrt(var + LN_EPS) * g + b


def _wdot(x, w):
    """Matmul with the activation cast to the weight dtype at the MXU boundary.

    Accumulation is always f32 (preferred_element_type); when weights are f32
    the cast is a no-op, when they are bf16 (v6e/v7x) only the MXU operands
    become bf16 — all element-wise math stays f32.
    """
    return jnp.dot(x.astype(w.dtype), w, preferred_element_type=jnp.float32)


def _attention_core(q, k, v, batch, tq, tk, mask):
    """Head-batched scaled dot-product attention.

    q: (batch*tq, E) f32, k/v: (batch*tk, E) f32.
    Heads are stacked on the batch axis so scores and attn*V are ONE batched
    einsum each (batch = NUM_HEADS*batch).  Returns (NUM_HEADS*batch, tq, D)
    with head h occupying rows [h*batch, (h+1)*batch).
    """
    q3 = q.reshape(batch, tq, EMBED_DIM)
    k3 = k.reshape(batch, tk, EMBED_DIM)
    v3 = v.reshape(batch, tk, EMBED_DIM)

    def split_heads(x3):
        return jnp.concatenate(
            [x3[:, :, h * HEAD_DIM:(h + 1) * HEAD_DIM] for h in range(NUM_HEADS)],
            axis=0)                                         # (H*batch, t, D)

    qh, kh, vh = split_heads(q3), split_heads(k3), split_heads(v3)
    scale = 1.0 / math.sqrt(HEAD_DIM)
    s = jnp.einsum('bqd,bkd->bqk', qh, kh,
                   preferred_element_type=jnp.float32) * scale
    if mask is not None:
        s = s + mask[None, :, :]
    m = jnp.max(s, axis=-1, keepdims=True)
    e = jnp.exp(s - m)
    p = e * pl.reciprocal(jnp.sum(e, axis=-1, keepdims=True), approx=True)
    return jnp.einsum('bqk,bkd->bqd', p, vh,
                      preferred_element_type=jnp.float32)   # (H*batch, tq, D)


def _out_proj(o_heads, batch, tq, wo_ref, bo_ref, io, l):
    """Fold each head straight into the output projection (no lane concat)."""
    out = None
    for h in range(NUM_HEADS):
        oh = o_heads[h * batch:(h + 1) * batch].reshape(batch * tq, HEAD_DIM)
        contrib = _wdot(oh, wo_ref[io, l, h])               # (D,E) lazy load
        out = contrib if out is None else out + contrib
    return out + bo_ref[io, l:l + 1]                        # (1,E) lazy load


# ----------------------------- Pallas kernel ----------------------------------
def _cond_ar_kernel(dec_ref, mem_ref, pos_ref,
                    attn_wqkv_ref, attn_bqkv_ref, attn_wo_ref, attn_bo_ref,
                    ffw1_ref, ffb1_ref, ffw2_ref, ffb2_ref,
                    ln_ref, fcw_ref, fcb_ref, out_ref):
    bb, t, e = dec_ref.shape            # batch-block, T, E
    s_len = mem_ref.shape[1]

    # glue fused in-kernel: positional add, then flatten batch*time.
    x = (dec_ref[...] + pos_ref[...][None, :, :]).reshape(bb * t, e)
    mem = mem_ref[...].reshape(bb * s_len, e)

    # causal mask built in-kernel (no DMA'd (T,T) input).
    row = jax.lax.broadcasted_iota(jnp.int32, (t, t), 0)
    col = jax.lax.broadcasted_iota(jnp.int32, (t, t), 1)
    causal = jnp.where(col > row, jnp.float32(NEG_INF), jnp.float32(0.0))

    for l in range(NUM_LAYERS):
        # ---- self-attention: one fused QKV matmul, head-batched core ----
        qkv = _wdot(x, attn_wqkv_ref[0, l]) + attn_bqkv_ref[0, l:l + 1]
        o_h = _attention_core(qkv[:, :e], qkv[:, e:2 * e], qkv[:, 2 * e:],
                              bb, t, t, causal)
        sa = _out_proj(o_h, bb, t, attn_wo_ref, attn_bo_ref, 0, l)
        x = _layer_norm(x + sa, ln_ref[0, 3 * l:3 * l + 1],
                        ln_ref[1, 3 * l:3 * l + 1])

        # ---- cross-attention: Q from x, fused KV matmul from memory ----
        w_c = attn_wqkv_ref[1, l]                 # (E, 3E), loaded at use
        b_c = attn_bqkv_ref[1, l:l + 1]           # (1, 3E)
        q_c = _wdot(x, w_c[:, :e]) + b_c[:, :e]
        kv_c = _wdot(mem, w_c[:, e:]) + b_c[:, e:]
        o_h = _attention_core(q_c, kv_c[:, :e], kv_c[:, e:],
                              bb, t, s_len, None)
        ca = _out_proj(o_h, bb, t, attn_wo_ref, attn_bo_ref, 1, l)
        x = _layer_norm(x + ca, ln_ref[0, 3 * l + 1:3 * l + 2],
                        ln_ref[1, 3 * l + 1:3 * l + 2])

        # ---- feed-forward (ReLU) ----
        hdn = jnp.maximum(_wdot(x, ffw1_ref[l]) + ffb1_ref[l:l + 1], 0.0)
        ff = _wdot(hdn, ffw2_ref[l]) + ffb2_ref[l:l + 1]
        x = _layer_norm(x + ff, ln_ref[0, 3 * l + 2:3 * l + 3],
                        ln_ref[1, 3 * l + 2:3 * l + 3])

    # final decoder norm + lane-dense (B*T, 512) projection.
    x = _layer_norm(x, ln_ref[0, 3 * NUM_LAYERS:3 * NUM_LAYERS + 1],
                    ln_ref[1, 3 * NUM_LAYERS:3 * NUM_LAYERS + 1])
    logits = _wdot(x, fcw_ref[...]) + fcb_ref[...]
    out_ref[...] = logits.reshape(bb, t, CLASSES)


# ----------------------------- host-side packing ------------------------------
def pack_params(params, param_dtype=jnp.float32):
    """One-time host-side pack: pre-transpose, fuse QKV, stack into few buffers.

    param_dtype=jnp.bfloat16 casts only the matmul weights (biases / LN stay
    f32) for the bf16-native MXU on v6e/v7x.
    """
    L, E = NUM_LAYERS, EMBED_DIM

    def wt(x):
        return x.astype(param_dtype)

    def fused_attn(prefix):
        w = jnp.stack([jnp.concatenate(
            [params[f"{prefix}_wq"][l].T,
             params[f"{prefix}_wk"][l].T,
             params[f"{prefix}_wv"][l].T], axis=1) for l in range(L)], axis=0)  # (L,E,3E)
        b = jnp.stack([jnp.concatenate(
            [params[f"{prefix}_bq"][l],
             params[f"{prefix}_bk"][l],
             params[f"{prefix}_bv"][l]], axis=0) for l in range(L)], axis=0)    # (L,3E)
        wo = jnp.stack([params[f"{prefix}_wo"][l].T.reshape(NUM_HEADS, HEAD_DIM, E)
                        for l in range(L)], axis=0)                              # (L,H,D,E)
        bo = jnp.stack([params[f"{prefix}_bo"][l] for l in range(L)], axis=0)    # (L,E)
        return w, b, wo, bo

    sa_w, sa_b, sa_wo, sa_bo = fused_attn("sa")
    ca_w, ca_b, ca_wo, ca_bo = fused_attn("ca")

    ln_g, ln_b = [], []
    for l in range(L):
        for i in (1, 2, 3):
            ln_g.append(params[f"ln{i}_g"][l])
            ln_b.append(params[f"ln{i}_b"][l])
    ln_g.append(params["fn_g"][0])
    ln_b.append(params["fn_b"][0])

    return {
        "code_table": params["code_table"],
        "cond_table": params["cond_table"],
        "pos_table": params["pos_table"],
        "attn_wqkv": wt(jnp.stack([sa_w, ca_w], axis=0)),     # (2, L, E, 3E)
        "attn_bqkv": jnp.stack([sa_b, ca_b], axis=0),         # (2, L, 3E)  f32
        "attn_wo": wt(jnp.stack([sa_wo, ca_wo], axis=0)),     # (2, L, H, D, E)
        "attn_bo": jnp.stack([sa_bo, ca_bo], axis=0),         # (2, L, E)   f32
        "ff_w1": wt(jnp.transpose(params["ff_w1"], (0, 2, 1))),  # (L, E, H)
        "ff_b1": params["ff_b1"],                                 # (L, H)
        "ff_w2": wt(jnp.transpose(params["ff_w2"], (0, 2, 1))),  # (L, H, E)
        "ff_b2": params["ff_b2"],                                 # (L, E)
        "ln_gb": jnp.stack([jnp.stack(ln_g, 0), jnp.stack(ln_b, 0)], 0),  # (2,3L+1,E)
        "fc_w_t": wt(params["fc_w"].T),                        # (E, C)
        "fc_b": params["fc_b"],                                # (1, C)  f32
    }


# ----------------------------- forward wrapper ---------------------------------
def cond_ar_forward(code, cond, packed, batch_blocks=1):
    """Equivalent of CondARModel.forward(code, cond) with seq_len > 0.

    batch_blocks=1: one fused grid step (use on v5e/v6e, and on v7x while
                    per-block B*T is small — at B=2 splitting only duplicates
                    weight DMAs and halves an already tiny MXU M).
    batch_blocks=2: split the batch across a parallel grid (v7x's two
                    TensorCores) only when bblk*T is >= ~128 rows.
    """
    B, seq_len = code.shape
    T = seq_len + 1
    S = cond.shape[1]
    assert T <= MAX_LEN and B % batch_blocks == 0
    bblk = B // batch_blocks

    # --- XLA glue: data-dependent embedding gathers + zero-context pad ---
    code_emb = packed["code_table"][code]                          # (B, seq, E)
    dec_emb = jnp.pad(code_emb, ((0, 0), (1, 0), (0, 0)))          # (B, T, E)
    mem = packed["cond_table"][cond]                               # (B, S, E)
    pos = packed["pos_table"][:T]                                  # (T, E)

    def full_spec(arr):
        nd = arr.ndim
        # constant index_map -> params are DMA'd once, never re-fetched.
        return pl.BlockSpec(arr.shape, lambda i, _nd=nd: (0,) * _nd)

    param_order = ["attn_wqkv", "attn_bqkv", "attn_wo", "attn_bo",
                   "ff_w1", "ff_b1", "ff_w2", "ff_b2",
                   "ln_gb", "fc_w_t", "fc_b"]
    param_arrays = [packed[n] for n in param_order]

    in_specs = [
        pl.BlockSpec((bblk, T, EMBED_DIM), lambda i: (i, 0, 0)),   # dec_emb
        pl.BlockSpec((bblk, S, EMBED_DIM), lambda i: (i, 0, 0)),   # memory
        full_spec(pos),                                            # pos table
    ] + [full_spec(a) for a in param_arrays]

    out = pl.pallas_call(
        _cond_ar_kernel,
        out_shape=jax.ShapeDtypeStruct((B, T, CLASSES), jnp.float32),
        grid=(batch_blocks,),
        in_specs=in_specs,
        out_specs=pl.BlockSpec((bblk, T, CLASSES), lambda i: (i, 0, 0)),
        compiler_params=pltpu.CompilerParams(
            dimension_semantics=("parallel",) if batch_blocks > 1
            else ("arbitrary",)),
    )(dec_emb, mem, pos, *param_arrays)
    return out  # (B, T, CLASSES)


# ----------------------------- params ------------------------------------------
def init_params(key):
    ks = iter(jax.random.split(key, 64))

    def nrm(shape, scale=0.02):
        return scale * jax.random.normal(next(ks), shape, jnp.float32)

    L, E, H, C = NUM_LAYERS, EMBED_DIM, HIDDEN_DIM, CLASSES
    p = {
        "code_table": nrm((C, E)),
        "cond_table": nrm((C, E)),
        "pos_table": nrm((MAX_LEN, E), scale=0.1),
        "fc_w": nrm((C, E)),
        "fc_b": jnp.zeros((1, C), jnp.float32),
        "fn_g": jnp.ones((1, E), jnp.float32),
        "fn_b": jnp.zeros((1, E), jnp.float32),
    }
    for pre in ("sa", "ca"):
        for w in ("wq", "wk", "wv", "wo"):
            p[f"{pre}_{w}"] = nrm((L, E, E))
        for b in ("bq", "bk", "bv", "bo"):
            p[f"{pre}_{b}"] = jnp.zeros((L, E), jnp.float32)
    p["ff_w1"] = nrm((L, H, E))
    p["ff_b1"] = jnp.zeros((L, H), jnp.float32)
    p["ff_w2"] = nrm((L, E, H))
    p["ff_b2"] = jnp.zeros((L, E), jnp.float32)
    for i in (1, 2, 3):
        p[f"ln{i}_g"] = jnp.ones((L, E), jnp.float32)
        p[f"ln{i}_b"] = jnp.zeros((L, E), jnp.float32)
    return p


# ----------------------------- reference (pure JAX) -----------------------------
def _ref_layer_norm(x, g, b):
    mean = jnp.mean(x, axis=-1, keepdims=True)
    var = jnp.mean((x - mean) ** 2, axis=-1, keepdims=True)
    return (x - mean) * jax.lax.rsqrt(var + LN_EPS) * g + b


def _ref_mha(xq, xkv, wq, wk, wv, wo, bq, bk, bv, bo, mask=None):
    q = jnp.dot(xq, wq.T) + bq
    k = jnp.dot(xkv, wk.T) + bk
    v = jnp.dot(xkv, wv.T) + bv
    scale = 1.0 / math.sqrt(HEAD_DIM)
    outs = []
    for h in range(NUM_HEADS):
        sl = slice(h * HEAD_DIM, (h + 1) * HEAD_DIM)
        s = jnp.dot(q[:, sl], k[:, sl].T) * scale
        if mask is not None:
            s = s + mask
        a = jax.nn.softmax(s, axis=-1)
        outs.append(jnp.dot(a, v[:, sl]))
    return jnp.dot(jnp.concatenate(outs, axis=-1), wo.T) + bo


def _ref_stack(x, m, mask, p):
    for l in range(NUM_LAYERS):
        sa = _ref_mha(x, x, p["sa_wq"][l], p["sa_wk"][l], p["sa_wv"][l],
                      p["sa_wo"][l], p["sa_bq"][l], p["sa_bk"][l],
                      p["sa_bv"][l], p["sa_bo"][l], mask=mask)
        x = _ref_layer_norm(x + sa, p["ln1_g"][l], p["ln1_b"][l])
        ca = _ref_mha(x, m, p["ca_wq"][l], p["ca_wk"][l], p["ca_wv"][l],
                      p["ca_wo"][l], p["ca_bq"][l], p["ca_bk"][l],
                      p["ca_bv"][l], p["ca_bo"][l], mask=None)
        x = _ref_layer_norm(x + ca, p["ln2_g"][l], p["ln2_b"][l])
        h = jnp.maximum(jnp.dot(x, p["ff_w1"][l].T) + p["ff_b1"][l], 0.0)
        ff = jnp.dot(h, p["ff_w2"][l].T) + p["ff_b2"][l]
        x = _ref_layer_norm(x + ff, p["ln3_g"][l], p["ln3_b"][l])
    x = _ref_layer_norm(x, p["fn_g"][0], p["fn_b"][0])
    return jnp.dot(x, p["fc_w"].T) + p["fc_b"][0]


def reference_forward(code, cond, params):
    B, seq_len = code.shape
    T = seq_len + 1
    code_emb = params["code_table"][code]
    dec_in = jnp.concatenate(
        [jnp.zeros((B, 1, EMBED_DIM), jnp.float32), code_emb], axis=1)
    dec_in = dec_in + params["pos_table"][:T][None, :, :]
    mem = params["cond_table"][cond]
    mask = jnp.where(jnp.triu(jnp.ones((T, T), jnp.bool_), k=1),
                     jnp.float32(NEG_INF), jnp.float32(0.0))
    return jax.vmap(lambda x, m: _ref_stack(x, m, mask, params))(dec_in, mem)


# ----------------------------- main ---------------------------------------------
if __name__ == "__main__":
    key = jax.random.PRNGKey(0)
    kp, kc, kd = jax.random.split(key, 3)
    params = init_params(kp)

    B = 2
    seq_len = 7           # T = seq_len + 1 = 8 (<= max_len positions)
    cond_len = 8
    code = jax.random.randint(kc, (B, seq_len), 0, CLASSES, dtype=jnp.int32)
    cond = jax.random.randint(kd, (B, cond_len), 0, CLASSES, dtype=jnp.int32)

    ref = reference_forward(code, cond, params)

    # f32 weights: strict check (only deviation is the EUP approx reciprocal
    # used for the softmax denominator).
    packed_f32 = pack_params(params, param_dtype=jnp.float32)
    logits = cond_ar_forward(code, cond, packed_f32, batch_blocks=1)
    jax.block_until_ready(logits)
    assert logits.shape == (B, seq_len + 1, CLASSES), logits.shape
    assert jnp.allclose(logits, ref, rtol=2e-3, atol=2e-3), "f32 kernel mismatch"

    # bf16 matmul weights (v6e/v7x MXU fast path): relaxed tolerance.
    packed_bf16 = pack_params(params, param_dtype=jnp.bfloat16)
    logits_bf16 = cond_ar_forward(code, cond, packed_bf16, batch_blocks=1)
    jax.block_until_ready(logits_bf16)
    assert jnp.allclose(logits_bf16, ref, rtol=5e-2, atol=5e-2), \
        "bf16 kernel mismatch"

    print("KERNEL_OK")
</pallas_src>

<mosaic_0001>
module attributes {stable_mosaic.version = 11 : i64} {
  func.func @_cond_ar_kernel(%arg0: i32, %arg1: memref<2x8x32xf32, #tpu.memory_space<vmem>>, %arg2: memref<2x8x32xf32, #tpu.memory_space<vmem>>, %arg3: memref<8x32xf32, #tpu.memory_space<vmem>>, %arg4: memref<2x2x32x96xf32, #tpu.memory_space<vmem>>, %arg5: memref<2x2x96xf32, #tpu.memory_space<vmem>>, %arg6: memref<2x2x4x8x32xf32, #tpu.memory_space<vmem>>, %arg7: memref<2x2x32xf32, #tpu.memory_space<vmem>>, %arg8: memref<2x32x64xf32, #tpu.memory_space<vmem>>, %arg9: memref<2x64xf32, #tpu.memory_space<vmem>>, %arg10: memref<2x64x32xf32, #tpu.memory_space<vmem>>, %arg11: memref<2x32xf32, #tpu.memory_space<vmem>>, %arg12: memref<2x7x32xf32, #tpu.memory_space<vmem>>, %arg13: memref<32x512xf32, #tpu.memory_space<vmem>>, %arg14: memref<1x512xf32, #tpu.memory_space<vmem>>, %arg15: memref<2x8x512xf32, #tpu.memory_space<vmem>>) attributes {dimension_semantics = [#tpu.dimension_semantics<arbitrary>], iteration_bounds = array<i64: 1>, scalar_prefetch = 0 : i64, scratch_operands = 0 : i64, tpu.core_type = #tpu.core_type<tc>, window_params = [{transform_indices = @transform_0, window_bounds = array<i64: 2, 8, 32>}, {transform_indices = @transform_1, window_bounds = array<i64: 2, 8, 32>}, {pipeline_mode = #tpu.pipeline_mode<synchronous>, transform_indices = @transform_2, window_bounds = array<i64: 8, 32>}, {pipeline_mode = #tpu.pipeline_mode<synchronous>, transform_indices = @transform_3, window_bounds = array<i64: 2, 2, 32, 96>}, {pipeline_mode = #tpu.pipeline_mode<synchronous>, transform_indices = @transform_4, window_bounds = array<i64: 2, 2, 96>}, {pipeline_mode = #tpu.pipeline_mode<synchronous>, transform_indices = @transform_5, window_bounds = array<i64: 2, 2, 4, 8, 32>}, {pipeline_mode = #tpu.pipeline_mode<synchronous>, transform_indices = @transform_6, window_bounds = array<i64: 2, 2, 32>}, {pipeline_mode = #tpu.pipeline_mode<synchronous>, transform_indices = @transform_7, window_bounds = array<i64: 2, 32, 64>}, {pipeline_mode = #tpu.pipeline_mode<synchronous>, transform_indices = @transform_8, window_bounds = array<i64: 2, 64>}, {pipeline_mode = #tpu.pipeline_mode<synchronous>, transform_indices = @transform_9, window_bounds = array<i64: 2, 64, 32>}, {pipeline_mode = #tpu.pipeline_mode<synchronous>, transform_indices = @transform_10, window_bounds = array<i64: 2, 32>}, {pipeline_mode = #tpu.pipeline_mode<synchronous>, transform_indices = @transform_11, window_bounds = array<i64: 2, 7, 32>}, {pipeline_mode = #tpu.pipeline_mode<synchronous>, transform_indices = @transform_12, window_bounds = array<i64: 32, 512>}, {pipeline_mode = #tpu.pipeline_mode<synchronous>, transform_indices = @transform_13, window_bounds = array<i64: 1, 512>}, {transform_indices = @transform_14, window_bounds = array<i64: 2, 8, 512>}]} {
    %c0 = arith.constant 0 : index
    %c0_0 = arith.constant 0 : index
    %c0_1 = arith.constant 0 : index
    %0 = vector.load %arg1[%c0, %c0_0, %c0_1] : memref<2x8x32xf32, #tpu.memory_space<vmem>>, vector<2x8x32xf32>
    %c0_2 = arith.constant 0 : index
    %c0_3 = arith.constant 0 : index
    %1 = vector.load %arg3[%c0_2, %c0_3] : memref<8x32xf32, #tpu.memory_space<vmem>>, vector<8x32xf32>
    %2 = vector.shape_cast %1 : vector<8x32xf32> to vector<1x8x32xf32>
    %3 = vector.broadcast %2 : vector<1x8x32xf32> to vector<2x8x32xf32>
    %4 = arith.addf %0, %3 : vector<2x8x32xf32>
    %5 = vector.shape_cast %4 : vector<2x8x32xf32> to vector<16x32xf32>
    %c0_4 = arith.constant 0 : index
    %c0_5 = arith.constant 0 : index
    %c0_6 = arith.constant 0 : index
    %6 = vector.load %arg2[%c0_4, %c0_5, %c0_6] : memref<2x8x32xf32, #tpu.memory_space<vmem>>, vector<2x8x32xf32>
    %7 = vector.shape_cast %6 : vector<2x8x32xf32> to vector<16x32xf32>
    %8 = tpu.iota {dimensions = array<i32: 0>} : vector<8x8xi32>
    %9 = tpu.iota {dimensions = array<i32: 1>} : vector<8x8xi32>
    %10 = arith.cmpi sgt, %9, %8 : vector<8x8xi32>
    %cst = arith.constant -1.000000e+09 : f32
    %cst_7 = arith.constant 0.000000e+00 : f32
    %11 = vector.broadcast %cst : f32 to vector<8x8xf32>
    %12 = vector.broadcast %cst_7 : f32 to vector<8x8xf32>
    %13 = arith.select %10, %11, %12 : vector<8x8xi1>, vector<8x8xf32>
    %c0_8 = arith.constant 0 : index
    %c0_9 = arith.constant 0 : index
    %c0_10 = arith.constant 0 : index
    %c0_11 = arith.constant 0 : index
    %14 = vector.load %arg4[%c0_8, %c0_9, %c0_10, %c0_11] : memref<2x2x32x96xf32, #tpu.memory_space<vmem>>, vector<1x1x32x96xf32>
    %15 = vector.shape_cast %14 : vector<1x1x32x96xf32> to vector<32x96xf32>
    %cst_12 = arith.constant dense<0.000000e+00> : vector<16x96xf32>
    %16 = tpu.matmul %5, %15, %cst_12 {dimension_numbers = #tpu.dot_dimension_numbers<[1], [0], [0], [1], [0, 0, 1, 1], [], []>} : vector<16x32xf32>, vector<32x96xf32>, vector<16x96xf32> -> vector<16x96xf32>
    %c0_13 = arith.constant 0 : index
    %c0_14 = arith.constant 0 : index
    %c0_15 = arith.constant 0 : index
    %17 = vector.load %arg5[%c0_13, %c0_14, %c0_15] : memref<2x2x96xf32, #tpu.memory_space<vmem>>, vector<1x1x96xf32>
    %18 = vector.shape_cast %17 : vector<1x1x96xf32> to vector<1x96xf32>
    %19 = vector.broadcast %18 : vector<1x96xf32> to vector<16x96xf32>
    %20 = arith.addf %16, %19 : vector<16x96xf32>
    %21 = vector.extract_strided_slice %20 {offsets = [0, 0], sizes = [16, 32], strides = [1, 1]} : vector<16x96xf32> to vector<16x32xf32>
    %22 = vector.extract_strided_slice %20 {offsets = [0, 32], sizes = [16, 32], strides = [1, 1]} : vector<16x96xf32> to vector<16x32xf32>
    %23 = vector.extract_strided_slice %20 {offsets = [0, 64], sizes = [16, 32], strides = [1, 1]} : vector<16x96xf32> to vector<16x32xf32>
    %24 = vector.shape_cast %21 : vector<16x32xf32> to vector<2x8x32xf32>
    %25 = vector.shape_cast %22 : vector<16x32xf32> to vector<2x8x32xf32>
    %26 = vector.shape_cast %23 : vector<16x32xf32> to vector<2x8x32xf32>
    %27 = vector.extract_strided_slice %24 {offsets = [0, 0, 0], sizes = [2, 8, 8], strides = [1, 1, 1]} : vector<2x8x32xf32> to vector<2x8x8xf32>
    %28 = vector.extract_strided_slice %24 {offsets = [0, 0, 8], sizes = [2, 8, 8], strides = [1, 1, 1]} : vector<2x8x32xf32> to vector<2x8x8xf32>
    %29 = vector.extract_strided_slice %24 {offsets = [0, 0, 16], sizes = [2, 8, 8], strides = [1, 1, 1]} : vector<2x8x32xf32> to vector<2x8x8xf32>
    %30 = vector.extract_strided_slice %24 {offsets = [0, 0, 24], sizes = [2, 8, 8], strides = [1, 1, 1]} : vector<2x8x32xf32> to vector<2x8x8xf32>
    %31 = tpu.concatenate %27, %28, %29, %30 in 0 : vector<2x8x8xf32>, vector<2x8x8xf32>, vector<2x8x8xf32>, vector<2x8x8xf32> -> vector<8x8x8xf32>
    %32 = vector.extract_strided_slice %25 {offsets = [0, 0, 0], sizes = [2, 8, 8], strides = [1, 1, 1]} : vector<2x8x32xf32> to vector<2x8x8xf32>
    %33 = vector.extract_strided_slice %25 {offsets = [0, 0, 8], sizes = [2, 8, 8], strides = [1, 1, 1]} : vector<2x8x32xf32> to vector<2x8x8xf32>
    %34 = vector.extract_strided_slice %25 {offsets = [0, 0, 16], sizes = [2, 8, 8], strides = [1, 1, 1]} : vector<2x8x32xf32> to vector<2x8x8xf32>
    %35 = vector.extract_strided_slice %25 {offsets = [0, 0, 24], sizes = [2, 8, 8], strides = [1, 1, 1]} : vector<2x8x32xf32> to vector<2x8x8xf32>
    %36 = tpu.concatenate %32, %33, %34, %35 in 0 : vector<2x8x8xf32>, vector<2x8x8xf32>, vector<2x8x8xf32>, vector<2x8x8xf32> -> vector<8x8x8xf32>
    %37 = vector.extract_strided_slice %26 {offsets = [0, 0, 0], sizes = [2, 8, 8], strides = [1, 1, 1]} : vector<2x8x32xf32> to vector<2x8x8xf32>
    %38 = vector.extract_strided_slice %26 {offsets = [0, 0, 8], sizes = [2, 8, 8], strides = [1, 1, 1]} : vector<2x8x32xf32> to vector<2x8x8xf32>
    %39 = vector.extract_strided_slice %26 {offsets = [0, 0, 16], sizes = [2, 8, 8], strides = [1, 1, 1]} : vector<2x8x32xf32> to vector<2x8x8xf32>
    %40 = vector.extract_strided_slice %26 {offsets = [0, 0, 24], sizes = [2, 8, 8], strides = [1, 1, 1]} : vector<2x8x32xf32> to vector<2x8x8xf32>
    %41 = tpu.concatenate %37, %38, %39, %40 in 0 : vector<2x8x8xf32>, vector<2x8x8xf32>, vector<2x8x8xf32>, vector<2x8x8xf32> -> vector<8x8x8xf32>
    "tpu.trace_start"() <{level = 10 : i32, message = "bqd,bkd->bqk"}> : () -> ()
    %cst_16 = arith.constant dense<0.000000e+00> : vector<8x8x8xf32>
    %42 = tpu.matmul %31, %36, %cst_16 {dimension_numbers = #tpu.dot_dimension_numbers<[2], [2], [1], [1], [0, 0, 0, 1, 1, 1], [0], [0]>} : vector<8x8x8xf32>, vector<8x8x8xf32>, vector<8x8x8xf32> -> vector<8x8x8xf32>
    "tpu.trace_stop"() : () -> ()
    %cst_17 = arith.constant 0.353553385 : f32
    %43 = vector.broadcast %cst_17 : f32 to vector<8x8x8xf32>
    %44 = arith.mulf %42, %43 : vector<8x8x8xf32>
    %45 = vector.shape_cast %13 : vector<8x8xf32> to vector<1x8x8xf32>
    %46 = vector.broadcast %45 : vector<1x8x8xf32> to vector<8x8x8xf32>
    %47 = arith.addf %44, %46 : vector<8x8x8xf32>
    %cst_18 = arith.constant dense<0xFF800000> : vector<8x8xf32>
    %48 = vector.multi_reduction <maximumf>, %47, %cst_18 [2] : vector<8x8x8xf32> to vector<8x8xf32>
    %49 = vector.shape_cast %48 : vector<8x8xf32> to vector<8x8x1xf32>
    %50 = vector.broadcast %49 : vector<8x8x1xf32> to vector<8x8x8xf32>
    %51 = arith.subf %47, %50 : vector<8x8x8xf32>
    %52 = math.exp %51 : vector<8x8x8xf32>
    %cst_19 = arith.constant dense<0.000000e+00> : vector<8x8xf32>
    %53 = vector.multi_reduction <add>, %52, %cst_19 [2] : vector<8x8x8xf32> to vector<8x8xf32>
    %54 = vector.shape_cast %53 : vector<8x8xf32> to vector<8x8x1xf32>
    %55 = tpu.reciprocal %54 {approx = true} : vector<8x8x1xf32> -> vector<8x8x1xf32>
    %56 = vector.broadcast %55 : vector<8x8x1xf32> to vector<8x8x8xf32>
    %57 = arith.mulf %52, %56 : vector<8x8x8xf32>
    "tpu.trace_start"() <{level = 10 : i32, message = "bqk,bkd->bqd"}> : () -> ()
    %cst_20 = arith.constant dense<0.000000e+00> : vector<8x8x8xf32>
    %58 = tpu.matmul %57, %41, %cst_20 {dimension_numbers = #tpu.dot_dimension_numbers<[2], [1], [1], [2], [0, 0, 0, 1, 1, 2], [0], [0]>} : vector<8x8x8xf32>, vector<8x8x8xf32>, vector<8x8x8xf32> -> vector<8x8x8xf32>
    "tpu.trace_stop"() : () -> ()
    %59 = vector.extract_strided_slice %58 {offsets = [0, 0, 0], sizes = [2, 8, 8], strides = [1, 1, 1]} : vector<8x8x8xf32> to vector<2x8x8xf32>
    %60 = vector.shape_cast %59 : vector<2x8x8xf32> to vector<16x8xf32>
    %c0_21 = arith.constant 0 : index
    %c0_22 = arith.constant 0 : index
    %c0_23 = arith.constant 0 : index
    %c0_24 = arith.constant 0 : index
    %c0_25 = arith.constant 0 : index
    %61 = vector.load %arg6[%c0_21, %c0_22, %c0_23, %c0_24, %c0_25] : memref<2x2x4x8x32xf32, #tpu.memory_space<vmem>>, vector<1x1x1x8x32xf32>
    %62 = vector.shape_cast %61 : vector<1x1x1x8x32xf32> to vector<8x32xf32>
    %cst_26 = arith.constant dense<0.000000e+00> : vector<16x32xf32>
    %63 = tpu.matmul %60, %62, %cst_26 {dimension_numbers = #tpu.dot_dimension_numbers<[1], [0], [0], [1], [0, 0, 1, 1], [], []>} : vector<16x8xf32>, vector<8x32xf32>, vector<16x32xf32> -> vector<16x32xf32>
    %64 = vector.extract_strided_slice %58 {offsets = [2, 0, 0], sizes = [2, 8, 8], strides = [1, 1, 1]} : vector<8x8x8xf32> to vector<2x8x8xf32>
    %65 = vector.shape_cast %64 : vector<2x8x8xf32> to vector<16x8xf32>
    %c0_27 = arith.constant 0 : index
    %c0_28 = arith.constant 0 : index
    %c1 = arith.constant 1 : index
    %c0_29 = arith.constant 0 : index
    %c0_30 = arith.constant 0 : index
    %66 = vector.load %arg6[%c0_27, %c0_28, %c1, %c0_29, %c0_30] : memref<2x2x4x8x32xf32, #tpu.memory_space<vmem>>, vector<1x1x1x8x32xf32>
    %67 = vector.shape_cast %66 : vector<1x1x1x8x32xf32> to vector<8x32xf32>
    %cst_31 = arith.constant dense<0.000000e+00> : vector<16x32xf32>
    %68 = tpu.matmul %65, %67, %cst_31 {dimension_numbers = #tpu.dot_dimension_numbers<[1], [0], [0], [1], [0, 0, 1, 1], [], []>} : vector<16x8xf32>, vector<8x32xf32>, vector<16x32xf32> -> vector<16x32xf32>
    %69 = arith.addf %63, %68 : vector<16x32xf32>
    %70 = vector.extract_strided_slice %58 {offsets = [4, 0, 0], sizes = [2, 8, 8], strides = [1, 1, 1]} : vector<8x8x8xf32> to vector<2x8x8xf32>
    %71 = vector.shape_cast %70 : vector<2x8x8xf32> to vector<16x8xf32>
    %c0_32 = arith.constant 0 : index
    %c0_33 = arith.constant 0 : index
    %c2 = arith.constant 2 : index
    %c0_34 = arith.constant 0 : index
    %c0_35 = arith.constant 0 : index
    %72 = vector.load %arg6[%c0_32, %c0_33, %c2, %c0_34, %c0_35] : memref<2x2x4x8x32xf32, #tpu.memory_space<vmem>>, vector<1x1x1x8x32xf32>
    %73 = vector.shape_cast %72 : vector<1x1x1x8x32xf32> to vector<8x32xf32>
    %cst_36 = arith.constant dense<0.000000e+00> : vector<16x32xf32>
    %74 = tpu.matmul %71, %73, %cst_36 {dimension_numbers = #tpu.dot_dimension_numbers<[1], [0], [0], [1], [0, 0, 1, 1], [], []>} : vector<16x8xf32>, vector<8x32xf32>, vector<16x32xf32> -> vector<16x32xf32>
    %75 = arith.addf %69, %74 : vector<16x32xf32>
    %76 = vector.extract_strided_slice %58 {offsets = [6, 0, 0], sizes = [2, 8, 8], strides = [1, 1, 1]} : vector<8x8x8xf32> to vector<2x8x8xf32>
    %77 = vector.shape_cast %76 : vector<2x8x8xf32> to vector<16x8xf32>
    %c0_37 = arith.constant 0 : index
    %c0_38 = arith.constant 0 : index
    %c3 = arith.constant 3 : index
    %c0_39 = arith.constant 0 : index
    %c0_40 = arith.constant 0 : index
    %78 = vector.load %arg6[%c0_37, %c0_38, %c3, %c0_39, %c0_40] : memref<2x2x4x8x32xf32, #tpu.memory_space<vmem>>, vector<1x1x1x8x32xf32>
    %79 = vector.shape_cast %78 : vector<1x1x1x8x32xf32> to vector<8x32xf32>
    %cst_41 = arith.constant dense<0.000000e+00> : vector<16x32xf32>
    %80 = tpu.matmul %77, %79, %cst_41 {dimension_numbers = #tpu.dot_dimension_numbers<[1], [0], [0], [1], [0, 0, 1, 1], [], []>} : vector<16x8xf32>, vector<8x32xf32>, vector<16x32xf32> -> vector<16x32xf32>
    %81 = arith.addf %75, %80 : vector<16x32xf32>
    %c0_42 = arith.constant 0 : index
    %c0_43 = arith.constant 0 : index
    %c0_44 = arith.constant 0 : index
    %82 = vector.load %arg7[%c0_42, %c0_43, %c0_44] : memref<2x2x32xf32, #tpu.memory_space<vmem>>, vector<1x1x32xf32>
    %83 = vector.shape_cast %82 : vector<1x1x32xf32> to vector<1x32xf32>
    %84 = vector.broadcast %83 : vector<1x32xf32> to vector<16x32xf32>
    %85 = arith.addf %81, %84 : vector<16x32xf32>
    %86 = arith.addf %5, %85 : vector<16x32xf32>
    %c0_45 = arith.constant 0 : index
    %c0_46 = arith.constant 0 : index
    %c0_47 = arith.constant 0 : index
    %87 = vector.load %arg12[%c0_45, %c0_46, %c0_47] : memref<2x7x32xf32, #tpu.memory_space<vmem>>, vector<1x1x32xf32>
    %88 = vector.shape_cast %87 : vector<1x1x32xf32> to vector<1x32xf32>
    %c1_48 = arith.constant 1 : index
    %c0_49 = arith.constant 0 : index
    %c0_50 = arith.constant 0 : index
    %89 = vector.load %arg12[%c1_48, %c0_49, %c0_50] : memref<2x7x32xf32, #tpu.memory_space<vmem>>, vector<1x1x32xf32>
    %90 = vector.shape_cast %89 : vector<1x1x32xf32> to vector<1x32xf32>
    %cst_51 = arith.constant dense<0.000000e+00> : vector<16xf32>
    %91 = vector.multi_reduction <add>, %86, %cst_51 [1] : vector<16x32xf32> to vector<16xf32>
    %92 = vector.shape_cast %91 : vector<16xf32> to vector<16x1xf32>
    %cst_52 = arith.constant 3.200000e+01 : f32
    %93 = vector.broadcast %cst_52 : f32 to vector<16x1xf32>
    %94 = arith.divf %92, %93 : vector<16x1xf32>
    %95 = vector.broadcast %94 : vector<16x1xf32> to vector<16x32xf32>
    %96 = arith.subf %86, %95 : vector<16x32xf32>
    %97 = arith.mulf %96, %96 : vector<16x32xf32>
    %cst_53 = arith.constant dense<0.000000e+00> : vector<16xf32>
    %98 = vector.multi_reduction <add>, %97, %cst_53 [1] : vector<16x32xf32> to vector<16xf32>
    %99 = vector.shape_cast %98 : vector<16xf32> to vector<16x1xf32>
    %cst_54 = arith.constant 3.200000e+01 : f32
    %100 = vector.broadcast %cst_54 : f32 to vector<16x1xf32>
    %101 = arith.divf %99, %100 : vector<16x1xf32>
    %102 = vector.broadcast %94 : vector<16x1xf32> to vector<16x32xf32>
    %103 = arith.subf %86, %102 : vector<16x32xf32>
    %cst_55 = arith.constant 9.99999974E-6 : f32
    %104 = vector.broadcast %cst_55 : f32 to vector<16x1xf32>
    %105 = arith.addf %101, %104 : vector<16x1xf32>
    %106 = math.rsqrt %105 : vector<16x1xf32>
    %107 = vector.broadcast %106 : vector<16x1xf32> to vector<16x32xf32>
    %108 = arith.mulf %103, %107 : vector<16x32xf32>
    %109 = vector.broadcast %88 : vector<1x32xf32> to vector<16x32xf32>
    %110 = arith.mulf %108, %109 : vector<16x32xf32>
    %111 = vector.broadcast %90 : vector<1x32xf32> to vector<16x32xf32>
    %112 = arith.addf %110, %111 : vector<16x32xf32>
    %c1_56 = arith.constant 1 : index
    %c0_57 = arith.constant 0 : index
    %c0_58 = arith.constant 0 : index
    %c0_59 = arith.constant 0 : index
    %113 = vector.load %arg4[%c1_56, %c0_57, %c0_58, %c0_59] : memref<2x2x32x96xf32, #tpu.memory_space<vmem>>, vector<1x1x32x96xf32>
    %114 = vector.shape_cast %113 : vector<1x1x32x96xf32> to vector<32x96xf32>
    %c1_60 = arith.constant 1 : index
    %c0_61 = arith.constant 0 : index
    %c0_62 = arith.constant 0 : index
    %115 = vector.load %arg5[%c1_60, %c0_61, %c0_62] : memref<2x2x96xf32, #tpu.memory_space<vmem>>, vector<1x1x96xf32>
    %116 = vector.shape_cast %115 : vector<1x1x96xf32> to vector<1x96xf32>
    %117 = vector.extract_strided_slice %114 {offsets = [0, 0], sizes = [32, 32], strides = [1, 1]} : vector<32x96xf32> to vector<32x32xf32>
    %cst_63 = arith.constant dense<0.000000e+00> : vector<16x32xf32>
    %118 = tpu.matmul %112, %117, %cst_63 {dimension_numbers = #tpu.dot_dimension_numbers<[1], [0], [0], [1], [0, 0, 1, 1], [], []>} : vector<16x32xf32>, vector<32x32xf32>, vector<16x32xf32> -> vector<16x32xf32>
    %119 = vector.extract_strided_slice %116 {offsets = [0, 0], sizes = [1, 32], strides = [1, 1]} : vector<1x96xf32> to vector<1x32xf32>
    %120 = vector.broadcast %119 : vector<1x32xf32> to vector<16x32xf32>
    %121 = arith.addf %118, %120 : vector<16x32xf32>
    %122 = vector.extract_strided_slice %114 {offsets = [0, 32], sizes = [32, 64], strides = [1, 1]} : vector<32x96xf32> to vector<32x64xf32>
    %cst_64 = arith.constant dense<0.000000e+00> : vector<16x64xf32>
    %123 = tpu.matmul %7, %122, %cst_64 {dimension_numbers = #tpu.dot_dimension_numbers<[1], [0], [0], [1], [0, 0, 1, 1], [], []>} : vector<16x32xf32>, vector<32x64xf32>, vector<16x64xf32> -> vector<16x64xf32>
    %124 = vector.extract_strided_slice %116 {offsets = [0, 32], sizes = [1, 64], strides = [1, 1]} : vector<1x96xf32> to vector<1x64xf32>
    %125 = vector.broadcast %124 : vector<1x64xf32> to vector<16x64xf32>
    %126 = arith.addf %123, %125 : vector<16x64xf32>
    %127 = vector.extract_strided_slice %126 {offsets = [0, 0], sizes = [16, 32], strides = [1, 1]} : vector<16x64xf32> to vector<16x32xf32>
    %128 = vector.extract_strided_slice %126 {offsets = [0, 32], sizes = [16, 32], strides = [1, 1]} : vector<16x64xf32> to vector<16x32xf32>
    %129 = vector.shape_cast %121 : vector<16x32xf32> to vector<2x8x32xf32>
    %130 = vector.shape_cast %127 : vector<16x32xf32> to vector<2x8x32xf32>
    %131 = vector.shape_cast %128 : vector<16x32xf32> to vector<2x8x32xf32>
    %132 = vector.extract_strided_slice %129 {offsets = [0, 0, 0], sizes = [2, 8, 8], strides = [1, 1, 1]} : vector<2x8x32xf32> to vector<2x8x8xf32>
    %133 = vector.extract_strided_slice %129 {offsets = [0, 0, 8], sizes = [2, 8, 8], strides = [1, 1, 1]} : vector<2x8x32xf32> to vector<2x8x8xf32>
    %134 = vector.extract_strided_slice %129 {offsets = [0, 0, 16], sizes = [2, 8, 8], strides = [1, 1, 1]} : vector<2x8x32xf32> to vector<2x8x8xf32>
    %135 = vector.extract_strided_slice %129 {offsets = [0, 0, 24], sizes = [2, 8, 8], strides = [1, 1, 1]} : vector<2x8x32xf32> to vector<2x8x8xf32>
    %136 = tpu.concatenate %132, %133, %134, %135 in 0 : vector<2x8x8xf32>, vector<2x8x8xf32>, vector<2x8x8xf32>, vector<2x8x8xf32> -> vector<8x8x8xf32>
    %137 = vector.extract_strided_slice %130 {offsets = [0, 0, 0], sizes = [2, 8, 8], strides = [1, 1, 1]} : vector<2x8x32xf32> to vector<2x8x8xf32>
    %138 = vector.extract_strided_slice %130 {offsets = [0, 0, 8], sizes = [2, 8, 8], strides = [1, 1, 1]} : vector<2x8x32xf32> to vector<2x8x8xf32>
    %139 = vector.extract_strided_slice %130 {offsets = [0, 0, 16], sizes = [2, 8, 8], strides = [1, 1, 1]} : vector<2x8x32xf32> to vector<2x8x8xf32>
    %140 = vector.extract_strided_slice %130 {offsets = [0, 0, 24], sizes = [2, 8, 8], strides = [1, 1, 1]} : vector<2x8x32xf32> to vector<2x8x8xf32>
    %141 = tpu.concatenate %137, %138, %139, %140 in 0 : vector<2x8x8xf32>, vector<2x8x8xf32>, vector<2x8x8xf32>, vector<2x8x8xf32> -> vector<8x8x8xf32>
    %142 = vector.extract_strided_slice %131 {offsets = [0, 0, 0], sizes = [2, 8, 8], strides = [1, 1, 1]} : vector<2x8x32xf32> to vector<2x8x8xf32>
    %143 = vector.extract_strided_slice %131 {offsets = [0, 0, 8], sizes = [2, 8, 8], strides = [1, 1, 1]} : vector<2x8x32xf32> to vector<2x8x8xf32>
    %144 = vector.extract_strided_slice %131 {offsets = [0, 0, 16], sizes = [2, 8, 8], strides = [1, 1, 1]} : vector<2x8x32xf32> to vector<2x8x8xf32>
    %145 = vector.extract_strided_slice %131 {offsets = [0, 0, 24], sizes = [2, 8, 8], strides = [1, 1, 1]} : vector<2x8x32xf32> to vector<2x8x8xf32>
    %146 = tpu.concatenate %142, %143, %144, %145 in 0 : vector<2x8x8xf32>, vector<2x8x8xf32>, vector<2x8x8xf32>, vector<2x8x8xf32> -> vector<8x8x8xf32>
    "tpu.trace_start"() <{level = 10 : i32, message = "bqd,bkd->bqk"}> : () -> ()
    %cst_65 = arith.constant dense<0.000000e+00> : vector<8x8x8xf32>
    %147 = tpu.matmul %136, %141, %cst_65 {dimension_numbers = #tpu.dot_dimension_numbers<[2], [2], [1], [1], [0, 0, 0, 1, 1, 1], [0], [0]>} : vector<8x8x8xf32>, vector<8x8x8xf32>, vector<8x8x8xf32> -> vector<8x8x8xf32>
    "tpu.trace_stop"() : () -> ()
    %cst_66 = arith.constant 0.353553385 : f32
    %148 = vector.broadcast %cst_66 : f32 to vector<8x8x8xf32>
    %149 = arith.mulf %147, %148 : vector<8x8x8xf32>
    %cst_67 = arith.constant dense<0xFF800000> : vector<8x8xf32>
    %150 = vector.multi_reduction <maximumf>, %149, %cst_67 [2] : vector<8x8x8xf32> to vector<8x8xf32>
    %151 = vector.shape_cast %150 : vector<8x8xf32> to vector<8x8x1xf32>
    %152 = vector.broadcast %151 : vector<8x8x1xf32> to vector<8x8x8xf32>
    %153 = arith.subf %149, %152 : vector<8x8x8xf32>
    %154 = math.exp %153 : vector<8x8x8xf32>
    %cst_68 = arith.constant dense<0.000000e+00> : vector<8x8xf32>
    %155 = vector.multi_reduction <add>, %154, %cst_68 [2] : vector<8x8x8xf32> to vector<8x8xf32>
    %156 = vector.shape_cast %155 : vector<8x8xf32> to vector<8x8x1xf32>
    %157 = tpu.reciprocal %156 {approx = true} : vector<8x8x1xf32> -> vector<8x8x1xf32>
    %158 = vector.broadcast %157 : vector<8x8x1xf32> to vector<8x8x8xf32>
    %159 = arith.mulf %154, %158 : vector<8x8x8xf32>
    "tpu.trace_start"() <{level = 10 : i32, message = "bqk,bkd->bqd"}> : () -> ()
    %cst_69 = arith.constant dense<0.000000e+00> : vector<8x8x8xf32>
    %160 = tpu.matmul %159, %146, %cst_69 {dimension_numbers = #tpu.dot_dimension_numbers<[2], [1], [1], [2], [0, 0, 0, 1, 1, 2], [0], [0]>} : vector<8x8x8xf32>, vector<8x8x8xf32>, vector<8x8x8xf32> -> vector<8x8x8xf32>
    "tpu.trace_stop"() : () -> ()
    %161 = vector.extract_strided_slice %160 {offsets = [0, 0, 0], sizes = [2, 8, 8], strides = [1, 1, 1]} : vector<8x8x8xf32> to vector<2x8x8xf32>
    %162 = vector.shape_cast %161 : vector<2x8x8xf32> to vector<16x8xf32>
    %c1_70 = arith.constant 1 : index
    %c0_71 = arith.constant 0 : index
    %c0_72 = arith.constant 0 : index
    %c0_73 = arith.constant 0 : index
    %c0_74 = arith.constant 0 : index
    %163 = vector.load %arg6[%c1_70, %c0_71, %c0_72, %c0_73, %c0_74] : memref<2x2x4x8x32xf32, #tpu.memory_space<vmem>>, vector<1x1x1x8x32xf32>
    %164 = vector.shape_cast %163 : vector<1x1x1x8x32xf32> to vector<8x32xf32>
    %cst_75 = arith.constant dense<0.000000e+00> : vector<16x32xf32>
    %165 = tpu.matmul %162, %164, %cst_75 {dimension_numbers = #tpu.dot_dimension_numbers<[1], [0], [0], [1], [0, 0, 1, 1], [], []>} : vector<16x8xf32>, vector<8x32xf32>, vector<16x32xf32> -> vector<16x32xf32>
    %166 = vector.extract_strided_slice %160 {offsets = [2, 0, 0], sizes = [2, 8, 8], strides = [1, 1, 1]} : vector<8x8x8xf32> to vector<2x8x8xf32>
    %167 = vector.shape_cast %166 : vector<2x8x8xf32> to vector<16x8xf32>
    %c1_76 = arith.constant 1 : index
    %c0_77 = arith.constant 0 : index
    %c1_78 = arith.constant 1 : index
    %c0_79 = arith.constant 0 : index
    %c0_80 = arith.constant 0 : index
    %168 = vector.load %arg6[%c1_76, %c0_77, %c1_78, %c0_79, %c0_80] : memref<2x2x4x8x32xf32, #tpu.memory_space<vmem>>, vector<1x1x1x8x32xf32>
    %169 = vector.shape_cast %168 : vector<1x1x1x8x32xf32> to vector<8x32xf32>
    %cst_81 = arith.constant dense<0.000000e+00> : vector<16x32xf32>
    %170 = tpu.matmul %167, %169, %cst_81 {dimension_numbers = #tpu.dot_dimension_numbers<[1], [0], [0], [1], [0, 0, 1, 1], [], []>} : vector<16x8xf32>, vector<8x32xf32>, vector<16x32xf32> -> vector<16x32xf32>
    %171 = arith.addf %165, %170 : vector<16x32xf32>
    %172 = vector.extract_strided_slice %160 {offsets = [4, 0, 0], sizes = [2, 8, 8], strides = [1, 1, 1]} : vector<8x8x8xf32> to vector<2x8x8xf32>
    %173 = vector.shape_cast %172 : vector<2x8x8xf32> to vector<16x8xf32>
    %c1_82 = arith.constant 1 : index
    %c0_83 = arith.constant 0 : index
    %c2_84 = arith.constant 2 : index
    %c0_85 = arith.constant 0 : index
    %c0_86 = arith.constant 0 : index
    %174 = vector.load %arg6[%c1_82, %c0_83, %c2_84, %c0_85, %c0_86] : memref<2x2x4x8x32xf32, #tpu.memory_space<vmem>>, vector<1x1x1x8x32xf32>
    %175 = vector.shape_cast %174 : vector<1x1x1x8x32xf32> to vector<8x32xf32>
    %cst_87 = arith.constant dense<0.000000e+00> : vector<16x32xf32>
    %176 = tpu.matmul %173, %175, %cst_87 {dimension_numbers = #tpu.dot_dimension_numbers<[1], [0], [0], [1], [0, 0, 1, 1], [], []>} : vector<16x8xf32>, vector<8x32xf32>, vector<16x32xf32> -> vector<16x32xf32>
    %177 = arith.addf %171, %176 : vector<16x32xf32>
    %178 = vector.extract_strided_slice %160 {offsets = [6, 0, 0], sizes = [2, 8, 8], strides = [1, 1, 1]} : vector<8x8x8xf32> to vector<2x8x8xf32>
    %179 = vector.shape_cast %178 : vector<2x8x8xf32> to vector<16x8xf32>
    %c1_88 = arith.constant 1 : index
    %c0_89 = arith.constant 0 : index
    %c3_90 = arith.constant 3 : index
    %c0_91 = arith.constant 0 : index
    %c0_92 = arith.constant 0 : index
    %180 = vector.load %arg6[%c1_88, %c0_89, %c3_90, %c0_91, %c0_92] : memref<2x2x4x8x32xf32, #tpu.memory_space<vmem>>, vector<1x1x1x8x32xf32>
    %181 = vector.shape_cast %180 : vector<1x1x1x8x32xf32> to vector<8x32xf32>
    %cst_93 = arith.constant dense<0.000000e+00> : vector<16x32xf32>
    %182 = tpu.matmul %179, %181, %cst_93 {dimension_numbers = #tpu.dot_dimension_numbers<[1], [0], [0], [1], [0, 0, 1, 1], [], []>} : vector<16x8xf32>, vector<8x32xf32>, vector<16x32xf32> -> vector<16x32xf32>
    %183 = arith.addf %177, %182 : vector<16x32xf32>
    %c1_94 = arith.constant 1 : index
    %c0_95 = arith.constant 0 : index
    %c0_96 = arith.constant 0 : index
    %184 = vector.load %arg7[%c1_94, %c0_95, %c0_96] : memref<2x2x32xf32, #tpu.memory_space<vmem>>, vector<1x1x32xf32>
    %185 = vector.shape_cast %184 : vector<1x1x32xf32> to vector<1x32xf32>
    %186 = vector.broadcast %185 : vector<1x32xf32> to vector<16x32xf32>
    %187 = arith.addf %183, %186 : vector<16x32xf32>
    %188 = arith.addf %112, %187 : vector<16x32xf32>
    %c0_97 = arith.constant 0 : index
    %c1_98 = arith.constant 1 : index
    %c0_99 = arith.constant 0 : index
    %189 = vector.load %arg12[%c0_97, %c1_98, %c0_99] : memref<2x7x32xf32, #tpu.memory_space<vmem>>, vector<1x1x32xf32>
    %190 = vector.shape_cast %189 : vector<1x1x32xf32> to vector<1x32xf32>
    %c1_100 = arith.constant 1 : index
    %c1_101 = arith.constant 1 : index
    %c0_102 = arith.constant 0 : index
    %191 = vector.load %arg12[%c1_100, %c1_101, %c0_102] : memref<2x7x32xf32, #tpu.memory_space<vmem>>, vector<1x1x32xf32>
    %192 = vector.shape_cast %191 : vector<1x1x32xf32> to vector<1x32xf32>
    %cst_103 = arith.constant dense<0.000000e+00> : vector<16xf32>
    %193 = vector.multi_reduction <add>, %188, %cst_103 [1] : vector<16x32xf32> to vector<16xf32>
    %194 = vector.shape_cast %193 : vector<16xf32> to vector<16x1xf32>
    %cst_104 = arith.constant 3.200000e+01 : f32
    %195 = vector.broadcast %cst_104 : f32 to vector<16x1xf32>
    %196 = arith.divf %194, %195 : vector<16x1xf32>
    %197 = vector.broadcast %196 : vector<16x1xf32> to vector<16x32xf32>
    %198 = arith.subf %188, %197 : vector<16x32xf32>
    %199 = arith.mulf %198, %198 : vector<16x32xf32>
    %cst_105 = arith.constant dense<0.000000e+00> : vector<16xf32>
    %200 = vector.multi_reduction <add>, %199, %cst_105 [1] : vector<16x32xf32> to vector<16xf32>
    %201 = vector.shape_cast %200 : vector<16xf32> to vector<16x1xf32>
    %cst_106 = arith.constant 3.200000e+01 : f32
    %202 = vector.broadcast %cst_106 : f32 to vector<16x1xf32>
    %203 = arith.divf %201, %202 : vector<16x1xf32>
    %204 = vector.broadcast %196 : vector<16x1xf32> to vector<16x32xf32>
    %205 = arith.subf %188, %204 : vector<16x32xf32>
    %cst_107 = arith.constant 9.99999974E-6 : f32
    %206 = vector.broadcast %cst_107 : f32 to vector<16x1xf32>
    %207 = arith.addf %203, %206 : vector<16x1xf32>
    %208 = math.rsqrt %207 : vector<16x1xf32>
    %209 = vector.broadcast %208 : vector<16x1xf32> to vector<16x32xf32>
    %210 = arith.mulf %205, %209 : vector<16x32xf32>
    %211 = vector.broadcast %190 : vector<1x32xf32> to vector<16x32xf32>
    %212 = arith.mulf %210, %211 : vector<16x32xf32>
    %213 = vector.broadcast %192 : vector<1x32xf32> to vector<16x32xf32>
    %214 = arith.addf %212, %213 : vector<16x32xf32>
    %c0_108 = arith.constant 0 : index
    %c0_109 = arith.constant 0 : index
    %c0_110 = arith.constant 0 : index
    %215 = vector.load %arg8[%c0_108, %c0_109, %c0_110] : memref<2x32x64xf32, #tpu.memory_space<vmem>>, vector<1x32x64xf32>
    %216 = vector.shape_cast %215 : vector<1x32x64xf32> to vector<32x64xf32>
    %cst_111 = arith.constant dense<0.000000e+00> : vector<16x64xf32>
    %217 = tpu.matmul %214, %216, %cst_111 {dimension_numbers = #tpu.dot_dimension_numbers<[1], [0], [0], [1], [0, 0, 1, 1], [], []>} : vector<16x32xf32>, vector<32x64xf32>, vector<16x64xf32> -> vector<16x64xf32>
    %c0_112 = arith.constant 0 : index
    %c0_113 = arith.constant 0 : index
    %218 = vector.load %arg9[%c0_112, %c0_113] : memref<2x64xf32, #tpu.memory_space<vmem>>, vector<1x64xf32>
    %219 = vector.broadcast %218 : vector<1x64xf32> to vector<16x64xf32>
    %220 = arith.addf %217, %219 : vector<16x64xf32>
    %cst_114 = arith.constant 0.000000e+00 : f32
    %221 = vector.broadcast %cst_114 : f32 to vector<16x64xf32>
    %222 = arith.maximumf %220, %221 : vector<16x64xf32>
    %c0_115 = arith.constant 0 : index
    %c0_116 = arith.constant 0 : index
    %c0_117 = arith.constant 0 : index
    %223 = vector.load %arg10[%c0_115, %c0_116, %c0_117] : memref<2x64x32xf32, #tpu.memory_space<vmem>>, vector<1x64x32xf32>
    %224 = vector.shape_cast %223 : vector<1x64x32xf32> to vector<64x32xf32>
    %cst_118 = arith.constant dense<0.000000e+00> : vector<16x32xf32>
    %225 = tpu.matmul %222, %224, %cst_118 {dimension_numbers = #tpu.dot_dimension_numbers<[1], [0], [0], [1], [0, 0, 1, 1], [], []>} : vector<16x64xf32>, vector<64x32xf32>, vector<16x32xf32> -> vector<16x32xf32>
    %c0_119 = arith.constant 0 : index
    %c0_120 = arith.constant 0 : index
    %226 = vector.load %arg11[%c0_119, %c0_120] : memref<2x32xf32, #tpu.memory_space<vmem>>, vector<1x32xf32>
    %227 = vector.broadcast %226 : vector<1x32xf32> to vector<16x32xf32>
    %228 = arith.addf %225, %227 : vector<16x32xf32>
    %229 = arith.addf %214, %228 : vector<16x32xf32>
    %c0_121 = arith.constant 0 : index
    %c2_122 = arith.constant 2 : index
    %c0_123 = arith.constant 0 : index
    %230 = vector.load %arg12[%c0_121, %c2_122, %c0_123] : memref<2x7x32xf32, #tpu.memory_space<vmem>>, vector<1x1x32xf32>
    %231 = vector.shape_cast %230 : vector<1x1x32xf32> to vector<1x32xf32>
    %c1_124 = arith.constant 1 : index
    %c2_125 = arith.constant 2 : index
    %c0_126 = arith.constant 0 : index
    %232 = vector.load %arg12[%c1_124, %c2_125, %c0_126] : memref<2x7x32xf32, #tpu.memory_space<vmem>>, vector<1x1x32xf32>
    %233 = vector.shape_cast %232 : vector<1x1x32xf32> to vector<1x32xf32>
    %cst_127 = arith.constant dense<0.000000e+00> : vector<16xf32>
    %234 = vector.multi_reduction <add>, %229, %cst_127 [1] : vector<16x32xf32> to vector<16xf32>
    %235 = vector.shape_cast %234 : vector<16xf32> to vector<16x1xf32>
    %cst_128 = arith.constant 3.200000e+01 : f32
    %236 = vector.broadcast %cst_128 : f32 to vector<16x1xf32>
    %237 = arith.divf %235, %236 : vector<16x1xf32>
    %238 = vector.broadcast %237 : vector<16x1xf32> to vector<16x32xf32>
    %239 = arith.subf %229, %238 : vector<16x32xf32>
    %240 = arith.mulf %239, %239 : vector<16x32xf32>
    %cst_129 = arith.constant dense<0.000000e+00> : vector<16xf32>
    %241 = vector.multi_reduction <add>, %240, %cst_129 [1] : vector<16x32xf32> to vector<16xf32>
    %242 = vector.shape_cast %241 : vector<16xf32> to vector<16x1xf32>
    %cst_130 = arith.constant 3.200000e+01 : f32
    %243 = vector.broadcast %cst_130 : f32 to vector<16x1xf32>
    %244 = arith.divf %242, %243 : vector<16x1xf32>
    %245 = vector.broadcast %237 : vector<16x1xf32> to vector<16x32xf32>
    %246 = arith.subf %229, %245 : vector<16x32xf32>
    %cst_131 = arith.constant 9.99999974E-6 : f32
    %247 = vector.broadcast %cst_131 : f32 to vector<16x1xf32>
    %248 = arith.addf %244, %247 : vector<16x1xf32>
    %249 = math.rsqrt %248 : vector<16x1xf32>
    %250 = vector.broadcast %249 : vector<16x1xf32> to vector<16x32xf32>
    %251 = arith.mulf %246, %250 : vector<16x32xf32>
    %252 = vector.broadcast %231 : vector<1x32xf32> to vector<16x32xf32>
    %253 = arith.mulf %251, %252 : vector<16x32xf32>
    %254 = vector.broadcast %233 : vector<1x32xf32> to vector<16x32xf32>
    %255 = arith.addf %253, %254 : vector<16x32xf32>
    %c0_132 = arith.constant 0 : index
    %c1_133 = arith.constant 1 : index
    %c0_134 = arith.constant 0 : index
    %c0_135 = arith.constant 0 : index
    %256 = vector.load %arg4[%c0_132, %c1_133, %c0_134, %c0_135] : memref<2x2x32x96xf32, #tpu.memory_space<vmem>>, vector<1x1x32x96xf32>
    %257 = vector.shape_cast %256 : vector<1x1x32x96xf32> to vector<32x96xf32>
    %cst_136 = arith.constant dense<0.000000e+00> : vector<16x96xf32>
    %258 = tpu.matmul %255, %257, %cst_136 {dimension_numbers = #tpu.dot_dimension_numbers<[1], [0], [0], [1], [0, 0, 1, 1], [], []>} : vector<16x32xf32>, vector<32x96xf32>, vector<16x96xf32> -> vector<16x96xf32>
    %c0_137 = arith.constant 0 : index
    %c1_138 = arith.constant 1 : index
    %c0_139 = arith.constant 0 : index
    %259 = vector.load %arg5[%c0_137, %c1_138, %c0_139] : memref<2x2x96xf32, #tpu.memory_space<vmem>>, vector<1x1x96xf32>
    %260 = vector.shape_cast %259 : vector<1x1x96xf32> to vector<1x96xf32>
    %261 = vector.broadcast %260 : vector<1x96xf32> to vector<16x96xf32>
    %262 = arith.addf %258, %261 : vector<16x96xf32>
    %263 = vector.extract_strided_slice %262 {offsets = [0, 0], sizes = [16, 32], strides = [1, 1]} : vector<16x96xf32> to vector<16x32xf32>
    %264 = vector.extract_strided_slice %262 {offsets = [0, 32], sizes = [16, 32], strides = [1, 1]} : vector<16x96xf32> to vector<16x32xf32>
    %265 = vector.extract_strided_slice %262 {offsets = [0, 64], sizes = [16, 32], strides = [1, 1]} : vector<16x96xf32> to vector<16x32xf32>
    %266 = vector.shape_cast %263 : vector<16x32xf32> to vector<2x8x32xf32>
    %267 = vector.shape_cast %264 : vector<16x32xf32> to vector<2x8x32xf32>
    %268 = vector.shape_cast %265 : vector<16x32xf32> to vector<2x8x32xf32>
    %269 = vector.extract_strided_slice %266 {offsets = [0, 0, 0], sizes = [2, 8, 8], strides = [1, 1, 1]} : vector<2x8x32xf32> to vector<2x8x8xf32>
    %270 = vector.extract_strided_slice %266 {offsets = [0, 0, 8], sizes = [2, 8, 8], strides = [1, 1, 1]} : vector<2x8x32xf32> to vector<2x8x8xf32>
    %271 = vector.extract_strided_slice %266 {offsets = [0, 0, 16], sizes = [2, 8, 8], strides = [1, 1, 1]} : vector<2x8x32xf32> to vector<2x8x8xf32>
    %272 = vector.extract_strided_slice %266 {offsets = [0, 0, 24], sizes = [2, 8, 8], strides = [1, 1, 1]} : vector<2x8x32xf32> to vector<2x8x8xf32>
    %273 = tpu.concatenate %269, %270, %271, %272 in 0 : vector<2x8x8xf32>, vector<2x8x8xf32>, vector<2x8x8xf32>, vector<2x8x8xf32> -> vector<8x8x8xf32>
    %274 = vector.extract_strided_slice %267 {offsets = [0, 0, 0], sizes = [2, 8, 8], strides = [1, 1, 1]} : vector<2x8x32xf32> to vector<2x8x8xf32>
    %275 = vector.extract_strided_slice %267 {offsets = [0, 0, 8], sizes = [2, 8, 8], strides = [1, 1, 1]} : vector<2x8x32xf32> to vector<2x8x8xf32>
    %276 = vector.extract_strided_slice %267 {offsets = [0, 0, 16], sizes = [2, 8, 8], strides = [1, 1, 1]} : vector<2x8x32xf32> to vector<2x8x8xf32>
    %277 = vector.extract_strided_slice %267 {offsets = [0, 0, 24], sizes = [2, 8, 8], strides = [1, 1, 1]} : vector<2x8x32xf32> to vector<2x8x8xf32>
    %278 = tpu.concatenate %274, %275, %276, %277 in 0 : vector<2x8x8xf32>, vector<2x8x8xf32>, vector<2x8x8xf32>, vector<2x8x8xf32> -> vector<8x8x8xf32>
    %279 = vector.extract_strided_slice %268 {offsets = [0, 0, 0], sizes = [2, 8, 8], strides = [1, 1, 1]} : vector<2x8x32xf32> to vector<2x8x8xf32>
    %280 = vector.extract_strided_slice %268 {offsets = [0, 0, 8], sizes = [2, 8, 8], strides = [1, 1, 1]} : vector<2x8x32xf32> to vector<2x8x8xf32>
    %281 = vector.extract_strided_slice %268 {offsets = [0, 0, 16], sizes = [2, 8, 8], strides = [1, 1, 1]} : vector<2x8x32xf32> to vector<2x8x8xf32>
    %282 = vector.extract_strided_slice %268 {offsets = [0, 0, 24], sizes = [2, 8, 8], strides = [1, 1, 1]} : vector<2x8x32xf32> to vector<2x8x8xf32>
    %283 = tpu.concatenate %279, %280, %281, %282 in 0 : vector<2x8x8xf32>, vector<2x8x8xf32>, vector<2x8x8xf32>, vector<2x8x8xf32> -> vector<8x8x8xf32>
    "tpu.trace_start"() <{level = 10 : i32, message = "bqd,bkd->bqk"}> : () -> ()
    %cst_140 = arith.constant dense<0.000000e+00> : vector<8x8x8xf32>
    %284 = tpu.matmul %273, %278, %cst_140 {dimension_numbers = #tpu.dot_dimension_numbers<[2], [2], [1], [1], [0, 0, 0, 1, 1, 1], [0], [0]>} : vector<8x8x8xf32>, vector<8x8x8xf32>, vector<8x8x8xf32> -> vector<8x8x8xf32>
    "tpu.trace_stop"() : () -> ()
    %cst_141 = arith.constant 0.353553385 : f32
    %285 = vector.broadcast %cst_141 : f32 to vector<8x8x8xf32>
    %286 = arith.mulf %284, %285 : vector<8x8x8xf32>
    %287 = vector.shape_cast %13 : vector<8x8xf32> to vector<1x8x8xf32>
    %288 = vector.broadcast %287 : vector<1x8x8xf32> to vector<8x8x8xf32>
    %289 = arith.addf %286, %288 : vector<8x8x8xf32>
    %cst_142 = arith.constant dense<0xFF800000> : vector<8x8xf32>
    %290 = vector.multi_reduction <maximumf>, %289, %cst_142 [2] : vector<8x8x8xf32> to vector<8x8xf32>
    %291 = vector.shape_cast %290 : vector<8x8xf32> to vector<8x8x1xf32>
    %292 = vector.broadcast %291 : vector<8x8x1xf32> to vector<8x8x8xf32>
    %293 = arith.subf %289, %292 : vector<8x8x8xf32>
    %294 = math.exp %293 : vector<8x8x8xf32>
    %cst_143 = arith.constant dense<0.000000e+00> : vector<8x8xf32>
    %295 = vector.multi_reduction <add>, %294, %cst_143 [2] : vector<8x8x8xf32> to vector<8x8xf32>
    %296 = vector.shape_cast %295 : vector<8x8xf32> to vector<8x8x1xf32>
    %297 = tpu.reciprocal %296 {approx = true} : vector<8x8x1xf32> -> vector<8x8x1xf32>
    %298 = vector.broadcast %297 : vector<8x8x1xf32> to vector<8x8x8xf32>
    %299 = arith.mulf %294, %298 : vector<8x8x8xf32>
    "tpu.trace_start"() <{level = 10 : i32, message = "bqk,bkd->bqd"}> : () -> ()
    %cst_144 = arith.constant dense<0.000000e+00> : vector<8x8x8xf32>
    %300 = tpu.matmul %299, %283, %cst_144 {dimension_numbers = #tpu.dot_dimension_numbers<[2], [1], [1], [2], [0, 0, 0, 1, 1, 2], [0], [0]>} : vector<8x8x8xf32>, vector<8x8x8xf32>, vector<8x8x8xf32> -> vector<8x8x8xf32>
    "tpu.trace_stop"() : () -> ()
    %301 = vector.extract_strided_slice %300 {offsets = [0, 0, 0], sizes = [2, 8, 8], strides = [1, 1, 1]} : vector<8x8x8xf32> to vector<2x8x8xf32>
    %302 = vector.shape_cast %301 : vector<2x8x8xf32> to vector<16x8xf32>
    %c0_145 = arith.constant 0 : index
    %c1_146 = arith.constant 1 : index
    %c0_147 = arith.constant 0 : index
    %c0_148 = arith.constant 0 : index
    %c0_149 = arith.constant 0 : index
    %303 = vector.load %arg6[%c0_145, %c1_146, %c0_147, %c0_148, %c0_149] : memref<2x2x4x8x32xf32, #tpu.memory_space<vmem>>, vector<1x1x1x8x32xf32>
    %304 = vector.shape_cast %303 : vector<1x1x1x8x32xf32> to vector<8x32xf32>
    %cst_150 = arith.constant dense<0.000000e+00> : vector<16x32xf32>
    %305 = tpu.matmul %302, %304, %cst_150 {dimension_numbers = #tpu.dot_dimension_numbers<[1], [0], [0], [1], [0, 0, 1, 1], [], []>} : vector<16x8xf32>, vector<8x32xf32>, vector<16x32xf32> -> vector<16x32xf32>
    %306 = vector.extract_strided_slice %300 {offsets = [2, 0, 0], sizes = [2, 8, 8], strides = [1, 1, 1]} : vector<8x8x8xf32> to vector<2x8x8xf32>
    %307 = vector.shape_cast %306 : vector<2x8x8xf32> to vector<16x8xf32>
    %c0_151 = arith.constant 0 : index
    %c1_152 = arith.constant 1 : index
    %c1_153 = arith.constant 1 : index
    %c0_154 = arith.constant 0 : index
    %c0_155 = arith.constant 0 : index
    %308 = vector.load %arg6[%c0_151, %c1_152, %c1_153, %c0_154, %c0_155] : memref<2x2x4x8x32xf32, #tpu.memory_space<vmem>>, vector<1x1x1x8x32xf32>
    %309 = vector.shape_cast %308 : vector<1x1x1x8x32xf32> to vector<8x32xf32>
    %cst_156 = arith.constant dense<0.000000e+00> : vector<16x32xf32>
    %310 = tpu.matmul %307, %309, %cst_156 {dimension_numbers = #tpu.dot_dimension_numbers<[1], [0], [0], [1], [0, 0, 1, 1], [], []>} : vector<16x8xf32>, vector<8x32xf32>, vector<16x32xf32> -> vector<16x32xf32>
    %311 = arith.addf %305, %310 : vector<16x32xf32>
    %312 = vector.extract_strided_slice %300 {offsets = [4, 0, 0], sizes = [2, 8, 8], strides = [1, 1, 1]} : vector<8x8x8xf32> to vector<2x8x8xf32>
    %313 = vector.shape_cast %312 : vector<2x8x8xf32> to vector<16x8xf32>
    %c0_157 = arith.constant 0 : index
    %c1_158 = arith.constant 1 : index
    %c2_159 = arith.constant 2 : index
    %c0_160 = arith.constant 0 : index
    %c0_161 = arith.constant 0 : index
    %314 = vector.load %arg6[%c0_157, %c1_158, %c2_159, %c0_160, %c0_161] : memref<2x2x4x8x32xf32, #tpu.memory_space<vmem>>, vector<1x1x1x8x32xf32>
    %315 = vector.shape_cast %314 : vector<1x1x1x8x32xf32> to vector<8x32xf32>
    %cst_162 = arith.constant dense<0.000000e+00> : vector<16x32xf32>
    %316 = tpu.matmul %313, %315, %cst_162 {dimension_numbers = #tpu.dot_dimension_numbers<[1], [0], [0], [1], [0, 0, 1, 1], [], []>} : vector<16x8xf32>, vector<8x32xf32>, vector<16x32xf32> -> vector<16x32xf32>
    %317 = arith.addf %311, %316 : vector<16x32xf32>
    %318 = vector.extract_strided_slice %300 {offsets = [6, 0, 0], sizes = [2, 8, 8], strides = [1, 1, 1]} : vector<8x8x8xf32> to vector<2x8x8xf32>
    %319 = vector.shape_cast %318 : vector<2x8x8xf32> to vector<16x8xf32>
    %c0_163 = arith.constant 0 : index
    %c1_164 = arith.constant 1 : index
    %c3_165 = arith.constant 3 : index
    %c0_166 = arith.constant 0 : index
    %c0_167 = arith.constant 0 : index
    %320 = vector.load %arg6[%c0_163, %c1_164, %c3_165, %c0_166, %c0_167] : memref<2x2x4x8x32xf32, #tpu.memory_space<vmem>>, vector<1x1x1x8x32xf32>
    %321 = vector.shape_cast %320 : vector<1x1x1x8x32xf32> to vector<8x32xf32>
    %cst_168 = arith.constant dense<0.000000e+00> : vector<16x32xf32>
    %322 = tpu.matmul %319, %321, %cst_168 {dimension_numbers = #tpu.dot_dimension_numbers<[1], [0], [0], [1], [0, 0, 1, 1], [], []>} : vector<16x8xf32>, vector<8x32xf32>, vector<16x32xf32> -> vector<16x32xf32>
    %323 = arith.addf %317, %322 : vector<16x32xf32>
    %c0_169 = arith.constant 0 : index
    %c1_170 = arith.constant 1 : index
    %c0_171 = arith.constant 0 : index
    %324 = vector.load %arg7[%c0_169, %c1_170, %c0_171] : memref<2x2x32xf32, #tpu.memory_space<vmem>>, vector<1x1x32xf32>
    %325 = vector.shape_cast %324 : vector<1x1x32xf32> to vector<1x32xf32>
    %326 = vector.broadcast %325 : vector<1x32xf32> to vector<16x32xf32>
    %327 = arith.addf %323, %326 : vector<16x32xf32>
    %328 = arith.addf %255, %327 : vector<16x32xf32>
    %c0_172 = arith.constant 0 : index
    %c3_173 = arith.constant 3 : index
    %c0_174 = arith.constant 0 : index
    %329 = vector.load %arg12[%c0_172, %c3_173, %c0_174] : memref<2x7x32xf32, #tpu.memory_space<vmem>>, vector<1x1x32xf32>
    %330 = vector.shape_cast %329 : vector<1x1x32xf32> to vector<1x32xf32>
    %c1_175 = arith.constant 1 : index
    %c3_176 = arith.constant 3 : index
    %c0_177 = arith.constant 0 : index
    %331 = vector.load %arg12[%c1_175, %c3_176, %c0_177] : memref<2x7x32xf32, #tpu.memory_space<vmem>>, vector<1x1x32xf32>
    %332 = vector.shape_cast %331 : vector<1x1x32xf32> to vector<1x32xf32>
    %cst_178 = arith.constant dense<0.000000e+00> : vector<16xf32>
    %333 = vector.multi_reduction <add>, %328, %cst_178 [1] : vector<16x32xf32> to vector<16xf32>
    %334 = vector.shape_cast %333 : vector<16xf32> to vector<16x1xf32>
    %cst_179 = arith.constant 3.200000e+01 : f32
    %335 = vector.broadcast %cst_179 : f32 to vector<16x1xf32>
    %336 = arith.divf %334, %335 : vector<16x1xf32>
    %337 = vector.broadcast %336 : vector<16x1xf32> to vector<16x32xf32>
    %338 = arith.subf %328, %337 : vector<16x32xf32>
    %339 = arith.mulf %338, %338 : vector<16x32xf32>
    %cst_180 = arith.constant dense<0.000000e+00> : vector<16xf32>
    %340 = vector.multi_reduction <add>, %339, %cst_180 [1] : vector<16x32xf32> to vector<16xf32>
    %341 = vector.shape_cast %340 : vector<16xf32> to vector<16x1xf32>
    %cst_181 = arith.constant 3.200000e+01 : f32
    %342 = vector.broadcast %cst_181 : f32 to vector<16x1xf32>
    %343 = arith.divf %341, %342 : vector<16x1xf32>
    %344 = vector.broadcast %336 : vector<16x1xf32> to vector<16x32xf32>
    %345 = arith.subf %328, %344 : vector<16x32xf32>
    %cst_182 = arith.constant 9.99999974E-6 : f32
    %346 = vector.broadcast %cst_182 : f32 to vector<16x1xf32>
    %347 = arith.addf %343, %346 : vector<16x1xf32>
    %348 = math.rsqrt %347 : vector<16x1xf32>
    %349 = vector.broadcast %348 : vector<16x1xf32> to vector<16x32xf32>
    %350 = arith.mulf %345, %349 : vector<16x32xf32>
    %351 = vector.broadcast %330 : vector<1x32xf32> to vector<16x32xf32>
    %352 = arith.mulf %350, %351 : vector<16x32xf32>
    %353 = vector.broadcast %332 : vector<1x32xf32> to vector<16x32xf32>
    %354 = arith.addf %352, %353 : vector<16x32xf32>
    %c1_183 = arith.constant 1 : index
    %c1_184 = arith.constant 1 : index
    %c0_185 = arith.constant 0 : index
    %c0_186 = arith.constant 0 : index
    %355 = vector.load %arg4[%c1_183, %c1_184, %c0_185, %c0_186] : memref<2x2x32x96xf32, #tpu.memory_space<vmem>>, vector<1x1x32x96xf32>
    %356 = vector.shape_cast %355 : vector<1x1x32x96xf32> to vector<32x96xf32>
    %c1_187 = arith.constant 1 : index
    %c1_188 = arith.constant 1 : index
    %c0_189 = arith.constant 0 : index
    %357 = vector.load %arg5[%c1_187, %c1_188, %c0_189] : memref<2x2x96xf32, #tpu.memory_space<vmem>>, vector<1x1x96xf32>
    %358 = vector.shape_cast %357 : vector<1x1x96xf32> to vector<1x96xf32>
    %359 = vector.extract_strided_slice %356 {offsets = [0, 0], sizes = [32, 32], strides = [1, 1]} : vector<32x96xf32> to vector<32x32xf32>
    %cst_190 = arith.constant dense<0.000000e+00> : vector<16x32xf32>
    %360 = tpu.matmul %354, %359, %cst_190 {dimension_numbers = #tpu.dot_dimension_numbers<[1], [0], [0], [1], [0, 0, 1, 1], [], []>} : vector<16x32xf32>, vector<32x32xf32>, vector<16x32xf32> -> vector<16x32xf32>
    %361 = vector.extract_strided_slice %358 {offsets = [0, 0], sizes = [1, 32], strides = [1, 1]} : vector<1x96xf32> to vector<1x32xf32>
    %362 = vector.broadcast %361 : vector<1x32xf32> to vector<16x32xf32>
    %363 = arith.addf %360, %362 : vector<16x32xf32>
    %364 = vector.extract_strided_slice %356 {offsets = [0, 32], sizes = [32, 64], strides = [1, 1]} : vector<32x96xf32> to vector<32x64xf32>
    %cst_191 = arith.constant dense<0.000000e+00> : vector<16x64xf32>
    %365 = tpu.matmul %7, %364, %cst_191 {dimension_numbers = #tpu.dot_dimension_numbers<[1], [0], [0], [1], [0, 0, 1, 1], [], []>} : vector<16x32xf32>, vector<32x64xf32>, vector<16x64xf32> -> vector<16x64xf32>
    %366 = vector.extract_strided_slice %358 {offsets = [0, 32], sizes = [1, 64], strides = [1, 1]} : vector<1x96xf32> to vector<1x64xf32>
    %367 = vector.broadcast %366 : vector<1x64xf32> to vector<16x64xf32>
    %368 = arith.addf %365, %367 : vector<16x64xf32>
    %369 = vector.extract_strided_slice %368 {offsets = [0, 0], sizes = [16, 32], strides = [1, 1]} : vector<16x64xf32> to vector<16x32xf32>
    %370 = vector.extract_strided_slice %368 {offsets = [0, 32], sizes = [16, 32], strides = [1, 1]} : vector<16x64xf32> to vector<16x32xf32>
    %371 = vector.shape_cast %363 : vector<16x32xf32> to vector<2x8x32xf32>
    %372 = vector.shape_cast %369 : vector<16x32xf32> to vector<2x8x32xf32>
    %373 = vector.shape_cast %370 : vector<16x32xf32> to vector<2x8x32xf32>
    %374 = vector.extract_strided_slice %371 {offsets = [0, 0, 0], sizes = [2, 8, 8], strides = [1, 1, 1]} : vector<2x8x32xf32> to vector<2x8x8xf32>
    %375 = vector.extract_strided_slice %371 {offsets = [0, 0, 8], sizes = [2, 8, 8], strides = [1, 1, 1]} : vector<2x8x32xf32> to vector<2x8x8xf32>
    %376 = vector.extract_strided_slice %371 {offsets = [0, 0, 16], sizes = [2, 8, 8], strides = [1, 1, 1]} : vector<2x8x32xf32> to vector<2x8x8xf32>
    %377 = vector.extract_strided_slice %371 {offsets = [0, 0, 24], sizes = [2, 8, 8], strides = [1, 1, 1]} : vector<2x8x32xf32> to vector<2x8x8xf32>
    %378 = tpu.concatenate %374, %375, %376, %377 in 0 : vector<2x8x8xf32>, vector<2x8x8xf32>, vector<2x8x8xf32>, vector<2x8x8xf32> -> vector<8x8x8xf32>
    %379 = vector.extract_strided_slice %372 {offsets = [0, 0, 0], sizes = [2, 8, 8], strides = [1, 1, 1]} : vector<2x8x32xf32> to vector<2x8x8xf32>
    %380 = vector.extract_strided_slice %372 {offsets = [0, 0, 8], sizes = [2, 8, 8], strides = [1, 1, 1]} : vector<2x8x32xf32> to vector<2x8x8xf32>
    %381 = vector.extract_strided_slice %372 {offsets = [0, 0, 16], sizes = [2, 8, 8], strides = [1, 1, 1]} : vector<2x8x32xf32> to vector<2x8x8xf32>
    %382 = vector.extract_strided_slice %372 {offsets = [0, 0, 24], sizes = [2, 8, 8], strides = [1, 1, 1]} : vector<2x8x32xf32> to vector<2x8x8xf32>
    %383 = tpu.concatenate %379, %380, %381, %382 in 0 : vector<2x8x8xf32>, vector<2x8x8xf32>, vector<2x8x8xf32>, vector<2x8x8xf32> -> vector<8x8x8xf32>
    %384 = vector.extract_strided_slice %373 {offsets = [0, 0, 0], sizes = [2, 8, 8], strides = [1, 1, 1]} : vector<2x8x32xf32> to vector<2x8x8xf32>
    %385 = vector.extract_strided_slice %373 {offsets = [0, 0, 8], sizes = [2, 8, 8], strides = [1, 1, 1]} : vector<2x8x32xf32> to vector<2x8x8xf32>
    %386 = vector.extract_strided_slice %373 {offsets = [0, 0, 16], sizes = [2, 8, 8], strides = [1, 1, 1]} : vector<2x8x32xf32> to vector<2x8x8xf32>
    %387 = vector.extract_strided_slice %373 {offsets = [0, 0, 24], sizes = [2, 8, 8], strides = [1, 1, 1]} : vector<2x8x32xf32> to vector<2x8x8xf32>
    %388 = tpu.concatenate %384, %385, %386, %387 in 0 : vector<2x8x8xf32>, vector<2x8x8xf32>, vector<2x8x8xf32>, vector<2x8x8xf32> -> vector<8x8x8xf32>
    "tpu.trace_start"() <{level = 10 : i32, message = "bqd,bkd->bqk"}> : () -> ()
    %cst_192 = arith.constant dense<0.000000e+00> : vector<8x8x8xf32>
    %389 = tpu.matmul %378, %383, %cst_192 {dimension_numbers = #tpu.dot_dimension_numbers<[2], [2], [1], [1], [0, 0, 0, 1, 1, 1], [0], [0]>} : vector<8x8x8xf32>, vector<8x8x8xf32>, vector<8x8x8xf32> -> vector<8x8x8xf32>
    "tpu.trace_stop"() : () -> ()
    %cst_193 = arith.constant 0.353553385 : f32
    %390 = vector.broadcast %cst_193 : f32 to vector<8x8x8xf32>
    %391 = arith.mulf %389, %390 : vector<8x8x8xf32>
    %cst_194 = arith.constant dense<0xFF800000> : vector<8x8xf32>
    %392 = vector.multi_reduction <maximumf>, %391, %cst_194 [2] : vector<8x8x8xf32> to vector<8x8xf32>
    %393 = vector.shape_cast %392 : vector<8x8xf32> to vector<8x8x1xf32>
    %394 = vector.broadcast %393 : vector<8x8x1xf32> to vector<8x8x8xf32>
    %395 = arith.subf %391, %394 : vector<8x8x8xf32>
    %396 = math.exp %395 : vector<8x8x8xf32>
    %cst_195 = arith.constant dense<0.000000e+00> : vector<8x8xf32>
    %397 = vector.multi_reduction <add>, %396, %cst_195 [2] : vector<8x8x8xf32> to vector<8x8xf32>
    %398 = vector.shape_cast %397 : vector<8x8xf32> to vector<8x8x1xf32>
    %399 = tpu.reciprocal %398 {approx = true} : vector<8x8x1xf32> -> vector<8x8x1xf32>
    %400 = vector.broadcast %399 : vector<8x8x1xf32> to vector<8x8x8xf32>
    %401 = arith.mulf %396, %400 : vector<8x8x8xf32>
    "tpu.trace_start"() <{level = 10 : i32, message = "bqk,bkd->bqd"}> : () -> ()
    %cst_196 = arith.constant dense<0.000000e+00> : vector<8x8x8xf32>
    %402 = tpu.matmul %401, %388, %cst_196 {dimension_numbers = #tpu.dot_dimension_numbers<[2], [1], [1], [2], [0, 0, 0, 1, 1, 2], [0], [0]>} : vector<8x8x8xf32>, vector<8x8x8xf32>, vector<8x8x8xf32> -> vector<8x8x8xf32>
    "tpu.trace_stop"() : () -> ()
    %403 = vector.extract_strided_slice %402 {offsets = [0, 0, 0], sizes = [2, 8, 8], strides = [1, 1, 1]} : vector<8x8x8xf32> to vector<2x8x8xf32>
    %404 = vector.shape_cast %403 : vector<2x8x8xf32> to vector<16x8xf32>
    %c1_197 = arith.constant 1 : index
    %c1_198 = arith.constant 1 : index
    %c0_199 = arith.constant 0 : index
    %c0_200 = arith.constant 0 : index
    %c0_201 = arith.constant 0 : index
    %405 = vector.load %arg6[%c1_197, %c1_198, %c0_199, %c0_200, %c0_201] : memref<2x2x4x8x32xf32, #tpu.memory_space<vmem>>, vector<1x1x1x8x32xf32>
    %406 = vector.shape_cast %405 : vector<1x1x1x8x32xf32> to vector<8x32xf32>
    %cst_202 = arith.constant dense<0.000000e+00> : vector<16x32xf32>
    %407 = tpu.matmul %404, %406, %cst_202 {dimension_numbers = #tpu.dot_dimension_numbers<[1], [0], [0], [1], [0, 0, 1, 1], [], []>} : vector<16x8xf32>, vector<8x32xf32>, vector<16x32xf32> -> vector<16x32xf32>
    %408 = vector.extract_strided_slice %402 {offsets = [2, 0, 0], sizes = [2, 8, 8], strides = [1, 1, 1]} : vector<8x8x8xf32> to vector<2x8x8xf32>
    %409 = vector.shape_cast %408 : vector<2x8x8xf32> to vector<16x8xf32>
    %c1_203 = arith.constant 1 : index
    %c1_204 = arith.constant 1 : index
    %c1_205 = arith.constant 1 : index
    %c0_206 = arith.constant 0 : index
    %c0_207 = arith.constant 0 : index
    %410 = vector.load %arg6[%c1_203, %c1_204, %c1_205, %c0_206, %c0_207] : memref<2x2x4x8x32xf32, #tpu.memory_space<vmem>>, vector<1x1x1x8x32xf32>
    %411 = vector.shape_cast %410 : vector<1x1x1x8x32xf32> to vector<8x32xf32>
    %cst_208 = arith.constant dense<0.000000e+00> : vector<16x32xf32>
    %412 = tpu.matmul %409, %411, %cst_208 {dimension_numbers = #tpu.dot_dimension_numbers<[1], [0], [0], [1], [0, 0, 1, 1], [], []>} : vector<16x8xf32>, vector<8x32xf32>, vector<16x32xf32> -> vector<16x32xf32>
    %413 = arith.addf %407, %412 : vector<16x32xf32>
    %414 = vector.extract_strided_slice %402 {offsets = [4, 0, 0], sizes = [2, 8, 8], strides = [1, 1, 1]} : vector<8x8x8xf32> to vector<2x8x8xf32>
    %415 = vector.shape_cast %414 : vector<2x8x8xf32> to vector<16x8xf32>
    %c1_209 = arith.constant 1 : index
    %c1_210 = arith.constant 1 : index
    %c2_211 = arith.constant 2 : index
    %c0_212 = arith.constant 0 : index
    %c0_213 = arith.constant 0 : index
    %416 = vector.load %arg6[%c1_209, %c1_210, %c2_211, %c0_212, %c0_213] : memref<2x2x4x8x32xf32, #tpu.memory_space<vmem>>, vector<1x1x1x8x32xf32>
    %417 = vector.shape_cast %416 : vector<1x1x1x8x32xf32> to vector<8x32xf32>
    %cst_214 = arith.constant dense<0.000000e+00> : vector<16x32xf32>
    %418 = tpu.matmul %415, %417, %cst_214 {dimension_numbers = #tpu.dot_dimension_numbers<[1], [0], [0], [1], [0, 0, 1, 1], [], []>} : vector<16x8xf32>, vector<8x32xf32>, vector<16x32xf32> -> vector<16x32xf32>
    %419 = arith.addf %413, %418 : vector<16x32xf32>
    %420 = vector.extract_strided_slice %402 {offsets = [6, 0, 0], sizes = [2, 8, 8], strides = [1, 1, 1]} : vector<8x8x8xf32> to vector<2x8x8xf32>
    %421 = vector.shape_cast %420 : vector<2x8x8xf32> to vector<16x8xf32>
    %c1_215 = arith.constant 1 : index
    %c1_216 = arith.constant 1 : index
    %c3_217 = arith.constant 3 : index
    %c0_218 = arith.constant 0 : index
    %c0_219 = arith.constant 0 : index
    %422 = vector.load %arg6[%c1_215, %c1_216, %c3_217, %c0_218, %c0_219] : memref<2x2x4x8x32xf32, #tpu.memory_space<vmem>>, vector<1x1x1x8x32xf32>
    %423 = vector.shape_cast %422 : vector<1x1x1x8x32xf32> to vector<8x32xf32>
    %cst_220 = arith.constant dense<0.000000e+00> : vector<16x32xf32>
    %424 = tpu.matmul %421, %423, %cst_220 {dimension_numbers = #tpu.dot_dimension_numbers<[1], [0], [0], [1], [0, 0, 1, 1], [], []>} : vector<16x8xf32>, vector<8x32xf32>, vector<16x32xf32> -> vector<16x32xf32>
    %425 = arith.addf %419, %424 : vector<16x32xf32>
    %c1_221 = arith.constant 1 : index
    %c1_222 = arith.constant 1 : index
    %c0_223 = arith.constant 0 : index
    %426 = vector.load %arg7[%c1_221, %c1_222, %c0_223] : memref<2x2x32xf32, #tpu.memory_space<vmem>>, vector<1x1x32xf32>
    %427 = vector.shape_cast %426 : vector<1x1x32xf32> to vector<1x32xf32>
    %428 = vector.broadcast %427 : vector<1x32xf32> to vector<16x32xf32>
    %429 = arith.addf %425, %428 : vector<16x32xf32>
    %430 = arith.addf %354, %429 : vector<16x32xf32>
    %c0_224 = arith.constant 0 : index
    %c4 = arith.constant 4 : index
    %c0_225 = arith.constant 0 : index
    %431 = vector.load %arg12[%c0_224, %c4, %c0_225] : memref<2x7x32xf32, #tpu.memory_space<vmem>>, vector<1x1x32xf32>
    %432 = vector.shape_cast %431 : vector<1x1x32xf32> to vector<1x32xf32>
    %c1_226 = arith.constant 1 : index
    %c4_227 = arith.constant 4 : index
    %c0_228 = arith.constant 0 : index
    %433 = vector.load %arg12[%c1_226, %c4_227, %c0_228] : memref<2x7x32xf32, #tpu.memory_space<vmem>>, vector<1x1x32xf32>
    %434 = vector.shape_cast %433 : vector<1x1x32xf32> to vector<1x32xf32>
    %cst_229 = arith.constant dense<0.000000e+00> : vector<16xf32>
    %435 = vector.multi_reduction <add>, %430, %cst_229 [1] : vector<16x32xf32> to vector<16xf32>
    %436 = vector.shape_cast %435 : vector<16xf32> to vector<16x1xf32>
    %cst_230 = arith.constant 3.200000e+01 : f32
    %437 = vector.broadcast %cst_230 : f32 to vector<16x1xf32>
    %438 = arith.divf %436, %437 : vector<16x1xf32>
    %439 = vector.broadcast %438 : vector<16x1xf32> to vector<16x32xf32>
    %440 = arith.subf %430, %439 : vector<16x32xf32>
    %441 = arith.mulf %440, %440 : vector<16x32xf32>
    %cst_231 = arith.constant dense<0.000000e+00> : vector<16xf32>
    %442 = vector.multi_reduction <add>, %441, %cst_231 [1] : vector<16x32xf32> to vector<16xf32>
    %443 = vector.shape_cast %442 : vector<16xf32> to vector<16x1xf32>
    %cst_232 = arith.constant 3.200000e+01 : f32
    %444 = vector.broadcast %cst_232 : f32 to vector<16x1xf32>
    %445 = arith.divf %443, %444 : vector<16x1xf32>
    %446 = vector.broadcast %438 : vector<16x1xf32> to vector<16x32xf32>
    %447 = arith.subf %430, %446 : vector<16x32xf32>
    %cst_233 = arith.constant 9.99999974E-6 : f32
    %448 = vector.broadcast %cst_233 : f32 to vector<16x1xf32>
    %449 = arith.addf %445, %448 : vector<16x1xf32>
    %450 = math.rsqrt %449 : vector<16x1xf32>
    %451 = vector.broadcast %450 : vector<16x1xf32> to vector<16x32xf32>
    %452 = arith.mulf %447, %451 : vector<16x32xf32>
    %453 = vector.broadcast %432 : vector<1x32xf32> to vector<16x32xf32>
    %454 = arith.mulf %452, %453 : vector<16x32xf32>
    %455 = vector.broadcast %434 : vector<1x32xf32> to vector<16x32xf32>
    %456 = arith.addf %454, %455 : vector<16x32xf32>
    %c1_234 = arith.constant 1 : index
    %c0_235 = arith.constant 0 : index
    %c0_236 = arith.constant 0 : index
    %457 = vector.load %arg8[%c1_234, %c0_235, %c0_236] : memref<2x32x64xf32, #tpu.memory_space<vmem>>, vector<1x32x64xf32>
    %458 = vector.shape_cast %457 : vector<1x32x64xf32> to vector<32x64xf32>
    %cst_237 = arith.constant dense<0.000000e+00> : vector<16x64xf32>
    %459 = tpu.matmul %456, %458, %cst_237 {dimension_numbers = #tpu.dot_dimension_numbers<[1], [0], [0], [1], [0, 0, 1, 1], [], []>} : vector<16x32xf32>, vector<32x64xf32>, vector<16x64xf32> -> vector<16x64xf32>
    %c1_238 = arith.constant 1 : index
    %c0_239 = arith.constant 0 : index
    %460 = vector.load %arg9[%c1_238, %c0_239] : memref<2x64xf32, #tpu.memory_space<vmem>>, vector<1x64xf32>
    %461 = vector.broadcast %460 : vector<1x64xf32> to vector<16x64xf32>
    %462 = arith.addf %459, %461 : vector<16x64xf32>
    %cst_240 = arith.constant 0.000000e+00 : f32
    %463 = vector.broadcast %cst_240 : f32 to vector<16x64xf32>
    %464 = arith.maximumf %462, %463 : vector<16x64xf32>
    %c1_241 = arith.constant 1 : index
    %c0_242 = arith.constant 0 : index
    %c0_243 = arith.constant 0 : index
    %465 = vector.load %arg10[%c1_241, %c0_242, %c0_243] : memref<2x64x32xf32, #tpu.memory_space<vmem>>, vector<1x64x32xf32>
    %466 = vector.shape_cast %465 : vector<1x64x32xf32> to vector<64x32xf32>
    %cst_244 = arith.constant dense<0.000000e+00> : vector<16x32xf32>
    %467 = tpu.matmul %464, %466, %cst_244 {dimension_numbers = #tpu.dot_dimension_numbers<[1], [0], [0], [1], [0, 0, 1, 1], [], []>} : vector<16x64xf32>, vector<64x32xf32>, vector<16x32xf32> -> vector<16x32xf32>
    %c1_245 = arith.constant 1 : index
    %c0_246 = arith.constant 0 : index
    %468 = vector.load %arg11[%c1_245, %c0_246] : memref<2x32xf32, #tpu.memory_space<vmem>>, vector<1x32xf32>
    %469 = vector.broadcast %468 : vector<1x32xf32> to vector<16x32xf32>
    %470 = arith.addf %467, %469 : vector<16x32xf32>
    %471 = arith.addf %456, %470 : vector<16x32xf32>
    %c0_247 = arith.constant 0 : index
    %c5 = arith.constant 5 : index
    %c0_248 = arith.constant 0 : index
    %472 = vector.load %arg12[%c0_247, %c5, %c0_248] : memref<2x7x32xf32, #tpu.memory_space<vmem>>, vector<1x1x32xf32>
    %473 = vector.shape_cast %472 : vector<1x1x32xf32> to vector<1x32xf32>
    %c1_249 = arith.constant 1 : index
    %c5_250 = arith.constant 5 : index
    %c0_251 = arith.constant 0 : index
    %474 = vector.load %arg12[%c1_249, %c5_250, %c0_251] : memref<2x7x32xf32, #tpu.memory_space<vmem>>, vector<1x1x32xf32>
    %475 = vector.shape_cast %474 : vector<1x1x32xf32> to vector<1x32xf32>
    %cst_252 = arith.constant dense<0.000000e+00> : vector<16xf32>
    %476 = vector.multi_reduction <add>, %471, %cst_252 [1] : vector<16x32xf32> to vector<16xf32>
    %477 = vector.shape_cast %476 : vector<16xf32> to vector<16x1xf32>
    %cst_253 = arith.constant 3.200000e+01 : f32
    %478 = vector.broadcast %cst_253 : f32 to vector<16x1xf32>
    %479 = arith.divf %477, %478 : vector<16x1xf32>
    %480 = vector.broadcast %479 : vector<16x1xf32> to vector<16x32xf32>
    %481 = arith.subf %471, %480 : vector<16x32xf32>
    %482 = arith.mulf %481, %481 : vector<16x32xf32>
    %cst_254 = arith.constant dense<0.000000e+00> : vector<16xf32>
    %483 = vector.multi_reduction <add>, %482, %cst_254 [1] : vector<16x32xf32> to vector<16xf32>
    %484 = vector.shape_cast %483 : vector<16xf32> to vector<16x1xf32>
    %cst_255 = arith.constant 3.200000e+01 : f32
    %485 = vector.broadcast %cst_255 : f32 to vector<16x1xf32>
    %486 = arith.divf %484, %485 : vector<16x1xf32>
    %487 = vector.broadcast %479 : vector<16x1xf32> to vector<16x32xf32>
    %488 = arith.subf %471, %487 : vector<16x32xf32>
    %cst_256 = arith.constant 9.99999974E-6 : f32
    %489 = vector.broadcast %cst_256 : f32 to vector<16x1xf32>
    %490 = arith.addf %486, %489 : vector<16x1xf32>
    %491 = math.rsqrt %490 : vector<16x1xf32>
    %492 = vector.broadcast %491 : vector<16x1xf32> to vector<16x32xf32>
    %493 = arith.mulf %488, %492 : vector<16x32xf32>
    %494 = vector.broadcast %473 : vector<1x32xf32> to vector<16x32xf32>
    %495 = arith.mulf %493, %494 : vector<16x32xf32>
    %496 = vector.broadcast %475 : vector<1x32xf32> to vector<16x32xf32>
    %497 = arith.addf %495, %496 : vector<16x32xf32>
    %c0_257 = arith.constant 0 : index
    %c6 = arith.constant 6 : index
    %c0_258 = arith.constant 0 : index
    %498 = vector.load %arg12[%c0_257, %c6, %c0_258] : memref<2x7x32xf32, #tpu.memory_space<vmem>>, vector<1x1x32xf32>
    %499 = vector.shape_cast %498 : vector<1x1x32xf32> to vector<1x32xf32>
    %c1_259 = arith.constant 1 : index
    %c6_260 = arith.constant 6 : index
    %c0_261 = arith.constant 0 : index
    %500 = vector.load %arg12[%c1_259, %c6_260, %c0_261] : memref<2x7x32xf32, #tpu.memory_space<vmem>>, vector<1x1x32xf32>
    %501 = vector.shape_cast %500 : vector<1x1x32xf32> to vector<1x32xf32>
    %cst_262 = arith.constant dense<0.000000e+00> : vector<16xf32>
    %502 = vector.multi_reduction <add>, %497, %cst_262 [1] : vector<16x32xf32> to vector<16xf32>
    %503 = vector.shape_cast %502 : vector<16xf32> to vector<16x1xf32>
    %cst_263 = arith.constant 3.200000e+01 : f32
    %504 = vector.broadcast %cst_263 : f32 to vector<16x1xf32>
    %505 = arith.divf %503, %504 : vector<16x1xf32>
    %506 = vector.broadcast %505 : vector<16x1xf32> to vector<16x32xf32>
    %507 = arith.subf %497, %506 : vector<16x32xf32>
    %508 = arith.mulf %507, %507 : vector<16x32xf32>
    %cst_264 = arith.constant dense<0.000000e+00> : vector<16xf32>
    %509 = vector.multi_reduction <add>, %508, %cst_264 [1] : vector<16x32xf32> to vector<16xf32>
    %510 = vector.shape_cast %509 : vector<16xf32> to vector<16x1xf32>
    %cst_265 = arith.constant 3.200000e+01 : f32
    %511 = vector.broadcast %cst_265 : f32 to vector<16x1xf32>
    %512 = arith.divf %510, %511 : vector<16x1xf32>
    %513 = vector.broadcast %505 : vector<16x1xf32> to vector<16x32xf32>
    %514 = arith.subf %497, %513 : vector<16x32xf32>
    %cst_266 = arith.constant 9.99999974E-6 : f32
    %515 = vector.broadcast %cst_266 : f32 to vector<16x1xf32>
    %516 = arith.addf %512, %515 : vector<16x1xf32>
    %517 = math.rsqrt %516 : vector<16x1xf32>
    %518 = vector.broadcast %517 : vector<16x1xf32> to vector<16x32xf32>
    %519 = arith.mulf %514, %518 : vector<16x32xf32>
    %520 = vector.broadcast %499 : vector<1x32xf32> to vector<16x32xf32>
    %521 = arith.mulf %519, %520 : vector<16x32xf32>
    %522 = vector.broadcast %501 : vector<1x32xf32> to vector<16x32xf32>
    %523 = arith.addf %521, %522 : vector<16x32xf32>
    %c0_267 = arith.constant 0 : index
    %c0_268 = arith.constant 0 : index
    %524 = vector.load %arg13[%c0_267, %c0_268] : memref<32x512xf32, #tpu.memory_space<vmem>>, vector<32x512xf32>
    %cst_269 = arith.constant dense<0.000000e+00> : vector<16x512xf32>
    %525 = tpu.matmul %523, %524, %cst_269 {dimension_numbers = #tpu.dot_dimension_numbers<[1], [0], [0], [1], [0, 0, 1, 1], [], []>} : vector<16x32xf32>, vector<32x512xf32>, vector<16x512xf32> -> vector<16x512xf32>
    %c0_270 = arith.constant 0 : index
    %c0_271 = arith.constant 0 : index
    %526 = vector.load %arg14[%c0_270, %c0_271] : memref<1x512xf32, #tpu.memory_space<vmem>>, vector<1x512xf32>
    %527 = vector.broadcast %526 : vector<1x512xf32> to vector<16x512xf32>
    %528 = arith.addf %525, %527 : vector<16x512xf32>
    %529 = vector.shape_cast %528 : vector<16x512xf32> to vector<2x8x512xf32>
    %c0_272 = arith.constant 0 : index
    %c0_273 = arith.constant 0 : index
    %c0_274 = arith.constant 0 : index
    %530 = vector.load %arg15[%c0_272, %c0_273, %c0_274] : memref<2x8x512xf32, #tpu.memory_space<vmem>>, vector<2x8x512xf32>
    tpu.vector_store %arg15[%c0_272, %c0_273, %c0_274], %529 {strides = array<i32>} : memref<2x8x512xf32, #tpu.memory_space<vmem>>, vector<2x8x512xf32>,
    return
  }
  func.func @transform_0(%arg0: i32) -> (i32, i32, i32) {
    %c0_i32 = arith.constant 0 : i32
    %c0_i32_0 = arith.constant 0 : i32
    %c0_i32_1 = arith.constant 0 : i32
    return %arg0, %c0_i32, %c0_i32_0 : i32, i32, i32
  }
  func.func @transform_1(%arg0: i32) -> (i32, i32, i32) {
    %c0_i32 = arith.constant 0 : i32
    %c0_i32_0 = arith.constant 0 : i32
    %c0_i32_1 = arith.constant 0 : i32
    return %arg0, %c0_i32, %c0_i32_0 : i32, i32, i32
  }
  func.func @transform_2(%arg0: i32) -> (i32, i32) {
    %c0_i32 = arith.constant 0 : i32
    %c0_i32_0 = arith.constant 0 : i32
    %c0_i32_1 = arith.constant 0 : i32
    return %c0_i32, %c0_i32_0 : i32, i32
  }
  func.func @transform_3(%arg0: i32) -> (i32, i32, i32, i32) {
    %c0_i32 = arith.constant 0 : i32
    %c0_i32_0 = arith.constant 0 : i32
    %c0_i32_1 = arith.constant 0 : i32
    %c0_i32_2 = arith.constant 0 : i32
    %c0_i32_3 = arith.constant 0 : i32
    return %c0_i32, %c0_i32_0, %c0_i32_1, %c0_i32_2 : i32, i32, i32, i32
  }
  func.func @transform_4(%arg0: i32) -> (i32, i32, i32) {
    %c0_i32 = arith.constant 0 : i32
    %c0_i32_0 = arith.constant 0 : i32
    %c0_i32_1 = arith.constant 0 : i32
    %c0_i32_2 = arith.constant 0 : i32
    return %c0_i32, %c0_i32_0, %c0_i32_1 : i32, i32, i32
  }
  func.func @transform_5(%arg0: i32) -> (i32, i32, i32, i32, i32) {
    %c0_i32 = arith.constant 0 : i32
    %c0_i32_0 = arith.constant 0 : i32
    %c0_i32_1 = arith.constant 0 : i32
    %c0_i32_2 = arith.constant 0 : i32
    %c0_i32_3 = arith.constant 0 : i32
    %c0_i32_4 = arith.constant 0 : i32
    return %c0_i32, %c0_i32_0, %c0_i32_1, %c0_i32_2, %c0_i32_3 : i32, i32, i32, i32, i32
  }
  func.func @transform_6(%arg0: i32) -> (i32, i32, i32) {
    %c0_i32 = arith.constant 0 : i32
    %c0_i32_0 = arith.constant 0 : i32
    %c0_i32_1 = arith.constant 0 : i32
    %c0_i32_2 = arith.constant 0 : i32
    return %c0_i32, %c0_i32_0, %c0_i32_1 : i32, i32, i32
  }
  func.func @transform_7(%arg0: i32) -> (i32, i32, i32) {
    %c0_i32 = arith.constant 0 : i32
    %c0_i32_0 = arith.constant 0 : i32
    %c0_i32_1 = arith.constant 0 : i32
    %c0_i32_2 = arith.constant 0 : i32
    return %c0_i32, %c0_i32_0, %c0_i32_1 : i32, i32, i32
  }
  func.func @transform_8(%arg0: i32) -> (i32, i32) {
    %c0_i32 = arith.constant 0 : i32
    %c0_i32_0 = arith.constant 0 : i32
    %c0_i32_1 = arith.constant 0 : i32
    return %c0_i32, %c0_i32_0 : i32, i32
  }
  func.func @transform_9(%arg0: i32) -> (i32, i32, i32) {
    %c0_i32 = arith.constant 0 : i32
    %c0_i32_0 = arith.constant 0 : i32
    %c0_i32_1 = arith.constant 0 : i32
    %c0_i32_2 = arith.constant 0 : i32
    return %c0_i32, %c0_i32_0, %c0_i32_1 : i32, i32, i32
  }
  func.func @transform_10(%arg0: i32) -> (i32, i32) {
    %c0_i32 = arith.constant 0 : i32
    %c0_i32_0 = arith.constant 0 : i32
    %c0_i32_1 = arith.constant 0 : i32
    return %c0_i32, %c0_i32_0 : i32, i32
  }
  func.func @transform_11(%arg0: i32) -> (i32, i32, i32) {
    %c0_i32 = arith.constant 0 : i32
    %c0_i32_0 = arith.constant 0 : i32
    %c0_i32_1 = arith.constant 0 : i32
    %c0_i32_2 = arith.constant 0 : i32
    return %c0_i32, %c0_i32_0, %c0_i32_1 : i32, i32, i32
  }
  func.func @transform_12(%arg0: i32) -> (i32, i32) {
    %c0_i32 = arith.constant 0 : i32
    %c0_i32_0 = arith.constant 0 : i32
    %c0_i32_1 = arith.constant 0 : i32
    return %c0_i32, %c0_i32_0 : i32, i32
  }
  func.func @transform_13(%arg0: i32) -> (i32, i32) {
    %c0_i32 = arith.constant 0 : i32
    %c0_i32_0 = arith.constant 0 : i32
    %c0_i32_1 = arith.constant 0 : i32
    return %c0_i32, %c0_i32_0 : i32, i32
  }
  func.func @transform_14(%arg0: i32) -> (i32, i32, i32) {
    %c0_i32 = arith.constant 0 : i32
    %c0_i32_0 = arith.constant 0 : i32
    %c0_i32_1 = arith.constant 0 : i32
    return %arg0, %c0_i32, %c0_i32_0 : i32, i32, i32
  }
}

</mosaic_0001>

<llo_original>
// kernel: tpu_custom_call.1
$region0: #{tpu_custom_call.1}
  #allocation0 [shape = 'u32[]', space=smem, size = 0x4, offset = 0x4, fixed_abs, tag = 'smem constant byte address 0x4 - core index']
  #allocation1 [shape = 'u32[144,128]{1,0:T(1,128)}', space=vmem, size = 0x12000, scoped, tag = 'internal scratch']
  %s0 = inlined_call_operand.vmem [shape: f32[2,8,32], index: 0, kind: input, shape index: {}]
  %s1 = inlined_call_operand.vmem [shape: f32[2,8,32], index: 1, kind: input, shape index: {}]
  %s2 = inlined_call_operand.hbm [shape: f32[8,32], index: 2, kind: input, shape index: {}]
  %s3 = inlined_call_operand.vmem [shape: f32[2,2,32,96], index: 3, kind: input, shape index: {}]
  %s4 = inlined_call_operand.vmem [shape: f32[2,2,96], index: 4, kind: input, shape index: {}]
  %s5 = inlined_call_operand.hbm [shape: f32[2,2,4,8,32], index: 5, kind: input, shape index: {}]
  %s6 = inlined_call_operand.hbm [shape: f32[2,2,32], index: 6, kind: input, shape index: {}]
  %s7 = inlined_call_operand.vmem [shape: f32[2,32,64], index: 7, kind: input, shape index: {}]
  %s8 = inlined_call_operand.hbm [shape: f32[2,64], index: 8, kind: input, shape index: {}]
  %s9 = inlined_call_operand.vmem [shape: f32[2,64,32], index: 9, kind: input, shape index: {}]
  %s10 = inlined_call_operand.hbm [shape: f32[2,32], index: 10, kind: input, shape index: {}]
  %s11 = inlined_call_operand.vmem [shape: f32[2,7,32], index: 11, kind: input, shape index: {}]
  %s12 = inlined_call_operand.hbm [shape: f32[32,512], index: 12, kind: input, shape index: {}]
  %s13 = inlined_call_operand.hbm [shape: f32[1,512], index: 13, kind: input, shape index: {}]
  %s14 = inlined_call_operand.hbm [shape: f32[2,8,512], index: 14, kind: output, shape index: {}]
  %s15 = sld [smem:[#allocation0]]
  $region94: #{tpu_custom_call.1} parent=0
    _
  %s17 = ssub.s32 1, %s15
  %s18 = scalar_select 0, %s17, %s15
  $region1: #{tpu_custom_call.1} parent=0
    #allocation2 [shape = 'u8[4096]{0}', space=vmem, size = 0x1000, scoped, tag = 'input window, operand 2, single buffered']
    #allocation3 [shape = 's32[1]{0}', space=sflag, size = 0x4, scoped, tag = 'scoped memory for tpu_custom_call.1']
    #allocation4 [shape = 's32[1]{0}', space=sflag, size = 0x4, scoped, tag = 'scoped memory for tpu_custom_call.1']
    #allocation5 [shape = 'u8[65536]{0}', space=vmem, size = 0x10000, scoped, tag = 'input window, operand 5, single buffered']
    #allocation6 [shape = 's32[1]{0}', space=sflag, size = 0x4, scoped, tag = 'scoped memory for tpu_custom_call.1']
    #allocation7 [shape = 'u8[2048]{0}', space=vmem, size = 0x800, scoped, tag = 'input window, operand 6, single buffered']
    #allocation8 [shape = 'u8[1024]{0}', space=vmem, size = 0x400, scoped, tag = 'input window, operand 8, single buffered']
    #allocation9 [shape = 's32[1]{0}', space=sflag, size = 0x4, scoped, tag = 'scoped memory for tpu_custom_call.1']
    #allocation10 [shape = 'u8[1024]{0}', space=vmem, size = 0x400, scoped, tag = 'input window, operand 10, single buffered']
    #allocation11 [shape = 'u8[65536]{0}', space=vmem, size = 0x10000, scoped, tag = 'input window, operand 12, single buffered']
    #allocation12 [shape = 's32[1]{0}', space=sflag, size = 0x4, scoped, tag = 'scoped memory for tpu_custom_call.1']
    #allocation13 [shape = 'u8[2048]{0}', space=vmem, size = 0x800, scoped, tag = 'input window, operand 13, single buffered']
    #allocation14 [shape = 'u8[32768]{0}', space=vmem, size = 0x8000, scoped, tag = 'output window, operand 0, single buffered']
    %19 = vsyncpa [#allocation3], 0
    %20 = vsyncpa [#allocation6], 0
    %21 = vsyncpa [#allocation9], 0
    %22 = vsyncpa [#allocation12], 0
    %23 = vsyncpa [#allocation4], 0
    // Predicated region
    $region2: #{tpu_custom_call.1} parent=1 // pred_check
      _
    $region3: #{tpu_custom_call.1} parent=1 // pred_check_branch
      %25 = sbr.rel (0) target = $region5
    $region4: #{tpu_custom_call.1} parent=1 // pred_region
      _
    $region5: #{tpu_custom_call.1} parent=1 // pred_fallthru
      _
    // Predicated region
    $region6: #{tpu_custom_call.1} parent=1 // pred_check
      _
    $region7: #{tpu_custom_call.1} parent=1 // pred_check_branch
      %27 = sbr.rel (0) target = $region9
    $region8: #{tpu_custom_call.1} parent=1 // pred_region
      _
    $region9: #{tpu_custom_call.1} parent=1 // pred_fallthru
      _
    // Predicated region
    $region10: #{tpu_custom_call.1} parent=1 // pred_check
      _
    $region11: #{tpu_custom_call.1} parent=1 // pred_check_branch
      %29 = sbr.rel (0) target = $region13
    $region12: #{tpu_custom_call.1} parent=1 // pred_region
      %s31 = ssub.s32 128, 128
      %32 = vsyncadd [#allocation3], %s31
      %s34 = sshll.u32 [#allocation2], 4
      %s35 = int_to_ptr.vmem [resolvable:$true] %s34
      %37 = dma.hbm_to_vmem [thread:$0]  %s2, 128, %s35, [#allocation3]
    $region13: #{tpu_custom_call.1} parent=1 // pred_fallthru
      _
    // Predicated region
    $region14: #{tpu_custom_call.1} parent=1 // pred_check
      _
    $region15: #{tpu_custom_call.1} parent=1 // pred_check_branch
      %39 = sbr.rel (0) target = $region17
    $region16: #{tpu_custom_call.1} parent=1 // pred_region
      _
    $region17: #{tpu_custom_call.1} parent=1 // pred_fallthru
      _
    // Predicated region
    $region18: #{tpu_custom_call.1} parent=1 // pred_check
      _
    $region19: #{tpu_custom_call.1} parent=1 // pred_check_branch
      %41 = sbr.rel (0) target = $region21
    $region20: #{tpu_custom_call.1} parent=1 // pred_region
      _
    $region21: #{tpu_custom_call.1} parent=1 // pred_fallthru
      _
    // Predicated region
    $region22: #{tpu_custom_call.1} parent=1 // pred_check
      _
    $region23: #{tpu_custom_call.1} parent=1 // pred_check_branch
      %43 = sbr.rel (0) target = $region25
    $region24: #{tpu_custom_call.1} parent=1 // pred_region
      %s45 = ssub.s32 2048, 2048
      %46 = vsyncadd [#allocation6], %s45
      %s47 = sshll.u32 [#allocation5], 4
      %s48 = int_to_ptr.vmem [resolvable:$true] %s47
      %53 = dma.hbm_to_vmem [thread:$0]  %s5, 2048, %s48, [#allocation6], 128, 128, 8
    $region25: #{tpu_custom_call.1} parent=1 // pred_fallthru
      _
    // Predicated region
    $region26: #{tpu_custom_call.1} parent=1 // pred_check
      _
    $region27: #{tpu_custom_call.1} parent=1 // pred_check_branch
      %55 = sbr.rel (0) target = $region29
    $region28: #{tpu_custom_call.1} parent=1 // pred_region
      %s57 = ssub.s32 64, 64
      %58 = vsyncadd [#allocation6], %s57
      %s59 = sshll.u32 [#allocation7], 4
      %s60 = int_to_ptr.vmem [resolvable:$true] %s59
      %65 = dma.hbm_to_vmem [thread:$0]  %s6, 64, %s60, [#allocation6], 32, 32, 2
    $region29: #{tpu_custom_call.1} parent=1 // pred_fallthru
      _
    // Predicated region
    $region30: #{tpu_custom_call.1} parent=1 // pred_check
      _
    $region31: #{tpu_custom_call.1} parent=1 // pred_check_branch
      %67 = sbr.rel (0) target = $region33
    $region32: #{tpu_custom_call.1} parent=1 // pred_region
      _
    $region33: #{tpu_custom_call.1} parent=1 // pred_fallthru
      _
    // Predicated region
    $region34: #{tpu_custom_call.1} parent=1 // pred_check
      _
    $region35: #{tpu_custom_call.1} parent=1 // pred_check_branch
      %69 = sbr.rel (0) target = $region37
    $region36: #{tpu_custom_call.1} parent=1 // pred_region
      %s71 = ssub.s32 32, 32
      %72 = vsyncadd [#allocation9], %s71
      %s74 = sshll.u32 [#allocation8], 4
      %s75 = int_to_ptr.vmem [resolvable:$true] %s74
      %77 = dma.hbm_to_vmem [thread:$0]  %s8, 32, %s75, [#allocation9]
    $region37: #{tpu_custom_call.1} parent=1 // pred_fallthru
      _
    // Predicated region
    $region38: #{tpu_custom_call.1} parent=1 // pred_check
      _
    $region39: #{tpu_custom_call.1} parent=1 // pred_check_branch
      %79 = sbr.rel (0) target = $region41
    $region40: #{tpu_custom_call.1} parent=1 // pred_region
      _
    $region41: #{tpu_custom_call.1} parent=1 // pred_fallthru
      _
    // Predicated region
    $region42: #{tpu_custom_call.1} parent=1 // pred_check
      _
    $region43: #{tpu_custom_call.1} parent=1 // pred_check_branch
      %81 = sbr.rel (0) target = $region45
    $region44: #{tpu_custom_call.1} parent=1 // pred_region
      %s83 = ssub.s32 32, 32
      %84 = vsyncadd [#allocation9], %s83
      %s86 = sshll.u32 [#allocation10], 4
      %s87 = int_to_ptr.vmem [resolvable:$true] %s86
      %89 = dma.hbm_to_vmem [thread:$0]  %s10, 32, %s87, [#allocation9]
    $region45: #{tpu_custom_call.1} parent=1 // pred_fallthru
      _
    // Predicated region
    $region46: #{tpu_custom_call.1} parent=1 // pred_check
      _
    $region47: #{tpu_custom_call.1} parent=1 // pred_check_branch
      %91 = sbr.rel (0) target = $region49
    $region48: #{tpu_custom_call.1} parent=1 // pred_region
      _
    $region49: #{tpu_custom_call.1} parent=1 // pred_fallthru
      _
    // Predicated region
    $region50: #{tpu_custom_call.1} parent=1 // pred_check
      _
    $region51: #{tpu_custom_call.1} parent=1 // pred_check_branch
      %93 = sbr.rel (0) target = $region53
    $region52: #{tpu_custom_call.1} parent=1 // pred_region
      %s95 = ssub.s32 2048, 2048
      %96 = vsyncadd [#allocation12], %s95
      %s97 = sshll.u32 [#allocation11], 4
      %s98 = int_to_ptr.vmem [resolvable:$true] %s97
      %103 = dma.hbm_to_vmem [thread:$0]  %s12, 2048, %s98, [#allocation12], 512, 512, 32
    $region53: #{tpu_custom_call.1} parent=1 // pred_fallthru
      _
    // Predicated region
    $region54: #{tpu_custom_call.1} parent=1 // pred_check
      _
    $region55: #{tpu_custom_call.1} parent=1 // pred_check_branch
      %105 = sbr.rel (0) target = $region57
    $region56: #{tpu_custom_call.1} parent=1 // pred_region
      %s107 = ssub.s32 64, 64
      %108 = vsyncadd [#allocation12], %s107
      %s110 = sshll.u32 [#allocation13], 4
      %s111 = int_to_ptr.vmem [resolvable:$true] %s110
      %113 = dma.hbm_to_vmem [thread:$0]  %s13, 64, %s111, [#allocation12]
    $region57: #{tpu_custom_call.1} parent=1 // pred_fallthru
      _
    // Predicated region
    $region58: #{tpu_custom_call.1} parent=1 // pred_check
      _
    $region59: #{tpu_custom_call.1} parent=1 // pred_check_branch
      %115 = sbr.rel (0) target = $region61
    $region60: #{tpu_custom_call.1} parent=1 // pred_region
      %116 = dma.done [#allocation3], 128
    $region61: #{tpu_custom_call.1} parent=1 // pred_fallthru
      _
    // Predicated region
    $region62: #{tpu_custom_call.1} parent=1 // pred_check
      _
    $region63: #{tpu_custom_call.1} parent=1 // pred_check_branch
      %118 = sbr.rel (0) target = $region65
    $region64: #{tpu_custom_call.1} parent=1 // pred_region
      %119 = dma.done [#allocation6], 2048
    $region65: #{tpu_custom_call.1} parent=1 // pred_fallthru
      _
    // Predicated region
    $region66: #{tpu_custom_call.1} parent=1 // pred_check
      _
    $region67: #{tpu_custom_call.1} parent=1 // pred_check_branch
      %121 = sbr.rel (0) target = $region69
    $region68: #{tpu_custom_call.1} parent=1 // pred_region
      %122 = dma.done [#allocation6], 64
    $region69: #{tpu_custom_call.1} parent=1 // pred_fallthru
      _
    // Predicated region
    $region70: #{tpu_custom_call.1} parent=1 // pred_check
      _
    $region71: #{tpu_custom_call.1} parent=1 // pred_check_branch
      %124 = sbr.rel (0) target = $region73
    $region72: #{tpu_custom_call.1} parent=1 // pred_region
      %125 = dma.done [#allocation9], 32
    $region73: #{tpu_custom_call.1} parent=1 // pred_fallthru
      _
    // Predicated region
    $region74: #{tpu_custom_call.1} parent=1 // pred_check
      _
    $region75: #{tpu_custom_call.1} parent=1 // pred_check_branch
      %127 = sbr.rel (0) target = $region77
    $region76: #{tpu_custom_call.1} parent=1 // pred_region
      %128 = dma.done [#allocation9], 32
    $region77: #{tpu_custom_call.1} parent=1 // pred_fallthru
      _
    // Predicated region
    $region78: #{tpu_custom_call.1} parent=1 // pred_check
      _
    $region79: #{tpu_custom_call.1} parent=1 // pred_check_branch
      %130 = sbr.rel (0) target = $region81
    $region80: #{tpu_custom_call.1} parent=1 // pred_region
      %131 = dma.done [#allocation12], 2048
    $region81: #{tpu_custom_call.1} parent=1 // pred_fallthru
      _
    // Predicated region
    $region82: #{tpu_custom_call.1} parent=1 // pred_check
      _
    $region83: #{tpu_custom_call.1} parent=1 // pred_check_branch
      %133 = sbr.rel (0) target = $region85
    $region84: #{tpu_custom_call.1} parent=1 // pred_region
      %134 = dma.done [#allocation12], 64
    $region85: #{tpu_custom_call.1} parent=1 // pred_fallthru
      _
    %v135 = vld [vmem:[%s0] sm:$0xff]
    %v136 = vld [vmem:[%s0 + $0x8] sm:$0xff]
    %v137 = vld [vmem:[#allocation2] sm:$0xff]
    %v138 = vadd.f32 %v135, %v137
    %v139 = vadd.f32 %v136, %v137
    %v140 = vld [vmem:[%s1] sm:$0xff]
    %v141 = vld [vmem:[%s1 + $0x8] sm:$0xff]
    %v142 = vlaneseq
    %v143 = vshrl.u32 %v142, 7
    %v144 = vlaneseq
    %v145 = vand.u32 %v144, 127
    %vm146 = vcmp.gt.s32.totalorder %v145, %v143
    %v147 = vsel %vm146, -1e+09, 0.0
    %v148 = vld [vmem:[%s3] sm:$0xff]
    %v149 = vld [vmem:[%s3 + $0x8] sm:$0xff]
    %v150 = vld [vmem:[%s3 + $0x10] sm:$0xff]
    %v151 = vld [vmem:[%s3 + $0x18] sm:$0xff]
    %v152 = vld [vmem:[%s4] sm:$0x1]
    %v153 = vlaneseq
    %v154 = vshrl.u32 %v153, 7
    %v155 = vsub.s32 0, %v154
    %v156 = vrot.slane %v152, %v155
    %vm157 = vcmask 261120
    %v159 = vsel %vm157, %v138, 0
    %v162 = vsel %vm157, %v139, 0
    %164 = vmatprep.subr.mxu0 0.0
    %165 = vmatpush1.msra.mxu0 0.0
    %166 = vmatprep.subr.mxu0 0.0
    %167 = vmatpush1.msra.mxu0 0.0
    %168 = vmatprep.subr.mxu0 0.0
    %169 = vmatpush1.msra.mxu0 0.0
    %170 = vmatprep.subr.mxu0 0.0
    %171 = vmatpush1.msra.mxu0 0.0
    %172 = vmatprep.subr.mxu0 0.0
    %173 = vmatpush1.msra.mxu0 0.0
    %174 = vmatprep.subr.mxu0 0.0
    %175 = vmatpush1.msra.mxu0 0.0
    %176 = vmatprep.subr.mxu0 0.0
    %177 = vmatpush1.msra.mxu0 0.0
    %178 = vmatprep.subr.mxu0 0.0
    %179 = vmatpush1.msra.mxu0 0.0
    %180 = vmatprep.subr.mxu0 0.0
    %181 = vmatpush1.msra.mxu0 0.0
    %182 = vmatprep.subr.mxu0 0.0
    %183 = vmatpush1.msra.mxu0 0.0
    %184 = vmatprep.subr.mxu0 0.0
    %185 = vmatpush1.msra.mxu0 0.0
    %186 = vmatprep.subr.mxu0 0.0
    %187 = vmatpush1.msra.mxu0 0.0
    %188 = vmatprep.subr.mxu0 0.0
    %189 = vmatpush1.msra.mxu0 %v151
    %190 = vmatprep.subr.mxu0 0.0
    %191 = vmatpush1.msra.mxu0 %v150
    %192 = vmatprep.subr.mxu0 0.0
    %193 = vmatpush1.msra.mxu0 %v149
    %194 = vmatprep.subr.mxu0 0.0
    %195 = vmatpush1.msra.mxu0 %v148
    %196 = vmatprep.subr.mxu0 0.0
    %197 = vmatpush2.msra.mxu0 0.0
    %198 = vmatprep.subr.mxu0 0.0
    %199 = vmatpush2.msra.mxu0 0.0
    %200 = vmatprep.subr.mxu0 0.0
    %201 = vmatpush2.msra.mxu0 0.0
    %202 = vmatprep.subr.mxu0 0.0
    %203 = vmatpush2.msra.mxu0 0.0
    %204 = vmatprep.subr.mxu0 0.0
    %205 = vmatpush2.msra.mxu0 0.0
    %206 = vmatprep.subr.mxu0 0.0
    %207 = vmatpush2.msra.mxu0 0.0
    %208 = vmatprep.subr.mxu0 0.0
    %209 = vmatpush2.msra.mxu0 0.0
    %210 = vmatprep.subr.mxu0 0.0
    %211 = vmatpush2.msra.mxu0 0.0
    %212 = vmatprep.subr.mxu0 0.0
    %213 = vmatpush2.msra.mxu0 0.0
    %214 = vmatprep.subr.mxu0 0.0
    %215 = vmatpush2.msra.mxu0 0.0
    %216 = vmatprep.subr.mxu0 0.0
    %217 = vmatpush2.msra.mxu0 0.0
    %218 = vmatprep.subr.mxu0 0.0
    %219 = vmatpush2.msra.mxu0 0.0
    %220 = vmatprep.subr.mxu0 0.0
    %221 = vmatpush2.msra.mxu0 0.0
    %222 = vmatprep.subr.mxu0 0.0
    %223 = vmatpush2.msra.mxu0 0.0
    %224 = vmatprep.subr.mxu0 0.0
    %225 = vmatpush2.msra.mxu0 0.0
    %226 = vmatprep.subr.mxu0 0.0
    %227 = vmatpush2.msra.mxu0 0.0
    %228 = vmatprep.mubr.f32.mxu0 0.0
    %229 = vmatmul.mubr.f32.gmra.mxu0 %v159
    %v230 = vpop.f32.mrf.mxu0
    %v231 = vadd.f32 %v156, %v230
    %v232 = vpop.f32.mrf.mxu0
    %233 = vmatprep.mubr.f32.mxu0 0.0
    %234 = vmatmul.mubr.f32.gmra.mxu0 %v162
    %v235 = vpop.f32.mrf.mxu0
    %v236 = vadd.f32 %v156, %v235
    %v237 = vpop.f32.mrf.mxu0
    %238 = vdwg.mxu0
    %241 = vrot.lane.b32.xlu0 %v231, 120
    %v242 = vpop.permute.xlu0 %241
    %243 = vrot.lane.b32.xlu0 %v236, 120
    %v244 = vpop.permute.xlu0 %243
    %245 = vrot.lane.b32.xlu0 %v231, 112
    %v246 = vpop.permute.xlu0 %245
    %247 = vrot.lane.b32.xlu0 %v236, 112
    %v248 = vpop.permute.xlu0 %247
    %249 = vrot.lane.b32.xlu0 %v231, 104
    %v250 = vpop.permute.xlu0 %249
    %251 = vrot.lane.b32.xlu0 %v236, 104
    %v252 = vpop.permute.xlu0 %251
    %253 = vrot.lane.b32.xlu0 %v231, 96
    %v254 = vpop.permute.xlu0 %253
    %vm255 = vcmask 64512
    %v256 = vsel %vm255, %v231, 0
    %v258 = vsel %vm255, %v254, 0
    %260 = vmatprep.subr.mxu0 0.0
    %261 = vmatpush1.xpose.msra.mxu0 0.0
    %262 = vmatprep.subr.mxu0 0.0
    %263 = vmatpush1.xpose.msra.mxu0 0.0
    %264 = vmatprep.subr.mxu0 0.0
    %265 = vmatpush1.xpose.msra.mxu0 0.0
    %266 = vmatprep.subr.mxu0 0.0
    %267 = vmatpush1.xpose.msra.mxu0 0.0
    %268 = vmatprep.subr.mxu0 0.0
    %269 = vmatpush1.xpose.msra.mxu0 0.0
    %270 = vmatprep.subr.mxu0 0.0
    %271 = vmatpush1.xpose.msra.mxu0 0.0
    %272 = vmatprep.subr.mxu0 0.0
    %273 = vmatpush1.xpose.msra.mxu0 0.0
    %274 = vmatprep.subr.mxu0 0.0
    %275 = vmatpush1.xpose.msra.mxu0 0.0
    %276 = vmatprep.subr.mxu0 0.0
    %277 = vmatpush1.xpose.msra.mxu0 0.0
    %278 = vmatprep.subr.mxu0 0.0
    %279 = vmatpush1.xpose.msra.mxu0 0.0
    %280 = vmatprep.subr.mxu0 0.0
    %281 = vmatpush1.xpose.msra.mxu0 0.0
    %282 = vmatprep.subr.mxu0 0.0
    %283 = vmatpush1.xpose.msra.mxu0 0.0
    %284 = vmatprep.subr.mxu0 0.0
    %285 = vmatpush1.xpose.msra.mxu0 0.0
    %286 = vmatprep.subr.mxu0 0.0
    %287 = vmatpush1.xpose.msra.mxu0 0.0
    %288 = vmatprep.subr.mxu0 0.0
    %289 = vmatpush1.xpose.msra.mxu0 0.0
    %290 = vmatprep.subr.mxu0 0.0
    %291 = vmatpush1.xpose.msra.mxu0 %v258
    %292 = vmatprep.subr.mxu0 0.0
    %293 = vmatpush2.xpose.msra.mxu0 0.0
    %294 = vmatprep.subr.mxu0 0.0
    %295 = vmatpush2.xpose.msra.mxu0 0.0
    %296 = vmatprep.subr.mxu0 0.0
    %297 = vmatpush2.xpose.msra.mxu0 0.0
    %298 = vmatprep.subr.mxu0 0.0
    %299 = vmatpush2.xpose.msra.mxu0 0.0
    %300 = vmatprep.subr.mxu0 0.0
    %301 = vmatpush2.xpose.msra.mxu0 0.0
    %302 = vmatprep.subr.mxu0 0.0
    %303 = vmatpush2.xpose.msra.mxu0 0.0
    %304 = vmatprep.subr.mxu0 0.0
    %305 = vmatpush2.xpose.msra.mxu0 0.0
    %306 = vmatprep.subr.mxu0 0.0
    %307 = vmatpush2.xpose.msra.mxu0 0.0
    %308 = vmatprep.subr.mxu0 0.0
    %309 = vmatpush2.xpose.msra.mxu0 0.0
    %310 = vmatprep.subr.mxu0 0.0
    %311 = vmatpush2.xpose.msra.mxu0 0.0
    %312 = vmatprep.subr.mxu0 0.0
    %313 = vmatpush2.xpose.msra.mxu0 0.0
    %314 = vmatprep.subr.mxu0 0.0
    %315 = vmatpush2.xpose.msra.mxu0 0.0
    %316 = vmatprep.subr.mxu0 0.0
    %317 = vmatpush2.xpose.msra.mxu0 0.0
    %318 = vmatprep.subr.mxu0 0.0
    %319 = vmatpush2.xpose.msra.mxu0 0.0
    %320 = vmatprep.subr.mxu0 0.0
    %321 = vmatpush2.xpose.msra.mxu0 0.0
    %322 = vmatprep.subr.mxu0 0.0
    %323 = vmatpush2.xpose.msra.mxu0 0.0
    %324 = vmatprep.mubr.f32.mxu0 0.0
    %325 = vmatmul.mubr.f32.gmra.mxu0 %v256
    %v326 = vpop.f32.mrf.mxu0
    %v327 = vadd.f32 0.0, %v326
    %v328 = vpop.f32.mrf.mxu0
    %329 = vdwg.mxu0
    %330 = vrot.lane.b32.xlu0 %v236, 96
    %v331 = vpop.permute.xlu0 %330
    %v332 = vsel %vm255, %v236, 0
    %v334 = vsel %vm255, %v331, 0
    %336 = vmatprep.subr.mxu0 0.0
    %337 = vmatpush1.xpose.msra.mxu0 0.0
    %338 = vmatprep.subr.mxu0 0.0
    %339 = vmatpush1.xpose.msra.mxu0 0.0
    %340 = vmatprep.subr.mxu0 0.0
    %341 = vmatpush1.xpose.msra.mxu0 0.0
    %342 = vmatprep.subr.mxu0 0.0
    %343 = vmatpush1.xpose.msra.mxu0 0.0
    %344 = vmatprep.subr.mxu0 0.0
    %345 = vmatpush1.xpose.msra.mxu0 0.0
    %346 = vmatprep.subr.mxu0 0.0
    %347 = vmatpush1.xpose.msra.mxu0 0.0
    %348 = vmatprep.subr.mxu0 0.0
    %349 = vmatpush1.xpose.msra.mxu0 0.0
    %350 = vmatprep.subr.mxu0 0.0
    %351 = vmatpush1.xpose.msra.mxu0 0.0
    %352 = vmatprep.subr.mxu0 0.0
    %353 = vmatpush1.xpose.msra.mxu0 0.0
    %354 = vmatprep.subr.mxu0 0.0
    %355 = vmatpush1.xpose.msra.mxu0 0.0
    %356 = vmatprep.subr.mxu0 0.0
    %357 = vmatpush1.xpose.msra.mxu0 0.0
    %358 = vmatprep.subr.mxu0 0.0
    %359 = vmatpush1.xpose.msra.mxu0 0.0
    %360 = vmatprep.subr.mxu0 0.0
    %361 = vmatpush1.xpose.msra.mxu0 0.0
    %362 = vmatprep.subr.mxu0 0.0
    %363 = vmatpush1.xpose.msra.mxu0 0.0
    %364 = vmatprep.subr.mxu0 0.0
    %365 = vmatpush1.xpose.msra.mxu0 0.0
    %366 = vmatprep.subr.mxu0 0.0
    %367 = vmatpush1.xpose.msra.mxu0 %v334
    %368 = vmatprep.subr.mxu0 0.0
    %369 = vmatpush2.xpose.msra.mxu0 0.0
    %370 = vmatprep.subr.mxu0 0.0
    %371 = vmatpush2.xpose.msra.mxu0 0.0
    %372 = vmatprep.subr.mxu0 0.0
    %373 = vmatpush2.xpose.msra.mxu0 0.0
    %374 = vmatprep.subr.mxu0 0.0
    %375 = vmatpush2.xpose.msra.mxu0 0.0
    %376 = vmatprep.subr.mxu0 0.0
    %377 = vmatpush2.xpose.msra.mxu0 0.0
    %378 = vmatprep.subr.mxu0 0.0
    %379 = vmatpush2.xpose.msra.mxu0 0.0
    %380 = vmatprep.subr.mxu0 0.0
    %381 = vmatpush2.xpose.msra.mxu0 0.0
    %382 = vmatprep.subr.mxu0 0.0
    %383 = vmatpush2.xpose.msra.mxu0 0.0
    %384 = vmatprep.subr.mxu0 0.0
    %385 = vmatpush2.xpose.msra.mxu0 0.0
    %386 = vmatprep.subr.mxu0 0.0
    %387 = vmatpush2.xpose.msra.mxu0 0.0
    %388 = vmatprep.subr.mxu0 0.0
    %389 = vmatpush2.xpose.msra.mxu0 0.0
    %390 = vmatprep.subr.mxu0 0.0
    %391 = vmatpush2.xpose.msra.mxu0 0.0
    %392 = vmatprep.subr.mxu0 0.0
    %393 = vmatpush2.xpose.msra.mxu0 0.0
    %394 = vmatprep.subr.mxu0 0.0
    %395 = vmatpush2.xpose.msra.mxu0 0.0
    %396 = vmatprep.subr.mxu0 0.0
    %397 = vmatpush2.xpose.msra.mxu0 0.0
    %398 = vmatprep.subr.mxu0 0.0
    %399 = vmatpush2.xpose.msra.mxu0 0.0
    %400 = vmatprep.mubr.f32.mxu0 0.0
    %401 = vmatmul.mubr.f32.gmra.mxu0 %v332
    %v402 = vpop.f32.mrf.mxu0
    %v403 = vadd.f32 0.0, %v402
    %v404 = vpop.f32.mrf.mxu0
    %405 = vdwg.mxu0
    %406 = vrot.lane.b32.xlu0 %v242, 96
    %v407 = vpop.permute.xlu0 %406
    %v408 = vsel %vm255, %v242, 0
    %v410 = vsel %vm255, %v407, 0
    %412 = vmatprep.subr.mxu0 0.0
    %413 = vmatpush1.xpose.msra.mxu0 0.0
    %414 = vmatprep.subr.mxu0 0.0
    %415 = vmatpush1.xpose.msra.mxu0 0.0
    %416 = vmatprep.subr.mxu0 0.0
    %417 = vmatpush1.xpose.msra.mxu0 0.0
    %418 = vmatprep.subr.mxu0 0.0
    %419 = vmatpush1.xpose.msra.mxu0 0.0
    %420 = vmatprep.subr.mxu0 0.0
    %421 = vmatpush1.xpose.msra.mxu0 0.0
    %422 = vmatprep.subr.mxu0 0.0
    %423 = vmatpush1.xpose.msra.mxu0 0.0
    %424 = vmatprep.subr.mxu0 0.0
    %425 = vmatpush1.xpose.msra.mxu0 0.0
    %426 = vmatprep.subr.mxu0 0.0
    %427 = vmatpush1.xpose.msra.mxu0 0.0
    %428 = vmatprep.subr.mxu0 0.0
    %429 = vmatpush1.xpose.msra.mxu0 0.0
    %430 = vmatprep.subr.mxu0 0.0
    %431 = vmatpush1.xpose.msra.mxu0 0.0
    %432 = vmatprep.subr.mxu0 0.0
    %433 = vmatpush1.xpose.msra.mxu0 0.0
    %434 = vmatprep.subr.mxu0 0.0
    %435 = vmatpush1.xpose.msra.mxu0 0.0
    %436 = vmatprep.subr.mxu0 0.0
    %437 = vmatpush1.xpose.msra.mxu0 0.0
    %438 = vmatprep.subr.mxu0 0.0
    %439 = vmatpush1.xpose.msra.mxu0 0.0
    %440 = vmatprep.subr.mxu0 0.0
    %441 = vmatpush1.xpose.msra.mxu0 0.0
    %442 = vmatprep.subr.mxu0 0.0
    %443 = vmatpush1.xpose.msra.mxu0 %v410
    %444 = vmatprep.subr.mxu0 0.0
    %445 = vmatpush2.xpose.msra.mxu0 0.0
    %446 = vmatprep.subr.mxu0 0.0
    %447 = vmatpush2.xpose.msra.mxu0 0.0
    %448 = vmatprep.subr.mxu0 0.0
    %449 = vmatpush2.xpose.msra.mxu0 0.0
    %450 = vmatprep.subr.mxu0 0.0
    %451 = vmatpush2.xpose.msra.mxu0 0.0
    %452 = vmatprep.subr.mxu0 0.0
    %453 = vmatpush2.xpose.msra.mxu0 0.0
    %454 = vmatprep.subr.mxu0 0.0
    %455 = vmatpush2.xpose.msra.mxu0 0.0
    %456 = vmatprep.subr.mxu0 0.0
    %457 = vmatpush2.xpose.msra.mxu0 0.0
    %458 = vmatprep.subr.mxu0 0.0
    %459 = vmatpush2.xpose.msra.mxu0 0.0
    %460 = vmatprep.subr.mxu0 0.0
    %461 = vmatpush2.xpose.msra.mxu0 0.0
    %462 = vmatprep.subr.mxu0 0.0
    %463 = vmatpush2.xpose.msra.mxu0 0.0
    %464 = vmatprep.subr.mxu0 0.0
    %465 = vmatpush2.xpose.msra.mxu0 0.0
    %466 = vmatprep.subr.mxu0 0.0
    %467 = vmatpush2.xpose.msra.mxu0 0.0
    %468 = vmatprep.subr.mxu0 0.0
    %469 = vmatpush2.xpose.msra.mxu0 0.0
    %470 = vmatprep.subr.mxu0 0.0
    %471 = vmatpush2.xpose.msra.mxu0 0.0
    %472 = vmatprep.subr.mxu0 0.0
    %473 = vmatpush2.xpose.msra.mxu0 0.0
    %474 = vmatprep.subr.mxu0 0.0
    %475 = vmatpush2.xpose.msra.mxu0 0.0
    %476 = vmatprep.mubr.f32.mxu0 0.0
    %477 = vmatmul.mubr.f32.gmra.mxu0 %v408
    %v478 = vpop.f32.mrf.mxu0
    %v479 = vadd.f32 0.0, %v478
    %v480 = vpop.f32.mrf.mxu0
    %481 = vdwg.mxu0
    %482 = vrot.lane.b32.xlu0 %v244, 96
    %v483 = vpop.permute.xlu0 %482
    %v484 = vsel %vm255, %v244, 0
    %v486 = vsel %vm255, %v483, 0
    %488 = vmatprep.subr.mxu0 0.0
    %489 = vmatpush1.xpose.msra.mxu0 0.0
    %490 = vmatprep.subr.mxu0 0.0
    %491 = vmatpush1.xpose.msra.mxu0 0.0
    %492 = vmatprep.subr.mxu0 0.0
    %493 = vmatpush1.xpose.msra.mxu0 0.0
    %494 = vmatprep.subr.mxu0 0.0
    %495 = vmatpush1.xpose.msra.mxu0 0.0
    %496 = vmatprep.subr.mxu0 0.0
    %497 = vmatpush1.xpose.msra.mxu0 0.0
    %498 = vmatprep.subr.mxu0 0.0
    %499 = vmatpush1.xpose.msra.mxu0 0.0
    %500 = vmatprep.subr.mxu0 0.0
    %501 = vmatpush1.xpose.msra.mxu0 0.0
    %502 = vmatprep.subr.mxu0 0.0
    %503 = vmatpush1.xpose.msra.mxu0 0.0
    %504 = vmatprep.subr.mxu0 0.0
    %505 = vmatpush1.xpose.msra.mxu0 0.0
    %506 = vmatprep.subr.mxu0 0.0
    %507 = vmatpush1.xpose.msra.mxu0 0.0
    %508 = vmatprep.subr.mxu0 0.0
    %509 = vmatpush1.xpose.msra.mxu0 0.0
    %510 = vmatprep.subr.mxu0 0.0
    %511 = vmatpush1.xpose.msra.mxu0 0.0
    %512 = vmatprep.subr.mxu0 0.0
    %513 = vmatpush1.xpose.msra.mxu0 0.0
    %514 = vmatprep.subr.mxu0 0.0
    %515 = vmatpush1.xpose.msra.mxu0 0.0
    %516 = vmatprep.subr.mxu0 0.0
    %517 = vmatpush1.xpose.msra.mxu0 0.0
    %518 = vmatprep.subr.mxu0 0.0
    %519 = vmatpush1.xpose.msra.mxu0 %v486
    %520 = vmatprep.subr.mxu0 0.0
    %521 = vmatpush2.xpose.msra.mxu0 0.0
    %522 = vmatprep.subr.mxu0 0.0
    %523 = vmatpush2.xpose.msra.mxu0 0.0
    %524 = vmatprep.subr.mxu0 0.0
    %525 = vmatpush2.xpose.msra.mxu0 0.0
    %526 = vmatprep.subr.mxu0 0.0
    %527 = vmatpush2.xpose.msra.mxu0 0.0
    %528 = vmatprep.subr.mxu0 0.0
    %529 = vmatpush2.xpose.msra.mxu0 0.0
    %530 = vmatprep.subr.mxu0 0.0
    %531 = vmatpush2.xpose.msra.mxu0 0.0
    %532 = vmatprep.subr.mxu0 0.0
    %533 = vmatpush2.xpose.msra.mxu0 0.0
    %534 = vmatprep.subr.mxu0 0.0
    %535 = vmatpush2.xpose.msra.mxu0 0.0
    %536 = vmatprep.subr.mxu0 0.0
    %537 = vmatpush2.xpose.msra.mxu0 0.0
    %538 = vmatprep.subr.mxu0 0.0
    %539 = vmatpush2.xpose.msra.mxu0 0.0
    %540 = vmatprep.subr.mxu0 0.0
    %541 = vmatpush2.xpose.msra.mxu0 0.0
    %542 = vmatprep.subr.mxu0 0.0
    %543 = vmatpush2.xpose.msra.mxu0 0.0
    %544 = vmatprep.subr.mxu0 0.0
    %545 = vmatpush2.xpose.msra.mxu0 0.0
    %546 = vmatprep.subr.mxu0 0.0
    %547 = vmatpush2.xpose.msra.mxu0 0.0
    %548 = vmatprep.subr.mxu0 0.0
    %549 = vmatpush2.xpose.msra.mxu0 0.0
    %550 = vmatprep.subr.mxu0 0.0
    %551 = vmatpush2.xpose.msra.mxu0 0.0
    %552 = vmatprep.mubr.f32.mxu0 0.0
    %553 = vmatmul.mubr.f32.gmra.mxu0 %v484
    %v554 = vpop.f32.mrf.mxu0
    %v555 = vadd.f32 0.0, %v554
    %v556 = vpop.f32.mrf.mxu0
    %557 = vdwg.mxu0
    %558 = vrot.lane.b32.xlu0 %v246, 96
    %v559 = vpop.permute.xlu0 %558
    %v560 = vsel %vm255, %v246, 0
    %v562 = vsel %vm255, %v559, 0
    %564 = vmatprep.subr.mxu0 0.0
    %565 = vmatpush1.xpose.msra.mxu0 0.0
    %566 = vmatprep.subr.mxu0 0.0
    %567 = vmatpush1.xpose.msra.mxu0 0.0
    %568 = vmatprep.subr.mxu0 0.0
    %569 = vmatpush1.xpose.msra.mxu0 0.0
    %570 = vmatprep.subr.mxu0 0.0
    %571 = vmatpush1.xpose.msra.mxu0 0.0
    %572 = vmatprep.subr.mxu0 0.0
    %573 = vmatpush1.xpose.msra.mxu0 0.0
    %574 = vmatprep.subr.mxu0 0.0
    %575 = vmatpush1.xpose.msra.mxu0 0.0
    %576 = vmatprep.subr.mxu0 0.0
    %577 = vmatpush1.xpose.msra.mxu0 0.0
    %578 = vmatprep.subr.mxu0 0.0
    %579 = vmatpush1.xpose.msra.mxu0 0.0
    %580 = vmatprep.subr.mxu0 0.0
    %581 = vmatpush1.xpose.msra.mxu0 0.0
    %582 = vmatprep.subr.mxu0 0.0
    %583 = vmatpush1.xpose.msra.mxu0 0.0
    %584 = vmatprep.subr.mxu0 0.0
    %585 = vmatpush1.xpose.msra.mxu0 0.0
    %586 = vmatprep.subr.mxu0 0.0
    %587 = vmatpush1.xpose.msra.mxu0 0.0
    %588 = vmatprep.subr.mxu0 0.0
    %589 = vmatpush1.xpose.msra.mxu0 0.0
    %590 = vmatprep.subr.mxu0 0.0
    %591 = vmatpush1.xpose.msra.mxu0 0.0
    %592 = vmatprep.subr.mxu0 0.0
    %593 = vmatpush1.xpose.msra.mxu0 0.0
    %594 = vmatprep.subr.mxu0 0.0
    %595 = vmatpush1.xpose.msra.mxu0 %v562
    %596 = vmatprep.subr.mxu0 0.0
    %597 = vmatpush2.xpose.msra.mxu0 0.0
    %598 = vmatprep.subr.mxu0 0.0
    %599 = vmatpush2.xpose.msra.mxu0 0.0
    %600 = vmatprep.subr.mxu0 0.0
    %601 = vmatpush2.xpose.msra.mxu0 0.0
    %602 = vmatprep.subr.mxu0 0.0
    %603 = vmatpush2.xpose.msra.mxu0 0.0
    %604 = vmatprep.subr.mxu0 0.0
    %605 = vmatpush2.xpose.msra.mxu0 0.0
    %606 = vmatprep.subr.mxu0 0.0
    %607 = vmatpush2.xpose.msra.mxu0 0.0
    %608 = vmatprep.subr.mxu0 0.0
    %609 = vmatpush2.xpose.msra.mxu0 0.0
    %610 = vmatprep.subr.mxu0 0.0
    %611 = vmatpush2.xpose.msra.mxu0 0.0
    %612 = vmatprep.subr.mxu0 0.0
    %613 = vmatpush2.xpose.msra.mxu0 0.0
    %614 = vmatprep.subr.mxu0 0.0
    %615 = vmatpush2.xpose.msra.mxu0 0.0
    %616 = vmatprep.subr.mxu0 0.0
    %617 = vmatpush2.xpose.msra.mxu0 0.0
    %618 = vmatprep.subr.mxu0 0.0
    %619 = vmatpush2.xpose.msra.mxu0 0.0
    %620 = vmatprep.subr.mxu0 0.0
    %621 = vmatpush2.xpose.msra.mxu0 0.0
    %622 = vmatprep.subr.mxu0 0.0
    %623 = vmatpush2.xpose.msra.mxu0 0.0
    %624 = vmatprep.subr.mxu0 0.0
    %625 = vmatpush2.xpose.msra.mxu0 0.0
    %626 = vmatprep.subr.mxu0 0.0
    %627 = vmatpush2.xpose.msra.mxu0 0.0
    %628 = vmatprep.mubr.f32.mxu0 0.0
    %629 = vmatmul.mubr.f32.gmra.mxu0 %v560
    %v630 = vpop.f32.mrf.mxu0
    %v631 = vadd.f32 0.0, %v630
    %v632 = vpop.f32.mrf.mxu0
    %633 = vdwg.mxu0
    %634 = vrot.lane.b32.xlu0 %v248, 96
    %v635 = vpop.permute.xlu0 %634
    %v636 = vsel %vm255, %v248, 0
    %v638 = vsel %vm255, %v635, 0
    %640 = vmatprep.subr.mxu0 0.0
    %641 = vmatpush1.xpose.msra.mxu0 0.0
    %642 = vmatprep.subr.mxu0 0.0
    %643 = vmatpush1.xpose.msra.mxu0 0.0
    %644 = vmatprep.subr.mxu0 0.0
    %645 = vmatpush1.xpose.msra.mxu0 0.0
    %646 = vmatprep.subr.mxu0 0.0
    %647 = vmatpush1.xpose.msra.mxu0 0.0
    %648 = vmatprep.subr.mxu0 0.0
    %649 = vmatpush1.xpose.msra.mxu0 0.0
    %650 = vmatprep.subr.mxu0 0.0
    %651 = vmatpush1.xpose.msra.mxu0 0.0
    %652 = vmatprep.subr.mxu0 0.0
    %653 = vmatpush1.xpose.msra.mxu0 0.0
    %654 = vmatprep.subr.mxu0 0.0
    %655 = vmatpush1.xpose.msra.mxu0 0.0
    %656 = vmatprep.subr.mxu0 0.0
    %657 = vmatpush1.xpose.msra.mxu0 0.0
    %658 = vmatprep.subr.mxu0 0.0
    %659 = vmatpush1.xpose.msra.mxu0 0.0
    %660 = vmatprep.subr.mxu0 0.0
    %661 = vmatpush1.xpose.msra.mxu0 0.0
    %662 = vmatprep.subr.mxu0 0.0
    %663 = vmatpush1.xpose.msra.mxu0 0.0
    %664 = vmatprep.subr.mxu0 0.0
    %665 = vmatpush1.xpose.msra.mxu0 0.0
    %666 = vmatprep.subr.mxu0 0.0
    %667 = vmatpush1.xpose.msra.mxu0 0.0
    %668 = vmatprep.subr.mxu0 0.0
    %669 = vmatpush1.xpose.msra.mxu0 0.0
    %670 = vmatprep.subr.mxu0 0.0
    %671 = vmatpush1.xpose.msra.mxu0 %v638
    %672 = vmatprep.subr.mxu0 0.0
    %673 = vmatpush2.xpose.msra.mxu0 0.0
    %674 = vmatprep.subr.mxu0 0.0
    %675 = vmatpush2.xpose.msra.mxu0 0.0
    %676 = vmatprep.subr.mxu0 0.0
    %677 = vmatpush2.xpose.msra.mxu0 0.0
    %678 = vmatprep.subr.mxu0 0.0
    %679 = vmatpush2.xpose.msra.mxu0 0.0
    %680 = vmatprep.subr.mxu0 0.0
    %681 = vmatpush2.xpose.msra.mxu0 0.0
    %682 = vmatprep.subr.mxu0 0.0
    %683 = vmatpush2.xpose.msra.mxu0 0.0
    %684 = vmatprep.subr.mxu0 0.0
    %685 = vmatpush2.xpose.msra.mxu0 0.0
    %686 = vmatprep.subr.mxu0 0.0
    %687 = vmatpush2.xpose.msra.mxu0 0.0
    %688 = vmatprep.subr.mxu0 0.0
    %689 = vmatpush2.xpose.msra.mxu0 0.0
    %690 = vmatprep.subr.mxu0 0.0
    %691 = vmatpush2.xpose.msra.mxu0 0.0
    %692 = vmatprep.subr.mxu0 0.0
    %693 = vmatpush2.xpose.msra.mxu0 0.0
    %694 = vmatprep.subr.mxu0 0.0
    %695 = vmatpush2.xpose.msra.mxu0 0.0
    %696 = vmatprep.subr.mxu0 0.0
    %697 = vmatpush2.xpose.msra.mxu0 0.0
    %698 = vmatprep.subr.mxu0 0.0
    %699 = vmatpush2.xpose.msra.mxu0 0.0
    %700 = vmatprep.subr.mxu0 0.0
    %701 = vmatpush2.xpose.msra.mxu0 0.0
    %702 = vmatprep.subr.mxu0 0.0
    %703 = vmatpush2.xpose.msra.mxu0 0.0
    %704 = vmatprep.mubr.f32.mxu0 0.0
    %705 = vmatmul.mubr.f32.gmra.mxu0 %v636
    %v706 = vpop.f32.mrf.mxu0
    %v707 = vadd.f32 0.0, %v706
    %v708 = vpop.f32.mrf.mxu0
    %709 = vdwg.mxu0
    %710 = vrot.lane.b32.xlu0 %v250, 96
    %v711 = vpop.permute.xlu0 %710
    %v712 = vsel %vm255, %v250, 0
    %v714 = vsel %vm255, %v711, 0
    %716 = vmatprep.subr.mxu0 0.0
    %717 = vmatpush1.xpose.msra.mxu0 0.0
    %718 = vmatprep.subr.mxu0 0.0
    %719 = vmatpush1.xpose.msra.mxu0 0.0
    %720 = vmatprep.subr.mxu0 0.0
    %721 = vmatpush1.xpose.msra.mxu0 0.0
    %722 = vmatprep.subr.mxu0 0.0
    %723 = vmatpush1.xpose.msra.mxu0 0.0
    %724 = vmatprep.subr.mxu0 0.0
    %725 = vmatpush1.xpose.msra.mxu0 0.0
    %726 = vmatprep.subr.mxu0 0.0
    %727 = vmatpush1.xpose.msra.mxu0 0.0
    %728 = vmatprep.subr.mxu0 0.0
    %729 = vmatpush1.xpose.msra.mxu0 0.0
    %730 = vmatprep.subr.mxu0 0.0
    %731 = vmatpush1.xpose.msra.mxu0 0.0
    %732 = vmatprep.subr.mxu0 0.0
    %733 = vmatpush1.xpose.msra.mxu0 0.0
    %734 = vmatprep.subr.mxu0 0.0
    %735 = vmatpush1.xpose.msra.mxu0 0.0
    %736 = vmatprep.subr.mxu0 0.0
    %737 = vmatpush1.xpose.msra.mxu0 0.0
    %738 = vmatprep.subr.mxu0 0.0
    %739 = vmatpush1.xpose.msra.mxu0 0.0
    %740 = vmatprep.subr.mxu0 0.0
    %741 = vmatpush1.xpose.msra.mxu0 0.0
    %742 = vmatprep.subr.mxu0 0.0
    %743 = vmatpush1.xpose.msra.mxu0 0.0
    %744 = vmatprep.subr.mxu0 0.0
    %745 = vmatpush1.xpose.msra.mxu0 0.0
    %746 = vmatprep.subr.mxu0 0.0
    %747 = vmatpush1.xpose.msra.mxu0 %v714
    %748 = vmatprep.subr.mxu0 0.0
    %749 = vmatpush2.xpose.msra.mxu0 0.0
    %750 = vmatprep.subr.mxu0 0.0
    %751 = vmatpush2.xpose.msra.mxu0 0.0
    %752 = vmatprep.subr.mxu0 0.0
    %753 = vmatpush2.xpose.msra.mxu0 0.0
    %754 = vmatprep.subr.mxu0 0.0
    %755 = vmatpush2.xpose.msra.mxu0 0.0
    %756 = vmatprep.subr.mxu0 0.0
    %757 = vmatpush2.xpose.msra.mxu0 0.0
    %758 = vmatprep.subr.mxu0 0.0
    %759 = vmatpush2.xpose.msra.mxu0 0.0
    %760 = vmatprep.subr.mxu0 0.0
    %761 = vmatpush2.xpose.msra.mxu0 0.0
    %762 = vmatprep.subr.mxu0 0.0
    %763 = vmatpush2.xpose.msra.mxu0 0.0
    %764 = vmatprep.subr.mxu0 0.0
    %765 = vmatpush2.xpose.msra.mxu0 0.0
    %766 = vmatprep.subr.mxu0 0.0
    %767 = vmatpush2.xpose.msra.mxu0 0.0
    %768 = vmatprep.subr.mxu0 0.0
    %769 = vmatpush2.xpose.msra.mxu0 0.0
    %770 = vmatprep.subr.mxu0 0.0
    %771 = vmatpush2.xpose.msra.mxu0 0.0
    %772 = vmatprep.subr.mxu0 0.0
    %773 = vmatpush2.xpose.msra.mxu0 0.0
    %774 = vmatprep.subr.mxu0 0.0
    %775 = vmatpush2.xpose.msra.mxu0 0.0
    %776 = vmatprep.subr.mxu0 0.0
    %777 = vmatpush2.xpose.msra.mxu0 0.0
    %778 = vmatprep.subr.mxu0 0.0
    %779 = vmatpush2.xpose.msra.mxu0 0.0
    %780 = vmatprep.mubr.f32.mxu0 0.0
    %781 = vmatmul.mubr.f32.gmra.mxu0 %v712
    %v782 = vpop.f32.mrf.mxu0
    %v783 = vadd.f32 0.0, %v782
    %v784 = vpop.f32.mrf.mxu0
    %785 = vdwg.mxu0
    %786 = vrot.lane.b32.xlu0 %v252, 96
    %v787 = vpop.permute.xlu0 %786
    %v788 = vsel %vm255, %v252, 0
    %v790 = vsel %vm255, %v787, 0
    %792 = vmatprep.subr.mxu0 0.0
    %793 = vmatpush1.xpose.msra.mxu0 0.0
    %794 = vmatprep.subr.mxu0 0.0
    %795 = vmatpush1.xpose.msra.mxu0 0.0
    %796 = vmatprep.subr.mxu0 0.0
    %797 = vmatpush1.xpose.msra.mxu0 0.0
    %798 = vmatprep.subr.mxu0 0.0
    %799 = vmatpush1.xpose.msra.mxu0 0.0
    %800 = vmatprep.subr.mxu0 0.0
    %801 = vmatpush1.xpose.msra.mxu0 0.0
    %802 = vmatprep.subr.mxu0 0.0
    %803 = vmatpush1.xpose.msra.mxu0 0.0
    %804 = vmatprep.subr.mxu0 0.0
    %805 = vmatpush1.xpose.msra.mxu0 0.0
    %806 = vmatprep.subr.mxu0 0.0
    %807 = vmatpush1.xpose.msra.mxu0 0.0
    %808 = vmatprep.subr.mxu0 0.0
    %809 = vmatpush1.xpose.msra.mxu0 0.0
    %810 = vmatprep.subr.mxu0 0.0
    %811 = vmatpush1.xpose.msra.mxu0 0.0
    %812 = vmatprep.subr.mxu0 0.0
    %813 = vmatpush1.xpose.msra.mxu0 0.0
    %814 = vmatprep.subr.mxu0 0.0
    %815 = vmatpush1.xpose.msra.mxu0 0.0
    %816 = vmatprep.subr.mxu0 0.0
    %817 = vmatpush1.xpose.msra.mxu0 0.0
    %818 = vmatprep.subr.mxu0 0.0
    %819 = vmatpush1.xpose.msra.mxu0 0.0
    %820 = vmatprep.subr.mxu0 0.0
    %821 = vmatpush1.xpose.msra.mxu0 0.0
    %822 = vmatprep.subr.mxu0 0.0
    %823 = vmatpush1.xpose.msra.mxu0 %v790
    %824 = vmatprep.subr.mxu0 0.0
    %825 = vmatpush2.xpose.msra.mxu0 0.0
    %826 = vmatprep.subr.mxu0 0.0
    %827 = vmatpush2.xpose.msra.mxu0 0.0
    %828 = vmatprep.subr.mxu0 0.0
    %829 = vmatpush2.xpose.msra.mxu0 0.0
    %830 = vmatprep.subr.mxu0 0.0
    %831 = vmatpush2.xpose.msra.mxu0 0.0
    %832 = vmatprep.subr.mxu0 0.0
    %833 = vmatpush2.xpose.msra.mxu0 0.0
    %834 = vmatprep.subr.mxu0 0.0
    %835 = vmatpush2.xpose.msra.mxu0 0.0
    %836 = vmatprep.subr.mxu0 0.0
    %837 = vmatpush2.xpose.msra.mxu0 0.0
    %838 = vmatprep.subr.mxu0 0.0
    %839 = vmatpush2.xpose.msra.mxu0 0.0
    %840 = vmatprep.subr.mxu0 0.0
    %841 = vmatpush2.xpose.msra.mxu0 0.0
    %842 = vmatprep.subr.mxu0 0.0
    %843 = vmatpush2.xpose.msra.mxu0 0.0
    %844 = vmatprep.subr.mxu0 0.0
    %845 = vmatpush2.xpose.msra.mxu0 0.0
    %846 = vmatprep.subr.mxu0 0.0
    %847 = vmatpush2.xpose.msra.mxu0 0.0
    %848 = vmatprep.subr.mxu0 0.0
    %849 = vmatpush2.xpose.msra.mxu0 0.0
    %850 = vmatprep.subr.mxu0 0.0
    %851 = vmatpush2.xpose.msra.mxu0 0.0
    %852 = vmatprep.subr.mxu0 0.0
    %853 = vmatpush2.xpose.msra.mxu0 0.0
    %854 = vmatprep.subr.mxu0 0.0
    %855 = vmatpush2.xpose.msra.mxu0 0.0
    %856 = vmatprep.mubr.f32.mxu0 0.0
    %857 = vmatmul.mubr.f32.gmra.mxu0 %v788
    %v858 = vpop.f32.mrf.mxu0
    %v859 = vadd.f32 0.0, %v858
    %v860 = vpop.f32.mrf.mxu0
    %861 = vdwg.mxu0
    %v862 = vmul.f32 %v327, 0.35355338
    %v863 = vmul.f32 %v403, 0.35355338
    %v864 = vmul.f32 %v479, 0.35355338
    %v865 = vmul.f32 %v555, 0.35355338
    %v866 = vmul.f32 %v631, 0.35355338
    %v867 = vmul.f32 %v707, 0.35355338
    %v868 = vmul.f32 %v783, 0.35355338
    %v869 = vmul.f32 %v859, 0.35355338
    %v870 = vadd.f32 %v862, %v147
    %v871 = vadd.f32 %v863, %v147
    %v872 = vadd.f32 %v864, %v147
    %v873 = vadd.f32 %v865, %v147
    %v874 = vadd.f32 %v866, %v147
    %v875 = vadd.f32 %v867, %v147
    %v876 = vadd.f32 %v868, %v147
    %v877 = vadd.f32 %v869, %v147
    %v878 = vsel %vm255, %v870, -inf
    %879 = vmax.xlane.f32.xlu0 %v878
    %v880 = vpop.xlane.xlu0 %879
    %v881 = vsel %vm255, %v871, -inf
    %882 = vmax.xlane.f32.xlu0 %v881
    %v883 = vpop.xlane.xlu0 %882
    %v884 = vsel %vm255, %v872, -inf
    %885 = vmax.xlane.f32.xlu0 %v884
    %v886 = vpop.xlane.xlu0 %885
    %v887 = vsel %vm255, %v873, -inf
    %888 = vmax.xlane.f32.xlu0 %v887
    %v889 = vpop.xlane.xlu0 %888
    %v890 = vsel %vm255, %v874, -inf
    %891 = vmax.xlane.f32.xlu0 %v890
    %v892 = vpop.xlane.xlu0 %891
    %v893 = vsel %vm255, %v875, -inf
    %894 = vmax.xlane.f32.xlu0 %v893
    %v895 = vpop.xlane.xlu0 %894
    %v896 = vsel %vm255, %v876, -inf
    %897 = vmax.xlane.f32.xlu0 %v896
    %v898 = vpop.xlane.xlu0 %897
    %v899 = vsel %vm255, %v877, -inf
    %900 = vmax.xlane.f32.xlu0 %v899
    %v901 = vpop.xlane.xlu0 %900
    %v902 = vsub.f32 %v870, %v880
    %v903 = vsub.f32 %v871, %v883
    %v904 = vsub.f32 %v872, %v886
    %v905 = vsub.f32 %v873, %v889
    %v906 = vsub.f32 %v874, %v892
    %v907 = vsub.f32 %v875, %v895
    %v908 = vsub.f32 %v876, %v898
    %v909 = vsub.f32 %v877, %v901
    %v910 = vmul.f32 %v902, 1.442695
    %v911 = vpow.pop %v910
    %v912 = vmul.f32 %v903, 1.442695
    %v913 = vpow.pop %v912
    %v914 = vmul.f32 %v904, 1.442695
    %v915 = vpow.pop %v914
    %v916 = vmul.f32 %v905, 1.442695
    %v917 = vpow.pop %v916
    %v918 = vmul.f32 %v906, 1.442695
    %v919 = vpow.pop %v918
    %v920 = vmul.f32 %v907, 1.442695
    %v921 = vpow.pop %v920
    %v922 = vmul.f32 %v908, 1.442695
    %v923 = vpow.pop %v922
    %v924 = vmul.f32 %v909, 1.442695
    %v925 = vpow.pop %v924
    %v926 = vsel %vm255, %v911, 0.0
    %927 = vadd.xlane.f32.xlu0 %v926
    %v928 = vpop.xlane.xlu0 %927
    %v929 = vsel %vm255, %v913, 0.0
    %930 = vadd.xlane.f32.xlu0 %v929
    %v931 = vpop.xlane.xlu0 %930
    %v932 = vsel %vm255, %v915, 0.0
    %933 = vadd.xlane.f32.xlu0 %v932
    %v934 = vpop.xlane.xlu0 %933
    %v935 = vsel %vm255, %v917, 0.0
    %936 = vadd.xlane.f32.xlu0 %v935
    %v937 = vpop.xlane.xlu0 %936
    %v938 = vsel %vm255, %v919, 0.0
    %939 = vadd.xlane.f32.xlu0 %v938
    %v940 = vpop.xlane.xlu0 %939
    %v941 = vsel %vm255, %v921, 0.0
    %942 = vadd.xlane.f32.xlu0 %v941
    %v943 = vpop.xlane.xlu0 %942
    %v944 = vsel %vm255, %v923, 0.0
    %945 = vadd.xlane.f32.xlu0 %v944
    %v946 = vpop.xlane.xlu0 %945
    %v947 = vsel %vm255, %v925, 0.0
    %948 = vadd.xlane.f32.xlu0 %v947
    %v949 = vpop.xlane.xlu0 %948
    %v950 = vrcp.pop %v928
    %v951 = vrcp.pop %v931
    %v952 = vrcp.pop %v934
    %v953 = vrcp.pop %v937
    %v954 = vrcp.pop %v940
    %v955 = vrcp.pop %v943
    %v956 = vrcp.pop %v946
    %v957 = vrcp.pop %v949
    %v958 = vmul.f32 %v911, %v950
    %v959 = vmul.f32 %v913, %v951
    %v960 = vmul.f32 %v915, %v952
    %v961 = vmul.f32 %v917, %v953
    %v962 = vmul.f32 %v919, %v954
    %v963 = vmul.f32 %v921, %v955
    %v964 = vmul.f32 %v923, %v956
    %v965 = vmul.f32 %v925, %v957
    %966 = vrot.lane.b32.xlu0 %v231, 64
    %v967 = vpop.permute.xlu0 %966
    %v970 = vsel %vm255, %v958, 0
    %972 = vmatprep.subr.mxu0 0.0
    %973 = vmatpush1.msra.mxu0 0.0
    %974 = vmatprep.subr.mxu0 0.0
    %975 = vmatpush1.msra.mxu0 0.0
    %976 = vmatprep.subr.mxu0 0.0
    %977 = vmatpush1.msra.mxu0 0.0
    %978 = vmatprep.subr.mxu0 0.0
    %979 = vmatpush1.msra.mxu0 0.0
    %980 = vmatprep.subr.mxu0 0.0
    %981 = vmatpush1.msra.mxu0 0.0
    %982 = vmatprep.subr.mxu0 0.0
    %983 = vmatpush1.msra.mxu0 0.0
    %984 = vmatprep.subr.mxu0 0.0
    %985 = vmatpush1.msra.mxu0 0.0
    %986 = vmatprep.subr.mxu0 0.0
    %987 = vmatpush1.msra.mxu0 0.0
    %988 = vmatprep.subr.mxu0 0.0
    %989 = vmatpush1.msra.mxu0 0.0
    %990 = vmatprep.subr.mxu0 0.0
    %991 = vmatpush1.msra.mxu0 0.0
    %992 = vmatprep.subr.mxu0 0.0
    %993 = vmatpush1.msra.mxu0 0.0
    %994 = vmatprep.subr.mxu0 0.0
    %995 = vmatpush1.msra.mxu0 0.0
    %996 = vmatprep.subr.mxu0 0.0
    %997 = vmatpush1.msra.mxu0 0.0
    %998 = vmatprep.subr.mxu0 0.0
    %999 = vmatpush1.msra.mxu0 0.0
    %1000 = vmatprep.subr.mxu0 0.0
    %1001 = vmatpush1.msra.mxu0 0.0
    %1002 = vmatprep.subr.mxu0 0.0
    %1003 = vmatpush1.msra.mxu0 %v967
    %1004 = vmatprep.subr.mxu0 0.0
    %1005 = vmatpush2.msra.mxu0 0.0
    %1006 = vmatprep.subr.mxu0 0.0
    %1007 = vmatpush2.msra.mxu0 0.0
    %1008 = vmatprep.subr.mxu0 0.0
    %1009 = vmatpush2.msra.mxu0 0.0
    %1010 = vmatprep.subr.mxu0 0.0
    %1011 = vmatpush2.msra.mxu0 0.0
    %1012 = vmatprep.subr.mxu0 0.0
    %1013 = vmatpush2.msra.mxu0 0.0
    %1014 = vmatprep.subr.mxu0 0.0
    %1015 = vmatpush2.msra.mxu0 0.0
    %1016 = vmatprep.subr.mxu0 0.0
    %1017 = vmatpush2.msra.mxu0 0.0
    %1018 = vmatprep.subr.mxu0 0.0
    %1019 = vmatpush2.msra.mxu0 0.0
    %1020 = vmatprep.subr.mxu0 0.0
    %1021 = vmatpush2.msra.mxu0 0.0
    %1022 = vmatprep.subr.mxu0 0.0
    %1023 = vmatpush2.msra.mxu0 0.0
    %1024 = vmatprep.subr.mxu0 0.0
    %1025 = vmatpush2.msra.mxu0 0.0
    %1026 = vmatprep.subr.mxu0 0.0
    %1027 = vmatpush2.msra.mxu0 0.0
    %1028 = vmatprep.subr.mxu0 0.0
    %1029 = vmatpush2.msra.mxu0 0.0
    %1030 = vmatprep.subr.mxu0 0.0
    %1031 = vmatpush2.msra.mxu0 0.0
    %1032 = vmatprep.subr.mxu0 0.0
    %1033 = vmatpush2.msra.mxu0 0.0
    %1034 = vmatprep.subr.mxu0 0.0
    %1035 = vmatpush2.msra.mxu0 0.0
    %1036 = vmatprep.mubr.f32.mxu0 0.0
    %1037 = vmatmul.mubr.f32.gmra.mxu0 %v970
    %v1038 = vpop.f32.mrf.mxu0
    %v1039 = vadd.f32 0.0, %v1038
    %v1040 = vpop.f32.mrf.mxu0
    %1041 = vdwg.mxu0
    %1042 = vrot.lane.b32.xlu0 %v236, 64
    %v1043 = vpop.permute.xlu0 %1042
    %v1046 = vsel %vm255, %v959, 0
    %1048 = vmatprep.subr.mxu0 0.0
    %1049 = vmatpush1.msra.mxu0 0.0
    %1050 = vmatprep.subr.mxu0 0.0
    %1051 = vmatpush1.msra.mxu0 0.0
    %1052 = vmatprep.subr.mxu0 0.0
    %1053 = vmatpush1.msra.mxu0 0.0
    %1054 = vmatprep.subr.mxu0 0.0
    %1055 = vmatpush1.msra.mxu0 0.0
    %1056 = vmatprep.subr.mxu0 0.0
    %1057 = vmatpush1.msra.mxu0 0.0
    %1058 = vmatprep.subr.mxu0 0.0
    %1059 = vmatpush1.msra.mxu0 0.0
    %1060 = vmatprep.subr.mxu0 0.0
    %1061 = vmatpush1.msra.mxu0 0.0
    %1062 = vmatprep.subr.mxu0 0.0
    %1063 = vmatpush1.msra.mxu0 0.0
    %1064 = vmatprep.subr.mxu0 0.0
    %1065 = vmatpush1.msra.mxu0 0.0
    %1066 = vmatprep.subr.mxu0 0.0
    %1067 = vmatpush1.msra.mxu0 0.0
    %1068 = vmatprep.subr.mxu0 0.0
    %1069 = vmatpush1.msra.mxu0 0.0
    %1070 = vmatprep.subr.mxu0 0.0
    %1071 = vmatpush1.msra.mxu0 0.0
    %1072 = vmatprep.subr.mxu0 0.0
    %1073 = vmatpush1.msra.mxu0 0.0
    %1074 = vmatprep.subr.mxu0 0.0
    %1075 = vmatpush1.msra.mxu0 0.0
    %1076 = vmatprep.subr.mxu0 0.0
    %1077 = vmatpush1.msra.mxu0 0.0
    %1078 = vmatprep.subr.mxu0 0.0
    %1079 = vmatpush1.msra.mxu0 %v1043
    %1080 = vmatprep.subr.mxu0 0.0
    %1081 = vmatpush2.msra.mxu0 0.0
    %1082 = vmatprep.subr.mxu0 0.0
    %1083 = vmatpush2.msra.mxu0 0.0
    %1084 = vmatprep.subr.mxu0 0.0
    %1085 = vmatpush2.msra.mxu0 0.0
    %1086 = vmatprep.subr.mxu0 0.0
    %1087 = vmatpush2.msra.mxu0 0.0
    %1088 = vmatprep.subr.mxu0 0.0
    %1089 = vmatpush2.msra.mxu0 0.0
    %1090 = vmatprep.subr.mxu0 0.0
    %1091 = vmatpush2.msra.mxu0 0.0
    %1092 = vmatprep.subr.mxu0 0.0
    %1093 = vmatpush2.msra.mxu0 0.0
    %1094 = vmatprep.subr.mxu0 0.0
    %1095 = vmatpush2.msra.mxu0 0.0
    %1096 = vmatprep.subr.mxu0 0.0
    %1097 = vmatpush2.msra.mxu0 0.0
    %1098 = vmatprep.subr.mxu0 0.0
    %1099 = vmatpush2.msra.mxu0 0.0
    %1100 = vmatprep.subr.mxu0 0.0
    %1101 = vmatpush2.msra.mxu0 0.0
    %1102 = vmatprep.subr.mxu0 0.0
    %1103 = vmatpush2.msra.mxu0 0.0
    %1104 = vmatprep.subr.mxu0 0.0
    %1105 = vmatpush2.msra.mxu0 0.0
    %1106 = vmatprep.subr.mxu0 0.0
    %1107 = vmatpush2.msra.mxu0 0.0
    %1108 = vmatprep.subr.mxu0 0.0
    %1109 = vmatpush2.msra.mxu0 0.0
    %1110 = vmatprep.subr.mxu0 0.0
    %1111 = vmatpush2.msra.mxu0 0.0
    %1112 = vmatprep.mubr.f32.mxu0 0.0
    %1113 = vmatmul.mubr.f32.gmra.mxu0 %v1046
    %v1114 = vpop.f32.mrf.mxu0
    %v1115 = vadd.f32 0.0, %v1114
    %v1116 = vpop.f32.mrf.mxu0
    %1117 = vdwg.mxu0
    %1118 = vrot.lane.b32.xlu0 %v242, 64
    %v1119 = vpop.permute.xlu0 %1118
    %v1122 = vsel %vm255, %v960, 0
    %1124 = vmatprep.subr.mxu0 0.0
    %1125 = vmatpush1.msra.mxu0 0.0
    %1126 = vmatprep.subr.mxu0 0.0
    %1127 = vmatpush1.msra.mxu0 0.0
    %1128 = vmatprep.subr.mxu0 0.0
    %1129 = vmatpush1.msra.mxu0 0.0
    %1130 = vmatprep.subr.mxu0 0.0
    %1131 = vmatpush1.msra.mxu0 0.0
    %1132 = vmatprep.subr.mxu0 0.0
    %1133 = vmatpush1.msra.mxu0 0.0
    %1134 = vmatprep.subr.mxu0 0.0
    %1135 = vmatpush1.msra.mxu0 0.0
    %1136 = vmatprep.subr.mxu0 0.0
    %1137 = vmatpush1.msra.mxu0 0.0
    %1138 = vmatprep.subr.mxu0 0.0
    %1139 = vmatpush1.msra.mxu0 0.0
    %1140 = vmatprep.subr.mxu0 0.0
    %1141 = vmatpush1.msra.mxu0 0.0
    %1142 = vmatprep.subr.mxu0 0.0
    %1143 = vmatpush1.msra.mxu0 0.0
    %1144 = vmatprep.subr.mxu0 0.0
    %1145 = vmatpush1.msra.mxu0 0.0
    %1146 = vmatprep.subr.mxu0 0.0
    %1147 = vmatpush1.msra.mxu0 0.0
    %1148 = vmatprep.subr.mxu0 0.0
    %1149 = vmatpush1.msra.mxu0 0.0
    %1150 = vmatprep.subr.mxu0 0.0
    %1151 = vmatpush1.msra.mxu0 0.0
    %1152 = vmatprep.subr.mxu0 0.0
    %1153 = vmatpush1.msra.mxu0 0.0
    %1154 = vmatprep.subr.mxu0 0.0
    %1155 = vmatpush1.msra.mxu0 %v1119
    %1156 = vmatprep.subr.mxu0 0.0
    %1157 = vmatpush2.msra.mxu0 0.0
    %1158 = vmatprep.subr.mxu0 0.0
    %1159 = vmatpush2.msra.mxu0 0.0
    %1160 = vmatprep.subr.mxu0 0.0
    %1161 = vmatpush2.msra.mxu0 0.0
    %1162 = vmatprep.subr.mxu0 0.0
    %1163 = vmatpush2.msra.mxu0 0.0
    %1164 = vmatprep.subr.mxu0 0.0
    %1165 = vmatpush2.msra.mxu0 0.0
    %1166 = vmatprep.subr.mxu0 0.0
    %1167 = vmatpush2.msra.mxu0 0.0
    %1168 = vmatprep.subr.mxu0 0.0
    %1169 = vmatpush2.msra.mxu0 0.0
    %1170 = vmatprep.subr.mxu0 0.0
    %1171 = vmatpush2.msra.mxu0 0.0
    %1172 = vmatprep.subr.mxu0 0.0
    %1173 = vmatpush2.msra.mxu0 0.0
    %1174 = vmatprep.subr.mxu0 0.0
    %1175 = vmatpush2.msra.mxu0 0.0
    %1176 = vmatprep.subr.mxu0 0.0
    %1177 = vmatpush2.msra.mxu0 0.0
    %1178 = vmatprep.subr.mxu0 0.0
    %1179 = vmatpush2.msra.mxu0 0.0
    %1180 = vmatprep.subr.mxu0 0.0
    %1181 = vmatpush2.msra.mxu0 0.0
    %1182 = vmatprep.subr.mxu0 0.0
    %1183 = vmatpush2.msra.mxu0 0.0
    %1184 = vmatprep.subr.mxu0 0.0
    %1185 = vmatpush2.msra.mxu0 0.0
    %1186 = vmatprep.subr.mxu0 0.0
    %1187 = vmatpush2.msra.mxu0 0.0
    %1188 = vmatprep.mubr.f32.mxu0 0.0
    %1189 = vmatmul.mubr.f32.gmra.mxu0 %v1122
    %v1190 = vpop.f32.mrf.mxu0
    %v1191 = vadd.f32 0.0, %v1190
    %v1192 = vpop.f32.mrf.mxu0
    %1193 = vdwg.mxu0
    %1194 = vrot.lane.b32.xlu0 %v244, 64
    %v1195 = vpop.permute.xlu0 %1194
    %v1198 = vsel %vm255, %v961, 0
    %1200 = vmatprep.subr.mxu0 0.0
    %1201 = vmatpush1.msra.mxu0 0.0
    %1202 = vmatprep.subr.mxu0 0.0
    %1203 = vmatpush1.msra.mxu0 0.0
    %1204 = vmatprep.subr.mxu0 0.0
    %1205 = vmatpush1.msra.mxu0 0.0
    %1206 = vmatprep.subr.mxu0 0.0
    %1207 = vmatpush1.msra.mxu0 0.0
    %1208 = vmatprep.subr.mxu0 0.0
    %1209 = vmatpush1.msra.mxu0 0.0
    %1210 = vmatprep.subr.mxu0 0.0
    %1211 = vmatpush1.msra.mxu0 0.0
    %1212 = vmatprep.subr.mxu0 0.0
    %1213 = vmatpush1.msra.mxu0 0.0
    %1214 = vmatprep.subr.mxu0 0.0
    %1215 = vmatpush1.msra.mxu0 0.0
    %1216 = vmatprep.subr.mxu0 0.0
    %1217 = vmatpush1.msra.mxu0 0.0
    %1218 = vmatprep.subr.mxu0 0.0
    %1219 = vmatpush1.msra.mxu0 0.0
    %1220 = vmatprep.subr.mxu0 0.0
    %1221 = vmatpush1.msra.mxu0 0.0
    %1222 = vmatprep.subr.mxu0 0.0
    %1223 = vmatpush1.msra.mxu0 0.0
    %1224 = vmatprep.subr.mxu0 0.0
    %1225 = vmatpush1.msra.mxu0 0.0
    %1226 = vmatprep.subr.mxu0 0.0
    %1227 = vmatpush1.msra.mxu0 0.0
    %1228 = vmatprep.subr.mxu0 0.0
    %1229 = vmatpush1.msra.mxu0 0.0
    %1230 = vmatprep.subr.mxu0 0.0
    %1231 = vmatpush1.msra.mxu0 %v1195
    %1232 = vmatprep.subr.mxu0 0.0
    %1233 = vmatpush2.msra.mxu0 0.0
    %1234 = vmatprep.subr.mxu0 0.0
    %1235 = vmatpush2.msra.mxu0 0.0
    %1236 = vmatprep.subr.mxu0 0.0
    %1237 = vmatpush2.msra.mxu0 0.0
    %1238 = vmatprep.subr.mxu0 0.0
    %1239 = vmatpush2.msra.mxu0 0.0
    %1240 = vmatprep.subr.mxu0 0.0
    %1241 = vmatpush2.msra.mxu0 0.0
    %1242 = vmatprep.subr.mxu0 0.0
    %1243 = vmatpush2.msra.mxu0 0.0
    %1244 = vmatprep.subr.mxu0 0.0
    %1245 = vmatpush2.msra.mxu0 0.0
    %1246 = vmatprep.subr.mxu0 0.0
    %1247 = vmatpush2.msra.mxu0 0.0
    %1248 = vmatprep.subr.mxu0 0.0
    %1249 = vmatpush2.msra.mxu0 0.0
    %1250 = vmatprep.subr.mxu0 0.0
    %1251 = vmatpush2.msra.mxu0 0.0
    %1252 = vmatprep.subr.mxu0 0.0
    %1253 = vmatpush2.msra.mxu0 0.0
    %1254 = vmatprep.subr.mxu0 0.0
    %1255 = vmatpush2.msra.mxu0 0.0
    %1256 = vmatprep.subr.mxu0 0.0
    %1257 = vmatpush2.msra.mxu0 0.0
    %1258 = vmatprep.subr.mxu0 0.0
    %1259 = vmatpush2.msra.mxu0 0.0
    %1260 = vmatprep.subr.mxu0 0.0
    %1261 = vmatpush2.msra.mxu0 0.0
    %1262 = vmatprep.subr.mxu0 0.0
    %1263 = vmatpush2.msra.mxu0 0.0
    %1264 = vmatprep.mubr.f32.mxu0 0.0
    %1265 = vmatmul.mubr.f32.gmra.mxu0 %v1198
    %v1266 = vpop.f32.mrf.mxu0
    %v1267 = vadd.f32 0.0, %v1266
    %v1268 = vpop.f32.mrf.mxu0
    %1269 = vdwg.mxu0
    %1270 = vrot.lane.b32.xlu0 %v246, 64
    %v1271 = vpop.permute.xlu0 %1270
    %v1274 = vsel %vm255, %v962, 0
    %1276 = vmatprep.subr.mxu0 0.0
    %1277 = vmatpush1.msra.mxu0 0.0
    %1278 = vmatprep.subr.mxu0 0.0
    %1279 = vmatpush1.msra.mxu0 0.0
    %1280 = vmatprep.subr.mxu0 0.0
    %1281 = vmatpush1.msra.mxu0 0.0
    %1282 = vmatprep.subr.mxu0 0.0
    %1283 = vmatpush1.msra.mxu0 0.0
    %1284 = vmatprep.subr.mxu0 0.0
    %1285 = vmatpush1.msra.mxu0 0.0
    %1286 = vmatprep.subr.mxu0 0.0
    %1287 = vmatpush1.msra.mxu0 0.0
    %1288 = vmatprep.subr.mxu0 0.0
    %1289 = vmatpush1.msra.mxu0 0.0
    %1290 = vmatprep.subr.mxu0 0.0
    %1291 = vmatpush1.msra.mxu0 0.0
    %1292 = vmatprep.subr.mxu0 0.0
    %1293 = vmatpush1.msra.mxu0 0.0
    %1294 = vmatprep.subr.mxu0 0.0
    %1295 = vmatpush1.msra.mxu0 0.0
    %1296 = vmatprep.subr.mxu0 0.0
    %1297 = vmatpush1.msra.mxu0 0.0
    %1298 = vmatprep.subr.mxu0 0.0
    %1299 = vmatpush1.msra.mxu0 0.0
    %1300 = vmatprep.subr.mxu0 0.0
    %1301 = vmatpush1.msra.mxu0 0.0
    %1302 = vmatprep.subr.mxu0 0.0
    %1303 = vmatpush1.msra.mxu0 0.0
    %1304 = vmatprep.subr.mxu0 0.0
    %1305 = vmatpush1.msra.mxu0 0.0
    %1306 = vmatprep.subr.mxu0 0.0
    %1307 = vmatpush1.msra.mxu0 %v1271
    %1308 = vmatprep.subr.mxu0 0.0
    %1309 = vmatpush2.msra.mxu0 0.0
    %1310 = vmatprep.subr.mxu0 0.0
    %1311 = vmatpush2.msra.mxu0 0.0
    %1312 = vmatprep.subr.mxu0 0.0
    %1313 = vmatpush2.msra.mxu0 0.0
    %1314 = vmatprep.subr.mxu0 0.0
    %1315 = vmatpush2.msra.mxu0 0.0
    %1316 = vmatprep.subr.mxu0 0.0
    %1317 = vmatpush2.msra.mxu0 0.0
    %1318 = vmatprep.subr.mxu0 0.0
    %1319 = vmatpush2.msra.mxu0 0.0
    %1320 = vmatprep.subr.mxu0 0.0
    %1321 = vmatpush2.msra.mxu0 0.0
    %1322 = vmatprep.subr.mxu0 0.0
    %1323 = vmatpush2.msra.mxu0 0.0
    %1324 = vmatprep.subr.mxu0 0.0
    %1325 = vmatpush2.msra.mxu0 0.0
    %1326 = vmatprep.subr.mxu0 0.0
    %1327 = vmatpush2.msra.mxu0 0.0
    %1328 = vmatprep.subr.mxu0 0.0
    %1329 = vmatpush2.msra.mxu0 0.0
    %1330 = vmatprep.subr.mxu0 0.0
    %1331 = vmatpush2.msra.mxu0 0.0
    %1332 = vmatprep.subr.mxu0 0.0
    %1333 = vmatpush2.msra.mxu0 0.0
    %1334 = vmatprep.subr.mxu0 0.0
    %1335 = vmatpush2.msra.mxu0 0.0
    %1336 = vmatprep.subr.mxu0 0.0
    %1337 = vmatpush2.msra.mxu0 0.0
    %1338 = vmatprep.subr.mxu0 0.0
    %1339 = vmatpush2.msra.mxu0 0.0
    %1340 = vmatprep.mubr.f32.mxu0 0.0
    %1341 = vmatmul.mubr.f32.gmra.mxu0 %v1274
    %v1342 = vpop.f32.mrf.mxu0
    %v1343 = vadd.f32 0.0, %v1342
    %v1344 = vpop.f32.mrf.mxu0
    %1345 = vdwg.mxu0
    %1346 = vrot.lane.b32.xlu0 %v248, 64
    %v1347 = vpop.permute.xlu0 %1346
    %v1350 = vsel %vm255, %v963, 0
    %1352 = vmatprep.subr.mxu0 0.0
    %1353 = vmatpush1.msra.mxu0 0.0
    %1354 = vmatprep.subr.mxu0 0.0
    %1355 = vmatpush1.msra.mxu0 0.0
    %1356 = vmatprep.subr.mxu0 0.0
    %1357 = vmatpush1.msra.mxu0 0.0
    %1358 = vmatprep.subr.mxu0 0.0
    %1359 = vmatpush1.msra.mxu0 0.0
    %1360 = vmatprep.subr.mxu0 0.0
    %1361 = vmatpush1.msra.mxu0 0.0
    %1362 = vmatprep.subr.mxu0 0.0
    %1363 = vmatpush1.msra.mxu0 0.0
    %1364 = vmatprep.subr.mxu0 0.0
    %1365 = vmatpush1.msra.mxu0 0.0
    %1366 = vmatprep.subr.mxu0 0.0
    %1367 = vmatpush1.msra.mxu0 0.0
    %1368 = vmatprep.subr.mxu0 0.0
    %1369 = vmatpush1.msra.mxu0 0.0
    %1370 = vmatprep.subr.mxu0 0.0
    %1371 = vmatpush1.msra.mxu0 0.0
    %1372 = vmatprep.subr.mxu0 0.0
    %1373 = vmatpush1.msra.mxu0 0.0
    %1374 = vmatprep.subr.mxu0 0.0
    %1375 = vmatpush1.msra.mxu0 0.0
    %1376 = vmatprep.subr.mxu0 0.0
    %1377 = vmatpush1.msra.mxu0 0.0
    %1378 = vmatprep.subr.mxu0 0.0
    %1379 = vmatpush1.msra.mxu0 0.0
    %1380 = vmatprep.subr.mxu0 0.0
    %1381 = vmatpush1.msra.mxu0 0.0
    %1382 = vmatprep.subr.mxu0 0.0
    %1383 = vmatpush1.msra.mxu0 %v1347
    %1384 = vmatprep.subr.mxu0 0.0
    %1385 = vmatpush2.msra.mxu0 0.0
    %1386 = vmatprep.subr.mxu0 0.0
    %1387 = vmatpush2.msra.mxu0 0.0
    %1388 = vmatprep.subr.mxu0 0.0
    %1389 = vmatpush2.msra.mxu0 0.0
    %1390 = vmatprep.subr.mxu0 0.0
    %1391 = vmatpush2.msra.mxu0 0.0
    %1392 = vmatprep.subr.mxu0 0.0
    %1393 = vmatpush2.msra.mxu0 0.0
    %1394 = vmatprep.subr.mxu0 0.0
    %1395 = vmatpush2.msra.mxu0 0.0
    %1396 = vmatprep.subr.mxu0 0.0
    %1397 = vmatpush2.msra.mxu0 0.0
    %1398 = vmatprep.subr.mxu0 0.0
    %1399 = vmatpush2.msra.mxu0 0.0
    %1400 = vmatprep.subr.mxu0 0.0
    %1401 = vmatpush2.msra.mxu0 0.0
    %1402 = vmatprep.subr.mxu0 0.0
    %1403 = vmatpush2.msra.mxu0 0.0
    %1404 = vmatprep.subr.mxu0 0.0
    %1405 = vmatpush2.msra.mxu0 0.0
    %1406 = vmatprep.subr.mxu0 0.0
    %1407 = vmatpush2.msra.mxu0 0.0
    %1408 = vmatprep.subr.mxu0 0.0
    %1409 = vmatpush2.msra.mxu0 0.0
    %1410 = vmatprep.subr.mxu0 0.0
    %1411 = vmatpush2.msra.mxu0 0.0
    %1412 = vmatprep.subr.mxu0 0.0
    %1413 = vmatpush2.msra.mxu0 0.0
    %1414 = vmatprep.subr.mxu0 0.0
    %1415 = vmatpush2.msra.mxu0 0.0
    %1416 = vmatprep.mubr.f32.mxu0 0.0
    %1417 = vmatmul.mubr.f32.gmra.mxu0 %v1350
    %v1418 = vpop.f32.mrf.mxu0
    %v1419 = vadd.f32 0.0, %v1418
    %v1420 = vpop.f32.mrf.mxu0
    %1421 = vdwg.mxu0
    %1422 = vrot.lane.b32.xlu0 %v250, 64
    %v1423 = vpop.permute.xlu0 %1422
    %v1426 = vsel %vm255, %v964, 0
    %1428 = vmatprep.subr.mxu0 0.0
    %1429 = vmatpush1.msra.mxu0 0.0
    %1430 = vmatprep.subr.mxu0 0.0
    %1431 = vmatpush1.msra.mxu0 0.0
    %1432 = vmatprep.subr.mxu0 0.0
    %1433 = vmatpush1.msra.mxu0 0.0
    %1434 = vmatprep.subr.mxu0 0.0
    %1435 = vmatpush1.msra.mxu0 0.0
    %1436 = vmatprep.subr.mxu0 0.0
    %1437 = vmatpush1.msra.mxu0 0.0
    %1438 = vmatprep.subr.mxu0 0.0
    %1439 = vmatpush1.msra.mxu0 0.0
    %1440 = vmatprep.subr.mxu0 0.0
    %1441 = vmatpush1.msra.mxu0 0.0
    %1442 = vmatprep.subr.mxu0 0.0
    %1443 = vmatpush1.msra.mxu0 0.0
    %1444 = vmatprep.subr.mxu0 0.0
    %1445 = vmatpush1.msra.mxu0 0.0
    %1446 = vmatprep.subr.mxu0 0.0
    %1447 = vmatpush1.msra.mxu0 0.0
    %1448 = vmatprep.subr.mxu0 0.0
    %1449 = vmatpush1.msra.mxu0 0.0
    %1450 = vmatprep.subr.mxu0 0.0
    %1451 = vmatpush1.msra.mxu0 0.0
    %1452 = vmatprep.subr.mxu0 0.0
    %1453 = vmatpush1.msra.mxu0 0.0
    %1454 = vmatprep.subr.mxu0 0.0
    %1455 = vmatpush1.msra.mxu0 0.0
    %1456 = vmatprep.subr.mxu0 0.0
    %1457 = vmatpush1.msra.mxu0 0.0
    %1458 = vmatprep.subr.mxu0 0.0
    %1459 = vmatpush1.msra.mxu0 %v1423
    %1460 = vmatprep.subr.mxu0 0.0
    %1461 = vmatpush2.msra.mxu0 0.0
    %1462 = vmatprep.subr.mxu0 0.0
    %1463 = vmatpush2.msra.mxu0 0.0
    %1464 = vmatprep.subr.mxu0 0.0
    %1465 = vmatpush2.msra.mxu0 0.0
    %1466 = vmatprep.subr.mxu0 0.0
    %1467 = vmatpush2.msra.mxu0 0.0
    %1468 = vmatprep.subr.mxu0 0.0
    %1469 = vmatpush2.msra.mxu0 0.0
    %1470 = vmatprep.subr.mxu0 0.0
    %1471 = vmatpush2.msra.mxu0 0.0
    %1472 = vmatprep.subr.mxu0 0.0
    %1473 = vmatpush2.msra.mxu0 0.0
    %1474 = vmatprep.subr.mxu0 0.0
    %1475 = vmatpush2.msra.mxu0 0.0
    %1476 = vmatprep.subr.mxu0 0.0
    %1477 = vmatpush2.msra.mxu0 0.0
    %1478 = vmatprep.subr.mxu0 0.0
    %1479 = vmatpush2.msra.mxu0 0.0
    %1480 = vmatprep.subr.mxu0 0.0
    %1481 = vmatpush2.msra.mxu0 0.0
    %1482 = vmatprep.subr.mxu0 0.0
    %1483 = vmatpush2.msra.mxu0 0.0
    %1484 = vmatprep.subr.mxu0 0.0
    %1485 = vmatpush2.msra.mxu0 0.0
    %1486 = vmatprep.subr.mxu0 0.0
    %1487 = vmatpush2.msra.mxu0 0.0
    %1488 = vmatprep.subr.mxu0 0.0
    %1489 = vmatpush2.msra.mxu0 0.0
    %1490 = vmatprep.subr.mxu0 0.0
    %1491 = vmatpush2.msra.mxu0 0.0
    %1492 = vmatprep.mubr.f32.mxu0 0.0
    %1493 = vmatmul.mubr.f32.gmra.mxu0 %v1426
    %v1494 = vpop.f32.mrf.mxu0
    %v1495 = vadd.f32 0.0, %v1494
    %v1496 = vpop.f32.mrf.mxu0
    %1497 = vdwg.mxu0
    %1498 = vrot.lane.b32.xlu0 %v252, 64
    %v1499 = vpop.permute.xlu0 %1498
    %v1502 = vsel %vm255, %v965, 0
    %1504 = vmatprep.subr.mxu0 0.0
    %1505 = vmatpush1.msra.mxu0 0.0
    %1506 = vmatprep.subr.mxu0 0.0
    %1507 = vmatpush1.msra.mxu0 0.0
    %1508 = vmatprep.subr.mxu0 0.0
    %1509 = vmatpush1.msra.mxu0 0.0
    %1510 = vmatprep.subr.mxu0 0.0
    %1511 = vmatpush1.msra.mxu0 0.0
    %1512 = vmatprep.subr.mxu0 0.0
    %1513 = vmatpush1.msra.mxu0 0.0
    %1514 = vmatprep.subr.mxu0 0.0
    %1515 = vmatpush1.msra.mxu0 0.0
    %1516 = vmatprep.subr.mxu0 0.0
    %1517 = vmatpush1.msra.mxu0 0.0
    %1518 = vmatprep.subr.mxu0 0.0
    %1519 = vmatpush1.msra.mxu0 0.0
    %1520 = vmatprep.subr.mxu0 0.0
    %1521 = vmatpush1.msra.mxu0 0.0
    %1522 = vmatprep.subr.mxu0 0.0
    %1523 = vmatpush1.msra.mxu0 0.0
    %1524 = vmatprep.subr.mxu0 0.0
    %1525 = vmatpush1.msra.mxu0 0.0
    %1526 = vmatprep.subr.mxu0 0.0
    %1527 = vmatpush1.msra.mxu0 0.0
    %1528 = vmatprep.subr.mxu0 0.0
    %1529 = vmatpush1.msra.mxu0 0.0
    %1530 = vmatprep.subr.mxu0 0.0
    %1531 = vmatpush1.msra.mxu0 0.0
    %1532 = vmatprep.subr.mxu0 0.0
    %1533 = vmatpush1.msra.mxu0 0.0
    %1534 = vmatprep.subr.mxu0 0.0
    %1535 = vmatpush1.msra.mxu0 %v1499
    %1536 = vmatprep.subr.mxu0 0.0
    %1537 = vmatpush2.msra.mxu0 0.0
    %1538 = vmatprep.subr.mxu0 0.0
    %1539 = vmatpush2.msra.mxu0 0.0
    %1540 = vmatprep.subr.mxu0 0.0
    %1541 = vmatpush2.msra.mxu0 0.0
    %1542 = vmatprep.subr.mxu0 0.0
    %1543 = vmatpush2.msra.mxu0 0.0
    %1544 = vmatprep.subr.mxu0 0.0
    %1545 = vmatpush2.msra.mxu0 0.0
    %1546 = vmatprep.subr.mxu0 0.0
    %1547 = vmatpush2.msra.mxu0 0.0
    %1548 = vmatprep.subr.mxu0 0.0
    %1549 = vmatpush2.msra.mxu0 0.0
    %1550 = vmatprep.subr.mxu0 0.0
    %1551 = vmatpush2.msra.mxu0 0.0
    %1552 = vmatprep.subr.mxu0 0.0
    %1553 = vmatpush2.msra.mxu0 0.0
    %1554 = vmatprep.subr.mxu0 0.0
    %1555 = vmatpush2.msra.mxu0 0.0
    %1556 = vmatprep.subr.mxu0 0.0
    %1557 = vmatpush2.msra.mxu0 0.0
    %1558 = vmatprep.subr.mxu0 0.0
    %1559 = vmatpush2.msra.mxu0 0.0
    %1560 = vmatprep.subr.mxu0 0.0
    %1561 = vmatpush2.msra.mxu0 0.0
    %1562 = vmatprep.subr.mxu0 0.0
    %1563 = vmatpush2.msra.mxu0 0.0
    %1564 = vmatprep.subr.mxu0 0.0
    %1565 = vmatpush2.msra.mxu0 0.0
    %1566 = vmatprep.subr.mxu0 0.0
    %1567 = vmatpush2.msra.mxu0 0.0
    %1568 = vmatprep.mubr.f32.mxu0 0.0
    %1569 = vmatmul.mubr.f32.gmra.mxu0 %v1502
    %v1570 = vpop.f32.mrf.mxu0
    %v1571 = vadd.f32 0.0, %v1570
    %v1572 = vpop.f32.mrf.mxu0
    %1573 = vdwg.mxu0
    %v1574 = vld [vmem:[#allocation5] sm:$0xff]
    %s1575 = scalar_lea.vmem [#allocation5], 8
    %v1576 = vld [vmem:[%s1575] sm:$0xff]
    %v1578 = vsel %vm255, %v1191, 0
    %v1581 = vsel %vm255, %v1267, 0
    %1583 = vmatprep.subr.mxu0 0.0
    %1584 = vmatpush1.msra.mxu0 0.0
    %1585 = vmatprep.subr.mxu0 0.0
    %1586 = vmatpush1.msra.mxu0 0.0
    %1587 = vmatprep.subr.mxu0 0.0
    %1588 = vmatpush1.msra.mxu0 0.0
    %1589 = vmatprep.subr.mxu0 0.0
    %1590 = vmatpush1.msra.mxu0 0.0
    %1591 = vmatprep.subr.mxu0 0.0
    %1592 = vmatpush1.msra.mxu0 0.0
    %1593 = vmatprep.subr.mxu0 0.0
    %1594 = vmatpush1.msra.mxu0 0.0
    %1595 = vmatprep.subr.mxu0 0.0
    %1596 = vmatpush1.msra.mxu0 0.0
    %1597 = vmatprep.subr.mxu0 0.0
    %1598 = vmatpush1.msra.mxu0 0.0
    %1599 = vmatprep.subr.mxu0 0.0
    %1600 = vmatpush1.msra.mxu0 0.0
    %1601 = vmatprep.subr.mxu0 0.0
    %1602 = vmatpush1.msra.mxu0 0.0
    %1603 = vmatprep.subr.mxu0 0.0
    %1604 = vmatpush1.msra.mxu0 0.0
    %1605 = vmatprep.subr.mxu0 0.0
    %1606 = vmatpush1.msra.mxu0 0.0
    %1607 = vmatprep.subr.mxu0 0.0
    %1608 = vmatpush1.msra.mxu0 0.0
    %1609 = vmatprep.subr.mxu0 0.0
    %1610 = vmatpush1.msra.mxu0 0.0
    %1611 = vmatprep.subr.mxu0 0.0
    %1612 = vmatpush1.msra.mxu0 0.0
    %1613 = vmatprep.subr.mxu0 0.0
    %1614 = vmatpush1.msra.mxu0 %v1576
    %1615 = vmatprep.subr.mxu0 0.0
    %1616 = vmatpush2.msra.mxu0 0.0
    %1617 = vmatprep.subr.mxu0 0.0
    %1618 = vmatpush2.msra.mxu0 0.0
    %1619 = vmatprep.subr.mxu0 0.0
    %1620 = vmatpush2.msra.mxu0 0.0
    %1621 = vmatprep.subr.mxu0 0.0
    %1622 = vmatpush2.msra.mxu0 0.0
    %1623 = vmatprep.subr.mxu0 0.0
    %1624 = vmatpush2.msra.mxu0 0.0
    %1625 = vmatprep.subr.mxu0 0.0
    %1626 = vmatpush2.msra.mxu0 0.0
    %1627 = vmatprep.subr.mxu0 0.0
    %1628 = vmatpush2.msra.mxu0 0.0
    %1629 = vmatprep.subr.mxu0 0.0
    %1630 = vmatpush2.msra.mxu0 0.0
    %1631 = vmatprep.subr.mxu0 0.0
    %1632 = vmatpush2.msra.mxu0 0.0
    %1633 = vmatprep.subr.mxu0 0.0
    %1634 = vmatpush2.msra.mxu0 0.0
    %1635 = vmatprep.subr.mxu0 0.0
    %1636 = vmatpush2.msra.mxu0 0.0
    %1637 = vmatprep.subr.mxu0 0.0
    %1638 = vmatpush2.msra.mxu0 0.0
    %1639 = vmatprep.subr.mxu0 0.0
    %1640 = vmatpush2.msra.mxu0 0.0
    %1641 = vmatprep.subr.mxu0 0.0
    %1642 = vmatpush2.msra.mxu0 0.0
    %1643 = vmatprep.subr.mxu0 0.0
    %1644 = vmatpush2.msra.mxu0 0.0
    %1645 = vmatprep.subr.mxu0 0.0
    %1646 = vmatpush2.msra.mxu0 0.0
    %1647 = vmatprep.mubr.f32.mxu0 0.0
    %1648 = vmatmul.mubr.f32.gmra.mxu0 %v1578
    %v1649 = vpop.f32.mrf.mxu0
    %v1650 = vadd.f32 0.0, %v1649
    %v1651 = vpop.f32.mrf.mxu0
    %1652 = vmatprep.mubr.f32.mxu0 0.0
    %1653 = vmatmul.mubr.f32.gmra.mxu0 %v1581
    %v1654 = vpop.f32.mrf.mxu0
    %v1655 = vadd.f32 0.0, %v1654
    %v1656 = vpop.f32.mrf.mxu0
    %1657 = vdwg.mxu0
    %v1659 = vsel %vm255, %v1039, 0
    %v1662 = vsel %vm255, %v1115, 0
    %1664 = vmatprep.subr.mxu0 0.0
    %1665 = vmatpush1.msra.mxu0 0.0
    %1666 = vmatprep.subr.mxu0 0.0
    %1667 = vmatpush1.msra.mxu0 0.0
    %1668 = vmatprep.subr.mxu0 0.0
    %1669 = vmatpush1.msra.mxu0 0.0
    %1670 = vmatprep.subr.mxu0 0.0
    %1671 = vmatpush1.msra.mxu0 0.0
    %1672 = vmatprep.subr.mxu0 0.0
    %1673 = vmatpush1.msra.mxu0 0.0
    %1674 = vmatprep.subr.mxu0 0.0
    %1675 = vmatpush1.msra.mxu0 0.0
    %1676 = vmatprep.subr.mxu0 0.0
    %1677 = vmatpush1.msra.mxu0 0.0
    %1678 = vmatprep.subr.mxu0 0.0
    %1679 = vmatpush1.msra.mxu0 0.0
    %1680 = vmatprep.subr.mxu0 0.0
    %1681 = vmatpush1.msra.mxu0 0.0
    %1682 = vmatprep.subr.mxu0 0.0
    %1683 = vmatpush1.msra.mxu0 0.0
    %1684 = vmatprep.subr.mxu0 0.0
    %1685 = vmatpush1.msra.mxu0 0.0
    %1686 = vmatprep.subr.mxu0 0.0
    %1687 = vmatpush1.msra.mxu0 0.0
    %1688 = vmatprep.subr.mxu0 0.0
    %1689 = vmatpush1.msra.mxu0 0.0
    %1690 = vmatprep.subr.mxu0 0.0
    %1691 = vmatpush1.msra.mxu0 0.0
    %1692 = vmatprep.subr.mxu0 0.0
    %1693 = vmatpush1.msra.mxu0 0.0
    %1694 = vmatprep.subr.mxu0 0.0
    %1695 = vmatpush1.msra.mxu0 %v1574
    %1696 = vmatprep.subr.mxu0 0.0
    %1697 = vmatpush2.msra.mxu0 0.0
    %1698 = vmatprep.subr.mxu0 0.0
    %1699 = vmatpush2.msra.mxu0 0.0
    %1700 = vmatprep.subr.mxu0 0.0
    %1701 = vmatpush2.msra.mxu0 0.0
    %1702 = vmatprep.subr.mxu0 0.0
    %1703 = vmatpush2.msra.mxu0 0.0
    %1704 = vmatprep.subr.mxu0 0.0
    %1705 = vmatpush2.msra.mxu0 0.0
    %1706 = vmatprep.subr.mxu0 0.0
    %1707 = vmatpush2.msra.mxu0 0.0
    %1708 = vmatprep.subr.mxu0 0.0
    %1709 = vmatpush2.msra.mxu0 0.0
    %1710 = vmatprep.subr.mxu0 0.0
    %1711 = vmatpush2.msra.mxu0 0.0
    %1712 = vmatprep.subr.mxu0 0.0
    %1713 = vmatpush2.msra.mxu0 0.0
    %1714 = vmatprep.subr.mxu0 0.0
    %1715 = vmatpush2.msra.mxu0 0.0
    %1716 = vmatprep.subr.mxu0 0.0
    %1717 = vmatpush2.msra.mxu0 0.0
    %1718 = vmatprep.subr.mxu0 0.0
    %1719 = vmatpush2.msra.mxu0 0.0
    %1720 = vmatprep.subr.mxu0 0.0
    %1721 = vmatpush2.msra.mxu0 0.0
    %1722 = vmatprep.subr.mxu0 0.0
    %1723 = vmatpush2.msra.mxu0 0.0
    %1724 = vmatprep.subr.mxu0 0.0
    %1725 = vmatpush2.msra.mxu0 0.0
    %1726 = vmatprep.subr.mxu0 0.0
    %1727 = vmatpush2.msra.mxu0 0.0
    %1728 = vmatprep.mubr.f32.mxu0 0.0
    %1729 = vmatmul.mubr.f32.gmra.mxu0 %v1659
    %v1730 = vpop.f32.mrf.mxu0
    %v1731 = vadd.f32 %v1650, %v1730
    %v1732 = vpop.f32.mrf.mxu0
    %1733 = vmatprep.mubr.f32.mxu0 0.0
    %1734 = vmatmul.mubr.f32.gmra.mxu0 %v1662
    %v1735 = vpop.f32.mrf.mxu0
    %v1736 = vadd.f32 %v1655, %v1735
    %v1737 = vpop.f32.mrf.mxu0
    %1738 = vdwg.mxu0
    %s1739 = scalar_lea.vmem [#allocation5], 16
    %v1740 = vld [vmem:[%s1739] sm:$0xff]
    %v1742 = vsel %vm255, %v1343, 0
    %v1745 = vsel %vm255, %v1419, 0
    %1747 = vmatprep.subr.mxu0 0.0
    %1748 = vmatpush1.msra.mxu0 0.0
    %1749 = vmatprep.subr.mxu0 0.0
    %1750 = vmatpush1.msra.mxu0 0.0
    %1751 = vmatprep.subr.mxu0 0.0
    %1752 = vmatpush1.msra.mxu0 0.0
    %1753 = vmatprep.subr.mxu0 0.0
    %1754 = vmatpush1.msra.mxu0 0.0
    %1755 = vmatprep.subr.mxu0 0.0
    %1756 = vmatpush1.msra.mxu0 0.0
    %1757 = vmatprep.subr.mxu0 0.0
    %1758 = vmatpush1.msra.mxu0 0.0
    %1759 = vmatprep.subr.mxu0 0.0
    %1760 = vmatpush1.msra.mxu0 0.0
    %1761 = vmatprep.subr.mxu0 0.0
    %1762 = vmatpush1.msra.mxu0 0.0
    %1763 = vmatprep.subr.mxu0 0.0
    %1764 = vmatpush1.msra.mxu0 0.0
    %1765 = vmatprep.subr.mxu0 0.0
    %1766 = vmatpush1.msra.mxu0 0.0
    %1767 = vmatprep.subr.mxu0 0.0
    %1768 = vmatpush1.msra.mxu0 0.0
    %1769 = vmatprep.subr.mxu0 0.0
    %1770 = vmatpush1.msra.mxu0 0.0
    %1771 = vmatprep.subr.mxu0 0.0
    %1772 = vmatpush1.msra.mxu0 0.0
    %1773 = vmatprep.subr.mxu0 0.0
    %1774 = vmatpush1.msra.mxu0 0.0
    %1775 = vmatprep.subr.mxu0 0.0
    %1776 = vmatpush1.msra.mxu0 0.0
    %1777 = vmatprep.subr.mxu0 0.0
    %1778 = vmatpush1.msra.mxu0 %v1740
    %1779 = vmatprep.subr.mxu0 0.0
    %1780 = vmatpush2.msra.mxu0 0.0
    %1781 = vmatprep.subr.mxu0 0.0
    %1782 = vmatpush2.msra.mxu0 0.0
    %1783 = vmatprep.subr.mxu0 0.0
    %1784 = vmatpush2.msra.mxu0 0.0
    %1785 = vmatprep.subr.mxu0 0.0
    %1786 = vmatpush2.msra.mxu0 0.0
    %1787 = vmatprep.subr.mxu0 0.0
    %1788 = vmatpush2.msra.mxu0 0.0
    %1789 = vmatprep.subr.mxu0 0.0
    %1790 = vmatpush2.msra.mxu0 0.0
    %1791 = vmatprep.subr.mxu0 0.0
    %1792 = vmatpush2.msra.mxu0 0.0
    %1793 = vmatprep.subr.mxu0 0.0
    %1794 = vmatpush2.msra.mxu0 0.0
    %1795 = vmatprep.subr.mxu0 0.0
    %1796 = vmatpush2.msra.mxu0 0.0
    %1797 = vmatprep.subr.mxu0 0.0
    %1798 = vmatpush2.msra.mxu0 0.0
    %1799 = vmatprep.subr.mxu0 0.0
    %1800 = vmatpush2.msra.mxu0 0.0
    %1801 = vmatprep.subr.mxu0 0.0
    %1802 = vmatpush2.msra.mxu0 0.0
    %1803 = vmatprep.subr.mxu0 0.0
    %1804 = vmatpush2.msra.mxu0 0.0
    %1805 = vmatprep.subr.mxu0 0.0
    %1806 = vmatpush2.msra.mxu0 0.0
    %1807 = vmatprep.subr.mxu0 0.0
    %1808 = vmatpush2.msra.mxu0 0.0
    %1809 = vmatprep.subr.mxu0 0.0
    %1810 = vmatpush2.msra.mxu0 0.0
    %1811 = vmatprep.mubr.f32.mxu0 0.0
    %1812 = vmatmul.mubr.f32.gmra.mxu0 %v1742
    %v1813 = vpop.f32.mrf.mxu0
    %v1814 = vadd.f32 0.0, %v1813
    %v1815 = vpop.f32.mrf.mxu0
    %1816 = vmatprep.mubr.f32.mxu0 0.0
    %1817 = vmatmul.mubr.f32.gmra.mxu0 %v1745
    %v1818 = vpop.f32.mrf.mxu0
    %v1819 = vadd.f32 0.0, %v1818
    %v1820 = vpop.f32.mrf.mxu0
    %1821 = vdwg.mxu0
    %v1822 = vadd.f32 %v1731, %v1814
    %v1823 = vadd.f32 %v1736, %v1819
    %s1824 = scalar_lea.vmem [#allocation5], 24
    %v1825 = vld [vmem:[%s1824] sm:$0xff]
    %v1827 = vsel %vm255, %v1495, 0
    %v1830 = vsel %vm255, %v1571, 0
    %1832 = vmatprep.subr.mxu0 0.0
    %1833 = vmatpush1.msra.mxu0 0.0
    %1834 = vmatprep.subr.mxu0 0.0
    %1835 = vmatpush1.msra.mxu0 0.0
    %1836 = vmatprep.subr.mxu0 0.0
    %1837 = vmatpush1.msra.mxu0 0.0
    %1838 = vmatprep.subr.mxu0 0.0
    %1839 = vmatpush1.msra.mxu0 0.0
    %1840 = vmatprep.subr.mxu0 0.0
    %1841 = vmatpush1.msra.mxu0 0.0
    %1842 = vmatprep.subr.mxu0 0.0
    %1843 = vmatpush1.msra.mxu0 0.0
    %1844 = vmatprep.subr.mxu0 0.0
    %1845 = vmatpush1.msra.mxu0 0.0
    %1846 = vmatprep.subr.mxu0 0.0
    %1847 = vmatpush1.msra.mxu0 0.0
    %1848 = vmatprep.subr.mxu0 0.0
    %1849 = vmatpush1.msra.mxu0 0.0
    %1850 = vmatprep.subr.mxu0 0.0
    %1851 = vmatpush1.msra.mxu0 0.0
    %1852 = vmatprep.subr.mxu0 0.0
    %1853 = vmatpush1.msra.mxu0 0.0
    %1854 = vmatprep.subr.mxu0 0.0
    %1855 = vmatpush1.msra.mxu0 0.0
    %1856 = vmatprep.subr.mxu0 0.0
    %1857 = vmatpush1.msra.mxu0 0.0
    %1858 = vmatprep.subr.mxu0 0.0
    %1859 = vmatpush1.msra.mxu0 0.0
    %1860 = vmatprep.subr.mxu0 0.0
    %1861 = vmatpush1.msra.mxu0 0.0
    %1862 = vmatprep.subr.mxu0 0.0
    %1863 = vmatpush1.msra.mxu0 %v1825
    %1864 = vmatprep.subr.mxu0 0.0
    %1865 = vmatpush2.msra.mxu0 0.0
    %1866 = vmatprep.subr.mxu0 0.0
    %1867 = vmatpush2.msra.mxu0 0.0
    %1868 = vmatprep.subr.mxu0 0.0
    %1869 = vmatpush2.msra.mxu0 0.0
    %1870 = vmatprep.subr.mxu0 0.0
    %1871 = vmatpush2.msra.mxu0 0.0
    %1872 = vmatprep.subr.mxu0 0.0
    %1873 = vmatpush2.msra.mxu0 0.0
    %1874 = vmatprep.subr.mxu0 0.0
    %1875 = vmatpush2.msra.mxu0 0.0
    %1876 = vmatprep.subr.mxu0 0.0
    %1877 = vmatpush2.msra.mxu0 0.0
    %1878 = vmatprep.subr.mxu0 0.0
    %1879 = vmatpush2.msra.mxu0 0.0
    %1880 = vmatprep.subr.mxu0 0.0
    %1881 = vmatpush2.msra.mxu0 0.0
    %1882 = vmatprep.subr.mxu0 0.0
    %1883 = vmatpush2.msra.mxu0 0.0
    %1884 = vmatprep.subr.mxu0 0.0
    %1885 = vmatpush2.msra.mxu0 0.0
    %1886 = vmatprep.subr.mxu0 0.0
    %1887 = vmatpush2.msra.mxu0 0.0
    %1888 = vmatprep.subr.mxu0 0.0
    %1889 = vmatpush2.msra.mxu0 0.0
    %1890 = vmatprep.subr.mxu0 0.0
    %1891 = vmatpush2.msra.mxu0 0.0
    %1892 = vmatprep.subr.mxu0 0.0
    %1893 = vmatpush2.msra.mxu0 0.0
    %1894 = vmatprep.subr.mxu0 0.0
    %1895 = vmatpush2.msra.mxu0 0.0
    %1896 = vmatprep.mubr.f32.mxu0 0.0
    %1897 = vmatmul.mubr.f32.gmra.mxu0 %v1827
    %v1898 = vpop.f32.mrf.mxu0
    %v1899 = vadd.f32 0.0, %v1898
    %v1900 = vpop.f32.mrf.mxu0
    %1901 = vmatprep.mubr.f32.mxu0 0.0
    %1902 = vmatmul.mubr.f32.gmra.mxu0 %v1830
    %v1903 = vpop.f32.mrf.mxu0
    %v1904 = vadd.f32 0.0, %v1903
    %v1905 = vpop.f32.mrf.mxu0
    %1906 = vdwg.mxu0
    %v1907 = vadd.f32 %v1822, %v1899
    %v1908 = vadd.f32 %v1823, %v1904
    %v1909 = vld [vmem:[#allocation7] sm:$0x1]
    %v1910 = vlaneseq
    %v1911 = vshrl.u32 %v1910, 7
    %v1912 = vsub.s32 0, %v1911
    %v1913 = vrot.slane %v1909, %v1912
    %v1914 = vadd.f32 %v1907, %v1913
    %v1915 = vadd.f32 %v1908, %v1913
    %v1916 = vadd.f32 %v138, %v1914
    %v1917 = vadd.f32 %v139, %v1915
    %v1918 = vld [vmem:[%s11] sm:$0x1]
    %s1919 = scalar_lea.vmem %s11, 8
    %v1920 = vld [vmem:[%s1919] sm:$0x1]
    %v1921 = vsel %vm157, %v1916, 0.0
    %1922 = vadd.xlane.f32.xlu0 %v1921
    %v1923 = vpop.xlane.xlu0 %1922
    %v1924 = vsel %vm157, %v1917, 0.0
    %1925 = vadd.xlane.f32.xlu0 %v1924
    %v1926 = vpop.xlane.xlu0 %1925
    %v1927 = vrcp.pop 32.0
    %v1928 = vmul.f32 %v1923, %v1927
    %v1929 = vmul.f32 %v1926, %v1927
    %v1930 = vsub.f32 %v1916, %v1928
    %v1931 = vsub.f32 %v1917, %v1929
    %v1932 = vmul.f32 %v1930, %v1930
    %v1933 = vmul.f32 %v1931, %v1931
    %v1934 = vsel %vm157, %v1932, 0.0
    %1935 = vadd.xlane.f32.xlu0 %v1934
    %v1936 = vpop.xlane.xlu0 %1935
    %v1937 = vsel %vm157, %v1933, 0.0
    %1938 = vadd.xlane.f32.xlu0 %v1937
    %v1939 = vpop.xlane.xlu0 %1938
    %v1940 = vmul.f32 %v1936, %v1927
    %v1941 = vmul.f32 %v1939, %v1927
    %v1942 = vadd.f32 %v1940, 1e-05
    %v1943 = vadd.f32 %v1941, 1e-05
    %v1944 = vrsqrt.pop %v1942
    %v1945 = vrsqrt.pop %v1943
    %v1946 = vmul.f32 %v1930, %v1944
    %v1947 = vmul.f32 %v1931, %v1945
    %v1948 = vlaneseq
    %v1949 = vshrl.u32 %v1948, 7
    %v1950 = vsub.s32 0, %v1949
    %v1951 = vrot.slane %v1918, %v1950
    %v1952 = vmul.f32 %v1946, %v1951
    %v1953 = vmul.f32 %v1947, %v1951
    %v1954 = vlaneseq
    %v1955 = vshrl.u32 %v1954, 7
    %v1956 = vsub.s32 0, %v1955
    %v1957 = vrot.slane %v1920, %v1956
    %v1958 = vadd.f32 %v1952, %v1957
    %v1959 = vadd.f32 %v1953, %v1957
    %s1960 = scalar_lea.vmem %s3, 64
    %v1961 = vld [vmem:[%s1960] sm:$0xff]
    %v1962 = vld [vmem:[%s1960 + $0x8] sm:$0xff]
    %v1963 = vld [vmem:[%s1960 + $0x10] sm:$0xff]
    %v1964 = vld [vmem:[%s1960 + $0x18] sm:$0xff]
    %s1965 = scalar_lea.vmem %s4, 2
    %v1966 = vld [vmem:[%s1965] sm:$0x1]
    %v1967 = vlaneseq
    %v1968 = vshrl.u32 %v1967, 7
    %v1969 = vsub.s32 0, %v1968
    %v1970 = vrot.slane %v1966, %v1969
    %v1972 = vsel %vm157, %v1958, 0
    %v1975 = vsel %vm157, %v1959, 0
    %1977 = vmatprep.subr.mxu0 0.0
    %1978 = vmatpush1.msra.mxu0 0.0
    %1979 = vmatprep.subr.mxu0 0.0
    %1980 = vmatpush1.msra.mxu0 0.0
    %1981 = vmatprep.subr.mxu0 0.0
    %1982 = vmatpush1.msra.mxu0 0.0
    %1983 = vmatprep.subr.mxu0 0.0
    %1984 = vmatpush1.msra.mxu0 0.0
    %1985 = vmatprep.subr.mxu0 0.0
    %1986 = vmatpush1.msra.mxu0 0.0
    %1987 = vmatprep.subr.mxu0 0.0
    %1988 = vmatpush1.msra.mxu0 0.0
    %1989 = vmatprep.subr.mxu0 0.0
    %1990 = vmatpush1.msra.mxu0 0.0
    %1991 = vmatprep.subr.mxu0 0.0
    %1992 = vmatpush1.msra.mxu0 0.0
    %1993 = vmatprep.subr.mxu0 0.0
    %1994 = vmatpush1.msra.mxu0 0.0
    %1995 = vmatprep.subr.mxu0 0.0
    %1996 = vmatpush1.msra.mxu0 0.0
    %1997 = vmatprep.subr.mxu0 0.0
    %1998 = vmatpush1.msra.mxu0 0.0
    %1999 = vmatprep.subr.mxu0 0.0
    %2000 = vmatpush1.msra.mxu0 0.0
    %2001 = vmatprep.subr.mxu0 0.0
    %2002 = vmatpush1.msra.mxu0 %v1964
    %2003 = vmatprep.subr.mxu0 0.0
    %2004 = vmatpush1.msra.mxu0 %v1963
    %2005 = vmatprep.subr.mxu0 0.0
    %2006 = vmatpush1.msra.mxu0 %v1962
    %2007 = vmatprep.subr.mxu0 0.0
    %2008 = vmatpush1.msra.mxu0 %v1961
    %2009 = vmatprep.subr.mxu0 0.0
    %2010 = vmatpush2.msra.mxu0 0.0
    %2011 = vmatprep.subr.mxu0 0.0
    %2012 = vmatpush2.msra.mxu0 0.0
    %2013 = vmatprep.subr.mxu0 0.0
    %2014 = vmatpush2.msra.mxu0 0.0
    %2015 = vmatprep.subr.mxu0 0.0
    %2016 = vmatpush2.msra.mxu0 0.0
    %2017 = vmatprep.subr.mxu0 0.0
    %2018 = vmatpush2.msra.mxu0 0.0
    %2019 = vmatprep.subr.mxu0 0.0
    %2020 = vmatpush2.msra.mxu0 0.0
    %2021 = vmatprep.subr.mxu0 0.0
    %2022 = vmatpush2.msra.mxu0 0.0
    %2023 = vmatprep.subr.mxu0 0.0
    %2024 = vmatpush2.msra.mxu0 0.0
    %2025 = vmatprep.subr.mxu0 0.0
    %2026 = vmatpush2.msra.mxu0 0.0
    %2027 = vmatprep.subr.mxu0 0.0
    %2028 = vmatpush2.msra.mxu0 0.0
    %2029 = vmatprep.subr.mxu0 0.0
    %2030 = vmatpush2.msra.mxu0 0.0
    %2031 = vmatprep.subr.mxu0 0.0
    %2032 = vmatpush2.msra.mxu0 0.0
    %2033 = vmatprep.subr.mxu0 0.0
    %2034 = vmatpush2.msra.mxu0 0.0
    %2035 = vmatprep.subr.mxu0 0.0
    %2036 = vmatpush2.msra.mxu0 0.0
    %2037 = vmatprep.subr.mxu0 0.0
    %2038 = vmatpush2.msra.mxu0 0.0
    %2039 = vmatprep.subr.mxu0 0.0
    %2040 = vmatpush2.msra.mxu0 0.0
    %2041 = vmatprep.mubr.f32.mxu0 0.0
    %2042 = vmatmul.mubr.f32.gmra.mxu0 %v1972
    %v2043 = vpop.f32.mrf.mxu0
    %v2044 = vadd.f32 %v1970, %v2043
    %v2045 = vpop.f32.mrf.mxu0
    %2046 = vmatprep.mubr.f32.mxu0 0.0
    %2047 = vmatmul.mubr.f32.gmra.mxu0 %v1975
    %v2048 = vpop.f32.mrf.mxu0
    %v2049 = vadd.f32 %v1970, %v2048
    %v2050 = vpop.f32.mrf.mxu0
    %2051 = vdwg.mxu0
    %2056 = vrot.lane.b32.xlu0 %v1961, 96
    %v2057 = vpop.permute.xlu0 %2056
    %2058 = vrot.lane.b32.xlu0 %v1962, 96
    %v2059 = vpop.permute.xlu0 %2058
    %2060 = vrot.lane.b32.xlu0 %v1963, 96
    %v2061 = vpop.permute.xlu0 %2060
    %2062 = vrot.lane.b32.xlu0 %v1964, 96
    %v2063 = vpop.permute.xlu0 %2062
    %2069 = vrot.lane.b32.xlu0 %v1970, 96
    %v2070 = vpop.permute.xlu0 %2069
    %v2073 = vsel %vm157, %v140, 0
    %v2076 = vsel %vm157, %v141, 0
    %2078 = vmatprep.subr.mxu0 0.0
    %2079 = vmatpush1.msra.mxu0 0.0
    %2080 = vmatprep.subr.mxu0 0.0
    %2081 = vmatpush1.msra.mxu0 0.0
    %2082 = vmatprep.subr.mxu0 0.0
    %2083 = vmatpush1.msra.mxu0 0.0
    %2084 = vmatprep.subr.mxu0 0.0
    %2085 = vmatpush1.msra.mxu0 0.0
    %2086 = vmatprep.subr.mxu0 0.0
    %2087 = vmatpush1.msra.mxu0 0.0
    %2088 = vmatprep.subr.mxu0 0.0
    %2089 = vmatpush1.msra.mxu0 0.0
    %2090 = vmatprep.subr.mxu0 0.0
    %2091 = vmatpush1.msra.mxu0 0.0
    %2092 = vmatprep.subr.mxu0 0.0
    %2093 = vmatpush1.msra.mxu0 0.0
    %2094 = vmatprep.subr.mxu0 0.0
    %2095 = vmatpush1.msra.mxu0 0.0
    %2096 = vmatprep.subr.mxu0 0.0
    %2097 = vmatpush1.msra.mxu0 0.0
    %2098 = vmatprep.subr.mxu0 0.0
    %2099 = vmatpush1.msra.mxu0 0.0
    %2100 = vmatprep.subr.mxu0 0.0
    %2101 = vmatpush1.msra.mxu0 0.0
    %2102 = vmatprep.subr.mxu0 0.0
    %2103 = vmatpush1.msra.mxu0 %v2063
    %2104 = vmatprep.subr.mxu0 0.0
    %2105 = vmatpush1.msra.mxu0 %v2061
    %2106 = vmatprep.subr.mxu0 0.0
    %2107 = vmatpush1.msra.mxu0 %v2059
    %2108 = vmatprep.subr.mxu0 0.0
    %2109 = vmatpush1.msra.mxu0 %v2057
    %2110 = vmatprep.subr.mxu0 0.0
    %2111 = vmatpush2.msra.mxu0 0.0
    %2112 = vmatprep.subr.mxu0 0.0
    %2113 = vmatpush2.msra.mxu0 0.0
    %2114 = vmatprep.subr.mxu0 0.0
    %2115 = vmatpush2.msra.mxu0 0.0
    %2116 = vmatprep.subr.mxu0 0.0
    %2117 = vmatpush2.msra.mxu0 0.0
    %2118 = vmatprep.subr.mxu0 0.0
    %2119 = vmatpush2.msra.mxu0 0.0
    %2120 = vmatprep.subr.mxu0 0.0
    %2121 = vmatpush2.msra.mxu0 0.0
    %2122 = vmatprep.subr.mxu0 0.0
    %2123 = vmatpush2.msra.mxu0 0.0
    %2124 = vmatprep.subr.mxu0 0.0
    %2125 = vmatpush2.msra.mxu0 0.0
    %2126 = vmatprep.subr.mxu0 0.0
    %2127 = vmatpush2.msra.mxu0 0.0
    %2128 = vmatprep.subr.mxu0 0.0
    %2129 = vmatpush2.msra.mxu0 0.0
    %2130 = vmatprep.subr.mxu0 0.0
    %2131 = vmatpush2.msra.mxu0 0.0
    %2132 = vmatprep.subr.mxu0 0.0
    %2133 = vmatpush2.msra.mxu0 0.0
    %2134 = vmatprep.subr.mxu0 0.0
    %2135 = vmatpush2.msra.mxu0 0.0
    %2136 = vmatprep.subr.mxu0 0.0
    %2137 = vmatpush2.msra.mxu0 0.0
    %2138 = vmatprep.subr.mxu0 0.0
    %2139 = vmatpush2.msra.mxu0 0.0
    %2140 = vmatprep.subr.mxu0 0.0
    %2141 = vmatpush2.msra.mxu0 0.0
    %2142 = vmatprep.mubr.f32.mxu0 0.0
    %2143 = vmatmul.mubr.f32.gmra.mxu0 %v2073
    %v2144 = vpop.f32.mrf.mxu0
    %v2145 = vadd.f32 %v2070, %v2144
    %v2146 = vpop.f32.mrf.mxu0
    %2147 = vmatprep.mubr.f32.mxu0 0.0
    %2148 = vmatmul.mubr.f32.gmra.mxu0 %v2076
    %v2149 = vpop.f32.mrf.mxu0
    %v2150 = vadd.f32 %v2070, %v2149
    %v2151 = vpop.f32.mrf.mxu0
    %2152 = vdwg.mxu0
    %2155 = vrot.lane.b32.xlu0 %v2044, 120
    %v2156 = vpop.permute.xlu0 %2155
    %2157 = vrot.lane.b32.xlu0 %v2049, 120
    %v2158 = vpop.permute.xlu0 %2157
    %2159 = vrot.lane.b32.xlu0 %v2044, 112
    %v2160 = vpop.permute.xlu0 %2159
    %2161 = vrot.lane.b32.xlu0 %v2049, 112
    %v2162 = vpop.permute.xlu0 %2161
    %2163 = vrot.lane.b32.xlu0 %v2044, 104
    %v2164 = vpop.permute.xlu0 %2163
    %2165 = vrot.lane.b32.xlu0 %v2049, 104
    %v2166 = vpop.permute.xlu0 %2165
    %2169 = vrot.lane.b32.xlu0 %v2145, 120
    %v2170 = vpop.permute.xlu0 %2169
    %2171 = vrot.lane.b32.xlu0 %v2150, 120
    %v2172 = vpop.permute.xlu0 %2171
    %2173 = vrot.lane.b32.xlu0 %v2145, 112
    %v2174 = vpop.permute.xlu0 %2173
    %2175 = vrot.lane.b32.xlu0 %v2150, 112
    %v2176 = vpop.permute.xlu0 %2175
    %2177 = vrot.lane.b32.xlu0 %v2145, 104
    %v2178 = vpop.permute.xlu0 %2177
    %2179 = vrot.lane.b32.xlu0 %v2150, 104
    %v2180 = vpop.permute.xlu0 %2179
    %v2181 = vsel %vm255, %v2044, 0
    %v2183 = vsel %vm255, %v2145, 0
    %2185 = vmatprep.subr.mxu0 0.0
    %2186 = vmatpush1.xpose.msra.mxu0 0.0
    %2187 = vmatprep.subr.mxu0 0.0
    %2188 = vmatpush1.xpose.msra.mxu0 0.0
    %2189 = vmatprep.subr.mxu0 0.0
    %2190 = vmatpush1.xpose.msra.mxu0 0.0
    %2191 = vmatprep.subr.mxu0 0.0
    %2192 = vmatpush1.xpose.msra.mxu0 0.0
    %2193 = vmatprep.subr.mxu0 0.0
    %2194 = vmatpush1.xpose.msra.mxu0 0.0
    %2195 = vmatprep.subr.mxu0 0.0
    %2196 = vmatpush1.xpose.msra.mxu0 0.0
    %2197 = vmatprep.subr.mxu0 0.0
    %2198 = vmatpush1.xpose.msra.mxu0 0.0
    %2199 = vmatprep.subr.mxu0 0.0
    %2200 = vmatpush1.xpose.msra.mxu0 0.0
    %2201 = vmatprep.subr.mxu0 0.0
    %2202 = vmatpush1.xpose.msra.mxu0 0.0
    %2203 = vmatprep.subr.mxu0 0.0
    %2204 = vmatpush1.xpose.msra.mxu0 0.0
    %2205 = vmatprep.subr.mxu0 0.0
    %2206 = vmatpush1.xpose.msra.mxu0 0.0
    %2207 = vmatprep.subr.mxu0 0.0
    %2208 = vmatpush1.xpose.msra.mxu0 0.0
    %2209 = vmatprep.subr.mxu0 0.0
    %2210 = vmatpush1.xpose.msra.mxu0 0.0
    %2211 = vmatprep.subr.mxu0 0.0
    %2212 = vmatpush1.xpose.msra.mxu0 0.0
    %2213 = vmatprep.subr.mxu0 0.0
    %2214 = vmatpush1.xpose.msra.mxu0 0.0
    %2215 = vmatprep.subr.mxu0 0.0
    %2216 = vmatpush1.xpose.msra.mxu0 %v2183
    %2217 = vmatprep.subr.mxu0 0.0
    %2218 = vmatpush2.xpose.msra.mxu0 0.0
    %2219 = vmatprep.subr.mxu0 0.0
    %2220 = vmatpush2.xpose.msra.mxu0 0.0
    %2221 = vmatprep.subr.mxu0 0.0
    %2222 = vmatpush2.xpose.msra.mxu0 0.0
    %2223 = vmatprep.subr.mxu0 0.0
    %2224 = vmatpush2.xpose.msra.mxu0 0.0
    %2225 = vmatprep.subr.mxu0 0.0
    %2226 = vmatpush2.xpose.msra.mxu0 0.0
    %2227 = vmatprep.subr.mxu0 0.0
    %2228 = vmatpush2.xpose.msra.mxu0 0.0
    %2229 = vmatprep.subr.mxu0 0.0
    %2230 = vmatpush2.xpose.msra.mxu0 0.0
    %2231 = vmatprep.subr.mxu0 0.0
    %2232 = vmatpush2.xpose.msra.mxu0 0.0
    %2233 = vmatprep.subr.mxu0 0.0
    %2234 = vmatpush2.xpose.msra.mxu0 0.0
    %2235 = vmatprep.subr.mxu0 0.0
    %2236 = vmatpush2.xpose.msra.mxu0 0.0
    %2237 = vmatprep.subr.mxu0 0.0
    %2238 = vmatpush2.xpose.msra.mxu0 0.0
    %2239 = vmatprep.subr.mxu0 0.0
    %2240 = vmatpush2.xpose.msra.mxu0 0.0
    %2241 = vmatprep.subr.mxu0 0.0
    %2242 = vmatpush2.xpose.msra.mxu0 0.0
    %2243 = vmatprep.subr.mxu0 0.0
    %2244 = vmatpush2.xpose.msra.mxu0 0.0
    %2245 = vmatprep.subr.mxu0 0.0
    %2246 = vmatpush2.xpose.msra.mxu0 0.0
    %2247 = vmatprep.subr.mxu0 0.0
    %2248 = vmatpush2.xpose.msra.mxu0 0.0
    %2249 = vmatprep.mubr.f32.mxu0 0.0
    %2250 = vmatmul.mubr.f32.gmra.mxu0 %v2181
    %v2251 = vpop.f32.mrf.mxu0
    %v2252 = vadd.f32 0.0, %v2251
    %v2253 = vpop.f32.mrf.mxu0
    %2254 = vdwg.mxu0
    %v2255 = vsel %vm255, %v2049, 0
    %v2257 = vsel %vm255, %v2150, 0
    %2259 = vmatprep.subr.mxu0 0.0
    %2260 = vmatpush1.xpose.msra.mxu0 0.0
    %2261 = vmatprep.subr.mxu0 0.0
    %2262 = vmatpush1.xpose.msra.mxu0 0.0
    %2263 = vmatprep.subr.mxu0 0.0
    %2264 = vmatpush1.xpose.msra.mxu0 0.0
    %2265 = vmatprep.subr.mxu0 0.0
    %2266 = vmatpush1.xpose.msra.mxu0 0.0
    %2267 = vmatprep.subr.mxu0 0.0
    %2268 = vmatpush1.xpose.msra.mxu0 0.0
    %2269 = vmatprep.subr.mxu0 0.0
    %2270 = vmatpush1.xpose.msra.mxu0 0.0
    %2271 = vmatprep.subr.mxu0 0.0
    %2272 = vmatpush1.xpose.msra.mxu0 0.0
    %2273 = vmatprep.subr.mxu0 0.0
    %2274 = vmatpush1.xpose.msra.mxu0 0.0
    %2275 = vmatprep.subr.mxu0 0.0
    %2276 = vmatpush1.xpose.msra.mxu0 0.0
    %2277 = vmatprep.subr.mxu0 0.0
    %2278 = vmatpush1.xpose.msra.mxu0 0.0
    %2279 = vmatprep.subr.mxu0 0.0
    %2280 = vmatpush1.xpose.msra.mxu0 0.0
    %2281 = vmatprep.subr.mxu0 0.0
    %2282 = vmatpush1.xpose.msra.mxu0 0.0
    %2283 = vmatprep.subr.mxu0 0.0
    %2284 = vmatpush1.xpose.msra.mxu0 0.0
    %2285 = vmatprep.subr.mxu0 0.0
    %2286 = vmatpush1.xpose.msra.mxu0 0.0
    %2287 = vmatprep.subr.mxu0 0.0
    %2288 = vmatpush1.xpose.msra.mxu0 0.0
    %2289 = vmatprep.subr.mxu0 0.0
    %2290 = vmatpush1.xpose.msra.mxu0 %v2257
    %2291 = vmatprep.subr.mxu0 0.0
    %2292 = vmatpush2.xpose.msra.mxu0 0.0
    %2293 = vmatprep.subr.mxu0 0.0
    %2294 = vmatpush2.xpose.msra.mxu0 0.0
    %2295 = vmatprep.subr.mxu0 0.0
    %2296 = vmatpush2.xpose.msra.mxu0 0.0
    %2297 = vmatprep.subr.mxu0 0.0
    %2298 = vmatpush2.xpose.msra.mxu0 0.0
    %2299 = vmatprep.subr.mxu0 0.0
    %2300 = vmatpush2.xpose.msra.mxu0 0.0
    %2301 = vmatprep.subr.mxu0 0.0
    %2302 = vmatpush2.xpose.msra.mxu0 0.0
    %2303 = vmatprep.subr.mxu0 0.0
    %2304 = vmatpush2.xpose.msra.mxu0 0.0
    %2305 = vmatprep.subr.mxu0 0.0
    %2306 = vmatpush2.xpose.msra.mxu0 0.0
    %2307 = vmatprep.subr.mxu0 0.0
    %2308 = vmatpush2.xpose.msra.mxu0 0.0
    %2309 = vmatprep.subr.mxu0 0.0
    %2310 = vmatpush2.xpose.msra.mxu0 0.0
    %2311 = vmatprep.subr.mxu0 0.0
    %2312 = vmatpush2.xpose.msra.mxu0 0.0
    %2313 = vmatprep.subr.mxu0 0.0
    %2314 = vmatpush2.xpose.msra.mxu0 0.0
    %2315 = vmatprep.subr.mxu0 0.0
    %2316 = vmatpush2.xpose.msra.mxu0 0.0
    %2317 = vmatprep.subr.mxu0 0.0
    %2318 = vmatpush2.xpose.msra.mxu0 0.0
    %2319 = vmatprep.subr.mxu0 0.0
    %2320 = vmatpush2.xpose.msra.mxu0 0.0
    %2321 = vmatprep.subr.mxu0 0.0
    %2322 = vmatpush2.xpose.msra.mxu0 0.0
    %2323 = vmatprep.mubr.f32.mxu0 0.0
    %2324 = vmatmul.mubr.f32.gmra.mxu0 %v2255
    %v2325 = vpop.f32.mrf.mxu0
    %v2326 = vadd.f32 0.0, %v2325
    %v2327 = vpop.f32.mrf.mxu0
    %2328 = vdwg.mxu0
    %v2329 = vsel %vm255, %v2156, 0
    %v2331 = vsel %vm255, %v2170, 0
    %2333 = vmatprep.subr.mxu0 0.0
    %2334 = vmatpush1.xpose.msra.mxu0 0.0
    %2335 = vmatprep.subr.mxu0 0.0
    %2336 = vmatpush1.xpose.msra.mxu0 0.0
    %2337 = vmatprep.subr.mxu0 0.0
    %2338 = vmatpush1.xpose.msra.mxu0 0.0
    %2339 = vmatprep.subr.mxu0 0.0
    %2340 = vmatpush1.xpose.msra.mxu0 0.0
    %2341 = vmatprep.subr.mxu0 0.0
    %2342 = vmatpush1.xpose.msra.mxu0 0.0
    %2343 = vmatprep.subr.mxu0 0.0
    %2344 = vmatpush1.xpose.msra.mxu0 0.0
    %2345 = vmatprep.subr.mxu0 0.0
    %2346 = vmatpush1.xpose.msra.mxu0 0.0
    %2347 = vmatprep.subr.mxu0 0.0
    %2348 = vmatpush1.xpose.msra.mxu0 0.0
    %2349 = vmatprep.subr.mxu0 0.0
    %2350 = vmatpush1.xpose.msra.mxu0 0.0
    %2351 = vmatprep.subr.mxu0 0.0
    %2352 = vmatpush1.xpose.msra.mxu0 0.0
    %2353 = vmatprep.subr.mxu0 0.0
    %2354 = vmatpush1.xpose.msra.mxu0 0.0
    %2355 = vmatprep.subr.mxu0 0.0
    %2356 = vmatpush1.xpose.msra.mxu0 0.0
    %2357 = vmatprep.subr.mxu0 0.0
    %2358 = vmatpush1.xpose.msra.mxu0 0.0
    %2359 = vmatprep.subr.mxu0 0.0
    %2360 = vmatpush1.xpose.msra.mxu0 0.0
    %2361 = vmatprep.subr.mxu0 0.0
    %2362 = vmatpush1.xpose.msra.mxu0 0.0
    %2363 = vmatprep.subr.mxu0 0.0
    %2364 = vmatpush1.xpose.msra.mxu0 %v2331
    %2365 = vmatprep.subr.mxu0 0.0
    %2366 = vmatpush2.xpose.msra.mxu0 0.0
    %2367 = vmatprep.subr.mxu0 0.0
    %2368 = vmatpush2.xpose.msra.mxu0 0.0
    %2369 = vmatprep.subr.mxu0 0.0
    %2370 = vmatpush2.xpose.msra.mxu0 0.0
    %2371 = vmatprep.subr.mxu0 0.0
    %2372 = vmatpush2.xpose.msra.mxu0 0.0
    %2373 = vmatprep.subr.mxu0 0.0
    %2374 = vmatpush2.xpose.msra.mxu0 0.0
    %2375 = vmatprep.subr.mxu0 0.0
    %2376 = vmatpush2.xpose.msra.mxu0 0.0
    %2377 = vmatprep.subr.mxu0 0.0
    %2378 = vmatpush2.xpose.msra.mxu0 0.0
    %2379 = vmatprep.subr.mxu0 0.0
    %2380 = vmatpush2.xpose.msra.mxu0 0.0
    %2381 = vmatprep.subr.mxu0 0.0
    %2382 = vmatpush2.xpose.msra.mxu0 0.0
    %2383 = vmatprep.subr.mxu0 0.0
    %2384 = vmatpush2.xpose.msra.mxu0 0.0
    %2385 = vmatprep.subr.mxu0 0.0
    %2386 = vmatpush2.xpose.msra.mxu0 0.0
    %2387 = vmatprep.subr.mxu0 0.0
    %2388 = vmatpush2.xpose.msra.mxu0 0.0
    %2389 = vmatprep.subr.mxu0 0.0
    %2390 = vmatpush2.xpose.msra.mxu0 0.0
    %2391 = vmatprep.subr.mxu0 0.0
    %2392 = vmatpush2.xpose.msra.mxu0 0.0
    %2393 = vmatprep.subr.mxu0 0.0
    %2394 = vmatpush2.xpose.msra.mxu0 0.0
    %2395 = vmatprep.subr.mxu0 0.0
    %2396 = vmatpush2.xpose.msra.mxu0 0.0
    %2397 = vmatprep.mubr.f32.mxu0 0.0
    %2398 = vmatmul.mubr.f32.gmra.mxu0 %v2329
    %v2399 = vpop.f32.mrf.mxu0
    %v2400 = vadd.f32 0.0, %v2399
    %v2401 = vpop.f32.mrf.mxu0
    %2402 = vdwg.mxu0
    %v2403 = vsel %vm255, %v2158, 0
    %v2405 = vsel %vm255, %v2172, 0
    %2407 = vmatprep.subr.mxu0 0.0
    %2408 = vmatpush1.xpose.msra.mxu0 0.0
    %2409 = vmatprep.subr.mxu0 0.0
    %2410 = vmatpush1.xpose.msra.mxu0 0.0
    %2411 = vmatprep.subr.mxu0 0.0
    %2412 = vmatpush1.xpose.msra.mxu0 0.0
    %2413 = vmatprep.subr.mxu0 0.0
    %2414 = vmatpush1.xpose.msra.mxu0 0.0
    %2415 = vmatprep.subr.mxu0 0.0
    %2416 = vmatpush1.xpose.msra.mxu0 0.0
    %2417 = vmatprep.subr.mxu0 0.0
    %2418 = vmatpush1.xpose.msra.mxu0 0.0
    %2419 = vmatprep.subr.mxu0 0.0
    %2420 = vmatpush1.xpose.msra.mxu0 0.0
    %2421 = vmatprep.subr.mxu0 0.0
    %2422 = vmatpush1.xpose.msra.mxu0 0.0
    %2423 = vmatprep.subr.mxu0 0.0
    %2424 = vmatpush1.xpose.msra.mxu0 0.0
    %2425 = vmatprep.subr.mxu0 0.0
    %2426 = vmatpush1.xpose.msra.mxu0 0.0
    %2427 = vmatprep.subr.mxu0 0.0
    %2428 = vmatpush1.xpose.msra.mxu0 0.0
    %2429 = vmatprep.subr.mxu0 0.0
    %2430 = vmatpush1.xpose.msra.mxu0 0.0
    %2431 = vmatprep.subr.mxu0 0.0
    %2432 = vmatpush1.xpose.msra.mxu0 0.0
    %2433 = vmatprep.subr.mxu0 0.0
    %2434 = vmatpush1.xpose.msra.mxu0 0.0
    %2435 = vmatprep.subr.mxu0 0.0
    %2436 = vmatpush1.xpose.msra.mxu0 0.0
    %2437 = vmatprep.subr.mxu0 0.0
    %2438 = vmatpush1.xpose.msra.mxu0 %v2405
    %2439 = vmatprep.subr.mxu0 0.0
    %2440 = vmatpush2.xpose.msra.mxu0 0.0
    %2441 = vmatprep.subr.mxu0 0.0
    %2442 = vmatpush2.xpose.msra.mxu0 0.0
    %2443 = vmatprep.subr.mxu0 0.0
    %2444 = vmatpush2.xpose.msra.mxu0 0.0
    %2445 = vmatprep.subr.mxu0 0.0
    %2446 = vmatpush2.xpose.msra.mxu0 0.0
    %2447 = vmatprep.subr.mxu0 0.0
    %2448 = vmatpush2.xpose.msra.mxu0 0.0
    %2449 = vmatprep.subr.mxu0 0.0
    %2450 = vmatpush2.xpose.msra.mxu0 0.0
    %2451 = vmatprep.subr.mxu0 0.0
    %2452 = vmatpush2.xpose.msra.mxu0 0.0
    %2453 = vmatprep.subr.mxu0 0.0
    %2454 = vmatpush2.xpose.msra.mxu0 0.0
    %2455 = vmatprep.subr.mxu0 0.0
    %2456 = vmatpush2.xpose.msra.mxu0 0.0
    %2457 = vmatprep.subr.mxu0 0.0
    %2458 = vmatpush2.xpose.msra.mxu0 0.0
    %2459 = vmatprep.subr.mxu0 0.0
    %2460 = vmatpush2.xpose.msra.mxu0 0.0
    %2461 = vmatprep.subr.mxu0 0.0
    %2462 = vmatpush2.xpose.msra.mxu0 0.0
    %2463 = vmatprep.subr.mxu0 0.0
    %2464 = vmatpush2.xpose.msra.mxu0 0.0
    %2465 = vmatprep.subr.mxu0 0.0
    %2466 = vmatpush2.xpose.msra.mxu0 0.0
    %2467 = vmatprep.subr.mxu0 0.0
    %2468 = vmatpush2.xpose.msra.mxu0 0.0
    %2469 = vmatprep.subr.mxu0 0.0
    %2470 = vmatpush2.xpose.msra.mxu0 0.0
    %2471 = vmatprep.mubr.f32.mxu0 0.0
    %2472 = vmatmul.mubr.f32.gmra.mxu0 %v2403
    %v2473 = vpop.f32.mrf.mxu0
    %v2474 = vadd.f32 0.0, %v2473
    %v2475 = vpop.f32.mrf.mxu0
    %2476 = vdwg.mxu0
    %v2477 = vsel %vm255, %v2160, 0
    %v2479 = vsel %vm255, %v2174, 0
    %2481 = vmatprep.subr.mxu0 0.0
    %2482 = vmatpush1.xpose.msra.mxu0 0.0
    %2483 = vmatprep.subr.mxu0 0.0
    %2484 = vmatpush1.xpose.msra.mxu0 0.0
    %2485 = vmatprep.subr.mxu0 0.0
    %2486 = vmatpush1.xpose.msra.mxu0 0.0
    %2487 = vmatprep.subr.mxu0 0.0
    %2488 = vmatpush1.xpose.msra.mxu0 0.0
    %2489 = vmatprep.subr.mxu0 0.0
    %2490 = vmatpush1.xpose.msra.mxu0 0.0
    %2491 = vmatprep.subr.mxu0 0.0
    %2492 = vmatpush1.xpose.msra.mxu0 0.0
    %2493 = vmatprep.subr.mxu0 0.0
    %2494 = vmatpush1.xpose.msra.mxu0 0.0
    %2495 = vmatprep.subr.mxu0 0.0
    %2496 = vmatpush1.xpose.msra.mxu0 0.0
    %2497 = vmatprep.subr.mxu0 0.0
    %2498 = vmatpush1.xpose.msra.mxu0 0.0
    %2499 = vmatprep.subr.mxu0 0.0
    %2500 = vmatpush1.xpose.msra.mxu0 0.0
    %2501 = vmatprep.subr.mxu0 0.0
    %2502 = vmatpush1.xpose.msra.mxu0 0.0
    %2503 = vmatprep.subr.mxu0 0.0
    %2504 = vmatpush1.xpose.msra.mxu0 0.0
    %2505 = vmatprep.subr.mxu0 0.0
    %2506 = vmatpush1.xpose.msra.mxu0 0.0
    %2507 = vmatprep.subr.mxu0 0.0
    %2508 = vmatpush1.xpose.msra.mxu0 0.0
    %2509 = vmatprep.subr.mxu0 0.0
    %2510 = vmatpush1.xpose.msra.mxu0 0.0
    %2511 = vmatprep.subr.mxu0 0.0
    %2512 = vmatpush1.xpose.msra.mxu0 %v2479
    %2513 = vmatprep.subr.mxu0 0.0
    %2514 = vmatpush2.xpose.msra.mxu0 0.0
    %2515 = vmatprep.subr.mxu0 0.0
    %2516 = vmatpush2.xpose.msra.mxu0 0.0
    %2517 = vmatprep.subr.mxu0 0.0
    %2518 = vmatpush2.xpose.msra.mxu0 0.0
    %2519 = vmatprep.subr.mxu0 0.0
    %2520 = vmatpush2.xpose.msra.mxu0 0.0
    %2521 = vmatprep.subr.mxu0 0.0
    %2522 = vmatpush2.xpose.msra.mxu0 0.0
    %2523 = vmatprep.subr.mxu0 0.0
    %2524 = vmatpush2.xpose.msra.mxu0 0.0
    %2525 = vmatprep.subr.mxu0 0.0
    %2526 = vmatpush2.xpose.msra.mxu0 0.0
    %2527 = vmatprep.subr.mxu0 0.0
    %2528 = vmatpush2.xpose.msra.mxu0 0.0
    %2529 = vmatprep.subr.mxu0 0.0
    %2530 = vmatpush2.xpose.msra.mxu0 0.0
    %2531 = vmatprep.subr.mxu0 0.0
    %2532 = vmatpush2.xpose.msra.mxu0 0.0
    %2533 = vmatprep.subr.mxu0 0.0
    %2534 = vmatpush2.xpose.msra.mxu0 0.0
    %2535 = vmatprep.subr.mxu0 0.0
    %2536 = vmatpush2.xpose.msra.mxu0 0.0
    %2537 = vmatprep.subr.mxu0 0.0
    %2538 = vmatpush2.xpose.msra.mxu0 0.0
    %2539 = vmatprep.subr.mxu0 0.0
    %2540 = vmatpush2.xpose.msra.mxu0 0.0
    %2541 = vmatprep.subr.mxu0 0.0
    %2542 = vmatpush2.xpose.msra.mxu0 0.0
    %2543 = vmatprep.subr.mxu0 0.0
    %2544 = vmatpush2.xpose.msra.mxu0 0.0
    %2545 = vmatprep.mubr.f32.mxu0 0.0
    %2546 = vmatmul.mubr.f32.gmra.mxu0 %v2477
    %v2547 = vpop.f32.mrf.mxu0
    %v2548 = vadd.f32 0.0, %v2547
    %v2549 = vpop.f32.mrf.mxu0
    %2550 = vdwg.mxu0
    %v2551 = vsel %vm255, %v2162, 0
    %v2553 = vsel %vm255, %v2176, 0
    %2555 = vmatprep.subr.mxu0 0.0
    %2556 = vmatpush1.xpose.msra.mxu0 0.0
    %2557 = vmatprep.subr.mxu0 0.0
    %2558 = vmatpush1.xpose.msra.mxu0 0.0
    %2559 = vmatprep.subr.mxu0 0.0
    %2560 = vmatpush1.xpose.msra.mxu0 0.0
    %2561 = vmatprep.subr.mxu0 0.0
    %2562 = vmatpush1.xpose.msra.mxu0 0.0
    %2563 = vmatprep.subr.mxu0 0.0
    %2564 = vmatpush1.xpose.msra.mxu0 0.0
    %2565 = vmatprep.subr.mxu0 0.0
    %2566 = vmatpush1.xpose.msra.mxu0 0.0
    %2567 = vmatprep.subr.mxu0 0.0
    %2568 = vmatpush1.xpose.msra.mxu0 0.0
    %2569 = vmatprep.subr.mxu0 0.0
    %2570 = vmatpush1.xpose.msra.mxu0 0.0
    %2571 = vmatprep.subr.mxu0 0.0
    %2572 = vmatpush1.xpose.msra.mxu0 0.0
    %2573 = vmatprep.subr.mxu0 0.0
    %2574 = vmatpush1.xpose.msra.mxu0 0.0
    %2575 = vmatprep.subr.mxu0 0.0
    %2576 = vmatpush1.xpose.msra.mxu0 0.0
    %2577 = vmatprep.subr.mxu0 0.0
    %2578 = vmatpush1.xpose.msra.mxu0 0.0
    %2579 = vmatprep.subr.mxu0 0.0
    %2580 = vmatpush1.xpose.msra.mxu0 0.0
    %2581 = vmatprep.subr.mxu0 0.0
    %2582 = vmatpush1.xpose.msra.mxu0 0.0
    %2583 = vmatprep.subr.mxu0 0.0
    %2584 = vmatpush1.xpose.msra.mxu0 0.0
    %2585 = vmatprep.subr.mxu0 0.0
    %2586 = vmatpush1.xpose.msra.mxu0 %v2553
    %2587 = vmatprep.subr.mxu0 0.0
    %2588 = vmatpush2.xpose.msra.mxu0 0.0
    %2589 = vmatprep.subr.mxu0 0.0
    %2590 = vmatpush2.xpose.msra.mxu0 0.0
    %2591 = vmatprep.subr.mxu0 0.0
    %2592 = vmatpush2.xpose.msra.mxu0 0.0
    %2593 = vmatprep.subr.mxu0 0.0
    %2594 = vmatpush2.xpose.msra.mxu0 0.0
    %2595 = vmatprep.subr.mxu0 0.0
    %2596 = vmatpush2.xpose.msra.mxu0 0.0
    %2597 = vmatprep.subr.mxu0 0.0
    %2598 = vmatpush2.xpose.msra.mxu0 0.0
    %2599 = vmatprep.subr.mxu0 0.0
    %2600 = vmatpush2.xpose.msra.mxu0 0.0
    %2601 = vmatprep.subr.mxu0 0.0
    %2602 = vmatpush2.xpose.msra.mxu0 0.0
    %2603 = vmatprep.subr.mxu0 0.0
    %2604 = vmatpush2.xpose.msra.mxu0 0.0
    %2605 = vmatprep.subr.mxu0 0.0
    %2606 = vmatpush2.xpose.msra.mxu0 0.0
    %2607 = vmatprep.subr.mxu0 0.0
    %2608 = vmatpush2.xpose.msra.mxu0 0.0
    %2609 = vmatprep.subr.mxu0 0.0
    %2610 = vmatpush2.xpose.msra.mxu0 0.0
    %2611 = vmatprep.subr.mxu0 0.0
    %2612 = vmatpush2.xpose.msra.mxu0 0.0
    %2613 = vmatprep.subr.mxu0 0.0
    %2614 = vmatpush2.xpose.msra.mxu0 0.0
    %2615 = vmatprep.subr.mxu0 0.0
    %2616 = vmatpush2.xpose.msra.mxu0 0.0
    %2617 = vmatprep.subr.mxu0 0.0
    %2618 = vmatpush2.xpose.msra.mxu0 0.0
    %2619 = vmatprep.mubr.f32.mxu0 0.0
    %2620 = vmatmul.mubr.f32.gmra.mxu0 %v2551
    %v2621 = vpop.f32.mrf.mxu0
    %v2622 = vadd.f32 0.0, %v2621
    %v2623 = vpop.f32.mrf.mxu0
    %2624 = vdwg.mxu0
    %v2625 = vsel %vm255, %v2164, 0
    %v2627 = vsel %vm255, %v2178, 0
    %2629 = vmatprep.subr.mxu0 0.0
    %2630 = vmatpush1.xpose.msra.mxu0 0.0
    %2631 = vmatprep.subr.mxu0 0.0
    %2632 = vmatpush1.xpose.msra.mxu0 0.0
    %2633 = vmatprep.subr.mxu0 0.0
    %2634 = vmatpush1.xpose.msra.mxu0 0.0
    %2635 = vmatprep.subr.mxu0 0.0
    %2636 = vmatpush1.xpose.msra.mxu0 0.0
    %2637 = vmatprep.subr.mxu0 0.0
    %2638 = vmatpush1.xpose.msra.mxu0 0.0
    %2639 = vmatprep.subr.mxu0 0.0
    %2640 = vmatpush1.xpose.msra.mxu0 0.0
    %2641 = vmatprep.subr.mxu0 0.0
    %2642 = vmatpush1.xpose.msra.mxu0 0.0
    %2643 = vmatprep.subr.mxu0 0.0
    %2644 = vmatpush1.xpose.msra.mxu0 0.0
    %2645 = vmatprep.subr.mxu0 0.0
    %2646 = vmatpush1.xpose.msra.mxu0 0.0
    %2647 = vmatprep.subr.mxu0 0.0
    %2648 = vmatpush1.xpose.msra.mxu0 0.0
    %2649 = vmatprep.subr.mxu0 0.0
    %2650 = vmatpush1.xpose.msra.mxu0 0.0
    %2651 = vmatprep.subr.mxu0 0.0
    %2652 = vmatpush1.xpose.msra.mxu0 0.0
    %2653 = vmatprep.subr.mxu0 0.0
    %2654 = vmatpush1.xpose.msra.mxu0 0.0
    %2655 = vmatprep.subr.mxu0 0.0
    %2656 = vmatpush1.xpose.msra.mxu0 0.0
    %2657 = vmatprep.subr.mxu0 0.0
    %2658 = vmatpush1.xpose.msra.mxu0 0.0
    %2659 = vmatprep.subr.mxu0 0.0
    %2660 = vmatpush1.xpose.msra.mxu0 %v2627
    %2661 = vmatprep.subr.mxu0 0.0
    %2662 = vmatpush2.xpose.msra.mxu0 0.0
    %2663 = vmatprep.subr.mxu0 0.0
    %2664 = vmatpush2.xpose.msra.mxu0 0.0
    %2665 = vmatprep.subr.mxu0 0.0
    %2666 = vmatpush2.xpose.msra.mxu0 0.0
    %2667 = vmatprep.subr.mxu0 0.0
    %2668 = vmatpush2.xpose.msra.mxu0 0.0
    %2669 = vmatprep.subr.mxu0 0.0
    %2670 = vmatpush2.xpose.msra.mxu0 0.0
    %2671 = vmatprep.subr.mxu0 0.0
    %2672 = vmatpush2.xpose.msra.mxu0 0.0
    %2673 = vmatprep.subr.mxu0 0.0
    %2674 = vmatpush2.xpose.msra.mxu0 0.0
    %2675 = vmatprep.subr.mxu0 0.0
    %2676 = vmatpush2.xpose.msra.mxu0 0.0
    %2677 = vmatprep.subr.mxu0 0.0
    %2678 = vmatpush2.xpose.msra.mxu0 0.0
    %2679 = vmatprep.subr.mxu0 0.0
    %2680 = vmatpush2.xpose.msra.mxu0 0.0
    %2681 = vmatprep.subr.mxu0 0.0
    %2682 = vmatpush2.xpose.msra.mxu0 0.0
    %2683 = vmatprep.subr.mxu0 0.0
    %2684 = vmatpush2.xpose.msra.mxu0 0.0
    %2685 = vmatprep.subr.mxu0 0.0
    %2686 = vmatpush2.xpose.msra.mxu0 0.0
    %2687 = vmatprep.subr.mxu0 0.0
    %2688 = vmatpush2.xpose.msra.mxu0 0.0
    %2689 = vmatprep.subr.mxu0 0.0
    %2690 = vmatpush2.xpose.msra.mxu0 0.0
    %2691 = vmatprep.subr.mxu0 0.0
    %2692 = vmatpush2.xpose.msra.mxu0 0.0
    %2693 = vmatprep.mubr.f32.mxu0 0.0
    %2694 = vmatmul.mubr.f32.gmra.mxu0 %v2625
    %v2695 = vpop.f32.mrf.mxu0
    %v2696 = vadd.f32 0.0, %v2695
    %v2697 = vpop.f32.mrf.mxu0
    %2698 = vdwg.mxu0
    %v2699 = vsel %vm255, %v2166, 0
    %v2701 = vsel %vm255, %v2180, 0
    %2703 = vmatprep.subr.mxu0 0.0
    %2704 = vmatpush1.xpose.msra.mxu0 0.0
    %2705 = vmatprep.subr.mxu0 0.0
    %2706 = vmatpush1.xpose.msra.mxu0 0.0
    %2707 = vmatprep.subr.mxu0 0.0
    %2708 = vmatpush1.xpose.msra.mxu0 0.0
    %2709 = vmatprep.subr.mxu0 0.0
    %2710 = vmatpush1.xpose.msra.mxu0 0.0
    %2711 = vmatprep.subr.mxu0 0.0
    %2712 = vmatpush1.xpose.msra.mxu0 0.0
    %2713 = vmatprep.subr.mxu0 0.0
    %2714 = vmatpush1.xpose.msra.mxu0 0.0
    %2715 = vmatprep.subr.mxu0 0.0
    %2716 = vmatpush1.xpose.msra.mxu0 0.0
    %2717 = vmatprep.subr.mxu0 0.0
    %2718 = vmatpush1.xpose.msra.mxu0 0.0
    %2719 = vmatprep.subr.mxu0 0.0
    %2720 = vmatpush1.xpose.msra.mxu0 0.0
    %2721 = vmatprep.subr.mxu0 0.0
    %2722 = vmatpush1.xpose.msra.mxu0 0.0
    %2723 = vmatprep.subr.mxu0 0.0
    %2724 = vmatpush1.xpose.msra.mxu0 0.0
    %2725 = vmatprep.subr.mxu0 0.0
    %2726 = vmatpush1.xpose.msra.mxu0 0.0
    %2727 = vmatprep.subr.mxu0 0.0
    %2728 = vmatpush1.xpose.msra.mxu0 0.0
    %2729 = vmatprep.subr.mxu0 0.0
    %2730 = vmatpush1.xpose.msra.mxu0 0.0
    %2731 = vmatprep.subr.mxu0 0.0
    %2732 = vmatpush1.xpose.msra.mxu0 0.0
    %2733 = vmatprep.subr.mxu0 0.0
    %2734 = vmatpush1.xpose.msra.mxu0 %v2701
    %2735 = vmatprep.subr.mxu0 0.0
    %2736 = vmatpush2.xpose.msra.mxu0 0.0
    %2737 = vmatprep.subr.mxu0 0.0
    %2738 = vmatpush2.xpose.msra.mxu0 0.0
    %2739 = vmatprep.subr.mxu0 0.0
    %2740 = vmatpush2.xpose.msra.mxu0 0.0
    %2741 = vmatprep.subr.mxu0 0.0
    %2742 = vmatpush2.xpose.msra.mxu0 0.0
    %2743 = vmatprep.subr.mxu0 0.0
    %2744 = vmatpush2.xpose.msra.mxu0 0.0
    %2745 = vmatprep.subr.mxu0 0.0
    %2746 = vmatpush2.xpose.msra.mxu0 0.0
    %2747 = vmatprep.subr.mxu0 0.0
    %2748 = vmatpush2.xpose.msra.mxu0 0.0
    %2749 = vmatprep.subr.mxu0 0.0
    %2750 = vmatpush2.xpose.msra.mxu0 0.0
    %2751 = vmatprep.subr.mxu0 0.0
    %2752 = vmatpush2.xpose.msra.mxu0 0.0
    %2753 = vmatprep.subr.mxu0 0.0
    %2754 = vmatpush2.xpose.msra.mxu0 0.0
    %2755 = vmatprep.subr.mxu0 0.0
    %2756 = vmatpush2.xpose.msra.mxu0 0.0
    %2757 = vmatprep.subr.mxu0 0.0
    %2758 = vmatpush2.xpose.msra.mxu0 0.0
    %2759 = vmatprep.subr.mxu0 0.0
    %2760 = vmatpush2.xpose.msra.mxu0 0.0
    %2761 = vmatprep.subr.mxu0 0.0
    %2762 = vmatpush2.xpose.msra.mxu0 0.0
    %2763 = vmatprep.subr.mxu0 0.0
    %2764 = vmatpush2.xpose.msra.mxu0 0.0
    %2765 = vmatprep.subr.mxu0 0.0
    %2766 = vmatpush2.xpose.msra.mxu0 0.0
    %2767 = vmatprep.mubr.f32.mxu0 0.0
    %2768 = vmatmul.mubr.f32.gmra.mxu0 %v2699
    %v2769 = vpop.f32.mrf.mxu0
    %v2770 = vadd.f32 0.0, %v2769
    %v2771 = vpop.f32.mrf.mxu0
    %2772 = vdwg.mxu0
    %v2773 = vmul.f32 %v2252, 0.35355338
    %v2774 = vmul.f32 %v2326, 0.35355338
    %v2775 = vmul.f32 %v2400, 0.35355338
    %v2776 = vmul.f32 %v2474, 0.35355338
    %v2777 = vmul.f32 %v2548, 0.35355338
    %v2778 = vmul.f32 %v2622, 0.35355338
    %v2779 = vmul.f32 %v2696, 0.35355338
    %v2780 = vmul.f32 %v2770, 0.35355338
    %v2781 = vsel %vm255, %v2773, -inf
    %2782 = vmax.xlane.f32.xlu0 %v2781
    %v2783 = vpop.xlane.xlu0 %2782
    %v2784 = vsel %vm255, %v2774, -inf
    %2785 = vmax.xlane.f32.xlu0 %v2784
    %v2786 = vpop.xlane.xlu0 %2785
    %v2787 = vsel %vm255, %v2775, -inf
    %2788 = vmax.xlane.f32.xlu0 %v2787
    %v2789 = vpop.xlane.xlu0 %2788
    %v2790 = vsel %vm255, %v2776, -inf
    %2791 = vmax.xlane.f32.xlu0 %v2790
    %v2792 = vpop.xlane.xlu0 %2791
    %v2793 = vsel %vm255, %v2777, -inf
    %2794 = vmax.xlane.f32.xlu0 %v2793
    %v2795 = vpop.xlane.xlu0 %2794
    %v2796 = vsel %vm255, %v2778, -inf
    %2797 = vmax.xlane.f32.xlu0 %v2796
    %v2798 = vpop.xlane.xlu0 %2797
    %v2799 = vsel %vm255, %v2779, -inf
    %2800 = vmax.xlane.f32.xlu0 %v2799
    %v2801 = vpop.xlane.xlu0 %2800
    %v2802 = vsel %vm255, %v2780, -inf
    %2803 = vmax.xlane.f32.xlu0 %v2802
    %v2804 = vpop.xlane.xlu0 %2803
    %v2805 = vsub.f32 %v2773, %v2783
    %v2806 = vsub.f32 %v2774, %v2786
    %v2807 = vsub.f32 %v2775, %v2789
    %v2808 = vsub.f32 %v2776, %v2792
    %v2809 = vsub.f32 %v2777, %v2795
    %v2810 = vsub.f32 %v2778, %v2798
    %v2811 = vsub.f32 %v2779, %v2801
    %v2812 = vsub.f32 %v2780, %v2804
    %v2813 = vmul.f32 %v2805, 1.442695
    %v2814 = vpow.pop %v2813
    %v2815 = vmul.f32 %v2806, 1.442695
    %v2816 = vpow.pop %v2815
    %v2817 = vmul.f32 %v2807, 1.442695
    %v2818 = vpow.pop %v2817
    %v2819 = vmul.f32 %v2808, 1.442695
    %v2820 = vpow.pop %v2819
    %v2821 = vmul.f32 %v2809, 1.442695
    %v2822 = vpow.pop %v2821
    %v2823 = vmul.f32 %v2810, 1.442695
    %v2824 = vpow.pop %v2823
    %v2825 = vmul.f32 %v2811, 1.442695
    %v2826 = vpow.pop %v2825
    %v2827 = vmul.f32 %v2812, 1.442695
    %v2828 = vpow.pop %v2827
    %v2829 = vsel %vm255, %v2814, 0.0
    %2830 = vadd.xlane.f32.xlu0 %v2829
    %v2831 = vpop.xlane.xlu0 %2830
    %v2832 = vsel %vm255, %v2816, 0.0
    %2833 = vadd.xlane.f32.xlu0 %v2832
    %v2834 = vpop.xlane.xlu0 %2833
    %v2835 = vsel %vm255, %v2818, 0.0
    %2836 = vadd.xlane.f32.xlu0 %v2835
    %v2837 = vpop.xlane.xlu0 %2836
    %v2838 = vsel %vm255, %v2820, 0.0
    %2839 = vadd.xlane.f32.xlu0 %v2838
    %v2840 = vpop.xlane.xlu0 %2839
    %v2841 = vsel %vm255, %v2822, 0.0
    %2842 = vadd.xlane.f32.xlu0 %v2841
    %v2843 = vpop.xlane.xlu0 %2842
    %v2844 = vsel %vm255, %v2824, 0.0
    %2845 = vadd.xlane.f32.xlu0 %v2844
    %v2846 = vpop.xlane.xlu0 %2845
    %v2847 = vsel %vm255, %v2826, 0.0
    %2848 = vadd.xlane.f32.xlu0 %v2847
    %v2849 = vpop.xlane.xlu0 %2848
    %v2850 = vsel %vm255, %v2828, 0.0
    %2851 = vadd.xlane.f32.xlu0 %v2850
    %v2852 = vpop.xlane.xlu0 %2851
    %v2853 = vrcp.pop %v2831
    %v2854 = vrcp.pop %v2834
    %v2855 = vrcp.pop %v2837
    %v2856 = vrcp.pop %v2840
    %v2857 = vrcp.pop %v2843
    %v2858 = vrcp.pop %v2846
    %v2859 = vrcp.pop %v2849
    %v2860 = vrcp.pop %v2852
    %v2861 = vmul.f32 %v2814, %v2853
    %v2862 = vmul.f32 %v2816, %v2854
    %v2863 = vmul.f32 %v2818, %v2855
    %v2864 = vmul.f32 %v2820, %v2856
    %v2865 = vmul.f32 %v2822, %v2857
    %v2866 = vmul.f32 %v2824, %v2858
    %v2867 = vmul.f32 %v2826, %v2859
    %v2868 = vmul.f32 %v2828, %v2860
    %2869 = vrot.lane.b32.xlu0 %v2145, 96
    %v2870 = vpop.permute.xlu0 %2869
    %v2873 = vsel %vm255, %v2861, 0
    %2875 = vmatprep.subr.mxu0 0.0
    %2876 = vmatpush1.msra.mxu0 0.0
    %2877 = vmatprep.subr.mxu0 0.0
    %2878 = vmatpush1.msra.mxu0 0.0
    %2879 = vmatprep.subr.mxu0 0.0
    %2880 = vmatpush1.msra.mxu0 0.0
    %2881 = vmatprep.subr.mxu0 0.0
    %2882 = vmatpush1.msra.mxu0 0.0
    %2883 = vmatprep.subr.mxu0 0.0
    %2884 = vmatpush1.msra.mxu0 0.0
    %2885 = vmatprep.subr.mxu0 0.0
    %2886 = vmatpush1.msra.mxu0 0.0
    %2887 = vmatprep.subr.mxu0 0.0
    %2888 = vmatpush1.msra.mxu0 0.0
    %2889 = vmatprep.subr.mxu0 0.0
    %2890 = vmatpush1.msra.mxu0 0.0
    %2891 = vmatprep.subr.mxu0 0.0
    %2892 = vmatpush1.msra.mxu0 0.0
    %2893 = vmatprep.subr.mxu0 0.0
    %2894 = vmatpush1.msra.mxu0 0.0
    %2895 = vmatprep.subr.mxu0 0.0
    %2896 = vmatpush1.msra.mxu0 0.0
    %2897 = vmatprep.subr.mxu0 0.0
    %2898 = vmatpush1.msra.mxu0 0.0
    %2899 = vmatprep.subr.mxu0 0.0
    %2900 = vmatpush1.msra.mxu0 0.0
    %2901 = vmatprep.subr.mxu0 0.0
    %2902 = vmatpush1.msra.mxu0 0.0
    %2903 = vmatprep.subr.mxu0 0.0
    %2904 = vmatpush1.msra.mxu0 0.0
    %2905 = vmatprep.subr.mxu0 0.0
    %2906 = vmatpush1.msra.mxu0 %v2870
    %2907 = vmatprep.subr.mxu0 0.0
    %2908 = vmatpush2.msra.mxu0 0.0
    %2909 = vmatprep.subr.mxu0 0.0
    %2910 = vmatpush2.msra.mxu0 0.0
    %2911 = vmatprep.subr.mxu0 0.0
    %2912 = vmatpush2.msra.mxu0 0.0
    %2913 = vmatprep.subr.mxu0 0.0
    %2914 = vmatpush2.msra.mxu0 0.0
    %2915 = vmatprep.subr.mxu0 0.0
    %2916 = vmatpush2.msra.mxu0 0.0
    %2917 = vmatprep.subr.mxu0 0.0
    %2918 = vmatpush2.msra.mxu0 0.0
    %2919 = vmatprep.subr.mxu0 0.0
    %2920 = vmatpush2.msra.mxu0 0.0
    %2921 = vmatprep.subr.mxu0 0.0
    %2922 = vmatpush2.msra.mxu0 0.0
    %2923 = vmatprep.subr.mxu0 0.0
    %2924 = vmatpush2.msra.mxu0 0.0
    %2925 = vmatprep.subr.mxu0 0.0
    %2926 = vmatpush2.msra.mxu0 0.0
    %2927 = vmatprep.subr.mxu0 0.0
    %2928 = vmatpush2.msra.mxu0 0.0
    %2929 = vmatprep.subr.mxu0 0.0
    %2930 = vmatpush2.msra.mxu0 0.0
    %2931 = vmatprep.subr.mxu0 0.0
    %2932 = vmatpush2.msra.mxu0 0.0
    %2933 = vmatprep.subr.mxu0 0.0
    %2934 = vmatpush2.msra.mxu0 0.0
    %2935 = vmatprep.subr.mxu0 0.0
    %2936 = vmatpush2.msra.mxu0 0.0
    %2937 = vmatprep.subr.mxu0 0.0
    %2938 = vmatpush2.msra.mxu0 0.0
    %2939 = vmatprep.mubr.f32.mxu0 0.0
    %2940 = vmatmul.mubr.f32.gmra.mxu0 %v2873
    %v2941 = vpop.f32.mrf.mxu0
    %v2942 = vadd.f32 0.0, %v2941
    %v2943 = vpop.f32.mrf.mxu0
    %2944 = vdwg.mxu0
    %2945 = vrot.lane.b32.xlu0 %v2150, 96
    %v2946 = vpop.permute.xlu0 %2945
    %v2949 = vsel %vm255, %v2862, 0
    %2951 = vmatprep.subr.mxu0 0.0
    %2952 = vmatpush1.msra.mxu0 0.0
    %2953 = vmatprep.subr.mxu0 0.0
    %2954 = vmatpush1.msra.mxu0 0.0
    %2955 = vmatprep.subr.mxu0 0.0
    %2956 = vmatpush1.msra.mxu0 0.0
    %2957 = vmatprep.subr.mxu0 0.0
    %2958 = vmatpush1.msra.mxu0 0.0
    %2959 = vmatprep.subr.mxu0 0.0
    %2960 = vmatpush1.msra.mxu0 0.0
    %2961 = vmatprep.subr.mxu0 0.0
    %2962 = vmatpush1.msra.mxu0 0.0
    %2963 = vmatprep.subr.mxu0 0.0
    %2964 = vmatpush1.msra.mxu0 0.0
    %2965 = vmatprep.subr.mxu0 0.0
    %2966 = vmatpush1.msra.mxu0 0.0
    %2967 = vmatprep.subr.mxu0 0.0
    %2968 = vmatpush1.msra.mxu0 0.0
    %2969 = vmatprep.subr.mxu0 0.0
    %2970 = vmatpush1.msra.mxu0 0.0
    %2971 = vmatprep.subr.mxu0 0.0
    %2972 = vmatpush1.msra.mxu0 0.0
    %2973 = vmatprep.subr.mxu0 0.0
    %2974 = vmatpush1.msra.mxu0 0.0
    %2975 = vmatprep.subr.mxu0 0.0
    %2976 = vmatpush1.msra.mxu0 0.0
    %2977 = vmatprep.subr.mxu0 0.0
    %2978 = vmatpush1.msra.mxu0 0.0
    %2979 = vmatprep.subr.mxu0 0.0
    %2980 = vmatpush1.msra.mxu0 0.0
    %2981 = vmatprep.subr.mxu0 0.0
    %2982 = vmatpush1.msra.mxu0 %v2946
    %2983 = vmatprep.subr.mxu0 0.0
    %2984 = vmatpush2.msra.mxu0 0.0
    %2985 = vmatprep.subr.mxu0 0.0
    %2986 = vmatpush2.msra.mxu0 0.0
    %2987 = vmatprep.subr.mxu0 0.0
    %2988 = vmatpush2.msra.mxu0 0.0
    %2989 = vmatprep.subr.mxu0 0.0
    %2990 = vmatpush2.msra.mxu0 0.0
    %2991 = vmatprep.subr.mxu0 0.0
    %2992 = vmatpush2.msra.mxu0 0.0
    %2993 = vmatprep.subr.mxu0 0.0
    %2994 = vmatpush2.msra.mxu0 0.0
    %2995 = vmatprep.subr.mxu0 0.0
    %2996 = vmatpush2.msra.mxu0 0.0
    %2997 = vmatprep.subr.mxu0 0.0
    %2998 = vmatpush2.msra.mxu0 0.0
    %2999 = vmatprep.subr.mxu0 0.0
    %3000 = vmatpush2.msra.mxu0 0.0
    %3001 = vmatprep.subr.mxu0 0.0
    %3002 = vmatpush2.msra.mxu0 0.0
    %3003 = vmatprep.subr.mxu0 0.0
    %3004 = vmatpush2.msra.mxu0 0.0
    %3005 = vmatprep.subr.mxu0 0.0
    %3006 = vmatpush2.msra.mxu0 0.0
    %3007 = vmatprep.subr.mxu0 0.0
    %3008 = vmatpush2.msra.mxu0 0.0
    %3009 = vmatprep.subr.mxu0 0.0
    %3010 = vmatpush2.msra.mxu0 0.0
    %3011 = vmatprep.subr.mxu0 0.0
    %3012 = vmatpush2.msra.mxu0 0.0
    %3013 = vmatprep.subr.mxu0 0.0
    %3014 = vmatpush2.msra.mxu0 0.0
    %3015 = vmatprep.mubr.f32.mxu0 0.0
    %3016 = vmatmul.mubr.f32.gmra.mxu0 %v2949
    %v3017 = vpop.f32.mrf.mxu0
    %v3018 = vadd.f32 0.0, %v3017
    %v3019 = vpop.f32.mrf.mxu0
    %3020 = vdwg.mxu0
    %3021 = vrot.lane.b32.xlu0 %v2170, 96
    %v3022 = vpop.permute.xlu0 %3021
    %v3025 = vsel %vm255, %v2863, 0
    %3027 = vmatprep.subr.mxu0 0.0
    %3028 = vmatpush1.msra.mxu0 0.0
    %3029 = vmatprep.subr.mxu0 0.0
    %3030 = vmatpush1.msra.mxu0 0.0
    %3031 = vmatprep.subr.mxu0 0.0
    %3032 = vmatpush1.msra.mxu0 0.0
    %3033 = vmatprep.subr.mxu0 0.0
    %3034 = vmatpush1.msra.mxu0 0.0
    %3035 = vmatprep.subr.mxu0 0.0
    %3036 = vmatpush1.msra.mxu0 0.0
    %3037 = vmatprep.subr.mxu0 0.0
    %3038 = vmatpush1.msra.mxu0 0.0
    %3039 = vmatprep.subr.mxu0 0.0
    %3040 = vmatpush1.msra.mxu0 0.0
    %3041 = vmatprep.subr.mxu0 0.0
    %3042 = vmatpush1.msra.mxu0 0.0
    %3043 = vmatprep.subr.mxu0 0.0
    %3044 = vmatpush1.msra.mxu0 0.0
    %3045 = vmatprep.subr.mxu0 0.0
    %3046 = vmatpush1.msra.mxu0 0.0
    %3047 = vmatprep.subr.mxu0 0.0
    %3048 = vmatpush1.msra.mxu0 0.0
    %3049 = vmatprep.subr.mxu0 0.0
    %3050 = vmatpush1.msra.mxu0 0.0
    %3051 = vmatprep.subr.mxu0 0.0
    %3052 = vmatpush1.msra.mxu0 0.0
    %3053 = vmatprep.subr.mxu0 0.0
    %3054 = vmatpush1.msra.mxu0 0.0
    %3055 = vmatprep.subr.mxu0 0.0
    %3056 = vmatpush1.msra.mxu0 0.0
    %3057 = vmatprep.subr.mxu0 0.0
    %3058 = vmatpush1.msra.mxu0 %v3022
    %3059 = vmatprep.subr.mxu0 0.0
    %3060 = vmatpush2.msra.mxu0 0.0
    %3061 = vmatprep.subr.mxu0 0.0
    %3062 = vmatpush2.msra.mxu0 0.0
    %3063 = vmatprep.subr.mxu0 0.0
    %3064 = vmatpush2.msra.mxu0 0.0
    %3065 = vmatprep.subr.mxu0 0.0
    %3066 = vmatpush2.msra.mxu0 0.0
    %3067 = vmatprep.subr.mxu0 0.0
    %3068 = vmatpush2.msra.mxu0 0.0
    %3069 = vmatprep.subr.mxu0 0.0
    %3070 = vmatpush2.msra.mxu0 0.0
    %3071 = vmatprep.subr.mxu0 0.0
    %3072 = vmatpush2.msra.mxu0 0.0
    %3073 = vmatprep.subr.mxu0 0.0
    %3074 = vmatpush2.msra.mxu0 0.0
    %3075 = vmatprep.subr.mxu0 0.0
    %3076 = vmatpush2.msra.mxu0 0.0
    %3077 = vmatprep.subr.mxu0 0.0
    %3078 = vmatpush2.msra.mxu0 0.0
    %3079 = vmatprep.subr.mxu0 0.0
    %3080 = vmatpush2.msra.mxu0 0.0
    %3081 = vmatprep.subr.mxu0 0.0
    %3082 = vmatpush2.msra.mxu0 0.0
    %3083 = vmatprep.subr.mxu0 0.0
    %3084 = vmatpush2.msra.mxu0 0.0
    %3085 = vmatprep.subr.mxu0 0.0
    %3086 = vmatpush2.msra.mxu0 0.0
    %3087 = vmatprep.subr.mxu0 0.0
    %3088 = vmatpush2.msra.mxu0 0.0
    %3089 = vmatprep.subr.mxu0 0.0
    %3090 = vmatpush2.msra.mxu0 0.0
    %3091 = vmatprep.mubr.f32.mxu0 0.0
    %3092 = vmatmul.mubr.f32.gmra.mxu0 %v3025
    %v3093 = vpop.f32.mrf.mxu0
    %v3094 = vadd.f32 0.0, %v3093
    %v3095 = vpop.f32.mrf.mxu0
    %3096 = vdwg.mxu0
    %3097 = vrot.lane.b32.xlu0 %v2172, 96
    %v3098 = vpop.permute.xlu0 %3097
    %v3101 = vsel %vm255, %v2864, 0
    %3103 = vmatprep.subr.mxu0 0.0
    %3104 = vmatpush1.msra.mxu0 0.0
    %3105 = vmatprep.subr.mxu0 0.0
    %3106 = vmatpush1.msra.mxu0 0.0
    %3107 = vmatprep.subr.mxu0 0.0
    %3108 = vmatpush1.msra.mxu0 0.0
    %3109 = vmatprep.subr.mxu0 0.0
    %3110 = vmatpush1.msra.mxu0 0.0
    %3111 = vmatprep.subr.mxu0 0.0
    %3112 = vmatpush1.msra.mxu0 0.0
    %3113 = vmatprep.subr.mxu0 0.0
    %3114 = vmatpush1.msra.mxu0 0.0
    %3115 = vmatprep.subr.mxu0 0.0
    %3116 = vmatpush1.msra.mxu0 0.0
    %3117 = vmatprep.subr.mxu0 0.0
    %3118 = vmatpush1.msra.mxu0 0.0
    %3119 = vmatprep.subr.mxu0 0.0
    %3120 = vmatpush1.msra.mxu0 0.0
    %3121 = vmatprep.subr.mxu0 0.0
    %3122 = vmatpush1.msra.mxu0 0.0
    %3123 = vmatprep.subr.mxu0 0.0
    %3124 = vmatpush1.msra.mxu0 0.0
    %3125 = vmatprep.subr.mxu0 0.0
    %3126 = vmatpush1.msra.mxu0 0.0
    %3127 = vmatprep.subr.mxu0 0.0
    %3128 = vmatpush1.msra.mxu0 0.0
    %3129 = vmatprep.subr.mxu0 0.0
    %3130 = vmatpush1.msra.mxu0 0.0
    %3131 = vmatprep.subr.mxu0 0.0
    %3132 = vmatpush1.msra.mxu0 0.0
    %3133 = vmatprep.subr.mxu0 0.0
    %3134 = vmatpush1.msra.mxu0 %v3098
    %3135 = vmatprep.subr.mxu0 0.0
    %3136 = vmatpush2.msra.mxu0 0.0
    %3137 = vmatprep.subr.mxu0 0.0
    %3138 = vmatpush2.msra.mxu0 0.0
    %3139 = vmatprep.subr.mxu0 0.0
    %3140 = vmatpush2.msra.mxu0 0.0
    %3141 = vmatprep.subr.mxu0 0.0
    %3142 = vmatpush2.msra.mxu0 0.0
    %3143 = vmatprep.subr.mxu0 0.0
    %3144 = vmatpush2.msra.mxu0 0.0
    %3145 = vmatprep.subr.mxu0 0.0
    %3146 = vmatpush2.msra.mxu0 0.0
    %3147 = vmatprep.subr.mxu0 0.0
    %3148 = vmatpush2.msra.mxu0 0.0
    %3149 = vmatprep.subr.mxu0 0.0
    %3150 = vmatpush2.msra.mxu0 0.0
    %3151 = vmatprep.subr.mxu0 0.0
    %3152 = vmatpush2.msra.mxu0 0.0
    %3153 = vmatprep.subr.mxu0 0.0
    %3154 = vmatpush2.msra.mxu0 0.0
    %3155 = vmatprep.subr.mxu0 0.0
    %3156 = vmatpush2.msra.mxu0 0.0
    %3157 = vmatprep.subr.mxu0 0.0
    %3158 = vmatpush2.msra.mxu0 0.0
    %3159 = vmatprep.subr.mxu0 0.0
    %3160 = vmatpush2.msra.mxu0 0.0
    %3161 = vmatprep.subr.mxu0 0.0
    %3162 = vmatpush2.msra.mxu0 0.0
    %3163 = vmatprep.subr.mxu0 0.0
    %3164 = vmatpush2.msra.mxu0 0.0
    %3165 = vmatprep.subr.mxu0 0.0
    %3166 = vmatpush2.msra.mxu0 0.0
    %3167 = vmatprep.mubr.f32.mxu0 0.0
    %3168 = vmatmul.mubr.f32.gmra.mxu0 %v3101
    %v3169 = vpop.f32.mrf.mxu0
    %v3170 = vadd.f32 0.0, %v3169
    %v3171 = vpop.f32.mrf.mxu0
    %3172 = vdwg.mxu0
    %3173 = vrot.lane.b32.xlu0 %v2174, 96
    %v3174 = vpop.permute.xlu0 %3173
    %v3177 = vsel %vm255, %v2865, 0
    %3179 = vmatprep.subr.mxu0 0.0
    %3180 = vmatpush1.msra.mxu0 0.0
    %3181 = vmatprep.subr.mxu0 0.0
    %3182 = vmatpush1.msra.mxu0 0.0
    %3183 = vmatprep.subr.mxu0 0.0
    %3184 = vmatpush1.msra.mxu0 0.0
    %3185 = vmatprep.subr.mxu0 0.0
    %3186 = vmatpush1.msra.mxu0 0.0
    %3187 = vmatprep.subr.mxu0 0.0
    %3188 = vmatpush1.msra.mxu0 0.0
    %3189 = vmatprep.subr.mxu0 0.0
    %3190 = vmatpush1.msra.mxu0 0.0
    %3191 = vmatprep.subr.mxu0 0.0
    %3192 = vmatpush1.msra.mxu0 0.0
    %3193 = vmatprep.subr.mxu0 0.0
    %3194 = vmatpush1.msra.mxu0 0.0
    %3195 = vmatprep.subr.mxu0 0.0
    %3196 = vmatpush1.msra.mxu0 0.0
    %3197 = vmatprep.subr.mxu0 0.0
    %3198 = vmatpush1.msra.mxu0 0.0
    %3199 = vmatprep.subr.mxu0 0.0
    %3200 = vmatpush1.msra.mxu0 0.0
    %3201 = vmatprep.subr.mxu0 0.0
    %3202 = vmatpush1.msra.mxu0 0.0
    %3203 = vmatprep.subr.mxu0 0.0
    %3204 = vmatpush1.msra.mxu0 0.0
    %3205 = vmatprep.subr.mxu0 0.0
    %3206 = vmatpush1.msra.mxu0 0.0
    %3207 = vmatprep.subr.mxu0 0.0
    %3208 = vmatpush1.msra.mxu0 0.0
    %3209 = vmatprep.subr.mxu0 0.0
    %3210 = vmatpush1.msra.mxu0 %v3174
    %3211 = vmatprep.subr.mxu0 0.0
    %3212 = vmatpush2.msra.mxu0 0.0
    %3213 = vmatprep.subr.mxu0 0.0
    %3214 = vmatpush2.msra.mxu0 0.0
    %3215 = vmatprep.subr.mxu0 0.0
    %3216 = vmatpush2.msra.mxu0 0.0
    %3217 = vmatprep.subr.mxu0 0.0
    %3218 = vmatpush2.msra.mxu0 0.0
    %3219 = vmatprep.subr.mxu0 0.0
    %3220 = vmatpush2.msra.mxu0 0.0
    %3221 = vmatprep.subr.mxu0 0.0
    %3222 = vmatpush2.msra.mxu0 0.0
    %3223 = vmatprep.subr.mxu0 0.0
    %3224 = vmatpush2.msra.mxu0 0.0
    %3225 = vmatprep.subr.mxu0 0.0
    %3226 = vmatpush2.msra.mxu0 0.0
    %3227 = vmatprep.subr.mxu0 0.0
    %3228 = vmatpush2.msra.mxu0 0.0
    %3229 = vmatprep.subr.mxu0 0.0
    %3230 = vmatpush2.msra.mxu0 0.0
    %3231 = vmatprep.subr.mxu0 0.0
    %3232 = vmatpush2.msra.mxu0 0.0
    %3233 = vmatprep.subr.mxu0 0.0
    %3234 = vmatpush2.msra.mxu0 0.0
    %3235 = vmatprep.subr.mxu0 0.0
    %3236 = vmatpush2.msra.mxu0 0.0
    %3237 = vmatprep.subr.mxu0 0.0
    %3238 = vmatpush2.msra.mxu0 0.0
    %3239 = vmatprep.subr.mxu0 0.0
    %3240 = vmatpush2.msra.mxu0 0.0
    %3241 = vmatprep.subr.mxu0 0.0
    %3242 = vmatpush2.msra.mxu0 0.0
    %3243 = vmatprep.mubr.f32.mxu0 0.0
    %3244 = vmatmul.mubr.f32.gmra.mxu0 %v3177
    %v3245 = vpop.f32.mrf.mxu0
    %v3246 = vadd.f32 0.0, %v3245
    %v3247 = vpop.f32.mrf.mxu0
    %3248 = vdwg.mxu0
    %3249 = vrot.lane.b32.xlu0 %v2176, 96
    %v3250 = vpop.permute.xlu0 %3249
    %v3253 = vsel %vm255, %v2866, 0
    %3255 = vmatprep.subr.mxu0 0.0
    %3256 = vmatpush1.msra.mxu0 0.0
    %3257 = vmatprep.subr.mxu0 0.0
    %3258 = vmatpush1.msra.mxu0 0.0
    %3259 = vmatprep.subr.mxu0 0.0
    %3260 = vmatpush1.msra.mxu0 0.0
    %3261 = vmatprep.subr.mxu0 0.0
    %3262 = vmatpush1.msra.mxu0 0.0
    %3263 = vmatprep.subr.mxu0 0.0
    %3264 = vmatpush1.msra.mxu0 0.0
    %3265 = vmatprep.subr.mxu0 0.0
    %3266 = vmatpush1.msra.mxu0 0.0
    %3267 = vmatprep.subr.mxu0 0.0
    %3268 = vmatpush1.msra.mxu0 0.0
    %3269 = vmatprep.subr.mxu0 0.0
    %3270 = vmatpush1.msra.mxu0 0.0
    %3271 = vmatprep.subr.mxu0 0.0
    %3272 = vmatpush1.msra.mxu0 0.0
    %3273 = vmatprep.subr.mxu0 0.0
    %3274 = vmatpush1.msra.mxu0 0.0
    %3275 = vmatprep.subr.mxu0 0.0
    %3276 = vmatpush1.msra.mxu0 0.0
    %3277 = vmatprep.subr.mxu0 0.0
    %3278 = vmatpush1.msra.mxu0 0.0
    %3279 = vmatprep.subr.mxu0 0.0
    %3280 = vmatpush1.msra.mxu0 0.0
    %3281 = vmatprep.subr.mxu0 0.0
    %3282 = vmatpush1.msra.mxu0 0.0
    %3283 = vmatprep.subr.mxu0 0.0
    %3284 = vmatpush1.msra.mxu0 0.0
    %3285 = vmatprep.subr.mxu0 0.0
    %3286 = vmatpush1.msra.mxu0 %v3250
    %3287 = vmatprep.subr.mxu0 0.0
    %3288 = vmatpush2.msra.mxu0 0.0
    %3289 = vmatprep.subr.mxu0 0.0
    %3290 = vmatpush2.msra.mxu0 0.0
    %3291 = vmatprep.subr.mxu0 0.0
    %3292 = vmatpush2.msra.mxu0 0.0
    %3293 = vmatprep.subr.mxu0 0.0
    %3294 = vmatpush2.msra.mxu0 0.0
    %3295 = vmatprep.subr.mxu0 0.0
    %3296 = vmatpush2.msra.mxu0 0.0
    %3297 = vmatprep.subr.mxu0 0.0
    %3298 = vmatpush2.msra.mxu0 0.0
    %3299 = vmatprep.subr.mxu0 0.0
    %3300 = vmatpush2.msra.mxu0 0.0
    %3301 = vmatprep.subr.mxu0 0.0
    %3302 = vmatpush2.msra.mxu0 0.0
    %3303 = vmatprep.subr.mxu0 0.0
    %3304 = vmatpush2.msra.mxu0 0.0
    %3305 = vmatprep.subr.mxu0 0.0
    %3306 = vmatpush2.msra.mxu0 0.0
    %3307 = vmatprep.subr.mxu0 0.0
    %3308 = vmatpush2.msra.mxu0 0.0
    %3309 = vmatprep.subr.mxu0 0.0
    %3310 = vmatpush2.msra.mxu0 0.0
    %3311 = vmatprep.subr.mxu0 0.0
    %3312 = vmatpush2.msra.mxu0 0.0
    %3313 = vmatprep.subr.mxu0 0.0
    %3314 = vmatpush2.msra.mxu0 0.0
    %3315 = vmatprep.subr.mxu0 0.0
    %3316 = vmatpush2.msra.mxu0 0.0
    %3317 = vmatprep.subr.mxu0 0.0
    %3318 = vmatpush2.msra.mxu0 0.0
    %3319 = vmatprep.mubr.f32.mxu0 0.0
    %3320 = vmatmul.mubr.f32.gmra.mxu0 %v3253
    %v3321 = vpop.f32.mrf.mxu0
    %v3322 = vadd.f32 0.0, %v3321
    %v3323 = vpop.f32.mrf.mxu0
    %3324 = vdwg.mxu0
    %3325 = vrot.lane.b32.xlu0 %v2178, 96
    %v3326 = vpop.permute.xlu0 %3325
    %v3329 = vsel %vm255, %v2867, 0
    %3331 = vmatprep.subr.mxu0 0.0
    %3332 = vmatpush1.msra.mxu0 0.0
    %3333 = vmatprep.subr.mxu0 0.0
    %3334 = vmatpush1.msra.mxu0 0.0
    %3335 = vmatprep.subr.mxu0 0.0
    %3336 = vmatpush1.msra.mxu0 0.0
    %3337 = vmatprep.subr.mxu0 0.0
    %3338 = vmatpush1.msra.mxu0 0.0
    %3339 = vmatprep.subr.mxu0 0.0
    %3340 = vmatpush1.msra.mxu0 0.0
    %3341 = vmatprep.subr.mxu0 0.0
    %3342 = vmatpush1.msra.mxu0 0.0
    %3343 = vmatprep.subr.mxu0 0.0
    %3344 = vmatpush1.msra.mxu0 0.0
    %3345 = vmatprep.subr.mxu0 0.0
    %3346 = vmatpush1.msra.mxu0 0.0
    %3347 = vmatprep.subr.mxu0 0.0
    %3348 = vmatpush1.msra.mxu0 0.0
    %3349 = vmatprep.subr.mxu0 0.0
    %3350 = vmatpush1.msra.mxu0 0.0
    %3351 = vmatprep.subr.mxu0 0.0
    %3352 = vmatpush1.msra.mxu0 0.0
    %3353 = vmatprep.subr.mxu0 0.0
    %3354 = vmatpush1.msra.mxu0 0.0
    %3355 = vmatprep.subr.mxu0 0.0
    %3356 = vmatpush1.msra.mxu0 0.0
    %3357 = vmatprep.subr.mxu0 0.0
    %3358 = vmatpush1.msra.mxu0 0.0
    %3359 = vmatprep.subr.mxu0 0.0
    %3360 = vmatpush1.msra.mxu0 0.0
    %3361 = vmatprep.subr.mxu0 0.0
    %3362 = vmatpush1.msra.mxu0 %v3326
    %3363 = vmatprep.subr.mxu0 0.0
    %3364 = vmatpush2.msra.mxu0 0.0
    %3365 = vmatprep.subr.mxu0 0.0
    %3366 = vmatpush2.msra.mxu0 0.0
    %3367 = vmatprep.subr.mxu0 0.0
    %3368 = vmatpush2.msra.mxu0 0.0
    %3369 = vmatprep.subr.mxu0 0.0
    %3370 = vmatpush2.msra.mxu0 0.0
    %3371 = vmatprep.subr.mxu0 0.0
    %3372 = vmatpush2.msra.mxu0 0.0
    %3373 = vmatprep.subr.mxu0 0.0
    %3374 = vmatpush2.msra.mxu0 0.0
    %3375 = vmatprep.subr.mxu0 0.0
    %3376 = vmatpush2.msra.mxu0 0.0
    %3377 = vmatprep.subr.mxu0 0.0
    %3378 = vmatpush2.msra.mxu0 0.0
    %3379 = vmatprep.subr.mxu0 0.0
    %3380 = vmatpush2.msra.mxu0 0.0
    %3381 = vmatprep.subr.mxu0 0.0
    %3382 = vmatpush2.msra.mxu0 0.0
    %3383 = vmatprep.subr.mxu0 0.0
    %3384 = vmatpush2.msra.mxu0 0.0
    %3385 = vmatprep.subr.mxu0 0.0
    %3386 = vmatpush2.msra.mxu0 0.0
    %3387 = vmatprep.subr.mxu0 0.0
    %3388 = vmatpush2.msra.mxu0 0.0
    %3389 = vmatprep.subr.mxu0 0.0
    %3390 = vmatpush2.msra.mxu0 0.0
    %3391 = vmatprep.subr.mxu0 0.0
    %3392 = vmatpush2.msra.mxu0 0.0
    %3393 = vmatprep.subr.mxu0 0.0
    %3394 = vmatpush2.msra.mxu0 0.0
    %3395 = vmatprep.mubr.f32.mxu0 0.0
    %3396 = vmatmul.mubr.f32.gmra.mxu0 %v3329
    %v3397 = vpop.f32.mrf.mxu0
    %v3398 = vadd.f32 0.0, %v3397
    %v3399 = vpop.f32.mrf.mxu0
    %3400 = vdwg.mxu0
    %3401 = vrot.lane.b32.xlu0 %v2180, 96
    %v3402 = vpop.permute.xlu0 %3401
    %v3405 = vsel %vm255, %v2868, 0
    %3407 = vmatprep.subr.mxu0 0.0
    %3408 = vmatpush1.msra.mxu0 0.0
    %3409 = vmatprep.subr.mxu0 0.0
    %3410 = vmatpush1.msra.mxu0 0.0
    %3411 = vmatprep.subr.mxu0 0.0
    %3412 = vmatpush1.msra.mxu0 0.0
    %3413 = vmatprep.subr.mxu0 0.0
    %3414 = vmatpush1.msra.mxu0 0.0
    %3415 = vmatprep.subr.mxu0 0.0
    %3416 = vmatpush1.msra.mxu0 0.0
    %3417 = vmatprep.subr.mxu0 0.0
    %3418 = vmatpush1.msra.mxu0 0.0
    %3419 = vmatprep.subr.mxu0 0.0
    %3420 = vmatpush1.msra.mxu0 0.0
    %3421 = vmatprep.subr.mxu0 0.0
    %3422 = vmatpush1.msra.mxu0 0.0
    %3423 = vmatprep.subr.mxu0 0.0
    %3424 = vmatpush1.msra.mxu0 0.0
    %3425 = vmatprep.subr.mxu0 0.0
    %3426 = vmatpush1.msra.mxu0 0.0
    %3427 = vmatprep.subr.mxu0 0.0
    %3428 = vmatpush1.msra.mxu0 0.0
    %3429 = vmatprep.subr.mxu0 0.0
    %3430 = vmatpush1.msra.mxu0 0.0
    %3431 = vmatprep.subr.mxu0 0.0
    %3432 = vmatpush1.msra.mxu0 0.0
    %3433 = vmatprep.subr.mxu0 0.0
    %3434 = vmatpush1.msra.mxu0 0.0
    %3435 = vmatprep.subr.mxu0 0.0
    %3436 = vmatpush1.msra.mxu0 0.0
    %3437 = vmatprep.subr.mxu0 0.0
    %3438 = vmatpush1.msra.mxu0 %v3402
    %3439 = vmatprep.subr.mxu0 0.0
    %3440 = vmatpush2.msra.mxu0 0.0
    %3441 = vmatprep.subr.mxu0 0.0
    %3442 = vmatpush2.msra.mxu0 0.0
    %3443 = vmatprep.subr.mxu0 0.0
    %3444 = vmatpush2.msra.mxu0 0.0
    %3445 = vmatprep.subr.mxu0 0.0
    %3446 = vmatpush2.msra.mxu0 0.0
    %3447 = vmatprep.subr.mxu0 0.0
    %3448 = vmatpush2.msra.mxu0 0.0
    %3449 = vmatprep.subr.mxu0 0.0
    %3450 = vmatpush2.msra.mxu0 0.0
    %3451 = vmatprep.subr.mxu0 0.0
    %3452 = vmatpush2.msra.mxu0 0.0
    %3453 = vmatprep.subr.mxu0 0.0
    %3454 = vmatpush2.msra.mxu0 0.0
    %3455 = vmatprep.subr.mxu0 0.0
    %3456 = vmatpush2.msra.mxu0 0.0
    %3457 = vmatprep.subr.mxu0 0.0
    %3458 = vmatpush2.msra.mxu0 0.0
    %3459 = vmatprep.subr.mxu0 0.0
    %3460 = vmatpush2.msra.mxu0 0.0
    %3461 = vmatprep.subr.mxu0 0.0
    %3462 = vmatpush2.msra.mxu0 0.0
    %3463 = vmatprep.subr.mxu0 0.0
    %3464 = vmatpush2.msra.mxu0 0.0
    %3465 = vmatprep.subr.mxu0 0.0
    %3466 = vmatpush2.msra.mxu0 0.0
    %3467 = vmatprep.subr.mxu0 0.0
    %3468 = vmatpush2.msra.mxu0 0.0
    %3469 = vmatprep.subr.mxu0 0.0
    %3470 = vmatpush2.msra.mxu0 0.0
    %3471 = vmatprep.mubr.f32.mxu0 0.0
    %3472 = vmatmul.mubr.f32.gmra.mxu0 %v3405
    %v3473 = vpop.f32.mrf.mxu0
    %v3474 = vadd.f32 0.0, %v3473
    %v3475 = vpop.f32.mrf.mxu0
    %3476 = vdwg.mxu0
    %s3477 = scalar_lea.vmem [#allocation5], 64
    %v3478 = vld [vmem:[%s3477] sm:$0xff]
    %s3479 = scalar_lea.vmem [#allocation5], 72
    %v3480 = vld [vmem:[%s3479] sm:$0xff]
    %v3482 = vsel %vm255, %v3094, 0
    %v3485 = vsel %vm255, %v3170, 0
    %3487 = vmatprep.subr.mxu0 0.0
    %3488 = vmatpush1.msra.mxu0 0.0
    %3489 = vmatprep.subr.mxu0 0.0
    %3490 = vmatpush1.msra.mxu0 0.0
    %3491 = vmatprep.subr.mxu0 0.0
    %3492 = vmatpush1.msra.mxu0 0.0
    %3493 = vmatprep.subr.mxu0 0.0
    %3494 = vmatpush1.msra.mxu0 0.0
    %3495 = vmatprep.subr.mxu0 0.0
    %3496 = vmatpush1.msra.mxu0 0.0
    %3497 = vmatprep.subr.mxu0 0.0
    %3498 = vmatpush1.msra.mxu0 0.0
    %3499 = vmatprep.subr.mxu0 0.0
    %3500 = vmatpush1.msra.mxu0 0.0
    %3501 = vmatprep.subr.mxu0 0.0
    %3502 = vmatpush1.msra.mxu0 0.0
    %3503 = vmatprep.subr.mxu0 0.0
    %3504 = vmatpush1.msra.mxu0 0.0
    %3505 = vmatprep.subr.mxu0 0.0
    %3506 = vmatpush1.msra.mxu0 0.0
    %3507 = vmatprep.subr.mxu0 0.0
    %3508 = vmatpush1.msra.mxu0 0.0
    %3509 = vmatprep.subr.mxu0 0.0
    %3510 = vmatpush1.msra.mxu0 0.0
    %3511 = vmatprep.subr.mxu0 0.0
    %3512 = vmatpush1.msra.mxu0 0.0
    %3513 = vmatprep.subr.mxu0 0.0
    %3514 = vmatpush1.msra.mxu0 0.0
    %3515 = vmatprep.subr.mxu0 0.0
    %3516 = vmatpush1.msra.mxu0 0.0
    %3517 = vmatprep.subr.mxu0 0.0
    %3518 = vmatpush1.msra.mxu0 %v3480
    %3519 = vmatprep.subr.mxu0 0.0
    %3520 = vmatpush2.msra.mxu0 0.0
    %3521 = vmatprep.subr.mxu0 0.0
    %3522 = vmatpush2.msra.mxu0 0.0
    %3523 = vmatprep.subr.mxu0 0.0
    %3524 = vmatpush2.msra.mxu0 0.0
    %3525 = vmatprep.subr.mxu0 0.0
    %3526 = vmatpush2.msra.mxu0 0.0
    %3527 = vmatprep.subr.mxu0 0.0
    %3528 = vmatpush2.msra.mxu0 0.0
    %3529 = vmatprep.subr.mxu0 0.0
    %3530 = vmatpush2.msra.mxu0 0.0
    %3531 = vmatprep.subr.mxu0 0.0
    %3532 = vmatpush2.msra.mxu0 0.0
    %3533 = vmatprep.subr.mxu0 0.0
    %3534 = vmatpush2.msra.mxu0 0.0
    %3535 = vmatprep.subr.mxu0 0.0
    %3536 = vmatpush2.msra.mxu0 0.0
    %3537 = vmatprep.subr.mxu0 0.0
    %3538 = vmatpush2.msra.mxu0 0.0
    %3539 = vmatprep.subr.mxu0 0.0
    %3540 = vmatpush2.msra.mxu0 0.0
    %3541 = vmatprep.subr.mxu0 0.0
    %3542 = vmatpush2.msra.mxu0 0.0
    %3543 = vmatprep.subr.mxu0 0.0
    %3544 = vmatpush2.msra.mxu0 0.0
    %3545 = vmatprep.subr.mxu0 0.0
    %3546 = vmatpush2.msra.mxu0 0.0
    %3547 = vmatprep.subr.mxu0 0.0
    %3548 = vmatpush2.msra.mxu0 0.0
    %3549 = vmatprep.subr.mxu0 0.0
    %3550 = vmatpush2.msra.mxu0 0.0
    %3551 = vmatprep.mubr.f32.mxu0 0.0
    %3552 = vmatmul.mubr.f32.gmra.mxu0 %v3482
    %v3553 = vpop.f32.mrf.mxu0
    %v3554 = vadd.f32 0.0, %v3553
    %v3555 = vpop.f32.mrf.mxu0
    %3556 = vmatprep.mubr.f32.mxu0 0.0
    %3557 = vmatmul.mubr.f32.gmra.mxu0 %v3485
    %v3558 = vpop.f32.mrf.mxu0
    %v3559 = vadd.f32 0.0, %v3558
    %v3560 = vpop.f32.mrf.mxu0
    %3561 = vdwg.mxu0
    %v3563 = vsel %vm255, %v2942, 0
    %v3566 = vsel %vm255, %v3018, 0
    %3568 = vmatprep.subr.mxu0 0.0
    %3569 = vmatpush1.msra.mxu0 0.0
    %3570 = vmatprep.subr.mxu0 0.0
    %3571 = vmatpush1.msra.mxu0 0.0
    %3572 = vmatprep.subr.mxu0 0.0
    %3573 = vmatpush1.msra.mxu0 0.0
    %3574 = vmatprep.subr.mxu0 0.0
    %3575 = vmatpush1.msra.mxu0 0.0
    %3576 = vmatprep.subr.mxu0 0.0
    %3577 = vmatpush1.msra.mxu0 0.0
    %3578 = vmatprep.subr.mxu0 0.0
    %3579 = vmatpush1.msra.mxu0 0.0
    %3580 = vmatprep.subr.mxu0 0.0
    %3581 = vmatpush1.msra.mxu0 0.0
    %3582 = vmatprep.subr.mxu0 0.0
    %3583 = vmatpush1.msra.mxu0 0.0
    %3584 = vmatprep.subr.mxu0 0.0
    %3585 = vmatpush1.msra.mxu0 0.0
    %3586 = vmatprep.subr.mxu0 0.0
    %3587 = vmatpush1.msra.mxu0 0.0
    %3588 = vmatprep.subr.mxu0 0.0
    %3589 = vmatpush1.msra.mxu0 0.0
    %3590 = vmatprep.subr.mxu0 0.0
    %3591 = vmatpush1.msra.mxu0 0.0
    %3592 = vmatprep.subr.mxu0 0.0
    %3593 = vmatpush1.msra.mxu0 0.0
    %3594 = vmatprep.subr.mxu0 0.0
    %3595 = vmatpush1.msra.mxu0 0.0
    %3596 = vmatprep.subr.mxu0 0.0
    %3597 = vmatpush1.msra.mxu0 0.0
    %3598 = vmatprep.subr.mxu0 0.0
    %3599 = vmatpush1.msra.mxu0 %v3478
    %3600 = vmatprep.subr.mxu0 0.0
    %3601 = vmatpush2.msra.mxu0 0.0
    %3602 = vmatprep.subr.mxu0 0.0
    %3603 = vmatpush2.msra.mxu0 0.0
    %3604 = vmatprep.subr.mxu0 0.0
    %3605 = vmatpush2.msra.mxu0 0.0
    %3606 = vmatprep.subr.mxu0 0.0
    %3607 = vmatpush2.msra.mxu0 0.0
    %3608 = vmatprep.subr.mxu0 0.0
    %3609 = vmatpush2.msra.mxu0 0.0
    %3610 = vmatprep.subr.mxu0 0.0
    %3611 = vmatpush2.msra.mxu0 0.0
    %3612 = vmatprep.subr.mxu0 0.0
    %3613 = vmatpush2.msra.mxu0 0.0
    %3614 = vmatprep.subr.mxu0 0.0
    %3615 = vmatpush2.msra.mxu0 0.0
    %3616 = vmatprep.subr.mxu0 0.0
    %3617 = vmatpush2.msra.mxu0 0.0
    %3618 = vmatprep.subr.mxu0 0.0
    %3619 = vmatpush2.msra.mxu0 0.0
    %3620 = vmatprep.subr.mxu0 0.0
    %3621 = vmatpush2.msra.mxu0 0.0
    %3622 = vmatprep.subr.mxu0 0.0
    %3623 = vmatpush2.msra.mxu0 0.0
    %3624 = vmatprep.subr.mxu0 0.0
    %3625 = vmatpush2.msra.mxu0 0.0
    %3626 = vmatprep.subr.mxu0 0.0
    %3627 = vmatpush2.msra.mxu0 0.0
    %3628 = vmatprep.subr.mxu0 0.0
    %3629 = vmatpush2.msra.mxu0 0.0
    %3630 = vmatprep.subr.mxu0 0.0
    %3631 = vmatpush2.msra.mxu0 0.0
    %3632 = vmatprep.mubr.f32.mxu0 0.0
    %3633 = vmatmul.mubr.f32.gmra.mxu0 %v3563
    %v3634 = vpop.f32.mrf.mxu0
    %v3635 = vadd.f32 %v3554, %v3634
    %v3636 = vpop.f32.mrf.mxu0
    %3637 = vmatprep.mubr.f32.mxu0 0.0
    %3638 = vmatmul.mubr.f32.gmra.mxu0 %v3566
    %v3639 = vpop.f32.mrf.mxu0
    %v3640 = vadd.f32 %v3559, %v3639
    %v3641 = vpop.f32.mrf.mxu0
    %3642 = vdwg.mxu0
    %s3643 = scalar_lea.vmem [#allocation5], 80
    %v3644 = vld [vmem:[%s3643] sm:$0xff]
    %v3646 = vsel %vm255, %v3246, 0
    %v3649 = vsel %vm255, %v3322, 0
    %3651 = vmatprep.subr.mxu0 0.0
    %3652 = vmatpush1.msra.mxu0 0.0
    %3653 = vmatprep.subr.mxu0 0.0
    %3654 = vmatpush1.msra.mxu0 0.0
    %3655 = vmatprep.subr.mxu0 0.0
    %3656 = vmatpush1.msra.mxu0 0.0
    %3657 = vmatprep.subr.mxu0 0.0
    %3658 = vmatpush1.msra.mxu0 0.0
    %3659 = vmatprep.subr.mxu0 0.0
    %3660 = vmatpush1.msra.mxu0 0.0
    %3661 = vmatprep.subr.mxu0 0.0
    %3662 = vmatpush1.msra.mxu0 0.0
    %3663 = vmatprep.subr.mxu0 0.0
    %3664 = vmatpush1.msra.mxu0 0.0
    %3665 = vmatprep.subr.mxu0 0.0
    %3666 = vmatpush1.msra.mxu0 0.0
    %3667 = vmatprep.subr.mxu0 0.0
    %3668 = vmatpush1.msra.mxu0 0.0
    %3669 = vmatprep.subr.mxu0 0.0
    %3670 = vmatpush1.msra.mxu0 0.0
    %3671 = vmatprep.subr.mxu0 0.0
    %3672 = vmatpush1.msra.mxu0 0.0
    %3673 = vmatprep.subr.mxu0 0.0
    %3674 = vmatpush1.msra.mxu0 0.0
    %3675 = vmatprep.subr.mxu0 0.0
    %3676 = vmatpush1.msra.mxu0 0.0
    %3677 = vmatprep.subr.mxu0 0.0
    %3678 = vmatpush1.msra.mxu0 0.0
    %3679 = vmatprep.subr.mxu0 0.0
    %3680 = vmatpush1.msra.mxu0 0.0
    %3681 = vmatprep.subr.mxu0 0.0
    %3682 = vmatpush1.msra.mxu0 %v3644
    %3683 = vmatprep.subr.mxu0 0.0
    %3684 = vmatpush2.msra.mxu0 0.0
    %3685 = vmatprep.subr.mxu0 0.0
    %3686 = vmatpush2.msra.mxu0 0.0
    %3687 = vmatprep.subr.mxu0 0.0
    %3688 = vmatpush2.msra.mxu0 0.0
    %3689 = vmatprep.subr.mxu0 0.0
    %3690 = vmatpush2.msra.mxu0 0.0
    %3691 = vmatprep.subr.mxu0 0.0
    %3692 = vmatpush2.msra.mxu0 0.0
    %3693 = vmatprep.subr.mxu0 0.0
    %3694 = vmatpush2.msra.mxu0 0.0
    %3695 = vmatprep.subr.mxu0 0.0
    %3696 = vmatpush2.msra.mxu0 0.0
    %3697 = vmatprep.subr.mxu0 0.0
    %3698 = vmatpush2.msra.mxu0 0.0
    %3699 = vmatprep.subr.mxu0 0.0
    %3700 = vmatpush2.msra.mxu0 0.0
    %3701 = vmatprep.subr.mxu0 0.0
    %3702 = vmatpush2.msra.mxu0 0.0
    %3703 = vmatprep.subr.mxu0 0.0
    %3704 = vmatpush2.msra.mxu0 0.0
    %3705 = vmatprep.subr.mxu0 0.0
    %3706 = vmatpush2.msra.mxu0 0.0
    %3707 = vmatprep.subr.mxu0 0.0
    %3708 = vmatpush2.msra.mxu0 0.0
    %3709 = vmatprep.subr.mxu0 0.0
    %3710 = vmatpush2.msra.mxu0 0.0
    %3711 = vmatprep.subr.mxu0 0.0
    %3712 = vmatpush2.msra.mxu0 0.0
    %3713 = vmatprep.subr.mxu0 0.0
    %3714 = vmatpush2.msra.mxu0 0.0
    %3715 = vmatprep.mubr.f32.mxu0 0.0
    %3716 = vmatmul.mubr.f32.gmra.mxu0 %v3646
    %v3717 = vpop.f32.mrf.mxu0
    %v3718 = vadd.f32 0.0, %v3717
    %v3719 = vpop.f32.mrf.mxu0
    %3720 = vmatprep.mubr.f32.mxu0 0.0
    %3721 = vmatmul.mubr.f32.gmra.mxu0 %v3649
    %v3722 = vpop.f32.mrf.mxu0
    %v3723 = vadd.f32 0.0, %v3722
    %v3724 = vpop.f32.mrf.mxu0
    %3725 = vdwg.mxu0
    %v3726 = vadd.f32 %v3635, %v3718
    %v3727 = vadd.f32 %v3640, %v3723
    %s3728 = scalar_lea.vmem [#allocation5], 88
    %v3729 = vld [vmem:[%s3728] sm:$0xff]
    %v3731 = vsel %vm255, %v3398, 0
    %v3734 = vsel %vm255, %v3474, 0
    %3736 = vmatprep.subr.mxu0 0.0
    %3737 = vmatpush1.msra.mxu0 0.0
    %3738 = vmatprep.subr.mxu0 0.0
    %3739 = vmatpush1.msra.mxu0 0.0
    %3740 = vmatprep.subr.mxu0 0.0
    %3741 = vmatpush1.msra.mxu0 0.0
    %3742 = vmatprep.subr.mxu0 0.0
    %3743 = vmatpush1.msra.mxu0 0.0
    %3744 = vmatprep.subr.mxu0 0.0
    %3745 = vmatpush1.msra.mxu0 0.0
    %3746 = vmatprep.subr.mxu0 0.0
    %3747 = vmatpush1.msra.mxu0 0.0
    %3748 = vmatprep.subr.mxu0 0.0
    %3749 = vmatpush1.msra.mxu0 0.0
    %3750 = vmatprep.subr.mxu0 0.0
    %3751 = vmatpush1.msra.mxu0 0.0
    %3752 = vmatprep.subr.mxu0 0.0
    %3753 = vmatpush1.msra.mxu0 0.0
    %3754 = vmatprep.subr.mxu0 0.0
    %3755 = vmatpush1.msra.mxu0 0.0
    %3756 = vmatprep.subr.mxu0 0.0
    %3757 = vmatpush1.msra.mxu0 0.0
    %3758 = vmatprep.subr.mxu0 0.0
    %3759 = vmatpush1.msra.mxu0 0.0
    %3760 = vmatprep.subr.mxu0 0.0
    %3761 = vmatpush1.msra.mxu0 0.0
    %3762 = vmatprep.subr.mxu0 0.0
    %3763 = vmatpush1.msra.mxu0 0.0
    %3764 = vmatprep.subr.mxu0 0.0
    %3765 = vmatpush1.msra.mxu0 0.0
    %3766 = vmatprep.subr.mxu0 0.0
    %3767 = vmatpush1.msra.mxu0 %v3729
    %3768 = vmatprep.subr.mxu0 0.0
    %3769 = vmatpush2.msra.mxu0 0.0
    %3770 = vmatprep.subr.mxu0 0.0
    %3771 = vmatpush2.msra.mxu0 0.0
    %3772 = vmatprep.subr.mxu0 0.0
    %3773 = vmatpush2.msra.mxu0 0.0
    %3774 = vmatprep.subr.mxu0 0.0
    %3775 = vmatpush2.msra.mxu0 0.0
    %3776 = vmatprep.subr.mxu0 0.0
    %3777 = vmatpush2.msra.mxu0 0.0
    %3778 = vmatprep.subr.mxu0 0.0
    %3779 = vmatpush2.msra.mxu0 0.0
    %3780 = vmatprep.subr.mxu0 0.0
    %3781 = vmatpush2.msra.mxu0 0.0
    %3782 = vmatprep.subr.mxu0 0.0
    %3783 = vmatpush2.msra.mxu0 0.0
    %3784 = vmatprep.subr.mxu0 0.0
    %3785 = vmatpush2.msra.mxu0 0.0
    %3786 = vmatprep.subr.mxu0 0.0
    %3787 = vmatpush2.msra.mxu0 0.0
    %3788 = vmatprep.subr.mxu0 0.0
    %3789 = vmatpush2.msra.mxu0 0.0
    %3790 = vmatprep.subr.mxu0 0.0
    %3791 = vmatpush2.msra.mxu0 0.0
    %3792 = vmatprep.subr.mxu0 0.0
    %3793 = vmatpush2.msra.mxu0 0.0
    %3794 = vmatprep.subr.mxu0 0.0
    %3795 = vmatpush2.msra.mxu0 0.0
    %3796 = vmatprep.subr.mxu0 0.0
    %3797 = vmatpush2.msra.mxu0 0.0
    %3798 = vmatprep.subr.mxu0 0.0
    %3799 = vmatpush2.msra.mxu0 0.0
    %3800 = vmatprep.mubr.f32.mxu0 0.0
    %3801 = vmatmul.mubr.f32.gmra.mxu0 %v3731
    %v3802 = vpop.f32.mrf.mxu0
    %v3803 = vadd.f32 0.0, %v3802
    %v3804 = vpop.f32.mrf.mxu0
    %3805 = vmatprep.mubr.f32.mxu0 0.0
    %3806 = vmatmul.mubr.f32.gmra.mxu0 %v3734
    %v3807 = vpop.f32.mrf.mxu0
    %v3808 = vadd.f32 0.0, %v3807
    %v3809 = vpop.f32.mrf.mxu0
    %3810 = vdwg.mxu0
    %v3811 = vadd.f32 %v3726, %v3803
    %v3812 = vadd.f32 %v3727, %v3808
    %s3813 = scalar_lea.vmem [#allocation7], 2
    %v3814 = vld [vmem:[%s3813] sm:$0x1]
    %v3815 = vlaneseq
    %v3816 = vshrl.u32 %v3815, 7
    %v3817 = vsub.s32 0, %v3816
    %v3818 = vrot.slane %v3814, %v3817
    %v3819 = vadd.f32 %v3811, %v3818
    %v3820 = vadd.f32 %v3812, %v3818
    %v3821 = vadd.f32 %v1958, %v3819
    %v3822 = vadd.f32 %v1959, %v3820
    %v3823 = vld [vmem:[%s11 + $0x1] sm:$0x1]
    %v3824 = vld [vmem:[%s1919 + $0x1] sm:$0x1]
    %v3825 = vsel %vm157, %v3821, 0.0
    %3826 = vadd.xlane.f32.xlu0 %v3825
    %v3827 = vpop.xlane.xlu0 %3826
    %v3828 = vsel %vm157, %v3822, 0.0
    %3829 = vadd.xlane.f32.xlu0 %v3828
    %v3830 = vpop.xlane.xlu0 %3829
    %v3831 = vmul.f32 %v3827, %v1927
    %v3832 = vmul.f32 %v3830, %v1927
    %v3833 = vsub.f32 %v3821, %v3831
    %v3834 = vsub.f32 %v3822, %v3832
    %v3835 = vmul.f32 %v3833, %v3833
    %v3836 = vmul.f32 %v3834, %v3834
    %v3837 = vsel %vm157, %v3835, 0.0
    %3838 = vadd.xlane.f32.xlu0 %v3837
    %v3839 = vpop.xlane.xlu0 %3838
    %v3840 = vsel %vm157, %v3836, 0.0
    %3841 = vadd.xlane.f32.xlu0 %v3840
    %v3842 = vpop.xlane.xlu0 %3841
    %v3843 = vmul.f32 %v3839, %v1927
    %v3844 = vmul.f32 %v3842, %v1927
    %v3845 = vadd.f32 %v3843, 1e-05
    %v3846 = vadd.f32 %v3844, 1e-05
    %v3847 = vrsqrt.pop %v3845
    %v3848 = vrsqrt.pop %v3846
    %v3849 = vmul.f32 %v3833, %v3847
    %v3850 = vmul.f32 %v3834, %v3848
    %v3851 = vlaneseq
    %v3852 = vshrl.u32 %v3851, 7
    %v3853 = vsub.s32 0, %v3852
    %v3854 = vrot.slane %v3823, %v3853
    %v3855 = vmul.f32 %v3849, %v3854
    %v3856 = vmul.f32 %v3850, %v3854
    %v3857 = vlaneseq
    %v3858 = vshrl.u32 %v3857, 7
    %v3859 = vsub.s32 0, %v3858
    %v3860 = vrot.slane %v3824, %v3859
    %v3861 = vadd.f32 %v3855, %v3860
    %v3862 = vadd.f32 %v3856, %v3860
    %v3863 = vld [vmem:[%s7] sm:$0xff]
    %v3864 = vld [vmem:[%s7 + $0x8] sm:$0xff]
    %v3865 = vld [vmem:[%s7 + $0x10] sm:$0xff]
    %v3866 = vld [vmem:[%s7 + $0x18] sm:$0xff]
    %v3867 = vld [vmem:[#allocation8] sm:$0x1]
    %v3868 = vlaneseq
    %v3869 = vshrl.u32 %v3868, 7
    %v3870 = vsub.s32 0, %v3869
    %v3871 = vrot.slane %v3867, %v3870
    %v3873 = vsel %vm157, %v3861, 0
    %v3876 = vsel %vm157, %v3862, 0
    %3878 = vmatprep.subr.mxu0 0.0
    %3879 = vmatpush1.msra.mxu0 0.0
    %3880 = vmatprep.subr.mxu0 0.0
    %3881 = vmatpush1.msra.mxu0 0.0
    %3882 = vmatprep.subr.mxu0 0.0
    %3883 = vmatpush1.msra.mxu0 0.0
    %3884 = vmatprep.subr.mxu0 0.0
    %3885 = vmatpush1.msra.mxu0 0.0
    %3886 = vmatprep.subr.mxu0 0.0
    %3887 = vmatpush1.msra.mxu0 0.0
    %3888 = vmatprep.subr.mxu0 0.0
    %3889 = vmatpush1.msra.mxu0 0.0
    %3890 = vmatprep.subr.mxu0 0.0
    %3891 = vmatpush1.msra.mxu0 0.0
    %3892 = vmatprep.subr.mxu0 0.0
    %3893 = vmatpush1.msra.mxu0 0.0
    %3894 = vmatprep.subr.mxu0 0.0
    %3895 = vmatpush1.msra.mxu0 0.0
    %3896 = vmatprep.subr.mxu0 0.0
    %3897 = vmatpush1.msra.mxu0 0.0
    %3898 = vmatprep.subr.mxu0 0.0
    %3899 = vmatpush1.msra.mxu0 0.0
    %3900 = vmatprep.subr.mxu0 0.0
    %3901 = vmatpush1.msra.mxu0 0.0
    %3902 = vmatprep.subr.mxu0 0.0
    %3903 = vmatpush1.msra.mxu0 %v3866
    %3904 = vmatprep.subr.mxu0 0.0
    %3905 = vmatpush1.msra.mxu0 %v3865
    %3906 = vmatprep.subr.mxu0 0.0
    %3907 = vmatpush1.msra.mxu0 %v3864
    %3908 = vmatprep.subr.mxu0 0.0
    %3909 = vmatpush1.msra.mxu0 %v3863
    %3910 = vmatprep.subr.mxu0 0.0
    %3911 = vmatpush2.msra.mxu0 0.0
    %3912 = vmatprep.subr.mxu0 0.0
    %3913 = vmatpush2.msra.mxu0 0.0
    %3914 = vmatprep.subr.mxu0 0.0
    %3915 = vmatpush2.msra.mxu0 0.0
    %3916 = vmatprep.subr.mxu0 0.0
    %3917 = vmatpush2.msra.mxu0 0.0
    %3918 = vmatprep.subr.mxu0 0.0
    %3919 = vmatpush2.msra.mxu0 0.0
    %3920 = vmatprep.subr.mxu0 0.0
    %3921 = vmatpush2.msra.mxu0 0.0
    %3922 = vmatprep.subr.mxu0 0.0
    %3923 = vmatpush2.msra.mxu0 0.0
    %3924 = vmatprep.subr.mxu0 0.0
    %3925 = vmatpush2.msra.mxu0 0.0
    %3926 = vmatprep.subr.mxu0 0.0
    %3927 = vmatpush2.msra.mxu0 0.0
    %3928 = vmatprep.subr.mxu0 0.0
    %3929 = vmatpush2.msra.mxu0 0.0
    %3930 = vmatprep.subr.mxu0 0.0
    %3931 = vmatpush2.msra.mxu0 0.0
    %3932 = vmatprep.subr.mxu0 0.0
    %3933 = vmatpush2.msra.mxu0 0.0
    %3934 = vmatprep.subr.mxu0 0.0
    %3935 = vmatpush2.msra.mxu0 0.0
    %3936 = vmatprep.subr.mxu0 0.0
    %3937 = vmatpush2.msra.mxu0 0.0
    %3938 = vmatprep.subr.mxu0 0.0
    %3939 = vmatpush2.msra.mxu0 0.0
    %3940 = vmatprep.subr.mxu0 0.0
    %3941 = vmatpush2.msra.mxu0 0.0
    %3942 = vmatprep.mubr.f32.mxu0 0.0
    %3943 = vmatmul.mubr.f32.gmra.mxu0 %v3873
    %v3944 = vpop.f32.mrf.mxu0
    %v3945 = vadd.f32 %v3871, %v3944
    %v3946 = vpop.f32.mrf.mxu0
    %3947 = vmatprep.mubr.f32.mxu0 0.0
    %3948 = vmatmul.mubr.f32.gmra.mxu0 %v3876
    %v3949 = vpop.f32.mrf.mxu0
    %v3950 = vadd.f32 %v3871, %v3949
    %v3951 = vpop.f32.mrf.mxu0
    %3952 = vdwg.mxu0
    %v3953 = vmax.f32 %v3945, 0.0
    %v3954 = vmax.f32 %v3950, 0.0
    %v3955 = vld [vmem:[%s9] sm:$0xff]
    %v3956 = vld [vmem:[%s9 + $0x8] sm:$0xff]
    %v3957 = vld [vmem:[%s9 + $0x10] sm:$0xff]
    %v3958 = vld [vmem:[%s9 + $0x18] sm:$0xff]
    %v3959 = vld [vmem:[%s9 + $0x20] sm:$0xff]
    %v3960 = vld [vmem:[%s9 + $0x28] sm:$0xff]
    %v3961 = vld [vmem:[%s9 + $0x30] sm:$0xff]
    %v3962 = vld [vmem:[%s9 + $0x38] sm:$0xff]
    %v3963 = vld [vmem:[#allocation10] sm:$0x1]
    %v3964 = vlaneseq
    %v3965 = vshrl.u32 %v3964, 7
    %v3966 = vsub.s32 0, %v3965
    %v3967 = vrot.slane %v3963, %v3966
    %vm3968 = vcmask 523264
    %v3970 = vsel %vm3968, %v3953, 0
    %v3973 = vsel %vm3968, %v3954, 0
    %3975 = vmatprep.subr.mxu0 0.0
    %3976 = vmatpush1.msra.mxu0 0.0
    %3977 = vmatprep.subr.mxu0 0.0
    %3978 = vmatpush1.msra.mxu0 0.0
    %3979 = vmatprep.subr.mxu0 0.0
    %3980 = vmatpush1.msra.mxu0 0.0
    %3981 = vmatprep.subr.mxu0 0.0
    %3982 = vmatpush1.msra.mxu0 0.0
    %3983 = vmatprep.subr.mxu0 0.0
    %3984 = vmatpush1.msra.mxu0 0.0
    %3985 = vmatprep.subr.mxu0 0.0
    %3986 = vmatpush1.msra.mxu0 0.0
    %3987 = vmatprep.subr.mxu0 0.0
    %3988 = vmatpush1.msra.mxu0 0.0
    %3989 = vmatprep.subr.mxu0 0.0
    %3990 = vmatpush1.msra.mxu0 0.0
    %3991 = vmatprep.subr.mxu0 0.0
    %3992 = vmatpush1.msra.mxu0 %v3962
    %3993 = vmatprep.subr.mxu0 0.0
    %3994 = vmatpush1.msra.mxu0 %v3961
    %3995 = vmatprep.subr.mxu0 0.0
    %3996 = vmatpush1.msra.mxu0 %v3960
    %3997 = vmatprep.subr.mxu0 0.0
    %3998 = vmatpush1.msra.mxu0 %v3959
    %3999 = vmatprep.subr.mxu0 0.0
    %4000 = vmatpush1.msra.mxu0 %v3958
    %4001 = vmatprep.subr.mxu0 0.0
    %4002 = vmatpush1.msra.mxu0 %v3957
    %4003 = vmatprep.subr.mxu0 0.0
    %4004 = vmatpush1.msra.mxu0 %v3956
    %4005 = vmatprep.subr.mxu0 0.0
    %4006 = vmatpush1.msra.mxu0 %v3955
    %4007 = vmatprep.subr.mxu0 0.0
    %4008 = vmatpush2.msra.mxu0 0.0
    %4009 = vmatprep.subr.mxu0 0.0
    %4010 = vmatpush2.msra.mxu0 0.0
    %4011 = vmatprep.subr.mxu0 0.0
    %4012 = vmatpush2.msra.mxu0 0.0
    %4013 = vmatprep.subr.mxu0 0.0
    %4014 = vmatpush2.msra.mxu0 0.0
    %4015 = vmatprep.subr.mxu0 0.0
    %4016 = vmatpush2.msra.mxu0 0.0
    %4017 = vmatprep.subr.mxu0 0.0
    %4018 = vmatpush2.msra.mxu0 0.0
    %4019 = vmatprep.subr.mxu0 0.0
    %4020 = vmatpush2.msra.mxu0 0.0
    %4021 = vmatprep.subr.mxu0 0.0
    %4022 = vmatpush2.msra.mxu0 0.0
    %4023 = vmatprep.subr.mxu0 0.0
    %4024 = vmatpush2.msra.mxu0 0.0
    %4025 = vmatprep.subr.mxu0 0.0
    %4026 = vmatpush2.msra.mxu0 0.0
    %4027 = vmatprep.subr.mxu0 0.0
    %4028 = vmatpush2.msra.mxu0 0.0
    %4029 = vmatprep.subr.mxu0 0.0
    %4030 = vmatpush2.msra.mxu0 0.0
    %4031 = vmatprep.subr.mxu0 0.0
    %4032 = vmatpush2.msra.mxu0 0.0
    %4033 = vmatprep.subr.mxu0 0.0
    %4034 = vmatpush2.msra.mxu0 0.0
    %4035 = vmatprep.subr.mxu0 0.0
    %4036 = vmatpush2.msra.mxu0 0.0
    %4037 = vmatprep.subr.mxu0 0.0
    %4038 = vmatpush2.msra.mxu0 0.0
    %4039 = vmatprep.mubr.f32.mxu0 0.0
    %4040 = vmatmul.mubr.f32.gmra.mxu0 %v3970
    %v4041 = vpop.f32.mrf.mxu0
    %v4042 = vadd.f32 %v3967, %v4041
    %v4043 = vpop.f32.mrf.mxu0
    %4044 = vmatprep.mubr.f32.mxu0 0.0
    %4045 = vmatmul.mubr.f32.gmra.mxu0 %v3973
    %v4046 = vpop.f32.mrf.mxu0
    %v4047 = vadd.f32 %v3967, %v4046
    %v4048 = vpop.f32.mrf.mxu0
    %4049 = vdwg.mxu0
    %v4050 = vadd.f32 %v3861, %v4042
    %v4051 = vadd.f32 %v3862, %v4047
    %v4052 = vld [vmem:[%s11 + $0x2] sm:$0x1]
    %v4053 = vld [vmem:[%s1919 + $0x2] sm:$0x1]
    %v4054 = vsel %vm157, %v4050, 0.0
    %4055 = vadd.xlane.f32.xlu0 %v4054
    %v4056 = vpop.xlane.xlu0 %4055
    %v4057 = vsel %vm157, %v4051, 0.0
    %4058 = vadd.xlane.f32.xlu0 %v4057
    %v4059 = vpop.xlane.xlu0 %4058
    %v4060 = vmul.f32 %v4056, %v1927
    %v4061 = vmul.f32 %v4059, %v1927
    %v4062 = vsub.f32 %v4050, %v4060
    %v4063 = vsub.f32 %v4051, %v4061
    %v4064 = vmul.f32 %v4062, %v4062
    %v4065 = vmul.f32 %v4063, %v4063
    %v4066 = vsel %vm157, %v4064, 0.0
    %4067 = vadd.xlane.f32.xlu0 %v4066
    %v4068 = vpop.xlane.xlu0 %4067
    %v4069 = vsel %vm157, %v4065, 0.0
    %4070 = vadd.xlane.f32.xlu0 %v4069
    %v4071 = vpop.xlane.xlu0 %4070
    %v4072 = vmul.f32 %v4068, %v1927
    %v4073 = vmul.f32 %v4071, %v1927
    %v4074 = vadd.f32 %v4072, 1e-05
    %v4075 = vadd.f32 %v4073, 1e-05
    %v4076 = vrsqrt.pop %v4074
    %v4077 = vrsqrt.pop %v4075
    %v4078 = vmul.f32 %v4062, %v4076
    %v4079 = vmul.f32 %v4063, %v4077
    %v4080 = vlaneseq
    %v4081 = vshrl.u32 %v4080, 7
    %v4082 = vsub.s32 0, %v4081
    %v4083 = vrot.slane %v4052, %v4082
    %v4084 = vmul.f32 %v4078, %v4083
    %v4085 = vmul.f32 %v4079, %v4083
    %v4086 = vlaneseq
    %v4087 = vshrl.u32 %v4086, 7
    %v4088 = vsub.s32 0, %v4087
    %v4089 = vrot.slane %v4053, %v4088
    %v4090 = vadd.f32 %v4084, %v4089
    %v4091 = vadd.f32 %v4085, %v4089
    %s4092 = scalar_lea.vmem %s3, 32
    %v4093 = vld [vmem:[%s4092] sm:$0xff]
    %v4094 = vld [vmem:[%s4092 + $0x8] sm:$0xff]
    %v4095 = vld [vmem:[%s4092 + $0x10] sm:$0xff]
    %v4096 = vld [vmem:[%s4092 + $0x18] sm:$0xff]
    %v4097 = vld [vmem:[%s4 + $0x1] sm:$0x1]
    %v4098 = vlaneseq
    %v4099 = vshrl.u32 %v4098, 7
    %v4100 = vsub.s32 0, %v4099
    %v4101 = vrot.slane %v4097, %v4100
    %v4103 = vsel %vm157, %v4090, 0
    %v4106 = vsel %vm157, %v4091, 0
    %4108 = vmatprep.subr.mxu0 0.0
    %4109 = vmatpush1.msra.mxu0 0.0
    %4110 = vmatprep.subr.mxu0 0.0
    %4111 = vmatpush1.msra.mxu0 0.0
    %4112 = vmatprep.subr.mxu0 0.0
    %4113 = vmatpush1.msra.mxu0 0.0
    %4114 = vmatprep.subr.mxu0 0.0
    %4115 = vmatpush1.msra.mxu0 0.0
    %4116 = vmatprep.subr.mxu0 0.0
    %4117 = vmatpush1.msra.mxu0 0.0
    %4118 = vmatprep.subr.mxu0 0.0
    %4119 = vmatpush1.msra.mxu0 0.0
    %4120 = vmatprep.subr.mxu0 0.0
    %4121 = vmatpush1.msra.mxu0 0.0
    %4122 = vmatprep.subr.mxu0 0.0
    %4123 = vmatpush1.msra.mxu0 0.0
    %4124 = vmatprep.subr.mxu0 0.0
    %4125 = vmatpush1.msra.mxu0 0.0
    %4126 = vmatprep.subr.mxu0 0.0
    %4127 = vmatpush1.msra.mxu0 0.0
    %4128 = vmatprep.subr.mxu0 0.0
    %4129 = vmatpush1.msra.mxu0 0.0
    %4130 = vmatprep.subr.mxu0 0.0
    %4131 = vmatpush1.msra.mxu0 0.0
    %4132 = vmatprep.subr.mxu0 0.0
    %4133 = vmatpush1.msra.mxu0 %v4096
    %4134 = vmatprep.subr.mxu0 0.0
    %4135 = vmatpush1.msra.mxu0 %v4095
    %4136 = vmatprep.subr.mxu0 0.0
    %4137 = vmatpush1.msra.mxu0 %v4094
    %4138 = vmatprep.subr.mxu0 0.0
    %4139 = vmatpush1.msra.mxu0 %v4093
    %4140 = vmatprep.subr.mxu0 0.0
    %4141 = vmatpush2.msra.mxu0 0.0
    %4142 = vmatprep.subr.mxu0 0.0
    %4143 = vmatpush2.msra.mxu0 0.0
    %4144 = vmatprep.subr.mxu0 0.0
    %4145 = vmatpush2.msra.mxu0 0.0
    %4146 = vmatprep.subr.mxu0 0.0
    %4147 = vmatpush2.msra.mxu0 0.0
    %4148 = vmatprep.subr.mxu0 0.0
    %4149 = vmatpush2.msra.mxu0 0.0
    %4150 = vmatprep.subr.mxu0 0.0
    %4151 = vmatpush2.msra.mxu0 0.0
    %4152 = vmatprep.subr.mxu0 0.0
    %4153 = vmatpush2.msra.mxu0 0.0
    %4154 = vmatprep.subr.mxu0 0.0
    %4155 = vmatpush2.msra.mxu0 0.0
    %4156 = vmatprep.subr.mxu0 0.0
    %4157 = vmatpush2.msra.mxu0 0.0
    %4158 = vmatprep.subr.mxu0 0.0
    %4159 = vmatpush2.msra.mxu0 0.0
    %4160 = vmatprep.subr.mxu0 0.0
    %4161 = vmatpush2.msra.mxu0 0.0
    %4162 = vmatprep.subr.mxu0 0.0
    %4163 = vmatpush2.msra.mxu0 0.0
    %4164 = vmatprep.subr.mxu0 0.0
    %4165 = vmatpush2.msra.mxu0 0.0
    %4166 = vmatprep.subr.mxu0 0.0
    %4167 = vmatpush2.msra.mxu0 0.0
    %4168 = vmatprep.subr.mxu0 0.0
    %4169 = vmatpush2.msra.mxu0 0.0
    %4170 = vmatprep.subr.mxu0 0.0
    %4171 = vmatpush2.msra.mxu0 0.0
    %4172 = vmatprep.mubr.f32.mxu0 0.0
    %4173 = vmatmul.mubr.f32.gmra.mxu0 %v4103
    %v4174 = vpop.f32.mrf.mxu0
    %v4175 = vadd.f32 %v4101, %v4174
    %v4176 = vpop.f32.mrf.mxu0
    %4177 = vmatprep.mubr.f32.mxu0 0.0
    %4178 = vmatmul.mubr.f32.gmra.mxu0 %v4106
    %v4179 = vpop.f32.mrf.mxu0
    %v4180 = vadd.f32 %v4101, %v4179
    %v4181 = vpop.f32.mrf.mxu0
    %4182 = vdwg.mxu0
    %4185 = vrot.lane.b32.xlu0 %v4175, 120
    %v4186 = vpop.permute.xlu0 %4185
    %4187 = vrot.lane.b32.xlu0 %v4180, 120
    %v4188 = vpop.permute.xlu0 %4187
    %4189 = vrot.lane.b32.xlu0 %v4175, 112
    %v4190 = vpop.permute.xlu0 %4189
    %4191 = vrot.lane.b32.xlu0 %v4180, 112
    %v4192 = vpop.permute.xlu0 %4191
    %4193 = vrot.lane.b32.xlu0 %v4175, 104
    %v4194 = vpop.permute.xlu0 %4193
    %4195 = vrot.lane.b32.xlu0 %v4180, 104
    %v4196 = vpop.permute.xlu0 %4195
    %4197 = vrot.lane.b32.xlu0 %v4175, 96
    %v4198 = vpop.permute.xlu0 %4197
    %v4199 = vsel %vm255, %v4175, 0
    %v4201 = vsel %vm255, %v4198, 0
    %4203 = vmatprep.subr.mxu0 0.0
    %4204 = vmatpush1.xpose.msra.mxu0 0.0
    %4205 = vmatprep.subr.mxu0 0.0
    %4206 = vmatpush1.xpose.msra.mxu0 0.0
    %4207 = vmatprep.subr.mxu0 0.0
    %4208 = vmatpush1.xpose.msra.mxu0 0.0
    %4209 = vmatprep.subr.mxu0 0.0
    %4210 = vmatpush1.xpose.msra.mxu0 0.0
    %4211 = vmatprep.subr.mxu0 0.0
    %4212 = vmatpush1.xpose.msra.mxu0 0.0
    %4213 = vmatprep.subr.mxu0 0.0
    %4214 = vmatpush1.xpose.msra.mxu0 0.0
    %4215 = vmatprep.subr.mxu0 0.0
    %4216 = vmatpush1.xpose.msra.mxu0 0.0
    %4217 = vmatprep.subr.mxu0 0.0
    %4218 = vmatpush1.xpose.msra.mxu0 0.0
    %4219 = vmatprep.subr.mxu0 0.0
    %4220 = vmatpush1.xpose.msra.mxu0 0.0
    %4221 = vmatprep.subr.mxu0 0.0
    %4222 = vmatpush1.xpose.msra.mxu0 0.0
    %4223 = vmatprep.subr.mxu0 0.0
    %4224 = vmatpush1.xpose.msra.mxu0 0.0
    %4225 = vmatprep.subr.mxu0 0.0
    %4226 = vmatpush1.xpose.msra.mxu0 0.0
    %4227 = vmatprep.subr.mxu0 0.0
    %4228 = vmatpush1.xpose.msra.mxu0 0.0
    %4229 = vmatprep.subr.mxu0 0.0
    %4230 = vmatpush1.xpose.msra.mxu0 0.0
    %4231 = vmatprep.subr.mxu0 0.0
    %4232 = vmatpush1.xpose.msra.mxu0 0.0
    %4233 = vmatprep.subr.mxu0 0.0
    %4234 = vmatpush1.xpose.msra.mxu0 %v4201
    %4235 = vmatprep.subr.mxu0 0.0
    %4236 = vmatpush2.xpose.msra.mxu0 0.0
    %4237 = vmatprep.subr.mxu0 0.0
    %4238 = vmatpush2.xpose.msra.mxu0 0.0
    %4239 = vmatprep.subr.mxu0 0.0
    %4240 = vmatpush2.xpose.msra.mxu0 0.0
    %4241 = vmatprep.subr.mxu0 0.0
    %4242 = vmatpush2.xpose.msra.mxu0 0.0
    %4243 = vmatprep.subr.mxu0 0.0
    %4244 = vmatpush2.xpose.msra.mxu0 0.0
    %4245 = vmatprep.subr.mxu0 0.0
    %4246 = vmatpush2.xpose.msra.mxu0 0.0
    %4247 = vmatprep.subr.mxu0 0.0
    %4248 = vmatpush2.xpose.msra.mxu0 0.0
    %4249 = vmatprep.subr.mxu0 0.0
    %4250 = vmatpush2.xpose.msra.mxu0 0.0
    %4251 = vmatprep.subr.mxu0 0.0
    %4252 = vmatpush2.xpose.msra.mxu0 0.0
    %4253 = vmatprep.subr.mxu0 0.0
    %4254 = vmatpush2.xpose.msra.mxu0 0.0
    %4255 = vmatprep.subr.mxu0 0.0
    %4256 = vmatpush2.xpose.msra.mxu0 0.0
    %4257 = vmatprep.subr.mxu0 0.0
    %4258 = vmatpush2.xpose.msra.mxu0 0.0
    %4259 = vmatprep.subr.mxu0 0.0
    %4260 = vmatpush2.xpose.msra.mxu0 0.0
    %4261 = vmatprep.subr.mxu0 0.0
    %4262 = vmatpush2.xpose.msra.mxu0 0.0
    %4263 = vmatprep.subr.mxu0 0.0
    %4264 = vmatpush2.xpose.msra.mxu0 0.0
    %4265 = vmatprep.subr.mxu0 0.0
    %4266 = vmatpush2.xpose.msra.mxu0 0.0
    %4267 = vmatprep.mubr.f32.mxu0 0.0
    %4268 = vmatmul.mubr.f32.gmra.mxu0 %v4199
    %v4269 = vpop.f32.mrf.mxu0
    %v4270 = vadd.f32 0.0, %v4269
    %v4271 = vpop.f32.mrf.mxu0
    %4272 = vdwg.mxu0
    %4273 = vrot.lane.b32.xlu0 %v4180, 96
    %v4274 = vpop.permute.xlu0 %4273
    %v4275 = vsel %vm255, %v4180, 0
    %v4277 = vsel %vm255, %v4274, 0
    %4279 = vmatprep.subr.mxu0 0.0
    %4280 = vmatpush1.xpose.msra.mxu0 0.0
    %4281 = vmatprep.subr.mxu0 0.0
    %4282 = vmatpush1.xpose.msra.mxu0 0.0
    %4283 = vmatprep.subr.mxu0 0.0
    %4284 = vmatpush1.xpose.msra.mxu0 0.0
    %4285 = vmatprep.subr.mxu0 0.0
    %4286 = vmatpush1.xpose.msra.mxu0 0.0
    %4287 = vmatprep.subr.mxu0 0.0
    %4288 = vmatpush1.xpose.msra.mxu0 0.0
    %4289 = vmatprep.subr.mxu0 0.0
    %4290 = vmatpush1.xpose.msra.mxu0 0.0
    %4291 = vmatprep.subr.mxu0 0.0
    %4292 = vmatpush1.xpose.msra.mxu0 0.0
    %4293 = vmatprep.subr.mxu0 0.0
    %4294 = vmatpush1.xpose.msra.mxu0 0.0
    %4295 = vmatprep.subr.mxu0 0.0
    %4296 = vmatpush1.xpose.msra.mxu0 0.0
    %4297 = vmatprep.subr.mxu0 0.0
    %4298 = vmatpush1.xpose.msra.mxu0 0.0
    %4299 = vmatprep.subr.mxu0 0.0
    %4300 = vmatpush1.xpose.msra.mxu0 0.0
    %4301 = vmatprep.subr.mxu0 0.0
    %4302 = vmatpush1.xpose.msra.mxu0 0.0
    %4303 = vmatprep.subr.mxu0 0.0
    %4304 = vmatpush1.xpose.msra.mxu0 0.0
    %4305 = vmatprep.subr.mxu0 0.0
    %4306 = vmatpush1.xpose.msra.mxu0 0.0
    %4307 = vmatprep.subr.mxu0 0.0
    %4308 = vmatpush1.xpose.msra.mxu0 0.0
    %4309 = vmatprep.subr.mxu0 0.0
    %4310 = vmatpush1.xpose.msra.mxu0 %v4277
    %4311 = vmatprep.subr.mxu0 0.0
    %4312 = vmatpush2.xpose.msra.mxu0 0.0
    %4313 = vmatprep.subr.mxu0 0.0
    %4314 = vmatpush2.xpose.msra.mxu0 0.0
    %4315 = vmatprep.subr.mxu0 0.0
    %4316 = vmatpush2.xpose.msra.mxu0 0.0
    %4317 = vmatprep.subr.mxu0 0.0
    %4318 = vmatpush2.xpose.msra.mxu0 0.0
    %4319 = vmatprep.subr.mxu0 0.0
    %4320 = vmatpush2.xpose.msra.mxu0 0.0
    %4321 = vmatprep.subr.mxu0 0.0
    %4322 = vmatpush2.xpose.msra.mxu0 0.0
    %4323 = vmatprep.subr.mxu0 0.0
    %4324 = vmatpush2.xpose.msra.mxu0 0.0
    %4325 = vmatprep.subr.mxu0 0.0
    %4326 = vmatpush2.xpose.msra.mxu0 0.0
    %4327 = vmatprep.subr.mxu0 0.0
    %4328 = vmatpush2.xpose.msra.mxu0 0.0
    %4329 = vmatprep.subr.mxu0 0.0
    %4330 = vmatpush2.xpose.msra.mxu0 0.0
    %4331 = vmatprep.subr.mxu0 0.0
    %4332 = vmatpush2.xpose.msra.mxu0 0.0
    %4333 = vmatprep.subr.mxu0 0.0
    %4334 = vmatpush2.xpose.msra.mxu0 0.0
    %4335 = vmatprep.subr.mxu0 0.0
    %4336 = vmatpush2.xpose.msra.mxu0 0.0
    %4337 = vmatprep.subr.mxu0 0.0
    %4338 = vmatpush2.xpose.msra.mxu0 0.0
    %4339 = vmatprep.subr.mxu0 0.0
    %4340 = vmatpush2.xpose.msra.mxu0 0.0
    %4341 = vmatprep.subr.mxu0 0.0
    %4342 = vmatpush2.xpose.msra.mxu0 0.0
    %4343 = vmatprep.mubr.f32.mxu0 0.0
    %4344 = vmatmul.mubr.f32.gmra.mxu0 %v4275
    %v4345 = vpop.f32.mrf.mxu0
    %v4346 = vadd.f32 0.0, %v4345
    %v4347 = vpop.f32.mrf.mxu0
    %4348 = vdwg.mxu0
    %4349 = vrot.lane.b32.xlu0 %v4186, 96
    %v4350 = vpop.permute.xlu0 %4349
    %v4351 = vsel %vm255, %v4186, 0
    %v4353 = vsel %vm255, %v4350, 0
    %4355 = vmatprep.subr.mxu0 0.0
    %4356 = vmatpush1.xpose.msra.mxu0 0.0
    %4357 = vmatprep.subr.mxu0 0.0
    %4358 = vmatpush1.xpose.msra.mxu0 0.0
    %4359 = vmatprep.subr.mxu0 0.0
    %4360 = vmatpush1.xpose.msra.mxu0 0.0
    %4361 = vmatprep.subr.mxu0 0.0
    %4362 = vmatpush1.xpose.msra.mxu0 0.0
    %4363 = vmatprep.subr.mxu0 0.0
    %4364 = vmatpush1.xpose.msra.mxu0 0.0
    %4365 = vmatprep.subr.mxu0 0.0
    %4366 = vmatpush1.xpose.msra.mxu0 0.0
    %4367 = vmatprep.subr.mxu0 0.0
    %4368 = vmatpush1.xpose.msra.mxu0 0.0
    %4369 = vmatprep.subr.mxu0 0.0
    %4370 = vmatpush1.xpose.msra.mxu0 0.0
    %4371 = vmatprep.subr.mxu0 0.0
    %4372 = vmatpush1.xpose.msra.mxu0 0.0
    %4373 = vmatprep.subr.mxu0 0.0
    %4374 = vmatpush1.xpose.msra.mxu0 0.0
    %4375 = vmatprep.subr.mxu0 0.0
    %4376 = vmatpush1.xpose.msra.mxu0 0.0
    %4377 = vmatprep.subr.mxu0 0.0
    %4378 = vmatpush1.xpose.msra.mxu0 0.0
    %4379 = vmatprep.subr.mxu0 0.0
    %4380 = vmatpush1.xpose.msra.mxu0 0.0
    %4381 = vmatprep.subr.mxu0 0.0
    %4382 = vmatpush1.xpose.msra.mxu0 0.0
    %4383 = vmatprep.subr.mxu0 0.0
    %4384 = vmatpush1.xpose.msra.mxu0 0.0
    %4385 = vmatprep.subr.mxu0 0.0
    %4386 = vmatpush1.xpose.msra.mxu0 %v4353
    %4387 = vmatprep.subr.mxu0 0.0
    %4388 = vmatpush2.xpose.msra.mxu0 0.0
    %4389 = vmatprep.subr.mxu0 0.0
    %4390 = vmatpush2.xpose.msra.mxu0 0.0
    %4391 = vmatprep.subr.mxu0 0.0
    %4392 = vmatpush2.xpose.msra.mxu0 0.0
    %4393 = vmatprep.subr.mxu0 0.0
    %4394 = vmatpush2.xpose.msra.mxu0 0.0
    %4395 = vmatprep.subr.mxu0 0.0
    %4396 = vmatpush2.xpose.msra.mxu0 0.0
    %4397 = vmatprep.subr.mxu0 0.0
    %4398 = vmatpush2.xpose.msra.mxu0 0.0
    %4399 = vmatprep.subr.mxu0 0.0
    %4400 = vmatpush2.xpose.msra.mxu0 0.0
    %4401 = vmatprep.subr.mxu0 0.0
    %4402 = vmatpush2.xpose.msra.mxu0 0.0
    %4403 = vmatprep.subr.mxu0 0.0
    %4404 = vmatpush2.xpose.msra.mxu0 0.0
    %4405 = vmatprep.subr.mxu0 0.0
    %4406 = vmatpush2.xpose.msra.mxu0 0.0
    %4407 = vmatprep.subr.mxu0 0.0
    %4408 = vmatpush2.xpose.msra.mxu0 0.0
    %4409 = vmatprep.subr.mxu0 0.0
    %4410 = vmatpush2.xpose.msra.mxu0 0.0
    %4411 = vmatprep.subr.mxu0 0.0
    %4412 = vmatpush2.xpose.msra.mxu0 0.0
    %4413 = vmatprep.subr.mxu0 0.0
    %4414 = vmatpush2.xpose.msra.mxu0 0.0
    %4415 = vmatprep.subr.mxu0 0.0
    %4416 = vmatpush2.xpose.msra.mxu0 0.0
    %4417 = vmatprep.subr.mxu0 0.0
    %4418 = vmatpush2.xpose.msra.mxu0 0.0
    %4419 = vmatprep.mubr.f32.mxu0 0.0
    %4420 = vmatmul.mubr.f32.gmra.mxu0 %v4351
    %v4421 = vpop.f32.mrf.mxu0
    %v4422 = vadd.f32 0.0, %v4421
    %v4423 = vpop.f32.mrf.mxu0
    %4424 = vdwg.mxu0
    %4425 = vrot.lane.b32.xlu0 %v4188, 96
    %v4426 = vpop.permute.xlu0 %4425
    %v4427 = vsel %vm255, %v4188, 0
    %v4429 = vsel %vm255, %v4426, 0
    %4431 = vmatprep.subr.mxu0 0.0
    %4432 = vmatpush1.xpose.msra.mxu0 0.0
    %4433 = vmatprep.subr.mxu0 0.0
    %4434 = vmatpush1.xpose.msra.mxu0 0.0
    %4435 = vmatprep.subr.mxu0 0.0
    %4436 = vmatpush1.xpose.msra.mxu0 0.0
    %4437 = vmatprep.subr.mxu0 0.0
    %4438 = vmatpush1.xpose.msra.mxu0 0.0
    %4439 = vmatprep.subr.mxu0 0.0
    %4440 = vmatpush1.xpose.msra.mxu0 0.0
    %4441 = vmatprep.subr.mxu0 0.0
    %4442 = vmatpush1.xpose.msra.mxu0 0.0
    %4443 = vmatprep.subr.mxu0 0.0
    %4444 = vmatpush1.xpose.msra.mxu0 0.0
    %4445 = vmatprep.subr.mxu0 0.0
    %4446 = vmatpush1.xpose.msra.mxu0 0.0
    %4447 = vmatprep.subr.mxu0 0.0
    %4448 = vmatpush1.xpose.msra.mxu0 0.0
    %4449 = vmatprep.subr.mxu0 0.0
    %4450 = vmatpush1.xpose.msra.mxu0 0.0
    %4451 = vmatprep.subr.mxu0 0.0
    %4452 = vmatpush1.xpose.msra.mxu0 0.0
    %4453 = vmatprep.subr.mxu0 0.0
    %4454 = vmatpush1.xpose.msra.mxu0 0.0
    %4455 = vmatprep.subr.mxu0 0.0
    %4456 = vmatpush1.xpose.msra.mxu0 0.0
    %4457 = vmatprep.subr.mxu0 0.0
    %4458 = vmatpush1.xpose.msra.mxu0 0.0
    %4459 = vmatprep.subr.mxu0 0.0
    %4460 = vmatpush1.xpose.msra.mxu0 0.0
    %4461 = vmatprep.subr.mxu0 0.0
    %4462 = vmatpush1.xpose.msra.mxu0 %v4429
    %4463 = vmatprep.subr.mxu0 0.0
    %4464 = vmatpush2.xpose.msra.mxu0 0.0
    %4465 = vmatprep.subr.mxu0 0.0
    %4466 = vmatpush2.xpose.msra.mxu0 0.0
    %4467 = vmatprep.subr.mxu0 0.0
    %4468 = vmatpush2.xpose.msra.mxu0 0.0
    %4469 = vmatprep.subr.mxu0 0.0
    %4470 = vmatpush2.xpose.msra.mxu0 0.0
    %4471 = vmatprep.subr.mxu0 0.0
    %4472 = vmatpush2.xpose.msra.mxu0 0.0
    %4473 = vmatprep.subr.mxu0 0.0
    %4474 = vmatpush2.xpose.msra.mxu0 0.0
    %4475 = vmatprep.subr.mxu0 0.0
    %4476 = vmatpush2.xpose.msra.mxu0 0.0
    %4477 = vmatprep.subr.mxu0 0.0
    %4478 = vmatpush2.xpose.msra.mxu0 0.0
    %4479 = vmatprep.subr.mxu0 0.0
    %4480 = vmatpush2.xpose.msra.mxu0 0.0
    %4481 = vmatprep.subr.mxu0 0.0
    %4482 = vmatpush2.xpose.msra.mxu0 0.0
    %4483 = vmatprep.subr.mxu0 0.0
    %4484 = vmatpush2.xpose.msra.mxu0 0.0
    %4485 = vmatprep.subr.mxu0 0.0
    %4486 = vmatpush2.xpose.msra.mxu0 0.0
    %4487 = vmatprep.subr.mxu0 0.0
    %4488 = vmatpush2.xpose.msra.mxu0 0.0
    %4489 = vmatprep.subr.mxu0 0.0
    %4490 = vmatpush2.xpose.msra.mxu0 0.0
    %4491 = vmatprep.subr.mxu0 0.0
    %4492 = vmatpush2.xpose.msra.mxu0 0.0
    %4493 = vmatprep.subr.mxu0 0.0
    %4494 = vmatpush2.xpose.msra.mxu0 0.0
    %4495 = vmatprep.mubr.f32.mxu0 0.0
    %4496 = vmatmul.mubr.f32.gmra.mxu0 %v4427
    %v4497 = vpop.f32.mrf.mxu0
    %v4498 = vadd.f32 0.0, %v4497
    %v4499 = vpop.f32.mrf.mxu0
    %4500 = vdwg.mxu0
    %4501 = vrot.lane.b32.xlu0 %v4190, 96
    %v4502 = vpop.permute.xlu0 %4501
    %v4503 = vsel %vm255, %v4190, 0
    %v4505 = vsel %vm255, %v4502, 0
    %4507 = vmatprep.subr.mxu0 0.0
    %4508 = vmatpush1.xpose.msra.mxu0 0.0
    %4509 = vmatprep.subr.mxu0 0.0
    %4510 = vmatpush1.xpose.msra.mxu0 0.0
    %4511 = vmatprep.subr.mxu0 0.0
    %4512 = vmatpush1.xpose.msra.mxu0 0.0
    %4513 = vmatprep.subr.mxu0 0.0
    %4514 = vmatpush1.xpose.msra.mxu0 0.0
    %4515 = vmatprep.subr.mxu0 0.0
    %4516 = vmatpush1.xpose.msra.mxu0 0.0
    %4517 = vmatprep.subr.mxu0 0.0
    %4518 = vmatpush1.xpose.msra.mxu0 0.0
    %4519 = vmatprep.subr.mxu0 0.0
    %4520 = vmatpush1.xpose.msra.mxu0 0.0
    %4521 = vmatprep.subr.mxu0 0.0
    %4522 = vmatpush1.xpose.msra.mxu0 0.0
    %4523 = vmatprep.subr.mxu0 0.0
    %4524 = vmatpush1.xpose.msra.mxu0 0.0
    %4525 = vmatprep.subr.mxu0 0.0
    %4526 = vmatpush1.xpose.msra.mxu0 0.0
    %4527 = vmatprep.subr.mxu0 0.0
    %4528 = vmatpush1.xpose.msra.mxu0 0.0
    %4529 = vmatprep.subr.mxu0 0.0
    %4530 = vmatpush1.xpose.msra.mxu0 0.0
    %4531 = vmatprep.subr.mxu0 0.0
    %4532 = vmatpush1.xpose.msra.mxu0 0.0
    %4533 = vmatprep.subr.mxu0 0.0
    %4534 = vmatpush1.xpose.msra.mxu0 0.0
    %4535 = vmatprep.subr.mxu0 0.0
    %4536 = vmatpush1.xpose.msra.mxu0 0.0
    %4537 = vmatprep.subr.mxu0 0.0
    %4538 = vmatpush1.xpose.msra.mxu0 %v4505
    %4539 = vmatprep.subr.mxu0 0.0
    %4540 = vmatpush2.xpose.msra.mxu0 0.0
    %4541 = vmatprep.subr.mxu0 0.0
    %4542 = vmatpush2.xpose.msra.mxu0 0.0
    %4543 = vmatprep.subr.mxu0 0.0
    %4544 = vmatpush2.xpose.msra.mxu0 0.0
    %4545 = vmatprep.subr.mxu0 0.0
    %4546 = vmatpush2.xpose.msra.mxu0 0.0
    %4547 = vmatprep.subr.mxu0 0.0
    %4548 = vmatpush2.xpose.msra.mxu0 0.0
    %4549 = vmatprep.subr.mxu0 0.0
    %4550 = vmatpush2.xpose.msra.mxu0 0.0
    %4551 = vmatprep.subr.mxu0 0.0
    %4552 = vmatpush2.xpose.msra.mxu0 0.0
    %4553 = vmatprep.subr.mxu0 0.0
    %4554 = vmatpush2.xpose.msra.mxu0 0.0
    %4555 = vmatprep.subr.mxu0 0.0
    %4556 = vmatpush2.xpose.msra.mxu0 0.0
    %4557 = vmatprep.subr.mxu0 0.0
    %4558 = vmatpush2.xpose.msra.mxu0 0.0
    %4559 = vmatprep.subr.mxu0 0.0
    %4560 = vmatpush2.xpose.msra.mxu0 0.0
    %4561 = vmatprep.subr.mxu0 0.0
    %4562 = vmatpush2.xpose.msra.mxu0 0.0
    %4563 = vmatprep.subr.mxu0 0.0
    %4564 = vmatpush2.xpose.msra.mxu0 0.0
    %4565 = vmatprep.subr.mxu0 0.0
    %4566 = vmatpush2.xpose.msra.mxu0 0.0
    %4567 = vmatprep.subr.mxu0 0.0
    %4568 = vmatpush2.xpose.msra.mxu0 0.0
    %4569 = vmatprep.subr.mxu0 0.0
    %4570 = vmatpush2.xpose.msra.mxu0 0.0
    %4571 = vmatprep.mubr.f32.mxu0 0.0
    %4572 = vmatmul.mubr.f32.gmra.mxu0 %v4503
    %v4573 = vpop.f32.mrf.mxu0
    %v4574 = vadd.f32 0.0, %v4573
    %v4575 = vpop.f32.mrf.mxu0
    %4576 = vdwg.mxu0
    %4577 = vrot.lane.b32.xlu0 %v4192, 96
    %v4578 = vpop.permute.xlu0 %4577
    %v4579 = vsel %vm255, %v4192, 0
    %v4581 = vsel %vm255, %v4578, 0
    %4583 = vmatprep.subr.mxu0 0.0
    %4584 = vmatpush1.xpose.msra.mxu0 0.0
    %4585 = vmatprep.subr.mxu0 0.0
    %4586 = vmatpush1.xpose.msra.mxu0 0.0
    %4587 = vmatprep.subr.mxu0 0.0
    %4588 = vmatpush1.xpose.msra.mxu0 0.0
    %4589 = vmatprep.subr.mxu0 0.0
    %4590 = vmatpush1.xpose.msra.mxu0 0.0
    %4591 = vmatprep.subr.mxu0 0.0
    %4592 = vmatpush1.xpose.msra.mxu0 0.0
    %4593 = vmatprep.subr.mxu0 0.0
    %4594 = vmatpush1.xpose.msra.mxu0 0.0
    %4595 = vmatprep.subr.mxu0 0.0
    %4596 = vmatpush1.xpose.msra.mxu0 0.0
    %4597 = vmatprep.subr.mxu0 0.0
    %4598 = vmatpush1.xpose.msra.mxu0 0.0
    %4599 = vmatprep.subr.mxu0 0.0
    %4600 = vmatpush1.xpose.msra.mxu0 0.0
    %4601 = vmatprep.subr.mxu0 0.0
    %4602 = vmatpush1.xpose.msra.mxu0 0.0
    %4603 = vmatprep.subr.mxu0 0.0
    %4604 = vmatpush1.xpose.msra.mxu0 0.0
    %4605 = vmatprep.subr.mxu0 0.0
    %4606 = vmatpush1.xpose.msra.mxu0 0.0
    %4607 = vmatprep.subr.mxu0 0.0
    %4608 = vmatpush1.xpose.msra.mxu0 0.0
    %4609 = vmatprep.subr.mxu0 0.0
    %4610 = vmatpush1.xpose.msra.mxu0 0.0
    %4611 = vmatprep.subr.mxu0 0.0
    %4612 = vmatpush1.xpose.msra.mxu0 0.0
    %4613 = vmatprep.subr.mxu0 0.0
    %4614 = vmatpush1.xpose.msra.mxu0 %v4581
    %4615 = vmatprep.subr.mxu0 0.0
    %4616 = vmatpush2.xpose.msra.mxu0 0.0
    %4617 = vmatprep.subr.mxu0 0.0
    %4618 = vmatpush2.xpose.msra.mxu0 0.0
    %4619 = vmatprep.subr.mxu0 0.0
    %4620 = vmatpush2.xpose.msra.mxu0 0.0
    %4621 = vmatprep.subr.mxu0 0.0
    %4622 = vmatpush2.xpose.msra.mxu0 0.0
    %4623 = vmatprep.subr.mxu0 0.0
    %4624 = vmatpush2.xpose.msra.mxu0 0.0
    %4625 = vmatprep.subr.mxu0 0.0
    %4626 = vmatpush2.xpose.msra.mxu0 0.0
    %4627 = vmatprep.subr.mxu0 0.0
    %4628 = vmatpush2.xpose.msra.mxu0 0.0
    %4629 = vmatprep.subr.mxu0 0.0
    %4630 = vmatpush2.xpose.msra.mxu0 0.0
    %4631 = vmatprep.subr.mxu0 0.0
    %4632 = vmatpush2.xpose.msra.mxu0 0.0
    %4633 = vmatprep.subr.mxu0 0.0
    %4634 = vmatpush2.xpose.msra.mxu0 0.0
    %4635 = vmatprep.subr.mxu0 0.0
    %4636 = vmatpush2.xpose.msra.mxu0 0.0
    %4637 = vmatprep.subr.mxu0 0.0
    %4638 = vmatpush2.xpose.msra.mxu0 0.0
    %4639 = vmatprep.subr.mxu0 0.0
    %4640 = vmatpush2.xpose.msra.mxu0 0.0
    %4641 = vmatprep.subr.mxu0 0.0
    %4642 = vmatpush2.xpose.msra.mxu0 0.0
    %4643 = vmatprep.subr.mxu0 0.0
    %4644 = vmatpush2.xpose.msra.mxu0 0.0
    %4645 = vmatprep.subr.mxu0 0.0
    %4646 = vmatpush2.xpose.msra.mxu0 0.0
    %4647 = vmatprep.mubr.f32.mxu0 0.0
    %4648 = vmatmul.mubr.f32.gmra.mxu0 %v4579
    %v4649 = vpop.f32.mrf.mxu0
    %v4650 = vadd.f32 0.0, %v4649
    %v4651 = vpop.f32.mrf.mxu0
    %4652 = vdwg.mxu0
    %4653 = vrot.lane.b32.xlu0 %v4194, 96
    %v4654 = vpop.permute.xlu0 %4653
    %v4655 = vsel %vm255, %v4194, 0
    %v4657 = vsel %vm255, %v4654, 0
    %4659 = vmatprep.subr.mxu0 0.0
    %4660 = vmatpush1.xpose.msra.mxu0 0.0
    %4661 = vmatprep.subr.mxu0 0.0
    %4662 = vmatpush1.xpose.msra.mxu0 0.0
    %4663 = vmatprep.subr.mxu0 0.0
    %4664 = vmatpush1.xpose.msra.mxu0 0.0
    %4665 = vmatprep.subr.mxu0 0.0
    %4666 = vmatpush1.xpose.msra.mxu0 0.0
    %4667 = vmatprep.subr.mxu0 0.0
    %4668 = vmatpush1.xpose.msra.mxu0 0.0
    %4669 = vmatprep.subr.mxu0 0.0
    %4670 = vmatpush1.xpose.msra.mxu0 0.0
    %4671 = vmatprep.subr.mxu0 0.0
    %4672 = vmatpush1.xpose.msra.mxu0 0.0
    %4673 = vmatprep.subr.mxu0 0.0
    %4674 = vmatpush1.xpose.msra.mxu0 0.0
    %4675 = vmatprep.subr.mxu0 0.0
    %4676 = vmatpush1.xpose.msra.mxu0 0.0
    %4677 = vmatprep.subr.mxu0 0.0
    %4678 = vmatpush1.xpose.msra.mxu0 0.0
    %4679 = vmatprep.subr.mxu0 0.0
    %4680 = vmatpush1.xpose.msra.mxu0 0.0
    %4681 = vmatprep.subr.mxu0 0.0
    %4682 = vmatpush1.xpose.msra.mxu0 0.0
    %4683 = vmatprep.subr.mxu0 0.0
    %4684 = vmatpush1.xpose.msra.mxu0 0.0
    %4685 = vmatprep.subr.mxu0 0.0
    %4686 = vmatpush1.xpose.msra.mxu0 0.0
    %4687 = vmatprep.subr.mxu0 0.0
    %4688 = vmatpush1.xpose.msra.mxu0 0.0
    %4689 = vmatprep.subr.mxu0 0.0
    %4690 = vmatpush1.xpose.msra.mxu0 %v4657
    %4691 = vmatprep.subr.mxu0 0.0
    %4692 = vmatpush2.xpose.msra.mxu0 0.0
    %4693 = vmatprep.subr.mxu0 0.0
    %4694 = vmatpush2.xpose.msra.mxu0 0.0
    %4695 = vmatprep.subr.mxu0 0.0
    %4696 = vmatpush2.xpose.msra.mxu0 0.0
    %4697 = vmatprep.subr.mxu0 0.0
    %4698 = vmatpush2.xpose.msra.mxu0 0.0
    %4699 = vmatprep.subr.mxu0 0.0
    %4700 = vmatpush2.xpose.msra.mxu0 0.0
    %4701 = vmatprep.subr.mxu0 0.0
    %4702 = vmatpush2.xpose.msra.mxu0 0.0
    %4703 = vmatprep.subr.mxu0 0.0
    %4704 = vmatpush2.xpose.msra.mxu0 0.0
    %4705 = vmatprep.subr.mxu0 0.0
    %4706 = vmatpush2.xpose.msra.mxu0 0.0
    %4707 = vmatprep.subr.mxu0 0.0
    %4708 = vmatpush2.xpose.msra.mxu0 0.0
    %4709 = vmatprep.subr.mxu0 0.0
    %4710 = vmatpush2.xpose.msra.mxu0 0.0
    %4711 = vmatprep.subr.mxu0 0.0
    %4712 = vmatpush2.xpose.msra.mxu0 0.0
    %4713 = vmatprep.subr.mxu0 0.0
    %4714 = vmatpush2.xpose.msra.mxu0 0.0
    %4715 = vmatprep.subr.mxu0 0.0
    %4716 = vmatpush2.xpose.msra.mxu0 0.0
    %4717 = vmatprep.subr.mxu0 0.0
    %4718 = vmatpush2.xpose.msra.mxu0 0.0
    %4719 = vmatprep.subr.mxu0 0.0
    %4720 = vmatpush2.xpose.msra.mxu0 0.0
    %4721 = vmatprep.subr.mxu0 0.0
    %4722 = vmatpush2.xpose.msra.mxu0 0.0
    %4723 = vmatprep.mubr.f32.mxu0 0.0
    %4724 = vmatmul.mubr.f32.gmra.mxu0 %v4655
    %v4725 = vpop.f32.mrf.mxu0
    %v4726 = vadd.f32 0.0, %v4725
    %v4727 = vpop.f32.mrf.mxu0
    %4728 = vdwg.mxu0
    %4729 = vrot.lane.b32.xlu0 %v4196, 96
    %v4730 = vpop.permute.xlu0 %4729
    %v4731 = vsel %vm255, %v4196, 0
    %v4733 = vsel %vm255, %v4730, 0
    %4735 = vmatprep.subr.mxu0 0.0
    %4736 = vmatpush1.xpose.msra.mxu0 0.0
    %4737 = vmatprep.subr.mxu0 0.0
    %4738 = vmatpush1.xpose.msra.mxu0 0.0
    %4739 = vmatprep.subr.mxu0 0.0
    %4740 = vmatpush1.xpose.msra.mxu0 0.0
    %4741 = vmatprep.subr.mxu0 0.0
    %4742 = vmatpush1.xpose.msra.mxu0 0.0
    %4743 = vmatprep.subr.mxu0 0.0
    %4744 = vmatpush1.xpose.msra.mxu0 0.0
    %4745 = vmatprep.subr.mxu0 0.0
    %4746 = vmatpush1.xpose.msra.mxu0 0.0
    %4747 = vmatprep.subr.mxu0 0.0
    %4748 = vmatpush1.xpose.msra.mxu0 0.0
    %4749 = vmatprep.subr.mxu0 0.0
    %4750 = vmatpush1.xpose.msra.mxu0 0.0
    %4751 = vmatprep.subr.mxu0 0.0
    %4752 = vmatpush1.xpose.msra.mxu0 0.0
    %4753 = vmatprep.subr.mxu0 0.0
    %4754 = vmatpush1.xpose.msra.mxu0 0.0
    %4755 = vmatprep.subr.mxu0 0.0
    %4756 = vmatpush1.xpose.msra.mxu0 0.0
    %4757 = vmatprep.subr.mxu0 0.0
    %4758 = vmatpush1.xpose.msra.mxu0 0.0
    %4759 = vmatprep.subr.mxu0 0.0
    %4760 = vmatpush1.xpose.msra.mxu0 0.0
    %4761 = vmatprep.subr.mxu0 0.0
    %4762 = vmatpush1.xpose.msra.mxu0 0.0
    %4763 = vmatprep.subr.mxu0 0.0
    %4764 = vmatpush1.xpose.msra.mxu0 0.0
    %4765 = vmatprep.subr.mxu0 0.0
    %4766 = vmatpush1.xpose.msra.mxu0 %v4733
    %4767 = vmatprep.subr.mxu0 0.0
    %4768 = vmatpush2.xpose.msra.mxu0 0.0
    %4769 = vmatprep.subr.mxu0 0.0
    %4770 = vmatpush2.xpose.msra.mxu0 0.0
    %4771 = vmatprep.subr.mxu0 0.0
    %4772 = vmatpush2.xpose.msra.mxu0 0.0
    %4773 = vmatprep.subr.mxu0 0.0
    %4774 = vmatpush2.xpose.msra.mxu0 0.0
    %4775 = vmatprep.subr.mxu0 0.0
    %4776 = vmatpush2.xpose.msra.mxu0 0.0
    %4777 = vmatprep.subr.mxu0 0.0
    %4778 = vmatpush2.xpose.msra.mxu0 0.0
    %4779 = vmatprep.subr.mxu0 0.0
    %4780 = vmatpush2.xpose.msra.mxu0 0.0
    %4781 = vmatprep.subr.mxu0 0.0
    %4782 = vmatpush2.xpose.msra.mxu0 0.0
    %4783 = vmatprep.subr.mxu0 0.0
    %4784 = vmatpush2.xpose.msra.mxu0 0.0
    %4785 = vmatprep.subr.mxu0 0.0
    %4786 = vmatpush2.xpose.msra.mxu0 0.0
    %4787 = vmatprep.subr.mxu0 0.0
    %4788 = vmatpush2.xpose.msra.mxu0 0.0
    %4789 = vmatprep.subr.mxu0 0.0
    %4790 = vmatpush2.xpose.msra.mxu0 0.0
    %4791 = vmatprep.subr.mxu0 0.0
    %4792 = vmatpush2.xpose.msra.mxu0 0.0
    %4793 = vmatprep.subr.mxu0 0.0
    %4794 = vmatpush2.xpose.msra.mxu0 0.0
    %4795 = vmatprep.subr.mxu0 0.0
    %4796 = vmatpush2.xpose.msra.mxu0 0.0
    %4797 = vmatprep.subr.mxu0 0.0
    %4798 = vmatpush2.xpose.msra.mxu0 0.0
    %4799 = vmatprep.mubr.f32.mxu0 0.0
    %4800 = vmatmul.mubr.f32.gmra.mxu0 %v4731
    %v4801 = vpop.f32.mrf.mxu0
    %v4802 = vadd.f32 0.0, %v4801
    %v4803 = vpop.f32.mrf.mxu0
    %4804 = vdwg.mxu0
    %v4805 = vmul.f32 %v4270, 0.35355338
    %v4806 = vmul.f32 %v4346, 0.35355338
    %v4807 = vmul.f32 %v4422, 0.35355338
    %v4808 = vmul.f32 %v4498, 0.35355338
    %v4809 = vmul.f32 %v4574, 0.35355338
    %v4810 = vmul.f32 %v4650, 0.35355338
    %v4811 = vmul.f32 %v4726, 0.35355338
    %v4812 = vmul.f32 %v4802, 0.35355338
    %v4813 = vadd.f32 %v4805, %v147
    %v4814 = vadd.f32 %v4806, %v147
    %v4815 = vadd.f32 %v4807, %v147
    %v4816 = vadd.f32 %v4808, %v147
    %v4817 = vadd.f32 %v4809, %v147
    %v4818 = vadd.f32 %v4810, %v147
    %v4819 = vadd.f32 %v4811, %v147
    %v4820 = vadd.f32 %v4812, %v147
    %v4821 = vsel %vm255, %v4813, -inf
    %4822 = vmax.xlane.f32.xlu0 %v4821
    %v4823 = vpop.xlane.xlu0 %4822
    %v4824 = vsel %vm255, %v4814, -inf
    %4825 = vmax.xlane.f32.xlu0 %v4824
    %v4826 = vpop.xlane.xlu0 %4825
    %v4827 = vsel %vm255, %v4815, -inf
    %4828 = vmax.xlane.f32.xlu0 %v4827
    %v4829 = vpop.xlane.xlu0 %4828
    %v4830 = vsel %vm255, %v4816, -inf
    %4831 = vmax.xlane.f32.xlu0 %v4830
    %v4832 = vpop.xlane.xlu0 %4831
    %v4833 = vsel %vm255, %v4817, -inf
    %4834 = vmax.xlane.f32.xlu0 %v4833
    %v4835 = vpop.xlane.xlu0 %4834
    %v4836 = vsel %vm255, %v4818, -inf
    %4837 = vmax.xlane.f32.xlu0 %v4836
    %v4838 = vpop.xlane.xlu0 %4837
    %v4839 = vsel %vm255, %v4819, -inf
    %4840 = vmax.xlane.f32.xlu0 %v4839
    %v4841 = vpop.xlane.xlu0 %4840
    %v4842 = vsel %vm255, %v4820, -inf
    %4843 = vmax.xlane.f32.xlu0 %v4842
    %v4844 = vpop.xlane.xlu0 %4843
    %v4845 = vsub.f32 %v4813, %v4823
    %v4846 = vsub.f32 %v4814, %v4826
    %v4847 = vsub.f32 %v4815, %v4829
    %v4848 = vsub.f32 %v4816, %v4832
    %v4849 = vsub.f32 %v4817, %v4835
    %v4850 = vsub.f32 %v4818, %v4838
    %v4851 = vsub.f32 %v4819, %v4841
    %v4852 = vsub.f32 %v4820, %v4844
    %v4853 = vmul.f32 %v4845, 1.442695
    %v4854 = vpow.pop %v4853
    %v4855 = vmul.f32 %v4846, 1.442695
    %v4856 = vpow.pop %v4855
    %v4857 = vmul.f32 %v4847, 1.442695
    %v4858 = vpow.pop %v4857
    %v4859 = vmul.f32 %v4848, 1.442695
    %v4860 = vpow.pop %v4859
    %v4861 = vmul.f32 %v4849, 1.442695
    %v4862 = vpow.pop %v4861
    %v4863 = vmul.f32 %v4850, 1.442695
    %v4864 = vpow.pop %v4863
    %v4865 = vmul.f32 %v4851, 1.442695
    %v4866 = vpow.pop %v4865
    %v4867 = vmul.f32 %v4852, 1.442695
    %v4868 = vpow.pop %v4867
    %v4869 = vsel %vm255, %v4854, 0.0
    %4870 = vadd.xlane.f32.xlu0 %v4869
    %v4871 = vpop.xlane.xlu0 %4870
    %v4872 = vsel %vm255, %v4856, 0.0
    %4873 = vadd.xlane.f32.xlu0 %v4872
    %v4874 = vpop.xlane.xlu0 %4873
    %v4875 = vsel %vm255, %v4858, 0.0
    %4876 = vadd.xlane.f32.xlu0 %v4875
    %v4877 = vpop.xlane.xlu0 %4876
    %v4878 = vsel %vm255, %v4860, 0.0
    %4879 = vadd.xlane.f32.xlu0 %v4878
    %v4880 = vpop.xlane.xlu0 %4879
    %v4881 = vsel %vm255, %v4862, 0.0
    %4882 = vadd.xlane.f32.xlu0 %v4881
    %v4883 = vpop.xlane.xlu0 %4882
    %v4884 = vsel %vm255, %v4864, 0.0
    %4885 = vadd.xlane.f32.xlu0 %v4884
    %v4886 = vpop.xlane.xlu0 %4885
    %v4887 = vsel %vm255, %v4866, 0.0
    %4888 = vadd.xlane.f32.xlu0 %v4887
    %v4889 = vpop.xlane.xlu0 %4888
    %v4890 = vsel %vm255, %v4868, 0.0
    %4891 = vadd.xlane.f32.xlu0 %v4890
    %v4892 = vpop.xlane.xlu0 %4891
    %v4893 = vrcp.pop %v4871
    %v4894 = vrcp.pop %v4874
    %v4895 = vrcp.pop %v4877
    %v4896 = vrcp.pop %v4880
    %v4897 = vrcp.pop %v4883
    %v4898 = vrcp.pop %v4886
    %v4899 = vrcp.pop %v4889
    %v4900 = vrcp.pop %v4892
    %v4901 = vmul.f32 %v4854, %v4893
    %v4902 = vmul.f32 %v4856, %v4894
    %v4903 = vmul.f32 %v4858, %v4895
    %v4904 = vmul.f32 %v4860, %v4896
    %v4905 = vmul.f32 %v4862, %v4897
    %v4906 = vmul.f32 %v4864, %v4898
    %v4907 = vmul.f32 %v4866, %v4899
    %v4908 = vmul.f32 %v4868, %v4900
    %4909 = vrot.lane.b32.xlu0 %v4175, 64
    %v4910 = vpop.permute.xlu0 %4909
    %v4913 = vsel %vm255, %v4901, 0
    %4915 = vmatprep.subr.mxu0 0.0
    %4916 = vmatpush1.msra.mxu0 0.0
    %4917 = vmatprep.subr.mxu0 0.0
    %4918 = vmatpush1.msra.mxu0 0.0
    %4919 = vmatprep.subr.mxu0 0.0
    %4920 = vmatpush1.msra.mxu0 0.0
    %4921 = vmatprep.subr.mxu0 0.0
    %4922 = vmatpush1.msra.mxu0 0.0
    %4923 = vmatprep.subr.mxu0 0.0
    %4924 = vmatpush1.msra.mxu0 0.0
    %4925 = vmatprep.subr.mxu0 0.0
    %4926 = vmatpush1.msra.mxu0 0.0
    %4927 = vmatprep.subr.mxu0 0.0
    %4928 = vmatpush1.msra.mxu0 0.0
    %4929 = vmatprep.subr.mxu0 0.0
    %4930 = vmatpush1.msra.mxu0 0.0
    %4931 = vmatprep.subr.mxu0 0.0
    %4932 = vmatpush1.msra.mxu0 0.0
    %4933 = vmatprep.subr.mxu0 0.0
    %4934 = vmatpush1.msra.mxu0 0.0
    %4935 = vmatprep.subr.mxu0 0.0
    %4936 = vmatpush1.msra.mxu0 0.0
    %4937 = vmatprep.subr.mxu0 0.0
    %4938 = vmatpush1.msra.mxu0 0.0
    %4939 = vmatprep.subr.mxu0 0.0
    %4940 = vmatpush1.msra.mxu0 0.0
    %4941 = vmatprep.subr.mxu0 0.0
    %4942 = vmatpush1.msra.mxu0 0.0
    %4943 = vmatprep.subr.mxu0 0.0
    %4944 = vmatpush1.msra.mxu0 0.0
    %4945 = vmatprep.subr.mxu0 0.0
    %4946 = vmatpush1.msra.mxu0 %v4910
    %4947 = vmatprep.subr.mxu0 0.0
    %4948 = vmatpush2.msra.mxu0 0.0
    %4949 = vmatprep.subr.mxu0 0.0
    %4950 = vmatpush2.msra.mxu0 0.0
    %4951 = vmatprep.subr.mxu0 0.0
    %4952 = vmatpush2.msra.mxu0 0.0
    %4953 = vmatprep.subr.mxu0 0.0
    %4954 = vmatpush2.msra.mxu0 0.0
    %4955 = vmatprep.subr.mxu0 0.0
    %4956 = vmatpush2.msra.mxu0 0.0
    %4957 = vmatprep.subr.mxu0 0.0
    %4958 = vmatpush2.msra.mxu0 0.0
    %4959 = vmatprep.subr.mxu0 0.0
    %4960 = vmatpush2.msra.mxu0 0.0
    %4961 = vmatprep.subr.mxu0 0.0
    %4962 = vmatpush2.msra.mxu0 0.0
    %4963 = vmatprep.subr.mxu0 0.0
    %4964 = vmatpush2.msra.mxu0 0.0
    %4965 = vmatprep.subr.mxu0 0.0
    %4966 = vmatpush2.msra.mxu0 0.0
    %4967 = vmatprep.subr.mxu0 0.0
    %4968 = vmatpush2.msra.mxu0 0.0
    %4969 = vmatprep.subr.mxu0 0.0
    %4970 = vmatpush2.msra.mxu0 0.0
    %4971 = vmatprep.subr.mxu0 0.0
    %4972 = vmatpush2.msra.mxu0 0.0
    %4973 = vmatprep.subr.mxu0 0.0
    %4974 = vmatpush2.msra.mxu0 0.0
    %4975 = vmatprep.subr.mxu0 0.0
    %4976 = vmatpush2.msra.mxu0 0.0
    %4977 = vmatprep.subr.mxu0 0.0
    %4978 = vmatpush2.msra.mxu0 0.0
    %4979 = vmatprep.mubr.f32.mxu0 0.0
    %4980 = vmatmul.mubr.f32.gmra.mxu0 %v4913
    %v4981 = vpop.f32.mrf.mxu0
    %v4982 = vadd.f32 0.0, %v4981
    %v4983 = vpop.f32.mrf.mxu0
    %4984 = vdwg.mxu0
    %4985 = vrot.lane.b32.xlu0 %v4180, 64
    %v4986 = vpop.permute.xlu0 %4985
    %v4989 = vsel %vm255, %v4902, 0
    %4991 = vmatprep.subr.mxu0 0.0
    %4992 = vmatpush1.msra.mxu0 0.0
    %4993 = vmatprep.subr.mxu0 0.0
    %4994 = vmatpush1.msra.mxu0 0.0
    %4995 = vmatprep.subr.mxu0 0.0
    %4996 = vmatpush1.msra.mxu0 0.0
    %4997 = vmatprep.subr.mxu0 0.0
    %4998 = vmatpush1.msra.mxu0 0.0
    %4999 = vmatprep.subr.mxu0 0.0
    %5000 = vmatpush1.msra.mxu0 0.0
    %5001 = vmatprep.subr.mxu0 0.0
    %5002 = vmatpush1.msra.mxu0 0.0
    %5003 = vmatprep.subr.mxu0 0.0
    %5004 = vmatpush1.msra.mxu0 0.0
    %5005 = vmatprep.subr.mxu0 0.0
    %5006 = vmatpush1.msra.mxu0 0.0
    %5007 = vmatprep.subr.mxu0 0.0
    %5008 = vmatpush1.msra.mxu0 0.0
    %5009 = vmatprep.subr.mxu0 0.0
    %5010 = vmatpush1.msra.mxu0 0.0
    %5011 = vmatprep.subr.mxu0 0.0
    %5012 = vmatpush1.msra.mxu0 0.0
    %5013 = vmatprep.subr.mxu0 0.0
    %5014 = vmatpush1.msra.mxu0 0.0
    %5015 = vmatprep.subr.mxu0 0.0
    %5016 = vmatpush1.msra.mxu0 0.0
    %5017 = vmatprep.subr.mxu0 0.0
    %5018 = vmatpush1.msra.mxu0 0.0
    %5019 = vmatprep.subr.mxu0 0.0
    %5020 = vmatpush1.msra.mxu0 0.0
    %5021 = vmatprep.subr.mxu0 0.0
    %5022 = vmatpush1.msra.mxu0 %v4986
    %5023 = vmatprep.subr.mxu0 0.0
    %5024 = vmatpush2.msra.mxu0 0.0
    %5025 = vmatprep.subr.mxu0 0.0
    %5026 = vmatpush2.msra.mxu0 0.0
    %5027 = vmatprep.subr.mxu0 0.0
    %5028 = vmatpush2.msra.mxu0 0.0
    %5029 = vmatprep.subr.mxu0 0.0
    %5030 = vmatpush2.msra.mxu0 0.0
    %5031 = vmatprep.subr.mxu0 0.0
    %5032 = vmatpush2.msra.mxu0 0.0
    %5033 = vmatprep.subr.mxu0 0.0
    %5034 = vmatpush2.msra.mxu0 0.0
    %5035 = vmatprep.subr.mxu0 0.0
    %5036 = vmatpush2.msra.mxu0 0.0
    %5037 = vmatprep.subr.mxu0 0.0
    %5038 = vmatpush2.msra.mxu0 0.0
    %5039 = vmatprep.subr.mxu0 0.0
    %5040 = vmatpush2.msra.mxu0 0.0
    %5041 = vmatprep.subr.mxu0 0.0
    %5042 = vmatpush2.msra.mxu0 0.0
    %5043 = vmatprep.subr.mxu0 0.0
    %5044 = vmatpush2.msra.mxu0 0.0
    %5045 = vmatprep.subr.mxu0 0.0
    %5046 = vmatpush2.msra.mxu0 0.0
    %5047 = vmatprep.subr.mxu0 0.0
    %5048 = vmatpush2.msra.mxu0 0.0
    %5049 = vmatprep.subr.mxu0 0.0
    %5050 = vmatpush2.msra.mxu0 0.0
    %5051 = vmatprep.subr.mxu0 0.0
    %5052 = vmatpush2.msra.mxu0 0.0
    %5053 = vmatprep.subr.mxu0 0.0
    %5054 = vmatpush2.msra.mxu0 0.0
    %5055 = vmatprep.mubr.f32.mxu0 0.0
    %5056 = vmatmul.mubr.f32.gmra.mxu0 %v4989
    %v5057 = vpop.f32.mrf.mxu0
    %v5058 = vadd.f32 0.0, %v5057
    %v5059 = vpop.f32.mrf.mxu0
    %5060 = vdwg.mxu0
    %5061 = vrot.lane.b32.xlu0 %v4186, 64
    %v5062 = vpop.permute.xlu0 %5061
    %v5065 = vsel %vm255, %v4903, 0
    %5067 = vmatprep.subr.mxu0 0.0
    %5068 = vmatpush1.msra.mxu0 0.0
    %5069 = vmatprep.subr.mxu0 0.0
    %5070 = vmatpush1.msra.mxu0 0.0
    %5071 = vmatprep.subr.mxu0 0.0
    %5072 = vmatpush1.msra.mxu0 0.0
    %5073 = vmatprep.subr.mxu0 0.0
    %5074 = vmatpush1.msra.mxu0 0.0
    %5075 = vmatprep.subr.mxu0 0.0
    %5076 = vmatpush1.msra.mxu0 0.0
    %5077 = vmatprep.subr.mxu0 0.0
    %5078 = vmatpush1.msra.mxu0 0.0
    %5079 = vmatprep.subr.mxu0 0.0
    %5080 = vmatpush1.msra.mxu0 0.0
    %5081 = vmatprep.subr.mxu0 0.0
    %5082 = vmatpush1.msra.mxu0 0.0
    %5083 = vmatprep.subr.mxu0 0.0
    %5084 = vmatpush1.msra.mxu0 0.0
    %5085 = vmatprep.subr.mxu0 0.0
    %5086 = vmatpush1.msra.mxu0 0.0
    %5087 = vmatprep.subr.mxu0 0.0
    %5088 = vmatpush1.msra.mxu0 0.0
    %5089 = vmatprep.subr.mxu0 0.0
    %5090 = vmatpush1.msra.mxu0 0.0
    %5091 = vmatprep.subr.mxu0 0.0
    %5092 = vmatpush1.msra.mxu0 0.0
    %5093 = vmatprep.subr.mxu0 0.0
    %5094 = vmatpush1.msra.mxu0 0.0
    %5095 = vmatprep.subr.mxu0 0.0
    %5096 = vmatpush1.msra.mxu0 0.0
    %5097 = vmatprep.subr.mxu0 0.0
    %5098 = vmatpush1.msra.mxu0 %v5062
    %5099 = vmatprep.subr.mxu0 0.0
    %5100 = vmatpush2.msra.mxu0 0.0
    %5101 = vmatprep.subr.mxu0 0.0
    %5102 = vmatpush2.msra.mxu0 0.0
    %5103 = vmatprep.subr.mxu0 0.0
    %5104 = vmatpush2.msra.mxu0 0.0
    %5105 = vmatprep.subr.mxu0 0.0
    %5106 = vmatpush2.msra.mxu0 0.0
    %5107 = vmatprep.subr.mxu0 0.0
    %5108 = vmatpush2.msra.mxu0 0.0
    %5109 = vmatprep.subr.mxu0 0.0
    %5110 = vmatpush2.msra.mxu0 0.0
    %5111 = vmatprep.subr.mxu0 0.0
    %5112 = vmatpush2.msra.mxu0 0.0
    %5113 = vmatprep.subr.mxu0 0.0
    %5114 = vmatpush2.msra.mxu0 0.0
    %5115 = vmatprep.subr.mxu0 0.0
    %5116 = vmatpush2.msra.mxu0 0.0
    %5117 = vmatprep.subr.mxu0 0.0
    %5118 = vmatpush2.msra.mxu0 0.0
    %5119 = vmatprep.subr.mxu0 0.0
    %5120 = vmatpush2.msra.mxu0 0.0
    %5121 = vmatprep.subr.mxu0 0.0
    %5122 = vmatpush2.msra.mxu0 0.0
    %5123 = vmatprep.subr.mxu0 0.0
    %5124 = vmatpush2.msra.mxu0 0.0
    %5125 = vmatprep.subr.mxu0 0.0
    %5126 = vmatpush2.msra.mxu0 0.0
    %5127 = vmatprep.subr.mxu0 0.0
    %5128 = vmatpush2.msra.mxu0 0.0
    %5129 = vmatprep.subr.mxu0 0.0
    %5130 = vmatpush2.msra.mxu0 0.0
    %5131 = vmatprep.mubr.f32.mxu0 0.0
    %5132 = vmatmul.mubr.f32.gmra.mxu0 %v5065
    %v5133 = vpop.f32.mrf.mxu0
    %v5134 = vadd.f32 0.0, %v5133
    %v5135 = vpop.f32.mrf.mxu0
    %5136 = vdwg.mxu0
    %5137 = vrot.lane.b32.xlu0 %v4188, 64
    %v5138 = vpop.permute.xlu0 %5137
    %v5141 = vsel %vm255, %v4904, 0
    %5143 = vmatprep.subr.mxu0 0.0
    %5144 = vmatpush1.msra.mxu0 0.0
    %5145 = vmatprep.subr.mxu0 0.0
    %5146 = vmatpush1.msra.mxu0 0.0
    %5147 = vmatprep.subr.mxu0 0.0
    %5148 = vmatpush1.msra.mxu0 0.0
    %5149 = vmatprep.subr.mxu0 0.0
    %5150 = vmatpush1.msra.mxu0 0.0
    %5151 = vmatprep.subr.mxu0 0.0
    %5152 = vmatpush1.msra.mxu0 0.0
    %5153 = vmatprep.subr.mxu0 0.0
    %5154 = vmatpush1.msra.mxu0 0.0
    %5155 = vmatprep.subr.mxu0 0.0
    %5156 = vmatpush1.msra.mxu0 0.0
    %5157 = vmatprep.subr.mxu0 0.0
    %5158 = vmatpush1.msra.mxu0 0.0
    %5159 = vmatprep.subr.mxu0 0.0
    %5160 = vmatpush1.msra.mxu0 0.0
    %5161 = vmatprep.subr.mxu0 0.0
    %5162 = vmatpush1.msra.mxu0 0.0
    %5163 = vmatprep.subr.mxu0 0.0
    %5164 = vmatpush1.msra.mxu0 0.0
    %5165 = vmatprep.subr.mxu0 0.0
    %5166 = vmatpush1.msra.mxu0 0.0
    %5167 = vmatprep.subr.mxu0 0.0
    %5168 = vmatpush1.msra.mxu0 0.0
    %5169 = vmatprep.subr.mxu0 0.0
    %5170 = vmatpush1.msra.mxu0 0.0
    %5171 = vmatprep.subr.mxu0 0.0
    %5172 = vmatpush1.msra.mxu0 0.0
    %5173 = vmatprep.subr.mxu0 0.0
    %5174 = vmatpush1.msra.mxu0 %v5138
    %5175 = vmatprep.subr.mxu0 0.0
    %5176 = vmatpush2.msra.mxu0 0.0
    %5177 = vmatprep.subr.mxu0 0.0
    %5178 = vmatpush2.msra.mxu0 0.0
    %5179 = vmatprep.subr.mxu0 0.0
    %5180 = vmatpush2.msra.mxu0 0.0
    %5181 = vmatprep.subr.mxu0 0.0
    %5182 = vmatpush2.msra.mxu0 0.0
    %5183 = vmatprep.subr.mxu0 0.0
    %5184 = vmatpush2.msra.mxu0 0.0
    %5185 = vmatprep.subr.mxu0 0.0
    %5186 = vmatpush2.msra.mxu0 0.0
    %5187 = vmatprep.subr.mxu0 0.0
    %5188 = vmatpush2.msra.mxu0 0.0
    %5189 = vmatprep.subr.mxu0 0.0
    %5190 = vmatpush2.msra.mxu0 0.0
    %5191 = vmatprep.subr.mxu0 0.0
    %5192 = vmatpush2.msra.mxu0 0.0
    %5193 = vmatprep.subr.mxu0 0.0
    %5194 = vmatpush2.msra.mxu0 0.0
    %5195 = vmatprep.subr.mxu0 0.0
    %5196 = vmatpush2.msra.mxu0 0.0
    %5197 = vmatprep.subr.mxu0 0.0
    %5198 = vmatpush2.msra.mxu0 0.0
    %5199 = vmatprep.subr.mxu0 0.0
    %5200 = vmatpush2.msra.mxu0 0.0
    %5201 = vmatprep.subr.mxu0 0.0
    %5202 = vmatpush2.msra.mxu0 0.0
    %5203 = vmatprep.subr.mxu0 0.0
    %5204 = vmatpush2.msra.mxu0 0.0
    %5205 = vmatprep.subr.mxu0 0.0
    %5206 = vmatpush2.msra.mxu0 0.0
    %5207 = vmatprep.mubr.f32.mxu0 0.0
    %5208 = vmatmul.mubr.f32.gmra.mxu0 %v5141
    %v5209 = vpop.f32.mrf.mxu0
    %v5210 = vadd.f32 0.0, %v5209
    %v5211 = vpop.f32.mrf.mxu0
    %5212 = vdwg.mxu0
    %5213 = vrot.lane.b32.xlu0 %v4190, 64
    %v5214 = vpop.permute.xlu0 %5213
    %v5217 = vsel %vm255, %v4905, 0
    %5219 = vmatprep.subr.mxu0 0.0
    %5220 = vmatpush1.msra.mxu0 0.0
    %5221 = vmatprep.subr.mxu0 0.0
    %5222 = vmatpush1.msra.mxu0 0.0
    %5223 = vmatprep.subr.mxu0 0.0
    %5224 = vmatpush1.msra.mxu0 0.0
    %5225 = vmatprep.subr.mxu0 0.0
    %5226 = vmatpush1.msra.mxu0 0.0
    %5227 = vmatprep.subr.mxu0 0.0
    %5228 = vmatpush1.msra.mxu0 0.0
    %5229 = vmatprep.subr.mxu0 0.0
    %5230 = vmatpush1.msra.mxu0 0.0
    %5231 = vmatprep.subr.mxu0 0.0
    %5232 = vmatpush1.msra.mxu0 0.0
    %5233 = vmatprep.subr.mxu0 0.0
    %5234 = vmatpush1.msra.mxu0 0.0
    %5235 = vmatprep.subr.mxu0 0.0
    %5236 = vmatpush1.msra.mxu0 0.0
    %5237 = vmatprep.subr.mxu0 0.0
    %5238 = vmatpush1.msra.mxu0 0.0
    %5239 = vmatprep.subr.mxu0 0.0
    %5240 = vmatpush1.msra.mxu0 0.0
    %5241 = vmatprep.subr.mxu0 0.0
    %5242 = vmatpush1.msra.mxu0 0.0
    %5243 = vmatprep.subr.mxu0 0.0
    %5244 = vmatpush1.msra.mxu0 0.0
    %5245 = vmatprep.subr.mxu0 0.0
    %5246 = vmatpush1.msra.mxu0 0.0
    %5247 = vmatprep.subr.mxu0 0.0
    %5248 = vmatpush1.msra.mxu0 0.0
    %5249 = vmatprep.subr.mxu0 0.0
    %5250 = vmatpush1.msra.mxu0 %v5214
    %5251 = vmatprep.subr.mxu0 0.0
    %5252 = vmatpush2.msra.mxu0 0.0
    %5253 = vmatprep.subr.mxu0 0.0
    %5254 = vmatpush2.msra.mxu0 0.0
    %5255 = vmatprep.subr.mxu0 0.0
    %5256 = vmatpush2.msra.mxu0 0.0
    %5257 = vmatprep.subr.mxu0 0.0
    %5258 = vmatpush2.msra.mxu0 0.0
    %5259 = vmatprep.subr.mxu0 0.0
    %5260 = vmatpush2.msra.mxu0 0.0
    %5261 = vmatprep.subr.mxu0 0.0
    %5262 = vmatpush2.msra.mxu0 0.0
    %5263 = vmatprep.subr.mxu0 0.0
    %5264 = vmatpush2.msra.mxu0 0.0
    %5265 = vmatprep.subr.mxu0 0.0
    %5266 = vmatpush2.msra.mxu0 0.0
    %5267 = vmatprep.subr.mxu0 0.0
    %5268 = vmatpush2.msra.mxu0 0.0
    %5269 = vmatprep.subr.mxu0 0.0
    %5270 = vmatpush2.msra.mxu0 0.0
    %5271 = vmatprep.subr.mxu0 0.0
    %5272 = vmatpush2.msra.mxu0 0.0
    %5273 = vmatprep.subr.mxu0 0.0
    %5274 = vmatpush2.msra.mxu0 0.0
    %5275 = vmatprep.subr.mxu0 0.0
    %5276 = vmatpush2.msra.mxu0 0.0
    %5277 = vmatprep.subr.mxu0 0.0
    %5278 = vmatpush2.msra.mxu0 0.0
    %5279 = vmatprep.subr.mxu0 0.0
    %5280 = vmatpush2.msra.mxu0 0.0
    %5281 = vmatprep.subr.mxu0 0.0
    %5282 = vmatpush2.msra.mxu0 0.0
    %5283 = vmatprep.mubr.f32.mxu0 0.0
    %5284 = vmatmul.mubr.f32.gmra.mxu0 %v5217
    %v5285 = vpop.f32.mrf.mxu0
    %v5286 = vadd.f32 0.0, %v5285
    %v5287 = vpop.f32.mrf.mxu0
    %5288 = vdwg.mxu0
    %5289 = vrot.lane.b32.xlu0 %v4192, 64
    %v5290 = vpop.permute.xlu0 %5289
    %v5293 = vsel %vm255, %v4906, 0
    %5295 = vmatprep.subr.mxu0 0.0
    %5296 = vmatpush1.msra.mxu0 0.0
    %5297 = vmatprep.subr.mxu0 0.0
    %5298 = vmatpush1.msra.mxu0 0.0
    %5299 = vmatprep.subr.mxu0 0.0
    %5300 = vmatpush1.msra.mxu0 0.0
    %5301 = vmatprep.subr.mxu0 0.0
    %5302 = vmatpush1.msra.mxu0 0.0
    %5303 = vmatprep.subr.mxu0 0.0
    %5304 = vmatpush1.msra.mxu0 0.0
    %5305 = vmatprep.subr.mxu0 0.0
    %5306 = vmatpush1.msra.mxu0 0.0
    %5307 = vmatprep.subr.mxu0 0.0
    %5308 = vmatpush1.msra.mxu0 0.0
    %5309 = vmatprep.subr.mxu0 0.0
    %5310 = vmatpush1.msra.mxu0 0.0
    %5311 = vmatprep.subr.mxu0 0.0
    %5312 = vmatpush1.msra.mxu0 0.0
    %5313 = vmatprep.subr.mxu0 0.0
    %5314 = vmatpush1.msra.mxu0 0.0
    %5315 = vmatprep.subr.mxu0 0.0
    %5316 = vmatpush1.msra.mxu0 0.0
    %5317 = vmatprep.subr.mxu0 0.0
    %5318 = vmatpush1.msra.mxu0 0.0
    %5319 = vmatprep.subr.mxu0 0.0
    %5320 = vmatpush1.msra.mxu0 0.0
    %5321 = vmatprep.subr.mxu0 0.0
    %5322 = vmatpush1.msra.mxu0 0.0
    %5323 = vmatprep.subr.mxu0 0.0
    %5324 = vmatpush1.msra.mxu0 0.0
    %5325 = vmatprep.subr.mxu0 0.0
    %5326 = vmatpush1.msra.mxu0 %v5290
    %5327 = vmatprep.subr.mxu0 0.0
    %5328 = vmatpush2.msra.mxu0 0.0
    %5329 = vmatprep.subr.mxu0 0.0
    %5330 = vmatpush2.msra.mxu0 0.0
    %5331 = vmatprep.subr.mxu0 0.0
    %5332 = vmatpush2.msra.mxu0 0.0
    %5333 = vmatprep.subr.mxu0 0.0
    %5334 = vmatpush2.msra.mxu0 0.0
    %5335 = vmatprep.subr.mxu0 0.0
    %5336 = vmatpush2.msra.mxu0 0.0
    %5337 = vmatprep.subr.mxu0 0.0
    %5338 = vmatpush2.msra.mxu0 0.0
    %5339 = vmatprep.subr.mxu0 0.0
    %5340 = vmatpush2.msra.mxu0 0.0
    %5341 = vmatprep.subr.mxu0 0.0
    %5342 = vmatpush2.msra.mxu0 0.0
    %5343 = vmatprep.subr.mxu0 0.0
    %5344 = vmatpush2.msra.mxu0 0.0
    %5345 = vmatprep.subr.mxu0 0.0
    %5346 = vmatpush2.msra.mxu0 0.0
    %5347 = vmatprep.subr.mxu0 0.0
    %5348 = vmatpush2.msra.mxu0 0.0
    %5349 = vmatprep.subr.mxu0 0.0
    %5350 = vmatpush2.msra.mxu0 0.0
    %5351 = vmatprep.subr.mxu0 0.0
    %5352 = vmatpush2.msra.mxu0 0.0
    %5353 = vmatprep.subr.mxu0 0.0
    %5354 = vmatpush2.msra.mxu0 0.0
    %5355 = vmatprep.subr.mxu0 0.0
    %5356 = vmatpush2.msra.mxu0 0.0
    %5357 = vmatprep.subr.mxu0 0.0
    %5358 = vmatpush2.msra.mxu0 0.0
    %5359 = vmatprep.mubr.f32.mxu0 0.0
    %5360 = vmatmul.mubr.f32.gmra.mxu0 %v5293
    %v5361 = vpop.f32.mrf.mxu0
    %v5362 = vadd.f32 0.0, %v5361
    %v5363 = vpop.f32.mrf.mxu0
    %5364 = vdwg.mxu0
    %5365 = vrot.lane.b32.xlu0 %v4194, 64
    %v5366 = vpop.permute.xlu0 %5365
    %v5369 = vsel %vm255, %v4907, 0
    %5371 = vmatprep.subr.mxu0 0.0
    %5372 = vmatpush1.msra.mxu0 0.0
    %5373 = vmatprep.subr.mxu0 0.0
    %5374 = vmatpush1.msra.mxu0 0.0
    %5375 = vmatprep.subr.mxu0 0.0
    %5376 = vmatpush1.msra.mxu0 0.0
    %5377 = vmatprep.subr.mxu0 0.0
    %5378 = vmatpush1.msra.mxu0 0.0
    %5379 = vmatprep.subr.mxu0 0.0
    %5380 = vmatpush1.msra.mxu0 0.0
    %5381 = vmatprep.subr.mxu0 0.0
    %5382 = vmatpush1.msra.mxu0 0.0
    %5383 = vmatprep.subr.mxu0 0.0
    %5384 = vmatpush1.msra.mxu0 0.0
    %5385 = vmatprep.subr.mxu0 0.0
    %5386 = vmatpush1.msra.mxu0 0.0
    %5387 = vmatprep.subr.mxu0 0.0
    %5388 = vmatpush1.msra.mxu0 0.0
    %5389 = vmatprep.subr.mxu0 0.0
    %5390 = vmatpush1.msra.mxu0 0.0
    %5391 = vmatprep.subr.mxu0 0.0
    %5392 = vmatpush1.msra.mxu0 0.0
    %5393 = vmatprep.subr.mxu0 0.0
    %5394 = vmatpush1.msra.mxu0 0.0
    %5395 = vmatprep.subr.mxu0 0.0
    %5396 = vmatpush1.msra.mxu0 0.0
    %5397 = vmatprep.subr.mxu0 0.0
    %5398 = vmatpush1.msra.mxu0 0.0
    %5399 = vmatprep.subr.mxu0 0.0
    %5400 = vmatpush1.msra.mxu0 0.0
    %5401 = vmatprep.subr.mxu0 0.0
    %5402 = vmatpush1.msra.mxu0 %v5366
    %5403 = vmatprep.subr.mxu0 0.0
    %5404 = vmatpush2.msra.mxu0 0.0
    %5405 = vmatprep.subr.mxu0 0.0
    %5406 = vmatpush2.msra.mxu0 0.0
    %5407 = vmatprep.subr.mxu0 0.0
    %5408 = vmatpush2.msra.mxu0 0.0
    %5409 = vmatprep.subr.mxu0 0.0
    %5410 = vmatpush2.msra.mxu0 0.0
    %5411 = vmatprep.subr.mxu0 0.0
    %5412 = vmatpush2.msra.mxu0 0.0
    %5413 = vmatprep.subr.mxu0 0.0
    %5414 = vmatpush2.msra.mxu0 0.0
    %5415 = vmatprep.subr.mxu0 0.0
    %5416 = vmatpush2.msra.mxu0 0.0
    %5417 = vmatprep.subr.mxu0 0.0
    %5418 = vmatpush2.msra.mxu0 0.0
    %5419 = vmatprep.subr.mxu0 0.0
    %5420 = vmatpush2.msra.mxu0 0.0
    %5421 = vmatprep.subr.mxu0 0.0
    %5422 = vmatpush2.msra.mxu0 0.0
    %5423 = vmatprep.subr.mxu0 0.0
    %5424 = vmatpush2.msra.mxu0 0.0
    %5425 = vmatprep.subr.mxu0 0.0
    %5426 = vmatpush2.msra.mxu0 0.0
    %5427 = vmatprep.subr.mxu0 0.0
    %5428 = vmatpush2.msra.mxu0 0.0
    %5429 = vmatprep.subr.mxu0 0.0
    %5430 = vmatpush2.msra.mxu0 0.0
    %5431 = vmatprep.subr.mxu0 0.0
    %5432 = vmatpush2.msra.mxu0 0.0
    %5433 = vmatprep.subr.mxu0 0.0
    %5434 = vmatpush2.msra.mxu0 0.0
    %5435 = vmatprep.mubr.f32.mxu0 0.0
    %5436 = vmatmul.mubr.f32.gmra.mxu0 %v5369
    %v5437 = vpop.f32.mrf.mxu0
    %v5438 = vadd.f32 0.0, %v5437
    %v5439 = vpop.f32.mrf.mxu0
    %5440 = vdwg.mxu0
    %5441 = vrot.lane.b32.xlu0 %v4196, 64
    %v5442 = vpop.permute.xlu0 %5441
    %v5445 = vsel %vm255, %v4908, 0
    %5447 = vmatprep.subr.mxu0 0.0
    %5448 = vmatpush1.msra.mxu0 0.0
    %5449 = vmatprep.subr.mxu0 0.0
    %5450 = vmatpush1.msra.mxu0 0.0
    %5451 = vmatprep.subr.mxu0 0.0
    %5452 = vmatpush1.msra.mxu0 0.0
    %5453 = vmatprep.subr.mxu0 0.0
    %5454 = vmatpush1.msra.mxu0 0.0
    %5455 = vmatprep.subr.mxu0 0.0
    %5456 = vmatpush1.msra.mxu0 0.0
    %5457 = vmatprep.subr.mxu0 0.0
    %5458 = vmatpush1.msra.mxu0 0.0
    %5459 = vmatprep.subr.mxu0 0.0
    %5460 = vmatpush1.msra.mxu0 0.0
    %5461 = vmatprep.subr.mxu0 0.0
    %5462 = vmatpush1.msra.mxu0 0.0
    %5463 = vmatprep.subr.mxu0 0.0
    %5464 = vmatpush1.msra.mxu0 0.0
    %5465 = vmatprep.subr.mxu0 0.0
    %5466 = vmatpush1.msra.mxu0 0.0
    %5467 = vmatprep.subr.mxu0 0.0
    %5468 = vmatpush1.msra.mxu0 0.0
    %5469 = vmatprep.subr.mxu0 0.0
    %5470 = vmatpush1.msra.mxu0 0.0
    %5471 = vmatprep.subr.mxu0 0.0
    %5472 = vmatpush1.msra.mxu0 0.0
    %5473 = vmatprep.subr.mxu0 0.0
    %5474 = vmatpush1.msra.mxu0 0.0
    %5475 = vmatprep.subr.mxu0 0.0
    %5476 = vmatpush1.msra.mxu0 0.0
    %5477 = vmatprep.subr.mxu0 0.0
    %5478 = vmatpush1.msra.mxu0 %v5442
    %5479 = vmatprep.subr.mxu0 0.0
    %5480 = vmatpush2.msra.mxu0 0.0
    %5481 = vmatprep.subr.mxu0 0.0
    %5482 = vmatpush2.msra.mxu0 0.0
    %5483 = vmatprep.subr.mxu0 0.0
    %5484 = vmatpush2.msra.mxu0 0.0
    %5485 = vmatprep.subr.mxu0 0.0
    %5486 = vmatpush2.msra.mxu0 0.0
    %5487 = vmatprep.subr.mxu0 0.0
    %5488 = vmatpush2.msra.mxu0 0.0
    %5489 = vmatprep.subr.mxu0 0.0
    %5490 = vmatpush2.msra.mxu0 0.0
    %5491 = vmatprep.subr.mxu0 0.0
    %5492 = vmatpush2.msra.mxu0 0.0
    %5493 = vmatprep.subr.mxu0 0.0
    %5494 = vmatpush2.msra.mxu0 0.0
    %5495 = vmatprep.subr.mxu0 0.0
    %5496 = vmatpush2.msra.mxu0 0.0
    %5497 = vmatprep.subr.mxu0 0.0
    %5498 = vmatpush2.msra.mxu0 0.0
    %5499 = vmatprep.subr.mxu0 0.0
    %5500 = vmatpush2.msra.mxu0 0.0
    %5501 = vmatprep.subr.mxu0 0.0
    %5502 = vmatpush2.msra.mxu0 0.0
    %5503 = vmatprep.subr.mxu0 0.0
    %5504 = vmatpush2.msra.mxu0 0.0
    %5505 = vmatprep.subr.mxu0 0.0
    %5506 = vmatpush2.msra.mxu0 0.0
    %5507 = vmatprep.subr.mxu0 0.0
    %5508 = vmatpush2.msra.mxu0 0.0
    %5509 = vmatprep.subr.mxu0 0.0
    %5510 = vmatpush2.msra.mxu0 0.0
    %5511 = vmatprep.mubr.f32.mxu0 0.0
    %5512 = vmatmul.mubr.f32.gmra.mxu0 %v5445
    %v5513 = vpop.f32.mrf.mxu0
    %v5514 = vadd.f32 0.0, %v5513
    %v5515 = vpop.f32.mrf.mxu0
    %5516 = vdwg.mxu0
    %s5517 = scalar_lea.vmem [#allocation5], 32
    %v5518 = vld [vmem:[%s5517] sm:$0xff]
    %s5519 = scalar_lea.vmem [#allocation5], 40
    %v5520 = vld [vmem:[%s5519] sm:$0xff]
    %v5522 = vsel %vm255, %v5134, 0
    %v5525 = vsel %vm255, %v5210, 0
    %5527 = vmatprep.subr.mxu0 0.0
    %5528 = vmatpush1.msra.mxu0 0.0
    %5529 = vmatprep.subr.mxu0 0.0
    %5530 = vmatpush1.msra.mxu0 0.0
    %5531 = vmatprep.subr.mxu0 0.0
    %5532 = vmatpush1.msra.mxu0 0.0
    %5533 = vmatprep.subr.mxu0 0.0
    %5534 = vmatpush1.msra.mxu0 0.0
    %5535 = vmatprep.subr.mxu0 0.0
    %5536 = vmatpush1.msra.mxu0 0.0
    %5537 = vmatprep.subr.mxu0 0.0
    %5538 = vmatpush1.msra.mxu0 0.0
    %5539 = vmatprep.subr.mxu0 0.0
    %5540 = vmatpush1.msra.mxu0 0.0
    %5541 = vmatprep.subr.mxu0 0.0
    %5542 = vmatpush1.msra.mxu0 0.0
    %5543 = vmatprep.subr.mxu0 0.0
    %5544 = vmatpush1.msra.mxu0 0.0
    %5545 = vmatprep.subr.mxu0 0.0
    %5546 = vmatpush1.msra.mxu0 0.0
    %5547 = vmatprep.subr.mxu0 0.0
    %5548 = vmatpush1.msra.mxu0 0.0
    %5549 = vmatprep.subr.mxu0 0.0
    %5550 = vmatpush1.msra.mxu0 0.0
    %5551 = vmatprep.subr.mxu0 0.0
    %5552 = vmatpush1.msra.mxu0 0.0
    %5553 = vmatprep.subr.mxu0 0.0
    %5554 = vmatpush1.msra.mxu0 0.0
    %5555 = vmatprep.subr.mxu0 0.0
    %5556 = vmatpush1.msra.mxu0 0.0
    %5557 = vmatprep.subr.mxu0 0.0
    %5558 = vmatpush1.msra.mxu0 %v5520
    %5559 = vmatprep.subr.mxu0 0.0
    %5560 = vmatpush2.msra.mxu0 0.0
    %5561 = vmatprep.subr.mxu0 0.0
    %5562 = vmatpush2.msra.mxu0 0.0
    %5563 = vmatprep.subr.mxu0 0.0
    %5564 = vmatpush2.msra.mxu0 0.0
    %5565 = vmatprep.subr.mxu0 0.0
    %5566 = vmatpush2.msra.mxu0 0.0
    %5567 = vmatprep.subr.mxu0 0.0
    %5568 = vmatpush2.msra.mxu0 0.0
    %5569 = vmatprep.subr.mxu0 0.0
    %5570 = vmatpush2.msra.mxu0 0.0
    %5571 = vmatprep.subr.mxu0 0.0
    %5572 = vmatpush2.msra.mxu0 0.0
    %5573 = vmatprep.subr.mxu0 0.0
    %5574 = vmatpush2.msra.mxu0 0.0
    %5575 = vmatprep.subr.mxu0 0.0
    %5576 = vmatpush2.msra.mxu0 0.0
    %5577 = vmatprep.subr.mxu0 0.0
    %5578 = vmatpush2.msra.mxu0 0.0
    %5579 = vmatprep.subr.mxu0 0.0
    %5580 = vmatpush2.msra.mxu0 0.0
    %5581 = vmatprep.subr.mxu0 0.0
    %5582 = vmatpush2.msra.mxu0 0.0
    %5583 = vmatprep.subr.mxu0 0.0
    %5584 = vmatpush2.msra.mxu0 0.0
    %5585 = vmatprep.subr.mxu0 0.0
    %5586 = vmatpush2.msra.mxu0 0.0
    %5587 = vmatprep.subr.mxu0 0.0
    %5588 = vmatpush2.msra.mxu0 0.0
    %5589 = vmatprep.subr.mxu0 0.0
    %5590 = vmatpush2.msra.mxu0 0.0
    %5591 = vmatprep.mubr.f32.mxu0 0.0
    %5592 = vmatmul.mubr.f32.gmra.mxu0 %v5522
    %v5593 = vpop.f32.mrf.mxu0
    %v5594 = vadd.f32 0.0, %v5593
    %v5595 = vpop.f32.mrf.mxu0
    %5596 = vmatprep.mubr.f32.mxu0 0.0
    %5597 = vmatmul.mubr.f32.gmra.mxu0 %v5525
    %v5598 = vpop.f32.mrf.mxu0
    %v5599 = vadd.f32 0.0, %v5598
    %v5600 = vpop.f32.mrf.mxu0
    %5601 = vdwg.mxu0
    %v5603 = vsel %vm255, %v4982, 0
    %v5606 = vsel %vm255, %v5058, 0
    %5608 = vmatprep.subr.mxu0 0.0
    %5609 = vmatpush1.msra.mxu0 0.0
    %5610 = vmatprep.subr.mxu0 0.0
    %5611 = vmatpush1.msra.mxu0 0.0
    %5612 = vmatprep.subr.mxu0 0.0
    %5613 = vmatpush1.msra.mxu0 0.0
    %5614 = vmatprep.subr.mxu0 0.0
    %5615 = vmatpush1.msra.mxu0 0.0
    %5616 = vmatprep.subr.mxu0 0.0
    %5617 = vmatpush1.msra.mxu0 0.0
    %5618 = vmatprep.subr.mxu0 0.0
    %5619 = vmatpush1.msra.mxu0 0.0
    %5620 = vmatprep.subr.mxu0 0.0
    %5621 = vmatpush1.msra.mxu0 0.0
    %5622 = vmatprep.subr.mxu0 0.0
    %5623 = vmatpush1.msra.mxu0 0.0
    %5624 = vmatprep.subr.mxu0 0.0
    %5625 = vmatpush1.msra.mxu0 0.0
    %5626 = vmatprep.subr.mxu0 0.0
    %5627 = vmatpush1.msra.mxu0 0.0
    %5628 = vmatprep.subr.mxu0 0.0
    %5629 = vmatpush1.msra.mxu0 0.0
    %5630 = vmatprep.subr.mxu0 0.0
    %5631 = vmatpush1.msra.mxu0 0.0
    %5632 = vmatprep.subr.mxu0 0.0
    %5633 = vmatpush1.msra.mxu0 0.0
    %5634 = vmatprep.subr.mxu0 0.0
    %5635 = vmatpush1.msra.mxu0 0.0
    %5636 = vmatprep.subr.mxu0 0.0
    %5637 = vmatpush1.msra.mxu0 0.0
    %5638 = vmatprep.subr.mxu0 0.0
    %5639 = vmatpush1.msra.mxu0 %v5518
    %5640 = vmatprep.subr.mxu0 0.0
    %5641 = vmatpush2.msra.mxu0 0.0
    %5642 = vmatprep.subr.mxu0 0.0
    %5643 = vmatpush2.msra.mxu0 0.0
    %5644 = vmatprep.subr.mxu0 0.0
    %5645 = vmatpush2.msra.mxu0 0.0
    %5646 = vmatprep.subr.mxu0 0.0
    %5647 = vmatpush2.msra.mxu0 0.0
    %5648 = vmatprep.subr.mxu0 0.0
    %5649 = vmatpush2.msra.mxu0 0.0
    %5650 = vmatprep.subr.mxu0 0.0
    %5651 = vmatpush2.msra.mxu0 0.0
    %5652 = vmatprep.subr.mxu0 0.0
    %5653 = vmatpush2.msra.mxu0 0.0
    %5654 = vmatprep.subr.mxu0 0.0
    %5655 = vmatpush2.msra.mxu0 0.0
    %5656 = vmatprep.subr.mxu0 0.0
    %5657 = vmatpush2.msra.mxu0 0.0
    %5658 = vmatprep.subr.mxu0 0.0
    %5659 = vmatpush2.msra.mxu0 0.0
    %5660 = vmatprep.subr.mxu0 0.0
    %5661 = vmatpush2.msra.mxu0 0.0
    %5662 = vmatprep.subr.mxu0 0.0
    %5663 = vmatpush2.msra.mxu0 0.0
    %5664 = vmatprep.subr.mxu0 0.0
    %5665 = vmatpush2.msra.mxu0 0.0
    %5666 = vmatprep.subr.mxu0 0.0
    %5667 = vmatpush2.msra.mxu0 0.0
    %5668 = vmatprep.subr.mxu0 0.0
    %5669 = vmatpush2.msra.mxu0 0.0
    %5670 = vmatprep.subr.mxu0 0.0
    %5671 = vmatpush2.msra.mxu0 0.0
    %5672 = vmatprep.mubr.f32.mxu0 0.0
    %5673 = vmatmul.mubr.f32.gmra.mxu0 %v5603
    %v5674 = vpop.f32.mrf.mxu0
    %v5675 = vadd.f32 %v5594, %v5674
    %v5676 = vpop.f32.mrf.mxu0
    %5677 = vmatprep.mubr.f32.mxu0 0.0
    %5678 = vmatmul.mubr.f32.gmra.mxu0 %v5606
    %v5679 = vpop.f32.mrf.mxu0
    %v5680 = vadd.f32 %v5599, %v5679
    %v5681 = vpop.f32.mrf.mxu0
    %5682 = vdwg.mxu0
    %s5683 = scalar_lea.vmem [#allocation5], 48
    %v5684 = vld [vmem:[%s5683] sm:$0xff]
    %v5686 = vsel %vm255, %v5286, 0
    %v5689 = vsel %vm255, %v5362, 0
    %5691 = vmatprep.subr.mxu0 0.0
    %5692 = vmatpush1.msra.mxu0 0.0
    %5693 = vmatprep.subr.mxu0 0.0
    %5694 = vmatpush1.msra.mxu0 0.0
    %5695 = vmatprep.subr.mxu0 0.0
    %5696 = vmatpush1.msra.mxu0 0.0
    %5697 = vmatprep.subr.mxu0 0.0
    %5698 = vmatpush1.msra.mxu0 0.0
    %5699 = vmatprep.subr.mxu0 0.0
    %5700 = vmatpush1.msra.mxu0 0.0
    %5701 = vmatprep.subr.mxu0 0.0
    %5702 = vmatpush1.msra.mxu0 0.0
    %5703 = vmatprep.subr.mxu0 0.0
    %5704 = vmatpush1.msra.mxu0 0.0
    %5705 = vmatprep.subr.mxu0 0.0
    %5706 = vmatpush1.msra.mxu0 0.0
    %5707 = vmatprep.subr.mxu0 0.0
    %5708 = vmatpush1.msra.mxu0 0.0
    %5709 = vmatprep.subr.mxu0 0.0
    %5710 = vmatpush1.msra.mxu0 0.0
    %5711 = vmatprep.subr.mxu0 0.0
    %5712 = vmatpush1.msra.mxu0 0.0
    %5713 = vmatprep.subr.mxu0 0.0
    %5714 = vmatpush1.msra.mxu0 0.0
    %5715 = vmatprep.subr.mxu0 0.0
    %5716 = vmatpush1.msra.mxu0 0.0
    %5717 = vmatprep.subr.mxu0 0.0
    %5718 = vmatpush1.msra.mxu0 0.0
    %5719 = vmatprep.subr.mxu0 0.0
    %5720 = vmatpush1.msra.mxu0 0.0
    %5721 = vmatprep.subr.mxu0 0.0
    %5722 = vmatpush1.msra.mxu0 %v5684
    %5723 = vmatprep.subr.mxu0 0.0
    %5724 = vmatpush2.msra.mxu0 0.0
    %5725 = vmatprep.subr.mxu0 0.0
    %5726 = vmatpush2.msra.mxu0 0.0
    %5727 = vmatprep.subr.mxu0 0.0
    %5728 = vmatpush2.msra.mxu0 0.0
    %5729 = vmatprep.subr.mxu0 0.0
    %5730 = vmatpush2.msra.mxu0 0.0
    %5731 = vmatprep.subr.mxu0 0.0
    %5732 = vmatpush2.msra.mxu0 0.0
    %5733 = vmatprep.subr.mxu0 0.0
    %5734 = vmatpush2.msra.mxu0 0.0
    %5735 = vmatprep.subr.mxu0 0.0
    %5736 = vmatpush2.msra.mxu0 0.0
    %5737 = vmatprep.subr.mxu0 0.0
    %5738 = vmatpush2.msra.mxu0 0.0
    %5739 = vmatprep.subr.mxu0 0.0
    %5740 = vmatpush2.msra.mxu0 0.0
    %5741 = vmatprep.subr.mxu0 0.0
    %5742 = vmatpush2.msra.mxu0 0.0
    %5743 = vmatprep.subr.mxu0 0.0
    %5744 = vmatpush2.msra.mxu0 0.0
    %5745 = vmatprep.subr.mxu0 0.0
    %5746 = vmatpush2.msra.mxu0 0.0
    %5747 = vmatprep.subr.mxu0 0.0
    %5748 = vmatpush2.msra.mxu0 0.0
    %5749 = vmatprep.subr.mxu0 0.0
    %5750 = vmatpush2.msra.mxu0 0.0
    %5751 = vmatprep.subr.mxu0 0.0
    %5752 = vmatpush2.msra.mxu0 0.0
    %5753 = vmatprep.subr.mxu0 0.0
    %5754 = vmatpush2.msra.mxu0 0.0
    %5755 = vmatprep.mubr.f32.mxu0 0.0
    %5756 = vmatmul.mubr.f32.gmra.mxu0 %v5686
    %v5757 = vpop.f32.mrf.mxu0
    %v5758 = vadd.f32 0.0, %v5757
    %v5759 = vpop.f32.mrf.mxu0
    %5760 = vmatprep.mubr.f32.mxu0 0.0
    %5761 = vmatmul.mubr.f32.gmra.mxu0 %v5689
    %v5762 = vpop.f32.mrf.mxu0
    %v5763 = vadd.f32 0.0, %v5762
    %v5764 = vpop.f32.mrf.mxu0
    %5765 = vdwg.mxu0
    %v5766 = vadd.f32 %v5675, %v5758
    %v5767 = vadd.f32 %v5680, %v5763
    %s5768 = scalar_lea.vmem [#allocation5], 56
    %v5769 = vld [vmem:[%s5768] sm:$0xff]
    %v5771 = vsel %vm255, %v5438, 0
    %v5774 = vsel %vm255, %v5514, 0
    %5776 = vmatprep.subr.mxu0 0.0
    %5777 = vmatpush1.msra.mxu0 0.0
    %5778 = vmatprep.subr.mxu0 0.0
    %5779 = vmatpush1.msra.mxu0 0.0
    %5780 = vmatprep.subr.mxu0 0.0
    %5781 = vmatpush1.msra.mxu0 0.0
    %5782 = vmatprep.subr.mxu0 0.0
    %5783 = vmatpush1.msra.mxu0 0.0
    %5784 = vmatprep.subr.mxu0 0.0
    %5785 = vmatpush1.msra.mxu0 0.0
    %5786 = vmatprep.subr.mxu0 0.0
    %5787 = vmatpush1.msra.mxu0 0.0
    %5788 = vmatprep.subr.mxu0 0.0
    %5789 = vmatpush1.msra.mxu0 0.0
    %5790 = vmatprep.subr.mxu0 0.0
    %5791 = vmatpush1.msra.mxu0 0.0
    %5792 = vmatprep.subr.mxu0 0.0
    %5793 = vmatpush1.msra.mxu0 0.0
    %5794 = vmatprep.subr.mxu0 0.0
    %5795 = vmatpush1.msra.mxu0 0.0
    %5796 = vmatprep.subr.mxu0 0.0
    %5797 = vmatpush1.msra.mxu0 0.0
    %5798 = vmatprep.subr.mxu0 0.0
    %5799 = vmatpush1.msra.mxu0 0.0
    %5800 = vmatprep.subr.mxu0 0.0
    %5801 = vmatpush1.msra.mxu0 0.0
    %5802 = vmatprep.subr.mxu0 0.0
    %5803 = vmatpush1.msra.mxu0 0.0
    %5804 = vmatprep.subr.mxu0 0.0
    %5805 = vmatpush1.msra.mxu0 0.0
    %5806 = vmatprep.subr.mxu0 0.0
    %5807 = vmatpush1.msra.mxu0 %v5769
    %5808 = vmatprep.subr.mxu0 0.0
    %5809 = vmatpush2.msra.mxu0 0.0
    %5810 = vmatprep.subr.mxu0 0.0
    %5811 = vmatpush2.msra.mxu0 0.0
    %5812 = vmatprep.subr.mxu0 0.0
    %5813 = vmatpush2.msra.mxu0 0.0
    %5814 = vmatprep.subr.mxu0 0.0
    %5815 = vmatpush2.msra.mxu0 0.0
    %5816 = vmatprep.subr.mxu0 0.0
    %5817 = vmatpush2.msra.mxu0 0.0
    %5818 = vmatprep.subr.mxu0 0.0
    %5819 = vmatpush2.msra.mxu0 0.0
    %5820 = vmatprep.subr.mxu0 0.0
    %5821 = vmatpush2.msra.mxu0 0.0
    %5822 = vmatprep.subr.mxu0 0.0
    %5823 = vmatpush2.msra.mxu0 0.0
    %5824 = vmatprep.subr.mxu0 0.0
    %5825 = vmatpush2.msra.mxu0 0.0
    %5826 = vmatprep.subr.mxu0 0.0
    %5827 = vmatpush2.msra.mxu0 0.0
    %5828 = vmatprep.subr.mxu0 0.0
    %5829 = vmatpush2.msra.mxu0 0.0
    %5830 = vmatprep.subr.mxu0 0.0
    %5831 = vmatpush2.msra.mxu0 0.0
    %5832 = vmatprep.subr.mxu0 0.0
    %5833 = vmatpush2.msra.mxu0 0.0
    %5834 = vmatprep.subr.mxu0 0.0
    %5835 = vmatpush2.msra.mxu0 0.0
    %5836 = vmatprep.subr.mxu0 0.0
    %5837 = vmatpush2.msra.mxu0 0.0
    %5838 = vmatprep.subr.mxu0 0.0
    %5839 = vmatpush2.msra.mxu0 0.0
    %5840 = vmatprep.mubr.f32.mxu0 0.0
    %5841 = vmatmul.mubr.f32.gmra.mxu0 %v5771
    %v5842 = vpop.f32.mrf.mxu0
    %v5843 = vadd.f32 0.0, %v5842
    %v5844 = vpop.f32.mrf.mxu0
    %5845 = vmatprep.mubr.f32.mxu0 0.0
    %5846 = vmatmul.mubr.f32.gmra.mxu0 %v5774
    %v5847 = vpop.f32.mrf.mxu0
    %v5848 = vadd.f32 0.0, %v5847
    %v5849 = vpop.f32.mrf.mxu0
    %5850 = vdwg.mxu0
    %v5851 = vadd.f32 %v5766, %v5843
    %v5852 = vadd.f32 %v5767, %v5848
    %v5853 = vld [vmem:[#allocation7 + $0x1] sm:$0x1]
    %v5854 = vlaneseq
    %v5855 = vshrl.u32 %v5854, 7
    %v5856 = vsub.s32 0, %v5855
    %v5857 = vrot.slane %v5853, %v5856
    %v5858 = vadd.f32 %v5851, %v5857
    %v5859 = vadd.f32 %v5852, %v5857
    %v5860 = vadd.f32 %v4090, %v5858
    %v5861 = vadd.f32 %v4091, %v5859
    %v5862 = vld [vmem:[%s11 + $0x3] sm:$0x1]
    %v5863 = vld [vmem:[%s1919 + $0x3] sm:$0x1]
    %v5864 = vsel %vm157, %v5860, 0.0
    %5865 = vadd.xlane.f32.xlu0 %v5864
    %v5866 = vpop.xlane.xlu0 %5865
    %v5867 = vsel %vm157, %v5861, 0.0
    %5868 = vadd.xlane.f32.xlu0 %v5867
    %v5869 = vpop.xlane.xlu0 %5868
    %v5870 = vmul.f32 %v5866, %v1927
    %v5871 = vmul.f32 %v5869, %v1927
    %v5872 = vsub.f32 %v5860, %v5870
    %v5873 = vsub.f32 %v5861, %v5871
    %v5874 = vmul.f32 %v5872, %v5872
    %v5875 = vmul.f32 %v5873, %v5873
    %v5876 = vsel %vm157, %v5874, 0.0
    %5877 = vadd.xlane.f32.xlu0 %v5876
    %v5878 = vpop.xlane.xlu0 %5877
    %v5879 = vsel %vm157, %v5875, 0.0
    %5880 = vadd.xlane.f32.xlu0 %v5879
    %v5881 = vpop.xlane.xlu0 %5880
    %v5882 = vmul.f32 %v5878, %v1927
    %v5883 = vmul.f32 %v5881, %v1927
    %v5884 = vadd.f32 %v5882, 1e-05
    %v5885 = vadd.f32 %v5883, 1e-05
    %v5886 = vrsqrt.pop %v5884
    %v5887 = vrsqrt.pop %v5885
    %v5888 = vmul.f32 %v5872, %v5886
    %v5889 = vmul.f32 %v5873, %v5887
    %v5890 = vlaneseq
    %v5891 = vshrl.u32 %v5890, 7
    %v5892 = vsub.s32 0, %v5891
    %v5893 = vrot.slane %v5862, %v5892
    %v5894 = vmul.f32 %v5888, %v5893
    %v5895 = vmul.f32 %v5889, %v5893
    %v5896 = vlaneseq
    %v5897 = vshrl.u32 %v5896, 7
    %v5898 = vsub.s32 0, %v5897
    %v5899 = vrot.slane %v5863, %v5898
    %v5900 = vadd.f32 %v5894, %v5899
    %v5901 = vadd.f32 %v5895, %v5899
    %s5902 = scalar_lea.vmem %s3, 96
    %v5903 = vld [vmem:[%s5902] sm:$0xff]
    %v5904 = vld [vmem:[%s5902 + $0x8] sm:$0xff]
    %v5905 = vld [vmem:[%s5902 + $0x10] sm:$0xff]
    %v5906 = vld [vmem:[%s5902 + $0x18] sm:$0xff]
    %v5907 = vld [vmem:[%s1965 + $0x1] sm:$0x1]
    %v5908 = vlaneseq
    %v5909 = vshrl.u32 %v5908, 7
    %v5910 = vsub.s32 0, %v5909
    %v5911 = vrot.slane %v5907, %v5910
    %v5913 = vsel %vm157, %v5900, 0
    %v5916 = vsel %vm157, %v5901, 0
    %5918 = vmatprep.subr.mxu0 0.0
    %5919 = vmatpush1.msra.mxu0 0.0
    %5920 = vmatprep.subr.mxu0 0.0
    %5921 = vmatpush1.msra.mxu0 0.0
    %5922 = vmatprep.subr.mxu0 0.0
    %5923 = vmatpush1.msra.mxu0 0.0
    %5924 = vmatprep.subr.mxu0 0.0
    %5925 = vmatpush1.msra.mxu0 0.0
    %5926 = vmatprep.subr.mxu0 0.0
    %5927 = vmatpush1.msra.mxu0 0.0
    %5928 = vmatprep.subr.mxu0 0.0
    %5929 = vmatpush1.msra.mxu0 0.0
    %5930 = vmatprep.subr.mxu0 0.0
    %5931 = vmatpush1.msra.mxu0 0.0
    %5932 = vmatprep.subr.mxu0 0.0
    %5933 = vmatpush1.msra.mxu0 0.0
    %5934 = vmatprep.subr.mxu0 0.0
    %5935 = vmatpush1.msra.mxu0 0.0
    %5936 = vmatprep.subr.mxu0 0.0
    %5937 = vmatpush1.msra.mxu0 0.0
    %5938 = vmatprep.subr.mxu0 0.0
    %5939 = vmatpush1.msra.mxu0 0.0
    %5940 = vmatprep.subr.mxu0 0.0
    %5941 = vmatpush1.msra.mxu0 0.0
    %5942 = vmatprep.subr.mxu0 0.0
    %5943 = vmatpush1.msra.mxu0 %v5906
    %5944 = vmatprep.subr.mxu0 0.0
    %5945 = vmatpush1.msra.mxu0 %v5905
    %5946 = vmatprep.subr.mxu0 0.0
    %5947 = vmatpush1.msra.mxu0 %v5904
    %5948 = vmatprep.subr.mxu0 0.0
    %5949 = vmatpush1.msra.mxu0 %v5903
    %5950 = vmatprep.subr.mxu0 0.0
    %5951 = vmatpush2.msra.mxu0 0.0
    %5952 = vmatprep.subr.mxu0 0.0
    %5953 = vmatpush2.msra.mxu0 0.0
    %5954 = vmatprep.subr.mxu0 0.0
    %5955 = vmatpush2.msra.mxu0 0.0
    %5956 = vmatprep.subr.mxu0 0.0
    %5957 = vmatpush2.msra.mxu0 0.0
    %5958 = vmatprep.subr.mxu0 0.0
    %5959 = vmatpush2.msra.mxu0 0.0
    %5960 = vmatprep.subr.mxu0 0.0
    %5961 = vmatpush2.msra.mxu0 0.0
    %5962 = vmatprep.subr.mxu0 0.0
    %5963 = vmatpush2.msra.mxu0 0.0
    %5964 = vmatprep.subr.mxu0 0.0
    %5965 = vmatpush2.msra.mxu0 0.0
    %5966 = vmatprep.subr.mxu0 0.0
    %5967 = vmatpush2.msra.mxu0 0.0
    %5968 = vmatprep.subr.mxu0 0.0
    %5969 = vmatpush2.msra.mxu0 0.0
    %5970 = vmatprep.subr.mxu0 0.0
    %5971 = vmatpush2.msra.mxu0 0.0
    %5972 = vmatprep.subr.mxu0 0.0
    %5973 = vmatpush2.msra.mxu0 0.0
    %5974 = vmatprep.subr.mxu0 0.0
    %5975 = vmatpush2.msra.mxu0 0.0
    %5976 = vmatprep.subr.mxu0 0.0
    %5977 = vmatpush2.msra.mxu0 0.0
    %5978 = vmatprep.subr.mxu0 0.0
    %5979 = vmatpush2.msra.mxu0 0.0
    %5980 = vmatprep.subr.mxu0 0.0
    %5981 = vmatpush2.msra.mxu0 0.0
    %5982 = vmatprep.mubr.f32.mxu0 0.0
    %5983 = vmatmul.mubr.f32.gmra.mxu0 %v5913
    %v5984 = vpop.f32.mrf.mxu0
    %v5985 = vadd.f32 %v5911, %v5984
    %v5986 = vpop.f32.mrf.mxu0
    %5987 = vmatprep.mubr.f32.mxu0 0.0
    %5988 = vmatmul.mubr.f32.gmra.mxu0 %v5916
    %v5989 = vpop.f32.mrf.mxu0
    %v5990 = vadd.f32 %v5911, %v5989
    %v5991 = vpop.f32.mrf.mxu0
    %5992 = vdwg.mxu0
    %5997 = vrot.lane.b32.xlu0 %v5903, 96
    %v5998 = vpop.permute.xlu0 %5997
    %5999 = vrot.lane.b32.xlu0 %v5904, 96
    %v6000 = vpop.permute.xlu0 %5999
    %6001 = vrot.lane.b32.xlu0 %v5905, 96
    %v6002 = vpop.permute.xlu0 %6001
    %6003 = vrot.lane.b32.xlu0 %v5906, 96
    %v6004 = vpop.permute.xlu0 %6003
    %6010 = vrot.lane.b32.xlu0 %v5911, 96
    %v6011 = vpop.permute.xlu0 %6010
    %6013 = vmatprep.subr.mxu0 0.0
    %6014 = vmatpush1.msra.mxu0 0.0
    %6015 = vmatprep.subr.mxu0 0.0
    %6016 = vmatpush1.msra.mxu0 0.0
    %6017 = vmatprep.subr.mxu0 0.0
    %6018 = vmatpush1.msra.mxu0 0.0
    %6019 = vmatprep.subr.mxu0 0.0
    %6020 = vmatpush1.msra.mxu0 0.0
    %6021 = vmatprep.subr.mxu0 0.0
    %6022 = vmatpush1.msra.mxu0 0.0
    %6023 = vmatprep.subr.mxu0 0.0
    %6024 = vmatpush1.msra.mxu0 0.0
    %6025 = vmatprep.subr.mxu0 0.0
    %6026 = vmatpush1.msra.mxu0 0.0
    %6027 = vmatprep.subr.mxu0 0.0
    %6028 = vmatpush1.msra.mxu0 0.0
    %6029 = vmatprep.subr.mxu0 0.0
    %6030 = vmatpush1.msra.mxu0 0.0
    %6031 = vmatprep.subr.mxu0 0.0
    %6032 = vmatpush1.msra.mxu0 0.0
    %6033 = vmatprep.subr.mxu0 0.0
    %6034 = vmatpush1.msra.mxu0 0.0
    %6035 = vmatprep.subr.mxu0 0.0
    %6036 = vmatpush1.msra.mxu0 0.0
    %6037 = vmatprep.subr.mxu0 0.0
    %6038 = vmatpush1.msra.mxu0 %v6004
    %6039 = vmatprep.subr.mxu0 0.0
    %6040 = vmatpush1.msra.mxu0 %v6002
    %6041 = vmatprep.subr.mxu0 0.0
    %6042 = vmatpush1.msra.mxu0 %v6000
    %6043 = vmatprep.subr.mxu0 0.0
    %6044 = vmatpush1.msra.mxu0 %v5998
    %6045 = vmatprep.subr.mxu0 0.0
    %6046 = vmatpush2.msra.mxu0 0.0
    %6047 = vmatprep.subr.mxu0 0.0
    %6048 = vmatpush2.msra.mxu0 0.0
    %6049 = vmatprep.subr.mxu0 0.0
    %6050 = vmatpush2.msra.mxu0 0.0
    %6051 = vmatprep.subr.mxu0 0.0
    %6052 = vmatpush2.msra.mxu0 0.0
    %6053 = vmatprep.subr.mxu0 0.0
    %6054 = vmatpush2.msra.mxu0 0.0
    %6055 = vmatprep.subr.mxu0 0.0
    %6056 = vmatpush2.msra.mxu0 0.0
    %6057 = vmatprep.subr.mxu0 0.0
    %6058 = vmatpush2.msra.mxu0 0.0
    %6059 = vmatprep.subr.mxu0 0.0
    %6060 = vmatpush2.msra.mxu0 0.0
    %6061 = vmatprep.subr.mxu0 0.0
    %6062 = vmatpush2.msra.mxu0 0.0
    %6063 = vmatprep.subr.mxu0 0.0
    %6064 = vmatpush2.msra.mxu0 0.0
    %6065 = vmatprep.subr.mxu0 0.0
    %6066 = vmatpush2.msra.mxu0 0.0
    %6067 = vmatprep.subr.mxu0 0.0
    %6068 = vmatpush2.msra.mxu0 0.0
    %6069 = vmatprep.subr.mxu0 0.0
    %6070 = vmatpush2.msra.mxu0 0.0
    %6071 = vmatprep.subr.mxu0 0.0
    %6072 = vmatpush2.msra.mxu0 0.0
    %6073 = vmatprep.subr.mxu0 0.0
    %6074 = vmatpush2.msra.mxu0 0.0
    %6075 = vmatprep.subr.mxu0 0.0
    %6076 = vmatpush2.msra.mxu0 0.0
    %6077 = vmatprep.mubr.f32.mxu0 0.0
    %6078 = vmatmul.mubr.f32.gmra.mxu0 %v2073
    %v6079 = vpop.f32.mrf.mxu0
    %v6080 = vadd.f32 %v6011, %v6079
    %v6081 = vpop.f32.mrf.mxu0
    %6082 = vmatprep.mubr.f32.mxu0 0.0
    %6083 = vmatmul.mubr.f32.gmra.mxu0 %v2076
    %v6084 = vpop.f32.mrf.mxu0
    %v6085 = vadd.f32 %v6011, %v6084
    %v6086 = vpop.f32.mrf.mxu0
    %6087 = vdwg.mxu0
    %6090 = vrot.lane.b32.xlu0 %v5985, 120
    %v6091 = vpop.permute.xlu0 %6090
    %6092 = vrot.lane.b32.xlu0 %v5990, 120
    %v6093 = vpop.permute.xlu0 %6092
    %6094 = vrot.lane.b32.xlu0 %v5985, 112
    %v6095 = vpop.permute.xlu0 %6094
    %6096 = vrot.lane.b32.xlu0 %v5990, 112
    %v6097 = vpop.permute.xlu0 %6096
    %6098 = vrot.lane.b32.xlu0 %v5985, 104
    %v6099 = vpop.permute.xlu0 %6098
    %6100 = vrot.lane.b32.xlu0 %v5990, 104
    %v6101 = vpop.permute.xlu0 %6100
    %6104 = vrot.lane.b32.xlu0 %v6080, 120
    %v6105 = vpop.permute.xlu0 %6104
    %6106 = vrot.lane.b32.xlu0 %v6085, 120
    %v6107 = vpop.permute.xlu0 %6106
    %6108 = vrot.lane.b32.xlu0 %v6080, 112
    %v6109 = vpop.permute.xlu0 %6108
    %6110 = vrot.lane.b32.xlu0 %v6085, 112
    %v6111 = vpop.permute.xlu0 %6110
    %6112 = vrot.lane.b32.xlu0 %v6080, 104
    %v6113 = vpop.permute.xlu0 %6112
    %6114 = vrot.lane.b32.xlu0 %v6085, 104
    %v6115 = vpop.permute.xlu0 %6114
    %v6116 = vsel %vm255, %v5985, 0
    %v6118 = vsel %vm255, %v6080, 0
    %6120 = vmatprep.subr.mxu0 0.0
    %6121 = vmatpush1.xpose.msra.mxu0 0.0
    %6122 = vmatprep.subr.mxu0 0.0
    %6123 = vmatpush1.xpose.msra.mxu0 0.0
    %6124 = vmatprep.subr.mxu0 0.0
    %6125 = vmatpush1.xpose.msra.mxu0 0.0
    %6126 = vmatprep.subr.mxu0 0.0
    %6127 = vmatpush1.xpose.msra.mxu0 0.0
    %6128 = vmatprep.subr.mxu0 0.0
    %6129 = vmatpush1.xpose.msra.mxu0 0.0
    %6130 = vmatprep.subr.mxu0 0.0
    %6131 = vmatpush1.xpose.msra.mxu0 0.0
    %6132 = vmatprep.subr.mxu0 0.0
    %6133 = vmatpush1.xpose.msra.mxu0 0.0
    %6134 = vmatprep.subr.mxu0 0.0
    %6135 = vmatpush1.xpose.msra.mxu0 0.0
    %6136 = vmatprep.subr.mxu0 0.0
    %6137 = vmatpush1.xpose.msra.mxu0 0.0
    %6138 = vmatprep.subr.mxu0 0.0
    %6139 = vmatpush1.xpose.msra.mxu0 0.0
    %6140 = vmatprep.subr.mxu0 0.0
    %6141 = vmatpush1.xpose.msra.mxu0 0.0
    %6142 = vmatprep.subr.mxu0 0.0
    %6143 = vmatpush1.xpose.msra.mxu0 0.0
    %6144 = vmatprep.subr.mxu0 0.0
    %6145 = vmatpush1.xpose.msra.mxu0 0.0
    %6146 = vmatprep.subr.mxu0 0.0
    %6147 = vmatpush1.xpose.msra.mxu0 0.0
    %6148 = vmatprep.subr.mxu0 0.0
    %6149 = vmatpush1.xpose.msra.mxu0 0.0
    %6150 = vmatprep.subr.mxu0 0.0
    %6151 = vmatpush1.xpose.msra.mxu0 %v6118
    %6152 = vmatprep.subr.mxu0 0.0
    %6153 = vmatpush2.xpose.msra.mxu0 0.0
    %6154 = vmatprep.subr.mxu0 0.0
    %6155 = vmatpush2.xpose.msra.mxu0 0.0
    %6156 = vmatprep.subr.mxu0 0.0
    %6157 = vmatpush2.xpose.msra.mxu0 0.0
    %6158 = vmatprep.subr.mxu0 0.0
    %6159 = vmatpush2.xpose.msra.mxu0 0.0
    %6160 = vmatprep.subr.mxu0 0.0
    %6161 = vmatpush2.xpose.msra.mxu0 0.0
    %6162 = vmatprep.subr.mxu0 0.0
    %6163 = vmatpush2.xpose.msra.mxu0 0.0
    %6164 = vmatprep.subr.mxu0 0.0
    %6165 = vmatpush2.xpose.msra.mxu0 0.0
    %6166 = vmatprep.subr.mxu0 0.0
    %6167 = vmatpush2.xpose.msra.mxu0 0.0
    %6168 = vmatprep.subr.mxu0 0.0
    %6169 = vmatpush2.xpose.msra.mxu0 0.0
    %6170 = vmatprep.subr.mxu0 0.0
    %6171 = vmatpush2.xpose.msra.mxu0 0.0
    %6172 = vmatprep.subr.mxu0 0.0
    %6173 = vmatpush2.xpose.msra.mxu0 0.0
    %6174 = vmatprep.subr.mxu0 0.0
    %6175 = vmatpush2.xpose.msra.mxu0 0.0
    %6176 = vmatprep.subr.mxu0 0.0
    %6177 = vmatpush2.xpose.msra.mxu0 0.0
    %6178 = vmatprep.subr.mxu0 0.0
    %6179 = vmatpush2.xpose.msra.mxu0 0.0
    %6180 = vmatprep.subr.mxu0 0.0
    %6181 = vmatpush2.xpose.msra.mxu0 0.0
    %6182 = vmatprep.subr.mxu0 0.0
    %6183 = vmatpush2.xpose.msra.mxu0 0.0
    %6184 = vmatprep.mubr.f32.mxu0 0.0
    %6185 = vmatmul.mubr.f32.gmra.mxu0 %v6116
    %v6186 = vpop.f32.mrf.mxu0
    %v6187 = vadd.f32 0.0, %v6186
    %v6188 = vpop.f32.mrf.mxu0
    %6189 = vdwg.mxu0
    %v6190 = vsel %vm255, %v5990, 0
    %v6192 = vsel %vm255, %v6085, 0
    %6194 = vmatprep.subr.mxu0 0.0
    %6195 = vmatpush1.xpose.msra.mxu0 0.0
    %6196 = vmatprep.subr.mxu0 0.0
    %6197 = vmatpush1.xpose.msra.mxu0 0.0
    %6198 = vmatprep.subr.mxu0 0.0
    %6199 = vmatpush1.xpose.msra.mxu0 0.0
    %6200 = vmatprep.subr.mxu0 0.0
    %6201 = vmatpush1.xpose.msra.mxu0 0.0
    %6202 = vmatprep.subr.mxu0 0.0
    %6203 = vmatpush1.xpose.msra.mxu0 0.0
    %6204 = vmatprep.subr.mxu0 0.0
    %6205 = vmatpush1.xpose.msra.mxu0 0.0
    %6206 = vmatprep.subr.mxu0 0.0
    %6207 = vmatpush1.xpose.msra.mxu0 0.0
    %6208 = vmatprep.subr.mxu0 0.0
    %6209 = vmatpush1.xpose.msra.mxu0 0.0
    %6210 = vmatprep.subr.mxu0 0.0
    %6211 = vmatpush1.xpose.msra.mxu0 0.0
    %6212 = vmatprep.subr.mxu0 0.0
    %6213 = vmatpush1.xpose.msra.mxu0 0.0
    %6214 = vmatprep.subr.mxu0 0.0
    %6215 = vmatpush1.xpose.msra.mxu0 0.0
    %6216 = vmatprep.subr.mxu0 0.0
    %6217 = vmatpush1.xpose.msra.mxu0 0.0
    %6218 = vmatprep.subr.mxu0 0.0
    %6219 = vmatpush1.xpose.msra.mxu0 0.0
    %6220 = vmatprep.subr.mxu0 0.0
    %6221 = vmatpush1.xpose.msra.mxu0 0.0
    %6222 = vmatprep.subr.mxu0 0.0
    %6223 = vmatpush1.xpose.msra.mxu0 0.0
    %6224 = vmatprep.subr.mxu0 0.0
    %6225 = vmatpush1.xpose.msra.mxu0 %v6192
    %6226 = vmatprep.subr.mxu0 0.0
    %6227 = vmatpush2.xpose.msra.mxu0 0.0
    %6228 = vmatprep.subr.mxu0 0.0
    %6229 = vmatpush2.xpose.msra.mxu0 0.0
    %6230 = vmatprep.subr.mxu0 0.0
    %6231 = vmatpush2.xpose.msra.mxu0 0.0
    %6232 = vmatprep.subr.mxu0 0.0
    %6233 = vmatpush2.xpose.msra.mxu0 0.0
    %6234 = vmatprep.subr.mxu0 0.0
    %6235 = vmatpush2.xpose.msra.mxu0 0.0
    %6236 = vmatprep.subr.mxu0 0.0
    %6237 = vmatpush2.xpose.msra.mxu0 0.0
    %6238 = vmatprep.subr.mxu0 0.0
    %6239 = vmatpush2.xpose.msra.mxu0 0.0
    %6240 = vmatprep.subr.mxu0 0.0
    %6241 = vmatpush2.xpose.msra.mxu0 0.0
    %6242 = vmatprep.subr.mxu0 0.0
    %6243 = vmatpush2.xpose.msra.mxu0 0.0
    %6244 = vmatprep.subr.mxu0 0.0
    %6245 = vmatpush2.xpose.msra.mxu0 0.0
    %6246 = vmatprep.subr.mxu0 0.0
    %6247 = vmatpush2.xpose.msra.mxu0 0.0
    %6248 = vmatprep.subr.mxu0 0.0
    %6249 = vmatpush2.xpose.msra.mxu0 0.0
    %6250 = vmatprep.subr.mxu0 0.0
    %6251 = vmatpush2.xpose.msra.mxu0 0.0
    %6252 = vmatprep.subr.mxu0 0.0
    %6253 = vmatpush2.xpose.msra.mxu0 0.0
    %6254 = vmatprep.subr.mxu0 0.0
    %6255 = vmatpush2.xpose.msra.mxu0 0.0
    %6256 = vmatprep.subr.mxu0 0.0
    %6257 = vmatpush2.xpose.msra.mxu0 0.0
    %6258 = vmatprep.mubr.f32.mxu0 0.0
    %6259 = vmatmul.mubr.f32.gmra.mxu0 %v6190
    %v6260 = vpop.f32.mrf.mxu0
    %v6261 = vadd.f32 0.0, %v6260
    %v6262 = vpop.f32.mrf.mxu0
    %6263 = vdwg.mxu0
    %v6264 = vsel %vm255, %v6091, 0
    %v6266 = vsel %vm255, %v6105, 0
    %6268 = vmatprep.subr.mxu0 0.0
    %6269 = vmatpush1.xpose.msra.mxu0 0.0
    %6270 = vmatprep.subr.mxu0 0.0
    %6271 = vmatpush1.xpose.msra.mxu0 0.0
    %6272 = vmatprep.subr.mxu0 0.0
    %6273 = vmatpush1.xpose.msra.mxu0 0.0
    %6274 = vmatprep.subr.mxu0 0.0
    %6275 = vmatpush1.xpose.msra.mxu0 0.0
    %6276 = vmatprep.subr.mxu0 0.0
    %6277 = vmatpush1.xpose.msra.mxu0 0.0
    %6278 = vmatprep.subr.mxu0 0.0
    %6279 = vmatpush1.xpose.msra.mxu0 0.0
    %6280 = vmatprep.subr.mxu0 0.0
    %6281 = vmatpush1.xpose.msra.mxu0 0.0
    %6282 = vmatprep.subr.mxu0 0.0
    %6283 = vmatpush1.xpose.msra.mxu0 0.0
    %6284 = vmatprep.subr.mxu0 0.0
    %6285 = vmatpush1.xpose.msra.mxu0 0.0
    %6286 = vmatprep.subr.mxu0 0.0
    %6287 = vmatpush1.xpose.msra.mxu0 0.0
    %6288 = vmatprep.subr.mxu0 0.0
    %6289 = vmatpush1.xpose.msra.mxu0 0.0
    %6290 = vmatprep.subr.mxu0 0.0
    %6291 = vmatpush1.xpose.msra.mxu0 0.0
    %6292 = vmatprep.subr.mxu0 0.0
    %6293 = vmatpush1.xpose.msra.mxu0 0.0
    %6294 = vmatprep.subr.mxu0 0.0
    %6295 = vmatpush1.xpose.msra.mxu0 0.0
    %6296 = vmatprep.subr.mxu0 0.0
    %6297 = vmatpush1.xpose.msra.mxu0 0.0
    %6298 = vmatprep.subr.mxu0 0.0
    %6299 = vmatpush1.xpose.msra.mxu0 %v6266
    %6300 = vmatprep.subr.mxu0 0.0
    %6301 = vmatpush2.xpose.msra.mxu0 0.0
    %6302 = vmatprep.subr.mxu0 0.0
    %6303 = vmatpush2.xpose.msra.mxu0 0.0
    %6304 = vmatprep.subr.mxu0 0.0
    %6305 = vmatpush2.xpose.msra.mxu0 0.0
    %6306 = vmatprep.subr.mxu0 0.0
    %6307 = vmatpush2.xpose.msra.mxu0 0.0
    %6308 = vmatprep.subr.mxu0 0.0
    %6309 = vmatpush2.xpose.msra.mxu0 0.0
    %6310 = vmatprep.subr.mxu0 0.0
    %6311 = vmatpush2.xpose.msra.mxu0 0.0
    %6312 = vmatprep.subr.mxu0 0.0
    %6313 = vmatpush2.xpose.msra.mxu0 0.0
    %6314 = vmatprep.subr.mxu0 0.0
    %6315 = vmatpush2.xpose.msra.mxu0 0.0
    %6316 = vmatprep.subr.mxu0 0.0
    %6317 = vmatpush2.xpose.msra.mxu0 0.0
    %6318 = vmatprep.subr.mxu0 0.0
    %6319 = vmatpush2.xpose.msra.mxu0 0.0
    %6320 = vmatprep.subr.mxu0 0.0
    %6321 = vmatpush2.xpose.msra.mxu0 0.0
    %6322 = vmatprep.subr.mxu0 0.0
    %6323 = vmatpush2.xpose.msra.mxu0 0.0
    %6324 = vmatprep.subr.mxu0 0.0
    %6325 = vmatpush2.xpose.msra.mxu0 0.0
    %6326 = vmatprep.subr.mxu0 0.0
    %6327 = vmatpush2.xpose.msra.mxu0 0.0
    %6328 = vmatprep.subr.mxu0 0.0
    %6329 = vmatpush2.xpose.msra.mxu0 0.0
    %6330 = vmatprep.subr.mxu0 0.0
    %6331 = vmatpush2.xpose.msra.mxu0 0.0
    %6332 = vmatprep.mubr.f32.mxu0 0.0
    %6333 = vmatmul.mubr.f32.gmra.mxu0 %v6264
    %v6334 = vpop.f32.mrf.mxu0
    %v6335 = vadd.f32 0.0, %v6334
    %v6336 = vpop.f32.mrf.mxu0
    %6337 = vdwg.mxu0
    %v6338 = vsel %vm255, %v6093, 0
    %v6340 = vsel %vm255, %v6107, 0
    %6342 = vmatprep.subr.mxu0 0.0
    %6343 = vmatpush1.xpose.msra.mxu0 0.0
    %6344 = vmatprep.subr.mxu0 0.0
    %6345 = vmatpush1.xpose.msra.mxu0 0.0
    %6346 = vmatprep.subr.mxu0 0.0
    %6347 = vmatpush1.xpose.msra.mxu0 0.0
    %6348 = vmatprep.subr.mxu0 0.0
    %6349 = vmatpush1.xpose.msra.mxu0 0.0
    %6350 = vmatprep.subr.mxu0 0.0
    %6351 = vmatpush1.xpose.msra.mxu0 0.0
    %6352 = vmatprep.subr.mxu0 0.0
    %6353 = vmatpush1.xpose.msra.mxu0 0.0
    %6354 = vmatprep.subr.mxu0 0.0
    %6355 = vmatpush1.xpose.msra.mxu0 0.0
    %6356 = vmatprep.subr.mxu0 0.0
    %6357 = vmatpush1.xpose.msra.mxu0 0.0
    %6358 = vmatprep.subr.mxu0 0.0
    %6359 = vmatpush1.xpose.msra.mxu0 0.0
    %6360 = vmatprep.subr.mxu0 0.0
    %6361 = vmatpush1.xpose.msra.mxu0 0.0
    %6362 = vmatprep.subr.mxu0 0.0
    %6363 = vmatpush1.xpose.msra.mxu0 0.0
    %6364 = vmatprep.subr.mxu0 0.0
    %6365 = vmatpush1.xpose.msra.mxu0 0.0
    %6366 = vmatprep.subr.mxu0 0.0
    %6367 = vmatpush1.xpose.msra.mxu0 0.0
    %6368 = vmatprep.subr.mxu0 0.0
    %6369 = vmatpush1.xpose.msra.mxu0 0.0
    %6370 = vmatprep.subr.mxu0 0.0
    %6371 = vmatpush1.xpose.msra.mxu0 0.0
    %6372 = vmatprep.subr.mxu0 0.0
    %6373 = vmatpush1.xpose.msra.mxu0 %v6340
    %6374 = vmatprep.subr.mxu0 0.0
    %6375 = vmatpush2.xpose.msra.mxu0 0.0
    %6376 = vmatprep.subr.mxu0 0.0
    %6377 = vmatpush2.xpose.msra.mxu0 0.0
    %6378 = vmatprep.subr.mxu0 0.0
    %6379 = vmatpush2.xpose.msra.mxu0 0.0
    %6380 = vmatprep.subr.mxu0 0.0
    %6381 = vmatpush2.xpose.msra.mxu0 0.0
    %6382 = vmatprep.subr.mxu0 0.0
    %6383 = vmatpush2.xpose.msra.mxu0 0.0
    %6384 = vmatprep.subr.mxu0 0.0
    %6385 = vmatpush2.xpose.msra.mxu0 0.0
    %6386 = vmatprep.subr.mxu0 0.0
    %6387 = vmatpush2.xpose.msra.mxu0 0.0
    %6388 = vmatprep.subr.mxu0 0.0
    %6389 = vmatpush2.xpose.msra.mxu0 0.0
    %6390 = vmatprep.subr.mxu0 0.0
    %6391 = vmatpush2.xpose.msra.mxu0 0.0
    %6392 = vmatprep.subr.mxu0 0.0
    %6393 = vmatpush2.xpose.msra.mxu0 0.0
    %6394 = vmatprep.subr.mxu0 0.0
    %6395 = vmatpush2.xpose.msra.mxu0 0.0
    %6396 = vmatprep.subr.mxu0 0.0
    %6397 = vmatpush2.xpose.msra.mxu0 0.0
    %6398 = vmatprep.subr.mxu0 0.0
    %6399 = vmatpush2.xpose.msra.mxu0 0.0
    %6400 = vmatprep.subr.mxu0 0.0
    %6401 = vmatpush2.xpose.msra.mxu0 0.0
    %6402 = vmatprep.subr.mxu0 0.0
    %6403 = vmatpush2.xpose.msra.mxu0 0.0
    %6404 = vmatprep.subr.mxu0 0.0
    %6405 = vmatpush2.xpose.msra.mxu0 0.0
    %6406 = vmatprep.mubr.f32.mxu0 0.0
    %6407 = vmatmul.mubr.f32.gmra.mxu0 %v6338
    %v6408 = vpop.f32.mrf.mxu0
    %v6409 = vadd.f32 0.0, %v6408
    %v6410 = vpop.f32.mrf.mxu0
    %6411 = vdwg.mxu0
    %v6412 = vsel %vm255, %v6095, 0
    %v6414 = vsel %vm255, %v6109, 0
    %6416 = vmatprep.subr.mxu0 0.0
    %6417 = vmatpush1.xpose.msra.mxu0 0.0
    %6418 = vmatprep.subr.mxu0 0.0
    %6419 = vmatpush1.xpose.msra.mxu0 0.0
    %6420 = vmatprep.subr.mxu0 0.0
    %6421 = vmatpush1.xpose.msra.mxu0 0.0
    %6422 = vmatprep.subr.mxu0 0.0
    %6423 = vmatpush1.xpose.msra.mxu0 0.0
    %6424 = vmatprep.subr.mxu0 0.0
    %6425 = vmatpush1.xpose.msra.mxu0 0.0
    %6426 = vmatprep.subr.mxu0 0.0
    %6427 = vmatpush1.xpose.msra.mxu0 0.0
    %6428 = vmatprep.subr.mxu0 0.0
    %6429 = vmatpush1.xpose.msra.mxu0 0.0
    %6430 = vmatprep.subr.mxu0 0.0
    %6431 = vmatpush1.xpose.msra.mxu0 0.0
    %6432 = vmatprep.subr.mxu0 0.0
    %6433 = vmatpush1.xpose.msra.mxu0 0.0
    %6434 = vmatprep.subr.mxu0 0.0
    %6435 = vmatpush1.xpose.msra.mxu0 0.0
    %6436 = vmatprep.subr.mxu0 0.0
    %6437 = vmatpush1.xpose.msra.mxu0 0.0
    %6438 = vmatprep.subr.mxu0 0.0
    %6439 = vmatpush1.xpose.msra.mxu0 0.0
    %6440 = vmatprep.subr.mxu0 0.0
    %6441 = vmatpush1.xpose.msra.mxu0 0.0
    %6442 = vmatprep.subr.mxu0 0.0
    %6443 = vmatpush1.xpose.msra.mxu0 0.0
    %6444 = vmatprep.subr.mxu0 0.0
    %6445 = vmatpush1.xpose.msra.mxu0 0.0
    %6446 = vmatprep.subr.mxu0 0.0
    %6447 = vmatpush1.xpose.msra.mxu0 %v6414
    %6448 = vmatprep.subr.mxu0 0.0
    %6449 = vmatpush2.xpose.msra.mxu0 0.0
    %6450 = vmatprep.subr.mxu0 0.0
    %6451 = vmatpush2.xpose.msra.mxu0 0.0
    %6452 = vmatprep.subr.mxu0 0.0
    %6453 = vmatpush2.xpose.msra.mxu0 0.0
    %6454 = vmatprep.subr.mxu0 0.0
    %6455 = vmatpush2.xpose.msra.mxu0 0.0
    %6456 = vmatprep.subr.mxu0 0.0
    %6457 = vmatpush2.xpose.msra.mxu0 0.0
    %6458 = vmatprep.subr.mxu0 0.0
    %6459 = vmatpush2.xpose.msra.mxu0 0.0
    %6460 = vmatprep.subr.mxu0 0.0
    %6461 = vmatpush2.xpose.msra.mxu0 0.0
    %6462 = vmatprep.subr.mxu0 0.0
    %6463 = vmatpush2.xpose.msra.mxu0 0.0
    %6464 = vmatprep.subr.mxu0 0.0
    %6465 = vmatpush2.xpose.msra.mxu0 0.0
    %6466 = vmatprep.subr.mxu0 0.0
    %6467 = vmatpush2.xpose.msra.mxu0 0.0
    %6468 = vmatprep.subr.mxu0 0.0
    %6469 = vmatpush2.xpose.msra.mxu0 0.0
    %6470 = vmatprep.subr.mxu0 0.0
    %6471 = vmatpush2.xpose.msra.mxu0 0.0
    %6472 = vmatprep.subr.mxu0 0.0
    %6473 = vmatpush2.xpose.msra.mxu0 0.0
    %6474 = vmatprep.subr.mxu0 0.0
    %6475 = vmatpush2.xpose.msra.mxu0 0.0
    %6476 = vmatprep.subr.mxu0 0.0
    %6477 = vmatpush2.xpose.msra.mxu0 0.0
    %6478 = vmatprep.subr.mxu0 0.0
    %6479 = vmatpush2.xpose.msra.mxu0 0.0
    %6480 = vmatprep.mubr.f32.mxu0 0.0
    %6481 = vmatmul.mubr.f32.gmra.mxu0 %v6412
    %v6482 = vpop.f32.mrf.mxu0
    %v6483 = vadd.f32 0.0, %v6482
    %v6484 = vpop.f32.mrf.mxu0
    %6485 = vdwg.mxu0
    %v6486 = vsel %vm255, %v6097, 0
    %v6488 = vsel %vm255, %v6111, 0
    %6490 = vmatprep.subr.mxu0 0.0
    %6491 = vmatpush1.xpose.msra.mxu0 0.0
    %6492 = vmatprep.subr.mxu0 0.0
    %6493 = vmatpush1.xpose.msra.mxu0 0.0
    %6494 = vmatprep.subr.mxu0 0.0
    %6495 = vmatpush1.xpose.msra.mxu0 0.0
    %6496 = vmatprep.subr.mxu0 0.0
    %6497 = vmatpush1.xpose.msra.mxu0 0.0
    %6498 = vmatprep.subr.mxu0 0.0
    %6499 = vmatpush1.xpose.msra.mxu0 0.0
    %6500 = vmatprep.subr.mxu0 0.0
    %6501 = vmatpush1.xpose.msra.mxu0 0.0
    %6502 = vmatprep.subr.mxu0 0.0
    %6503 = vmatpush1.xpose.msra.mxu0 0.0
    %6504 = vmatprep.subr.mxu0 0.0
    %6505 = vmatpush1.xpose.msra.mxu0 0.0
    %6506 = vmatprep.subr.mxu0 0.0
    %6507 = vmatpush1.xpose.msra.mxu0 0.0
    %6508 = vmatprep.subr.mxu0 0.0
    %6509 = vmatpush1.xpose.msra.mxu0 0.0
    %6510 = vmatprep.subr.mxu0 0.0
    %6511 = vmatpush1.xpose.msra.mxu0 0.0
    %6512 = vmatprep.subr.mxu0 0.0
    %6513 = vmatpush1.xpose.msra.mxu0 0.0
    %6514 = vmatprep.subr.mxu0 0.0
    %6515 = vmatpush1.xpose.msra.mxu0 0.0
    %6516 = vmatprep.subr.mxu0 0.0
    %6517 = vmatpush1.xpose.msra.mxu0 0.0
    %6518 = vmatprep.subr.mxu0 0.0
    %6519 = vmatpush1.xpose.msra.mxu0 0.0
    %6520 = vmatprep.subr.mxu0 0.0
    %6521 = vmatpush1.xpose.msra.mxu0 %v6488
    %6522 = vmatprep.subr.mxu0 0.0
    %6523 = vmatpush2.xpose.msra.mxu0 0.0
    %6524 = vmatprep.subr.mxu0 0.0
    %6525 = vmatpush2.xpose.msra.mxu0 0.0
    %6526 = vmatprep.subr.mxu0 0.0
    %6527 = vmatpush2.xpose.msra.mxu0 0.0
    %6528 = vmatprep.subr.mxu0 0.0
    %6529 = vmatpush2.xpose.msra.mxu0 0.0
    %6530 = vmatprep.subr.mxu0 0.0
    %6531 = vmatpush2.xpose.msra.mxu0 0.0
    %6532 = vmatprep.subr.mxu0 0.0
    %6533 = vmatpush2.xpose.msra.mxu0 0.0
    %6534 = vmatprep.subr.mxu0 0.0
    %6535 = vmatpush2.xpose.msra.mxu0 0.0
    %6536 = vmatprep.subr.mxu0 0.0
    %6537 = vmatpush2.xpose.msra.mxu0 0.0
    %6538 = vmatprep.subr.mxu0 0.0
    %6539 = vmatpush2.xpose.msra.mxu0 0.0
    %6540 = vmatprep.subr.mxu0 0.0
    %6541 = vmatpush2.xpose.msra.mxu0 0.0
    %6542 = vmatprep.subr.mxu0 0.0
    %6543 = vmatpush2.xpose.msra.mxu0 0.0
    %6544 = vmatprep.subr.mxu0 0.0
    %6545 = vmatpush2.xpose.msra.mxu0 0.0
    %6546 = vmatprep.subr.mxu0 0.0
    %6547 = vmatpush2.xpose.msra.mxu0 0.0
    %6548 = vmatprep.subr.mxu0 0.0
    %6549 = vmatpush2.xpose.msra.mxu0 0.0
    %6550 = vmatprep.subr.mxu0 0.0
    %6551 = vmatpush2.xpose.msra.mxu0 0.0
    %6552 = vmatprep.subr.mxu0 0.0
    %6553 = vmatpush2.xpose.msra.mxu0 0.0
    %6554 = vmatprep.mubr.f32.mxu0 0.0
    %6555 = vmatmul.mubr.f32.gmra.mxu0 %v6486
    %v6556 = vpop.f32.mrf.mxu0
    %v6557 = vadd.f32 0.0, %v6556
    %v6558 = vpop.f32.mrf.mxu0
    %6559 = vdwg.mxu0
    %v6560 = vsel %vm255, %v6099, 0
    %v6562 = vsel %vm255, %v6113, 0
    %6564 = vmatprep.subr.mxu0 0.0
    %6565 = vmatpush1.xpose.msra.mxu0 0.0
    %6566 = vmatprep.subr.mxu0 0.0
    %6567 = vmatpush1.xpose.msra.mxu0 0.0
    %6568 = vmatprep.subr.mxu0 0.0
    %6569 = vmatpush1.xpose.msra.mxu0 0.0
    %6570 = vmatprep.subr.mxu0 0.0
    %6571 = vmatpush1.xpose.msra.mxu0 0.0
    %6572 = vmatprep.subr.mxu0 0.0
    %6573 = vmatpush1.xpose.msra.mxu0 0.0
    %6574 = vmatprep.subr.mxu0 0.0
    %6575 = vmatpush1.xpose.msra.mxu0 0.0
    %6576 = vmatprep.subr.mxu0 0.0
    %6577 = vmatpush1.xpose.msra.mxu0 0.0
    %6578 = vmatprep.subr.mxu0 0.0
    %6579 = vmatpush1.xpose.msra.mxu0 0.0
    %6580 = vmatprep.subr.mxu0 0.0
    %6581 = vmatpush1.xpose.msra.mxu0 0.0
    %6582 = vmatprep.subr.mxu0 0.0
    %6583 = vmatpush1.xpose.msra.mxu0 0.0
    %6584 = vmatprep.subr.mxu0 0.0
    %6585 = vmatpush1.xpose.msra.mxu0 0.0
    %6586 = vmatprep.subr.mxu0 0.0
    %6587 = vmatpush1.xpose.msra.mxu0 0.0
    %6588 = vmatprep.subr.mxu0 0.0
    %6589 = vmatpush1.xpose.msra.mxu0 0.0
    %6590 = vmatprep.subr.mxu0 0.0
    %6591 = vmatpush1.xpose.msra.mxu0 0.0
    %6592 = vmatprep.subr.mxu0 0.0
    %6593 = vmatpush1.xpose.msra.mxu0 0.0
    %6594 = vmatprep.subr.mxu0 0.0
    %6595 = vmatpush1.xpose.msra.mxu0 %v6562
    %6596 = vmatprep.subr.mxu0 0.0
    %6597 = vmatpush2.xpose.msra.mxu0 0.0
    %6598 = vmatprep.subr.mxu0 0.0
    %6599 = vmatpush2.xpose.msra.mxu0 0.0
    %6600 = vmatprep.subr.mxu0 0.0
    %6601 = vmatpush2.xpose.msra.mxu0 0.0
    %6602 = vmatprep.subr.mxu0 0.0
    %6603 = vmatpush2.xpose.msra.mxu0 0.0
    %6604 = vmatprep.subr.mxu0 0.0
    %6605 = vmatpush2.xpose.msra.mxu0 0.0
    %6606 = vmatprep.subr.mxu0 0.0
    %6607 = vmatpush2.xpose.msra.mxu0 0.0
    %6608 = vmatprep.subr.mxu0 0.0
    %6609 = vmatpush2.xpose.msra.mxu0 0.0
    %6610 = vmatprep.subr.mxu0 0.0
    %6611 = vmatpush2.xpose.msra.mxu0 0.0
    %6612 = vmatprep.subr.mxu0 0.0
    %6613 = vmatpush2.xpose.msra.mxu0 0.0
    %6614 = vmatprep.subr.mxu0 0.0
    %6615 = vmatpush2.xpose.msra.mxu0 0.0
    %6616 = vmatprep.subr.mxu0 0.0
    %6617 = vmatpush2.xpose.msra.mxu0 0.0
    %6618 = vmatprep.subr.mxu0 0.0
    %6619 = vmatpush2.xpose.msra.mxu0 0.0
    %6620 = vmatprep.subr.mxu0 0.0
    %6621 = vmatpush2.xpose.msra.mxu0 0.0
    %6622 = vmatprep.subr.mxu0 0.0
    %6623 = vmatpush2.xpose.msra.mxu0 0.0
    %6624 = vmatprep.subr.mxu0 0.0
    %6625 = vmatpush2.xpose.msra.mxu0 0.0
    %6626 = vmatprep.subr.mxu0 0.0
    %6627 = vmatpush2.xpose.msra.mxu0 0.0
    %6628 = vmatprep.mubr.f32.mxu0 0.0
    %6629 = vmatmul.mubr.f32.gmra.mxu0 %v6560
    %v6630 = vpop.f32.mrf.mxu0
    %v6631 = vadd.f32 0.0, %v6630
    %v6632 = vpop.f32.mrf.mxu0
    %6633 = vdwg.mxu0
    %v6634 = vsel %vm255, %v6101, 0
    %v6636 = vsel %vm255, %v6115, 0
    %6638 = vmatprep.subr.mxu0 0.0
    %6639 = vmatpush1.xpose.msra.mxu0 0.0
    %6640 = vmatprep.subr.mxu0 0.0
    %6641 = vmatpush1.xpose.msra.mxu0 0.0
    %6642 = vmatprep.subr.mxu0 0.0
    %6643 = vmatpush1.xpose.msra.mxu0 0.0
    %6644 = vmatprep.subr.mxu0 0.0
    %6645 = vmatpush1.xpose.msra.mxu0 0.0
    %6646 = vmatprep.subr.mxu0 0.0
    %6647 = vmatpush1.xpose.msra.mxu0 0.0
    %6648 = vmatprep.subr.mxu0 0.0
    %6649 = vmatpush1.xpose.msra.mxu0 0.0
    %6650 = vmatprep.subr.mxu0 0.0
    %6651 = vmatpush1.xpose.msra.mxu0 0.0
    %6652 = vmatprep.subr.mxu0 0.0
    %6653 = vmatpush1.xpose.msra.mxu0 0.0
    %6654 = vmatprep.subr.mxu0 0.0
    %6655 = vmatpush1.xpose.msra.mxu0 0.0
    %6656 = vmatprep.subr.mxu0 0.0
    %6657 = vmatpush1.xpose.msra.mxu0 0.0
    %6658 = vmatprep.subr.mxu0 0.0
    %6659 = vmatpush1.xpose.msra.mxu0 0.0
    %6660 = vmatprep.subr.mxu0 0.0
    %6661 = vmatpush1.xpose.msra.mxu0 0.0
    %6662 = vmatprep.subr.mxu0 0.0
    %6663 = vmatpush1.xpose.msra.mxu0 0.0
    %6664 = vmatprep.subr.mxu0 0.0
    %6665 = vmatpush1.xpose.msra.mxu0 0.0
    %6666 = vmatprep.subr.mxu0 0.0
    %6667 = vmatpush1.xpose.msra.mxu0 0.0
    %6668 = vmatprep.subr.mxu0 0.0
    %6669 = vmatpush1.xpose.msra.mxu0 %v6636
    %6670 = vmatprep.subr.mxu0 0.0
    %6671 = vmatpush2.xpose.msra.mxu0 0.0
    %6672 = vmatprep.subr.mxu0 0.0
    %6673 = vmatpush2.xpose.msra.mxu0 0.0
    %6674 = vmatprep.subr.mxu0 0.0
    %6675 = vmatpush2.xpose.msra.mxu0 0.0
    %6676 = vmatprep.subr.mxu0 0.0
    %6677 = vmatpush2.xpose.msra.mxu0 0.0
    %6678 = vmatprep.subr.mxu0 0.0
    %6679 = vmatpush2.xpose.msra.mxu0 0.0
    %6680 = vmatprep.subr.mxu0 0.0
    %6681 = vmatpush2.xpose.msra.mxu0 0.0
    %6682 = vmatprep.subr.mxu0 0.0
    %6683 = vmatpush2.xpose.msra.mxu0 0.0
    %6684 = vmatprep.subr.mxu0 0.0
    %6685 = vmatpush2.xpose.msra.mxu0 0.0
    %6686 = vmatprep.subr.mxu0 0.0
    %6687 = vmatpush2.xpose.msra.mxu0 0.0
    %6688 = vmatprep.subr.mxu0 0.0
    %6689 = vmatpush2.xpose.msra.mxu0 0.0
    %6690 = vmatprep.subr.mxu0 0.0
    %6691 = vmatpush2.xpose.msra.mxu0 0.0
    %6692 = vmatprep.subr.mxu0 0.0
    %6693 = vmatpush2.xpose.msra.mxu0 0.0
    %6694 = vmatprep.subr.mxu0 0.0
    %6695 = vmatpush2.xpose.msra.mxu0 0.0
    %6696 = vmatprep.subr.mxu0 0.0
    %6697 = vmatpush2.xpose.msra.mxu0 0.0
    %6698 = vmatprep.subr.mxu0 0.0
    %6699 = vmatpush2.xpose.msra.mxu0 0.0
    %6700 = vmatprep.subr.mxu0 0.0
    %6701 = vmatpush2.xpose.msra.mxu0 0.0
    %6702 = vmatprep.mubr.f32.mxu0 0.0
    %6703 = vmatmul.mubr.f32.gmra.mxu0 %v6634
    %v6704 = vpop.f32.mrf.mxu0
    %v6705 = vadd.f32 0.0, %v6704
    %v6706 = vpop.f32.mrf.mxu0
    %6707 = vdwg.mxu0
    %v6708 = vmul.f32 %v6187, 0.35355338
    %v6709 = vmul.f32 %v6261, 0.35355338
    %v6710 = vmul.f32 %v6335, 0.35355338
    %v6711 = vmul.f32 %v6409, 0.35355338
    %v6712 = vmul.f32 %v6483, 0.35355338
    %v6713 = vmul.f32 %v6557, 0.35355338
    %v6714 = vmul.f32 %v6631, 0.35355338
    %v6715 = vmul.f32 %v6705, 0.35355338
    %v6716 = vsel %vm255, %v6708, -inf
    %6717 = vmax.xlane.f32.xlu0 %v6716
    %v6718 = vpop.xlane.xlu0 %6717
    %v6719 = vsel %vm255, %v6709, -inf
    %6720 = vmax.xlane.f32.xlu0 %v6719
    %v6721 = vpop.xlane.xlu0 %6720
    %v6722 = vsel %vm255, %v6710, -inf
    %6723 = vmax.xlane.f32.xlu0 %v6722
    %v6724 = vpop.xlane.xlu0 %6723
    %v6725 = vsel %vm255, %v6711, -inf
    %6726 = vmax.xlane.f32.xlu0 %v6725
    %v6727 = vpop.xlane.xlu0 %6726
    %v6728 = vsel %vm255, %v6712, -inf
    %6729 = vmax.xlane.f32.xlu0 %v6728
    %v6730 = vpop.xlane.xlu0 %6729
    %v6731 = vsel %vm255, %v6713, -inf
    %6732 = vmax.xlane.f32.xlu0 %v6731
    %v6733 = vpop.xlane.xlu0 %6732
    %v6734 = vsel %vm255, %v6714, -inf
    %6735 = vmax.xlane.f32.xlu0 %v6734
    %v6736 = vpop.xlane.xlu0 %6735
    %v6737 = vsel %vm255, %v6715, -inf
    %6738 = vmax.xlane.f32.xlu0 %v6737
    %v6739 = vpop.xlane.xlu0 %6738
    %v6740 = vsub.f32 %v6708, %v6718
    %v6741 = vsub.f32 %v6709, %v6721
    %v6742 = vsub.f32 %v6710, %v6724
    %v6743 = vsub.f32 %v6711, %v6727
    %v6744 = vsub.f32 %v6712, %v6730
    %v6745 = vsub.f32 %v6713, %v6733
    %v6746 = vsub.f32 %v6714, %v6736
    %v6747 = vsub.f32 %v6715, %v6739
    %v6748 = vmul.f32 %v6740, 1.442695
    %v6749 = vpow.pop %v6748
    %v6750 = vmul.f32 %v6741, 1.442695
    %v6751 = vpow.pop %v6750
    %v6752 = vmul.f32 %v6742, 1.442695
    %v6753 = vpow.pop %v6752
    %v6754 = vmul.f32 %v6743, 1.442695
    %v6755 = vpow.pop %v6754
    %v6756 = vmul.f32 %v6744, 1.442695
    %v6757 = vpow.pop %v6756
    %v6758 = vmul.f32 %v6745, 1.442695
    %v6759 = vpow.pop %v6758
    %v6760 = vmul.f32 %v6746, 1.442695
    %v6761 = vpow.pop %v6760
    %v6762 = vmul.f32 %v6747, 1.442695
    %v6763 = vpow.pop %v6762
    %v6764 = vsel %vm255, %v6749, 0.0
    %6765 = vadd.xlane.f32.xlu0 %v6764
    %v6766 = vpop.xlane.xlu0 %6765
    %v6767 = vsel %vm255, %v6751, 0.0
    %6768 = vadd.xlane.f32.xlu0 %v6767
    %v6769 = vpop.xlane.xlu0 %6768
    %v6770 = vsel %vm255, %v6753, 0.0
    %6771 = vadd.xlane.f32.xlu0 %v6770
    %v6772 = vpop.xlane.xlu0 %6771
    %v6773 = vsel %vm255, %v6755, 0.0
    %6774 = vadd.xlane.f32.xlu0 %v6773
    %v6775 = vpop.xlane.xlu0 %6774
    %v6776 = vsel %vm255, %v6757, 0.0
    %6777 = vadd.xlane.f32.xlu0 %v6776
    %v6778 = vpop.xlane.xlu0 %6777
    %v6779 = vsel %vm255, %v6759, 0.0
    %6780 = vadd.xlane.f32.xlu0 %v6779
    %v6781 = vpop.xlane.xlu0 %6780
    %v6782 = vsel %vm255, %v6761, 0.0
    %6783 = vadd.xlane.f32.xlu0 %v6782
    %v6784 = vpop.xlane.xlu0 %6783
    %v6785 = vsel %vm255, %v6763, 0.0
    %6786 = vadd.xlane.f32.xlu0 %v6785
    %v6787 = vpop.xlane.xlu0 %6786
    %v6788 = vrcp.pop %v6766
    %v6789 = vrcp.pop %v6769
    %v6790 = vrcp.pop %v6772
    %v6791 = vrcp.pop %v6775
    %v6792 = vrcp.pop %v6778
    %v6793 = vrcp.pop %v6781
    %v6794 = vrcp.pop %v6784
    %v6795 = vrcp.pop %v6787
    %v6796 = vmul.f32 %v6749, %v6788
    %v6797 = vmul.f32 %v6751, %v6789
    %v6798 = vmul.f32 %v6753, %v6790
    %v6799 = vmul.f32 %v6755, %v6791
    %v6800 = vmul.f32 %v6757, %v6792
    %v6801 = vmul.f32 %v6759, %v6793
    %v6802 = vmul.f32 %v6761, %v6794
    %v6803 = vmul.f32 %v6763, %v6795
    %6804 = vrot.lane.b32.xlu0 %v6080, 96
    %v6805 = vpop.permute.xlu0 %6804
    %v6808 = vsel %vm255, %v6796, 0
    %6810 = vmatprep.subr.mxu0 0.0
    %6811 = vmatpush1.msra.mxu0 0.0
    %6812 = vmatprep.subr.mxu0 0.0
    %6813 = vmatpush1.msra.mxu0 0.0
    %6814 = vmatprep.subr.mxu0 0.0
    %6815 = vmatpush1.msra.mxu0 0.0
    %6816 = vmatprep.subr.mxu0 0.0
    %6817 = vmatpush1.msra.mxu0 0.0
    %6818 = vmatprep.subr.mxu0 0.0
    %6819 = vmatpush1.msra.mxu0 0.0
    %6820 = vmatprep.subr.mxu0 0.0
    %6821 = vmatpush1.msra.mxu0 0.0
    %6822 = vmatprep.subr.mxu0 0.0
    %6823 = vmatpush1.msra.mxu0 0.0
    %6824 = vmatprep.subr.mxu0 0.0
    %6825 = vmatpush1.msra.mxu0 0.0
    %6826 = vmatprep.subr.mxu0 0.0
    %6827 = vmatpush1.msra.mxu0 0.0
    %6828 = vmatprep.subr.mxu0 0.0
    %6829 = vmatpush1.msra.mxu0 0.0
    %6830 = vmatprep.subr.mxu0 0.0
    %6831 = vmatpush1.msra.mxu0 0.0
    %6832 = vmatprep.subr.mxu0 0.0
    %6833 = vmatpush1.msra.mxu0 0.0
    %6834 = vmatprep.subr.mxu0 0.0
    %6835 = vmatpush1.msra.mxu0 0.0
    %6836 = vmatprep.subr.mxu0 0.0
    %6837 = vmatpush1.msra.mxu0 0.0
    %6838 = vmatprep.subr.mxu0 0.0
    %6839 = vmatpush1.msra.mxu0 0.0
    %6840 = vmatprep.subr.mxu0 0.0
    %6841 = vmatpush1.msra.mxu0 %v6805
    %6842 = vmatprep.subr.mxu0 0.0
    %6843 = vmatpush2.msra.mxu0 0.0
    %6844 = vmatprep.subr.mxu0 0.0
    %6845 = vmatpush2.msra.mxu0 0.0
    %6846 = vmatprep.subr.mxu0 0.0
    %6847 = vmatpush2.msra.mxu0 0.0
    %6848 = vmatprep.subr.mxu0 0.0
    %6849 = vmatpush2.msra.mxu0 0.0
    %6850 = vmatprep.subr.mxu0 0.0
    %6851 = vmatpush2.msra.mxu0 0.0
    %6852 = vmatprep.subr.mxu0 0.0
    %6853 = vmatpush2.msra.mxu0 0.0
    %6854 = vmatprep.subr.mxu0 0.0
    %6855 = vmatpush2.msra.mxu0 0.0
    %6856 = vmatprep.subr.mxu0 0.0
    %6857 = vmatpush2.msra.mxu0 0.0
    %6858 = vmatprep.subr.mxu0 0.0
    %6859 = vmatpush2.msra.mxu0 0.0
    %6860 = vmatprep.subr.mxu0 0.0
    %6861 = vmatpush2.msra.mxu0 0.0
    %6862 = vmatprep.subr.mxu0 0.0
    %6863 = vmatpush2.msra.mxu0 0.0
    %6864 = vmatprep.subr.mxu0 0.0
    %6865 = vmatpush2.msra.mxu0 0.0
    %6866 = vmatprep.subr.mxu0 0.0
    %6867 = vmatpush2.msra.mxu0 0.0
    %6868 = vmatprep.subr.mxu0 0.0
    %6869 = vmatpush2.msra.mxu0 0.0
    %6870 = vmatprep.subr.mxu0 0.0
    %6871 = vmatpush2.msra.mxu0 0.0
    %6872 = vmatprep.subr.mxu0 0.0
    %6873 = vmatpush2.msra.mxu0 0.0
    %6874 = vmatprep.mubr.f32.mxu0 0.0
    %6875 = vmatmul.mubr.f32.gmra.mxu0 %v6808
    %v6876 = vpop.f32.mrf.mxu0
    %v6877 = vadd.f32 0.0, %v6876
    %v6878 = vpop.f32.mrf.mxu0
    %6879 = vdwg.mxu0
    %6880 = vrot.lane.b32.xlu0 %v6085, 96
    %v6881 = vpop.permute.xlu0 %6880
    %v6884 = vsel %vm255, %v6797, 0
    %6886 = vmatprep.subr.mxu0 0.0
    %6887 = vmatpush1.msra.mxu0 0.0
    %6888 = vmatprep.subr.mxu0 0.0
    %6889 = vmatpush1.msra.mxu0 0.0
    %6890 = vmatprep.subr.mxu0 0.0
    %6891 = vmatpush1.msra.mxu0 0.0
    %6892 = vmatprep.subr.mxu0 0.0
    %6893 = vmatpush1.msra.mxu0 0.0
    %6894 = vmatprep.subr.mxu0 0.0
    %6895 = vmatpush1.msra.mxu0 0.0
    %6896 = vmatprep.subr.mxu0 0.0
    %6897 = vmatpush1.msra.mxu0 0.0
    %6898 = vmatprep.subr.mxu0 0.0
    %6899 = vmatpush1.msra.mxu0 0.0
    %6900 = vmatprep.subr.mxu0 0.0
    %6901 = vmatpush1.msra.mxu0 0.0
    %6902 = vmatprep.subr.mxu0 0.0
    %6903 = vmatpush1.msra.mxu0 0.0
    %6904 = vmatprep.subr.mxu0 0.0
    %6905 = vmatpush1.msra.mxu0 0.0
    %6906 = vmatprep.subr.mxu0 0.0
    %6907 = vmatpush1.msra.mxu0 0.0
    %6908 = vmatprep.subr.mxu0 0.0
    %6909 = vmatpush1.msra.mxu0 0.0
    %6910 = vmatprep.subr.mxu0 0.0
    %6911 = vmatpush1.msra.mxu0 0.0
    %6912 = vmatprep.subr.mxu0 0.0
    %6913 = vmatpush1.msra.mxu0 0.0
    %6914 = vmatprep.subr.mxu0 0.0
    %6915 = vmatpush1.msra.mxu0 0.0
    %6916 = vmatprep.subr.mxu0 0.0
    %6917 = vmatpush1.msra.mxu0 %v6881
    %6918 = vmatprep.subr.mxu0 0.0
    %6919 = vmatpush2.msra.mxu0 0.0
    %6920 = vmatprep.subr.mxu0 0.0
    %6921 = vmatpush2.msra.mxu0 0.0
    %6922 = vmatprep.subr.mxu0 0.0
    %6923 = vmatpush2.msra.mxu0 0.0
    %6924 = vmatprep.subr.mxu0 0.0
    %6925 = vmatpush2.msra.mxu0 0.0
    %6926 = vmatprep.subr.mxu0 0.0
    %6927 = vmatpush2.msra.mxu0 0.0
    %6928 = vmatprep.subr.mxu0 0.0
    %6929 = vmatpush2.msra.mxu0 0.0
    %6930 = vmatprep.subr.mxu0 0.0
    %6931 = vmatpush2.msra.mxu0 0.0
    %6932 = vmatprep.subr.mxu0 0.0
    %6933 = vmatpush2.msra.mxu0 0.0
    %6934 = vmatprep.subr.mxu0 0.0
    %6935 = vmatpush2.msra.mxu0 0.0
    %6936 = vmatprep.subr.mxu0 0.0
    %6937 = vmatpush2.msra.mxu0 0.0
    %6938 = vmatprep.subr.mxu0 0.0
    %6939 = vmatpush2.msra.mxu0 0.0
    %6940 = vmatprep.subr.mxu0 0.0
    %6941 = vmatpush2.msra.mxu0 0.0
    %6942 = vmatprep.subr.mxu0 0.0
    %6943 = vmatpush2.msra.mxu0 0.0
    %6944 = vmatprep.subr.mxu0 0.0
    %6945 = vmatpush2.msra.mxu0 0.0
    %6946 = vmatprep.subr.mxu0 0.0
    %6947 = vmatpush2.msra.mxu0 0.0
    %6948 = vmatprep.subr.mxu0 0.0
    %6949 = vmatpush2.msra.mxu0 0.0
    %6950 = vmatprep.mubr.f32.mxu0 0.0
    %6951 = vmatmul.mubr.f32.gmra.mxu0 %v6884
    %v6952 = vpop.f32.mrf.mxu0
    %v6953 = vadd.f32 0.0, %v6952
    %v6954 = vpop.f32.mrf.mxu0
    %6955 = vdwg.mxu0
    %6956 = vrot.lane.b32.xlu0 %v6105, 96
    %v6957 = vpop.permute.xlu0 %6956
    %v6960 = vsel %vm255, %v6798, 0
    %6962 = vmatprep.subr.mxu0 0.0
    %6963 = vmatpush1.msra.mxu0 0.0
    %6964 = vmatprep.subr.mxu0 0.0
    %6965 = vmatpush1.msra.mxu0 0.0
    %6966 = vmatprep.subr.mxu0 0.0
    %6967 = vmatpush1.msra.mxu0 0.0
    %6968 = vmatprep.subr.mxu0 0.0
    %6969 = vmatpush1.msra.mxu0 0.0
    %6970 = vmatprep.subr.mxu0 0.0
    %6971 = vmatpush1.msra.mxu0 0.0
    %6972 = vmatprep.subr.mxu0 0.0
    %6973 = vmatpush1.msra.mxu0 0.0
    %6974 = vmatprep.subr.mxu0 0.0
    %6975 = vmatpush1.msra.mxu0 0.0
    %6976 = vmatprep.subr.mxu0 0.0
    %6977 = vmatpush1.msra.mxu0 0.0
    %6978 = vmatprep.subr.mxu0 0.0
    %6979 = vmatpush1.msra.mxu0 0.0
    %6980 = vmatprep.subr.mxu0 0.0
    %6981 = vmatpush1.msra.mxu0 0.0
    %6982 = vmatprep.subr.mxu0 0.0
    %6983 = vmatpush1.msra.mxu0 0.0
    %6984 = vmatprep.subr.mxu0 0.0
    %6985 = vmatpush1.msra.mxu0 0.0
    %6986 = vmatprep.subr.mxu0 0.0
    %6987 = vmatpush1.msra.mxu0 0.0
    %6988 = vmatprep.subr.mxu0 0.0
    %6989 = vmatpush1.msra.mxu0 0.0
    %6990 = vmatprep.subr.mxu0 0.0
    %6991 = vmatpush1.msra.mxu0 0.0
    %6992 = vmatprep.subr.mxu0 0.0
    %6993 = vmatpush1.msra.mxu0 %v6957
    %6994 = vmatprep.subr.mxu0 0.0
    %6995 = vmatpush2.msra.mxu0 0.0
    %6996 = vmatprep.subr.mxu0 0.0
    %6997 = vmatpush2.msra.mxu0 0.0
    %6998 = vmatprep.subr.mxu0 0.0
    %6999 = vmatpush2.msra.mxu0 0.0
    %7000 = vmatprep.subr.mxu0 0.0
    %7001 = vmatpush2.msra.mxu0 0.0
    %7002 = vmatprep.subr.mxu0 0.0
    %7003 = vmatpush2.msra.mxu0 0.0
    %7004 = vmatprep.subr.mxu0 0.0
    %7005 = vmatpush2.msra.mxu0 0.0
    %7006 = vmatprep.subr.mxu0 0.0
    %7007 = vmatpush2.msra.mxu0 0.0
    %7008 = vmatprep.subr.mxu0 0.0
    %7009 = vmatpush2.msra.mxu0 0.0
    %7010 = vmatprep.subr.mxu0 0.0
    %7011 = vmatpush2.msra.mxu0 0.0
    %7012 = vmatprep.subr.mxu0 0.0
    %7013 = vmatpush2.msra.mxu0 0.0
    %7014 = vmatprep.subr.mxu0 0.0
    %7015 = vmatpush2.msra.mxu0 0.0
    %7016 = vmatprep.subr.mxu0 0.0
    %7017 = vmatpush2.msra.mxu0 0.0
    %7018 = vmatprep.subr.mxu0 0.0
    %7019 = vmatpush2.msra.mxu0 0.0
    %7020 = vmatprep.subr.mxu0 0.0
    %7021 = vmatpush2.msra.mxu0 0.0
    %7022 = vmatprep.subr.mxu0 0.0
    %7023 = vmatpush2.msra.mxu0 0.0
    %7024 = vmatprep.subr.mxu0 0.0
    %7025 = vmatpush2.msra.mxu0 0.0
    %7026 = vmatprep.mubr.f32.mxu0 0.0
    %7027 = vmatmul.mubr.f32.gmra.mxu0 %v6960
    %v7028 = vpop.f32.mrf.mxu0
    %v7029 = vadd.f32 0.0, %v7028
    %v7030 = vpop.f32.mrf.mxu0
    %7031 = vdwg.mxu0
    %7032 = vrot.lane.b32.xlu0 %v6107, 96
    %v7033 = vpop.permute.xlu0 %7032
    %v7036 = vsel %vm255, %v6799, 0
    %7038 = vmatprep.subr.mxu0 0.0
    %7039 = vmatpush1.msra.mxu0 0.0
    %7040 = vmatprep.subr.mxu0 0.0
    %7041 = vmatpush1.msra.mxu0 0.0
    %7042 = vmatprep.subr.mxu0 0.0
    %7043 = vmatpush1.msra.mxu0 0.0
    %7044 = vmatprep.subr.mxu0 0.0
    %7045 = vmatpush1.msra.mxu0 0.0
    %7046 = vmatprep.subr.mxu0 0.0
    %7047 = vmatpush1.msra.mxu0 0.0
    %7048 = vmatprep.subr.mxu0 0.0
    %7049 = vmatpush1.msra.mxu0 0.0
    %7050 = vmatprep.subr.mxu0 0.0
    %7051 = vmatpush1.msra.mxu0 0.0
    %7052 = vmatprep.subr.mxu0 0.0
    %7053 = vmatpush1.msra.mxu0 0.0
    %7054 = vmatprep.subr.mxu0 0.0
    %7055 = vmatpush1.msra.mxu0 0.0
    %7056 = vmatprep.subr.mxu0 0.0
    %7057 = vmatpush1.msra.mxu0 0.0
    %7058 = vmatprep.subr.mxu0 0.0
    %7059 = vmatpush1.msra.mxu0 0.0
    %7060 = vmatprep.subr.mxu0 0.0
    %7061 = vmatpush1.msra.mxu0 0.0
    %7062 = vmatprep.subr.mxu0 0.0
    %7063 = vmatpush1.msra.mxu0 0.0
    %7064 = vmatprep.subr.mxu0 0.0
    %7065 = vmatpush1.msra.mxu0 0.0
    %7066 = vmatprep.subr.mxu0 0.0
    %7067 = vmatpush1.msra.mxu0 0.0
    %7068 = vmatprep.subr.mxu0 0.0
    %7069 = vmatpush1.msra.mxu0 %v7033
    %7070 = vmatprep.subr.mxu0 0.0
    %7071 = vmatpush2.msra.mxu0 0.0
    %7072 = vmatprep.subr.mxu0 0.0
    %7073 = vmatpush2.msra.mxu0 0.0
    %7074 = vmatprep.subr.mxu0 0.0
    %7075 = vmatpush2.msra.mxu0 0.0
    %7076 = vmatprep.subr.mxu0 0.0
    %7077 = vmatpush2.msra.mxu0 0.0
    %7078 = vmatprep.subr.mxu0 0.0
    %7079 = vmatpush2.msra.mxu0 0.0
    %7080 = vmatprep.subr.mxu0 0.0
    %7081 = vmatpush2.msra.mxu0 0.0
    %7082 = vmatprep.subr.mxu0 0.0
    %7083 = vmatpush2.msra.mxu0 0.0
    %7084 = vmatprep.subr.mxu0 0.0
    %7085 = vmatpush2.msra.mxu0 0.0
    %7086 = vmatprep.subr.mxu0 0.0
    %7087 = vmatpush2.msra.mxu0 0.0
    %7088 = vmatprep.subr.mxu0 0.0
    %7089 = vmatpush2.msra.mxu0 0.0
    %7090 = vmatprep.subr.mxu0 0.0
    %7091 = vmatpush2.msra.mxu0 0.0
    %7092 = vmatprep.subr.mxu0 0.0
    %7093 = vmatpush2.msra.mxu0 0.0
    %7094 = vmatprep.subr.mxu0 0.0
    %7095 = vmatpush2.msra.mxu0 0.0
    %7096 = vmatprep.subr.mxu0 0.0
    %7097 = vmatpush2.msra.mxu0 0.0
    %7098 = vmatprep.subr.mxu0 0.0
    %7099 = vmatpush2.msra.mxu0 0.0
    %7100 = vmatprep.subr.mxu0 0.0
    %7101 = vmatpush2.msra.mxu0 0.0
    %7102 = vmatprep.mubr.f32.mxu0 0.0
    %7103 = vmatmul.mubr.f32.gmra.mxu0 %v7036
    %v7104 = vpop.f32.mrf.mxu0
    %v7105 = vadd.f32 0.0, %v7104
    %v7106 = vpop.f32.mrf.mxu0
    %7107 = vdwg.mxu0
    %7108 = vrot.lane.b32.xlu0 %v6109, 96
    %v7109 = vpop.permute.xlu0 %7108
    %v7112 = vsel %vm255, %v6800, 0
    %7114 = vmatprep.subr.mxu0 0.0
    %7115 = vmatpush1.msra.mxu0 0.0
    %7116 = vmatprep.subr.mxu0 0.0
    %7117 = vmatpush1.msra.mxu0 0.0
    %7118 = vmatprep.subr.mxu0 0.0
    %7119 = vmatpush1.msra.mxu0 0.0
    %7120 = vmatprep.subr.mxu0 0.0
    %7121 = vmatpush1.msra.mxu0 0.0
    %7122 = vmatprep.subr.mxu0 0.0
    %7123 = vmatpush1.msra.mxu0 0.0
    %7124 = vmatprep.subr.mxu0 0.0
    %7125 = vmatpush1.msra.mxu0 0.0
    %7126 = vmatprep.subr.mxu0 0.0
    %7127 = vmatpush1.msra.mxu0 0.0
    %7128 = vmatprep.subr.mxu0 0.0
    %7129 = vmatpush1.msra.mxu0 0.0
    %7130 = vmatprep.subr.mxu0 0.0
    %7131 = vmatpush1.msra.mxu0 0.0
    %7132 = vmatprep.subr.mxu0 0.0
    %7133 = vmatpush1.msra.mxu0 0.0
    %7134 = vmatprep.subr.mxu0 0.0
    %7135 = vmatpush1.msra.mxu0 0.0
    %7136 = vmatprep.subr.mxu0 0.0
    %7137 = vmatpush1.msra.mxu0 0.0
    %7138 = vmatprep.subr.mxu0 0.0
    %7139 = vmatpush1.msra.mxu0 0.0
    %7140 = vmatprep.subr.mxu0 0.0
    %7141 = vmatpush1.msra.mxu0 0.0
    %7142 = vmatprep.subr.mxu0 0.0
    %7143 = vmatpush1.msra.mxu0 0.0
    %7144 = vmatprep.subr.mxu0 0.0
    %7145 = vmatpush1.msra.mxu0 %v7109
    %7146 = vmatprep.subr.mxu0 0.0
    %7147 = vmatpush2.msra.mxu0 0.0
    %7148 = vmatprep.subr.mxu0 0.0
    %7149 = vmatpush2.msra.mxu0 0.0
    %7150 = vmatprep.subr.mxu0 0.0
    %7151 = vmatpush2.msra.mxu0 0.0
    %7152 = vmatprep.subr.mxu0 0.0
    %7153 = vmatpush2.msra.mxu0 0.0
    %7154 = vmatprep.subr.mxu0 0.0
    %7155 = vmatpush2.msra.mxu0 0.0
    %7156 = vmatprep.subr.mxu0 0.0
    %7157 = vmatpush2.msra.mxu0 0.0
    %7158 = vmatprep.subr.mxu0 0.0
    %7159 = vmatpush2.msra.mxu0 0.0
    %7160 = vmatprep.subr.mxu0 0.0
    %7161 = vmatpush2.msra.mxu0 0.0
    %7162 = vmatprep.subr.mxu0 0.0
    %7163 = vmatpush2.msra.mxu0 0.0
    %7164 = vmatprep.subr.mxu0 0.0
    %7165 = vmatpush2.msra.mxu0 0.0
    %7166 = vmatprep.subr.mxu0 0.0
    %7167 = vmatpush2.msra.mxu0 0.0
    %7168 = vmatprep.subr.mxu0 0.0
    %7169 = vmatpush2.msra.mxu0 0.0
    %7170 = vmatprep.subr.mxu0 0.0
    %7171 = vmatpush2.msra.mxu0 0.0
    %7172 = vmatprep.subr.mxu0 0.0
    %7173 = vmatpush2.msra.mxu0 0.0
    %7174 = vmatprep.subr.mxu0 0.0
    %7175 = vmatpush2.msra.mxu0 0.0
    %7176 = vmatprep.subr.mxu0 0.0
    %7177 = vmatpush2.msra.mxu0 0.0
    %7178 = vmatprep.mubr.f32.mxu0 0.0
    %7179 = vmatmul.mubr.f32.gmra.mxu0 %v7112
    %v7180 = vpop.f32.mrf.mxu0
    %v7181 = vadd.f32 0.0, %v7180
    %v7182 = vpop.f32.mrf.mxu0
    %7183 = vdwg.mxu0
    %7184 = vrot.lane.b32.xlu0 %v6111, 96
    %v7185 = vpop.permute.xlu0 %7184
    %v7188 = vsel %vm255, %v6801, 0
    %7190 = vmatprep.subr.mxu0 0.0
    %7191 = vmatpush1.msra.mxu0 0.0
    %7192 = vmatprep.subr.mxu0 0.0
    %7193 = vmatpush1.msra.mxu0 0.0
    %7194 = vmatprep.subr.mxu0 0.0
    %7195 = vmatpush1.msra.mxu0 0.0
    %7196 = vmatprep.subr.mxu0 0.0
    %7197 = vmatpush1.msra.mxu0 0.0
    %7198 = vmatprep.subr.mxu0 0.0
    %7199 = vmatpush1.msra.mxu0 0.0
    %7200 = vmatprep.subr.mxu0 0.0
    %7201 = vmatpush1.msra.mxu0 0.0
    %7202 = vmatprep.subr.mxu0 0.0
    %7203 = vmatpush1.msra.mxu0 0.0
    %7204 = vmatprep.subr.mxu0 0.0
    %7205 = vmatpush1.msra.mxu0 0.0
    %7206 = vmatprep.subr.mxu0 0.0
    %7207 = vmatpush1.msra.mxu0 0.0
    %7208 = vmatprep.subr.mxu0 0.0
    %7209 = vmatpush1.msra.mxu0 0.0
    %7210 = vmatprep.subr.mxu0 0.0
    %7211 = vmatpush1.msra.mxu0 0.0
    %7212 = vmatprep.subr.mxu0 0.0
    %7213 = vmatpush1.msra.mxu0 0.0
    %7214 = vmatprep.subr.mxu0 0.0
    %7215 = vmatpush1.msra.mxu0 0.0
    %7216 = vmatprep.subr.mxu0 0.0
    %7217 = vmatpush1.msra.mxu0 0.0
    %7218 = vmatprep.subr.mxu0 0.0
    %7219 = vmatpush1.msra.mxu0 0.0
    %7220 = vmatprep.subr.mxu0 0.0
    %7221 = vmatpush1.msra.mxu0 %v7185
    %7222 = vmatprep.subr.mxu0 0.0
    %7223 = vmatpush2.msra.mxu0 0.0
    %7224 = vmatprep.subr.mxu0 0.0
    %7225 = vmatpush2.msra.mxu0 0.0
    %7226 = vmatprep.subr.mxu0 0.0
    %7227 = vmatpush2.msra.mxu0 0.0
    %7228 = vmatprep.subr.mxu0 0.0
    %7229 = vmatpush2.msra.mxu0 0.0
    %7230 = vmatprep.subr.mxu0 0.0
    %7231 = vmatpush2.msra.mxu0 0.0
    %7232 = vmatprep.subr.mxu0 0.0
    %7233 = vmatpush2.msra.mxu0 0.0
    %7234 = vmatprep.subr.mxu0 0.0
    %7235 = vmatpush2.msra.mxu0 0.0
    %7236 = vmatprep.subr.mxu0 0.0
    %7237 = vmatpush2.msra.mxu0 0.0
    %7238 = vmatprep.subr.mxu0 0.0
    %7239 = vmatpush2.msra.mxu0 0.0
    %7240 = vmatprep.subr.mxu0 0.0
    %7241 = vmatpush2.msra.mxu0 0.0
    %7242 = vmatprep.subr.mxu0 0.0
    %7243 = vmatpush2.msra.mxu0 0.0
    %7244 = vmatprep.subr.mxu0 0.0
    %7245 = vmatpush2.msra.mxu0 0.0
    %7246 = vmatprep.subr.mxu0 0.0
    %7247 = vmatpush2.msra.mxu0 0.0
    %7248 = vmatprep.subr.mxu0 0.0
    %7249 = vmatpush2.msra.mxu0 0.0
    %7250 = vmatprep.subr.mxu0 0.0
    %7251 = vmatpush2.msra.mxu0 0.0
    %7252 = vmatprep.subr.mxu0 0.0
    %7253 = vmatpush2.msra.mxu0 0.0
    %7254 = vmatprep.mubr.f32.mxu0 0.0
    %7255 = vmatmul.mubr.f32.gmra.mxu0 %v7188
    %v7256 = vpop.f32.mrf.mxu0
    %v7257 = vadd.f32 0.0, %v7256
    %v7258 = vpop.f32.mrf.mxu0
    %7259 = vdwg.mxu0
    %7260 = vrot.lane.b32.xlu0 %v6113, 96
    %v7261 = vpop.permute.xlu0 %7260
    %v7264 = vsel %vm255, %v6802, 0
    %7266 = vmatprep.subr.mxu0 0.0
    %7267 = vmatpush1.msra.mxu0 0.0
    %7268 = vmatprep.subr.mxu0 0.0
    %7269 = vmatpush1.msra.mxu0 0.0
    %7270 = vmatprep.subr.mxu0 0.0
    %7271 = vmatpush1.msra.mxu0 0.0
    %7272 = vmatprep.subr.mxu0 0.0
    %7273 = vmatpush1.msra.mxu0 0.0
    %7274 = vmatprep.subr.mxu0 0.0
    %7275 = vmatpush1.msra.mxu0 0.0
    %7276 = vmatprep.subr.mxu0 0.0
    %7277 = vmatpush1.msra.mxu0 0.0
    %7278 = vmatprep.subr.mxu0 0.0
    %7279 = vmatpush1.msra.mxu0 0.0
    %7280 = vmatprep.subr.mxu0 0.0
    %7281 = vmatpush1.msra.mxu0 0.0
    %7282 = vmatprep.subr.mxu0 0.0
    %7283 = vmatpush1.msra.mxu0 0.0
    %7284 = vmatprep.subr.mxu0 0.0
    %7285 = vmatpush1.msra.mxu0 0.0
    %7286 = vmatprep.subr.mxu0 0.0
    %7287 = vmatpush1.msra.mxu0 0.0
    %7288 = vmatprep.subr.mxu0 0.0
    %7289 = vmatpush1.msra.mxu0 0.0
    %7290 = vmatprep.subr.mxu0 0.0
    %7291 = vmatpush1.msra.mxu0 0.0
    %7292 = vmatprep.subr.mxu0 0.0
    %7293 = vmatpush1.msra.mxu0 0.0
    %7294 = vmatprep.subr.mxu0 0.0
    %7295 = vmatpush1.msra.mxu0 0.0
    %7296 = vmatprep.subr.mxu0 0.0
    %7297 = vmatpush1.msra.mxu0 %v7261
    %7298 = vmatprep.subr.mxu0 0.0
    %7299 = vmatpush2.msra.mxu0 0.0
    %7300 = vmatprep.subr.mxu0 0.0
    %7301 = vmatpush2.msra.mxu0 0.0
    %7302 = vmatprep.subr.mxu0 0.0
    %7303 = vmatpush2.msra.mxu0 0.0
    %7304 = vmatprep.subr.mxu0 0.0
    %7305 = vmatpush2.msra.mxu0 0.0
    %7306 = vmatprep.subr.mxu0 0.0
    %7307 = vmatpush2.msra.mxu0 0.0
    %7308 = vmatprep.subr.mxu0 0.0
    %7309 = vmatpush2.msra.mxu0 0.0
    %7310 = vmatprep.subr.mxu0 0.0
    %7311 = vmatpush2.msra.mxu0 0.0
    %7312 = vmatprep.subr.mxu0 0.0
    %7313 = vmatpush2.msra.mxu0 0.0
    %7314 = vmatprep.subr.mxu0 0.0
    %7315 = vmatpush2.msra.mxu0 0.0
    %7316 = vmatprep.subr.mxu0 0.0
    %7317 = vmatpush2.msra.mxu0 0.0
    %7318 = vmatprep.subr.mxu0 0.0
    %7319 = vmatpush2.msra.mxu0 0.0
    %7320 = vmatprep.subr.mxu0 0.0
    %7321 = vmatpush2.msra.mxu0 0.0
    %7322 = vmatprep.subr.mxu0 0.0
    %7323 = vmatpush2.msra.mxu0 0.0
    %7324 = vmatprep.subr.mxu0 0.0
    %7325 = vmatpush2.msra.mxu0 0.0
    %7326 = vmatprep.subr.mxu0 0.0
    %7327 = vmatpush2.msra.mxu0 0.0
    %7328 = vmatprep.subr.mxu0 0.0
    %7329 = vmatpush2.msra.mxu0 0.0
    %7330 = vmatprep.mubr.f32.mxu0 0.0
    %7331 = vmatmul.mubr.f32.gmra.mxu0 %v7264
    %v7332 = vpop.f32.mrf.mxu0
    %v7333 = vadd.f32 0.0, %v7332
    %v7334 = vpop.f32.mrf.mxu0
    %7335 = vdwg.mxu0
    %7336 = vrot.lane.b32.xlu0 %v6115, 96
    %v7337 = vpop.permute.xlu0 %7336
    %v7340 = vsel %vm255, %v6803, 0
    %7342 = vmatprep.subr.mxu0 0.0
    %7343 = vmatpush1.msra.mxu0 0.0
    %7344 = vmatprep.subr.mxu0 0.0
    %7345 = vmatpush1.msra.mxu0 0.0
    %7346 = vmatprep.subr.mxu0 0.0
    %7347 = vmatpush1.msra.mxu0 0.0
    %7348 = vmatprep.subr.mxu0 0.0
    %7349 = vmatpush1.msra.mxu0 0.0
    %7350 = vmatprep.subr.mxu0 0.0
    %7351 = vmatpush1.msra.mxu0 0.0
    %7352 = vmatprep.subr.mxu0 0.0
    %7353 = vmatpush1.msra.mxu0 0.0
    %7354 = vmatprep.subr.mxu0 0.0
    %7355 = vmatpush1.msra.mxu0 0.0
    %7356 = vmatprep.subr.mxu0 0.0
    %7357 = vmatpush1.msra.mxu0 0.0
    %7358 = vmatprep.subr.mxu0 0.0
    %7359 = vmatpush1.msra.mxu0 0.0
    %7360 = vmatprep.subr.mxu0 0.0
    %7361 = vmatpush1.msra.mxu0 0.0
    %7362 = vmatprep.subr.mxu0 0.0
    %7363 = vmatpush1.msra.mxu0 0.0
    %7364 = vmatprep.subr.mxu0 0.0
    %7365 = vmatpush1.msra.mxu0 0.0
    %7366 = vmatprep.subr.mxu0 0.0
    %7367 = vmatpush1.msra.mxu0 0.0
    %7368 = vmatprep.subr.mxu0 0.0
    %7369 = vmatpush1.msra.mxu0 0.0
    %7370 = vmatprep.subr.mxu0 0.0
    %7371 = vmatpush1.msra.mxu0 0.0
    %7372 = vmatprep.subr.mxu0 0.0
    %7373 = vmatpush1.msra.mxu0 %v7337
    %7374 = vmatprep.subr.mxu0 0.0
    %7375 = vmatpush2.msra.mxu0 0.0
    %7376 = vmatprep.subr.mxu0 0.0
    %7377 = vmatpush2.msra.mxu0 0.0
    %7378 = vmatprep.subr.mxu0 0.0
    %7379 = vmatpush2.msra.mxu0 0.0
    %7380 = vmatprep.subr.mxu0 0.0
    %7381 = vmatpush2.msra.mxu0 0.0
    %7382 = vmatprep.subr.mxu0 0.0
    %7383 = vmatpush2.msra.mxu0 0.0
    %7384 = vmatprep.subr.mxu0 0.0
    %7385 = vmatpush2.msra.mxu0 0.0
    %7386 = vmatprep.subr.mxu0 0.0
    %7387 = vmatpush2.msra.mxu0 0.0
    %7388 = vmatprep.subr.mxu0 0.0
    %7389 = vmatpush2.msra.mxu0 0.0
    %7390 = vmatprep.subr.mxu0 0.0
    %7391 = vmatpush2.msra.mxu0 0.0
    %7392 = vmatprep.subr.mxu0 0.0
    %7393 = vmatpush2.msra.mxu0 0.0
    %7394 = vmatprep.subr.mxu0 0.0
    %7395 = vmatpush2.msra.mxu0 0.0
    %7396 = vmatprep.subr.mxu0 0.0
    %7397 = vmatpush2.msra.mxu0 0.0
    %7398 = vmatprep.subr.mxu0 0.0
    %7399 = vmatpush2.msra.mxu0 0.0
    %7400 = vmatprep.subr.mxu0 0.0
    %7401 = vmatpush2.msra.mxu0 0.0
    %7402 = vmatprep.subr.mxu0 0.0
    %7403 = vmatpush2.msra.mxu0 0.0
    %7404 = vmatprep.subr.mxu0 0.0
    %7405 = vmatpush2.msra.mxu0 0.0
    %7406 = vmatprep.mubr.f32.mxu0 0.0
    %7407 = vmatmul.mubr.f32.gmra.mxu0 %v7340
    %v7408 = vpop.f32.mrf.mxu0
    %v7409 = vadd.f32 0.0, %v7408
    %v7410 = vpop.f32.mrf.mxu0
    %7411 = vdwg.mxu0
    %s7412 = scalar_lea.vmem [#allocation5], 96
    %v7413 = vld [vmem:[%s7412] sm:$0xff]
    %s7414 = scalar_lea.vmem [#allocation5], 104
    %v7415 = vld [vmem:[%s7414] sm:$0xff]
    %v7417 = vsel %vm255, %v7029, 0
    %v7420 = vsel %vm255, %v7105, 0
    %7422 = vmatprep.subr.mxu0 0.0
    %7423 = vmatpush1.msra.mxu0 0.0
    %7424 = vmatprep.subr.mxu0 0.0
    %7425 = vmatpush1.msra.mxu0 0.0
    %7426 = vmatprep.subr.mxu0 0.0
    %7427 = vmatpush1.msra.mxu0 0.0
    %7428 = vmatprep.subr.mxu0 0.0
    %7429 = vmatpush1.msra.mxu0 0.0
    %7430 = vmatprep.subr.mxu0 0.0
    %7431 = vmatpush1.msra.mxu0 0.0
    %7432 = vmatprep.subr.mxu0 0.0
    %7433 = vmatpush1.msra.mxu0 0.0
    %7434 = vmatprep.subr.mxu0 0.0
    %7435 = vmatpush1.msra.mxu0 0.0
    %7436 = vmatprep.subr.mxu0 0.0
    %7437 = vmatpush1.msra.mxu0 0.0
    %7438 = vmatprep.subr.mxu0 0.0
    %7439 = vmatpush1.msra.mxu0 0.0
    %7440 = vmatprep.subr.mxu0 0.0
    %7441 = vmatpush1.msra.mxu0 0.0
    %7442 = vmatprep.subr.mxu0 0.0
    %7443 = vmatpush1.msra.mxu0 0.0
    %7444 = vmatprep.subr.mxu0 0.0
    %7445 = vmatpush1.msra.mxu0 0.0
    %7446 = vmatprep.subr.mxu0 0.0
    %7447 = vmatpush1.msra.mxu0 0.0
    %7448 = vmatprep.subr.mxu0 0.0
    %7449 = vmatpush1.msra.mxu0 0.0
    %7450 = vmatprep.subr.mxu0 0.0
    %7451 = vmatpush1.msra.mxu0 0.0
    %7452 = vmatprep.subr.mxu0 0.0
    %7453 = vmatpush1.msra.mxu0 %v7415
    %7454 = vmatprep.subr.mxu0 0.0
    %7455 = vmatpush2.msra.mxu0 0.0
    %7456 = vmatprep.subr.mxu0 0.0
    %7457 = vmatpush2.msra.mxu0 0.0
    %7458 = vmatprep.subr.mxu0 0.0
    %7459 = vmatpush2.msra.mxu0 0.0
    %7460 = vmatprep.subr.mxu0 0.0
    %7461 = vmatpush2.msra.mxu0 0.0
    %7462 = vmatprep.subr.mxu0 0.0
    %7463 = vmatpush2.msra.mxu0 0.0
    %7464 = vmatprep.subr.mxu0 0.0
    %7465 = vmatpush2.msra.mxu0 0.0
    %7466 = vmatprep.subr.mxu0 0.0
    %7467 = vmatpush2.msra.mxu0 0.0
    %7468 = vmatprep.subr.mxu0 0.0
    %7469 = vmatpush2.msra.mxu0 0.0
    %7470 = vmatprep.subr.mxu0 0.0
    %7471 = vmatpush2.msra.mxu0 0.0
    %7472 = vmatprep.subr.mxu0 0.0
    %7473 = vmatpush2.msra.mxu0 0.0
    %7474 = vmatprep.subr.mxu0 0.0
    %7475 = vmatpush2.msra.mxu0 0.0
    %7476 = vmatprep.subr.mxu0 0.0
    %7477 = vmatpush2.msra.mxu0 0.0
    %7478 = vmatprep.subr.mxu0 0.0
    %7479 = vmatpush2.msra.mxu0 0.0
    %7480 = vmatprep.subr.mxu0 0.0
    %7481 = vmatpush2.msra.mxu0 0.0
    %7482 = vmatprep.subr.mxu0 0.0
    %7483 = vmatpush2.msra.mxu0 0.0
    %7484 = vmatprep.subr.mxu0 0.0
    %7485 = vmatpush2.msra.mxu0 0.0
    %7486 = vmatprep.mubr.f32.mxu0 0.0
    %7487 = vmatmul.mubr.f32.gmra.mxu0 %v7417
    %v7488 = vpop.f32.mrf.mxu0
    %v7489 = vadd.f32 0.0, %v7488
    %v7490 = vpop.f32.mrf.mxu0
    %7491 = vmatprep.mubr.f32.mxu0 0.0
    %7492 = vmatmul.mubr.f32.gmra.mxu0 %v7420
    %v7493 = vpop.f32.mrf.mxu0
    %v7494 = vadd.f32 0.0, %v7493
    %v7495 = vpop.f32.mrf.mxu0
    %7496 = vdwg.mxu0
    %v7498 = vsel %vm255, %v6877, 0
    %v7501 = vsel %vm255, %v6953, 0
    %7503 = vmatprep.subr.mxu0 0.0
    %7504 = vmatpush1.msra.mxu0 0.0
    %7505 = vmatprep.subr.mxu0 0.0
    %7506 = vmatpush1.msra.mxu0 0.0
    %7507 = vmatprep.subr.mxu0 0.0
    %7508 = vmatpush1.msra.mxu0 0.0
    %7509 = vmatprep.subr.mxu0 0.0
    %7510 = vmatpush1.msra.mxu0 0.0
    %7511 = vmatprep.subr.mxu0 0.0
    %7512 = vmatpush1.msra.mxu0 0.0
    %7513 = vmatprep.subr.mxu0 0.0
    %7514 = vmatpush1.msra.mxu0 0.0
    %7515 = vmatprep.subr.mxu0 0.0
    %7516 = vmatpush1.msra.mxu0 0.0
    %7517 = vmatprep.subr.mxu0 0.0
    %7518 = vmatpush1.msra.mxu0 0.0
    %7519 = vmatprep.subr.mxu0 0.0
    %7520 = vmatpush1.msra.mxu0 0.0
    %7521 = vmatprep.subr.mxu0 0.0
    %7522 = vmatpush1.msra.mxu0 0.0
    %7523 = vmatprep.subr.mxu0 0.0
    %7524 = vmatpush1.msra.mxu0 0.0
    %7525 = vmatprep.subr.mxu0 0.0
    %7526 = vmatpush1.msra.mxu0 0.0
    %7527 = vmatprep.subr.mxu0 0.0
    %7528 = vmatpush1.msra.mxu0 0.0
    %7529 = vmatprep.subr.mxu0 0.0
    %7530 = vmatpush1.msra.mxu0 0.0
    %7531 = vmatprep.subr.mxu0 0.0
    %7532 = vmatpush1.msra.mxu0 0.0
    %7533 = vmatprep.subr.mxu0 0.0
    %7534 = vmatpush1.msra.mxu0 %v7413
    %7535 = vmatprep.subr.mxu0 0.0
    %7536 = vmatpush2.msra.mxu0 0.0
    %7537 = vmatprep.subr.mxu0 0.0
    %7538 = vmatpush2.msra.mxu0 0.0
    %7539 = vmatprep.subr.mxu0 0.0
    %7540 = vmatpush2.msra.mxu0 0.0
    %7541 = vmatprep.subr.mxu0 0.0
    %7542 = vmatpush2.msra.mxu0 0.0
    %7543 = vmatprep.subr.mxu0 0.0
    %7544 = vmatpush2.msra.mxu0 0.0
    %7545 = vmatprep.subr.mxu0 0.0
    %7546 = vmatpush2.msra.mxu0 0.0
    %7547 = vmatprep.subr.mxu0 0.0
    %7548 = vmatpush2.msra.mxu0 0.0
    %7549 = vmatprep.subr.mxu0 0.0
    %7550 = vmatpush2.msra.mxu0 0.0
    %7551 = vmatprep.subr.mxu0 0.0
    %7552 = vmatpush2.msra.mxu0 0.0
    %7553 = vmatprep.subr.mxu0 0.0
    %7554 = vmatpush2.msra.mxu0 0.0
    %7555 = vmatprep.subr.mxu0 0.0
    %7556 = vmatpush2.msra.mxu0 0.0
    %7557 = vmatprep.subr.mxu0 0.0
    %7558 = vmatpush2.msra.mxu0 0.0
    %7559 = vmatprep.subr.mxu0 0.0
    %7560 = vmatpush2.msra.mxu0 0.0
    %7561 = vmatprep.subr.mxu0 0.0
    %7562 = vmatpush2.msra.mxu0 0.0
    %7563 = vmatprep.subr.mxu0 0.0
    %7564 = vmatpush2.msra.mxu0 0.0
    %7565 = vmatprep.subr.mxu0 0.0
    %7566 = vmatpush2.msra.mxu0 0.0
    %7567 = vmatprep.mubr.f32.mxu0 0.0
    %7568 = vmatmul.mubr.f32.gmra.mxu0 %v7498
    %v7569 = vpop.f32.mrf.mxu0
    %v7570 = vadd.f32 %v7489, %v7569
    %v7571 = vpop.f32.mrf.mxu0
    %7572 = vmatprep.mubr.f32.mxu0 0.0
    %7573 = vmatmul.mubr.f32.gmra.mxu0 %v7501
    %v7574 = vpop.f32.mrf.mxu0
    %v7575 = vadd.f32 %v7494, %v7574
    %v7576 = vpop.f32.mrf.mxu0
    %7577 = vdwg.mxu0
    %s7578 = scalar_lea.vmem [#allocation5], 112
    %v7579 = vld [vmem:[%s7578] sm:$0xff]
    %v7581 = vsel %vm255, %v7181, 0
    %v7584 = vsel %vm255, %v7257, 0
    %7586 = vmatprep.subr.mxu0 0.0
    %7587 = vmatpush1.msra.mxu0 0.0
    %7588 = vmatprep.subr.mxu0 0.0
    %7589 = vmatpush1.msra.mxu0 0.0
    %7590 = vmatprep.subr.mxu0 0.0
    %7591 = vmatpush1.msra.mxu0 0.0
    %7592 = vmatprep.subr.mxu0 0.0
    %7593 = vmatpush1.msra.mxu0 0.0
    %7594 = vmatprep.subr.mxu0 0.0
    %7595 = vmatpush1.msra.mxu0 0.0
    %7596 = vmatprep.subr.mxu0 0.0
    %7597 = vmatpush1.msra.mxu0 0.0
    %7598 = vmatprep.subr.mxu0 0.0
    %7599 = vmatpush1.msra.mxu0 0.0
    %7600 = vmatprep.subr.mxu0 0.0
    %7601 = vmatpush1.msra.mxu0 0.0
    %7602 = vmatprep.subr.mxu0 0.0
    %7603 = vmatpush1.msra.mxu0 0.0
    %7604 = vmatprep.subr.mxu0 0.0
    %7605 = vmatpush1.msra.mxu0 0.0
    %7606 = vmatprep.subr.mxu0 0.0
    %7607 = vmatpush1.msra.mxu0 0.0
    %7608 = vmatprep.subr.mxu0 0.0
    %7609 = vmatpush1.msra.mxu0 0.0
    %7610 = vmatprep.subr.mxu0 0.0
    %7611 = vmatpush1.msra.mxu0 0.0
    %7612 = vmatprep.subr.mxu0 0.0
    %7613 = vmatpush1.msra.mxu0 0.0
    %7614 = vmatprep.subr.mxu0 0.0
    %7615 = vmatpush1.msra.mxu0 0.0
    %7616 = vmatprep.subr.mxu0 0.0
    %7617 = vmatpush1.msra.mxu0 %v7579
    %7618 = vmatprep.subr.mxu0 0.0
    %7619 = vmatpush2.msra.mxu0 0.0
    %7620 = vmatprep.subr.mxu0 0.0
    %7621 = vmatpush2.msra.mxu0 0.0
    %7622 = vmatprep.subr.mxu0 0.0
    %7623 = vmatpush2.msra.mxu0 0.0
    %7624 = vmatprep.subr.mxu0 0.0
    %7625 = vmatpush2.msra.mxu0 0.0
    %7626 = vmatprep.subr.mxu0 0.0
    %7627 = vmatpush2.msra.mxu0 0.0
    %7628 = vmatprep.subr.mxu0 0.0
    %7629 = vmatpush2.msra.mxu0 0.0
    %7630 = vmatprep.subr.mxu0 0.0
    %7631 = vmatpush2.msra.mxu0 0.0
    %7632 = vmatprep.subr.mxu0 0.0
    %7633 = vmatpush2.msra.mxu0 0.0
    %7634 = vmatprep.subr.mxu0 0.0
    %7635 = vmatpush2.msra.mxu0 0.0
    %7636 = vmatprep.subr.mxu0 0.0
    %7637 = vmatpush2.msra.mxu0 0.0
    %7638 = vmatprep.subr.mxu0 0.0
    %7639 = vmatpush2.msra.mxu0 0.0
    %7640 = vmatprep.subr.mxu0 0.0
    %7641 = vmatpush2.msra.mxu0 0.0
    %7642 = vmatprep.subr.mxu0 0.0
    %7643 = vmatpush2.msra.mxu0 0.0
    %7644 = vmatprep.subr.mxu0 0.0
    %7645 = vmatpush2.msra.mxu0 0.0
    %7646 = vmatprep.subr.mxu0 0.0
    %7647 = vmatpush2.msra.mxu0 0.0
    %7648 = vmatprep.subr.mxu0 0.0
    %7649 = vmatpush2.msra.mxu0 0.0
    %7650 = vmatprep.mubr.f32.mxu0 0.0
    %7651 = vmatmul.mubr.f32.gmra.mxu0 %v7581
    %v7652 = vpop.f32.mrf.mxu0
    %v7653 = vadd.f32 0.0, %v7652
    %v7654 = vpop.f32.mrf.mxu0
    %7655 = vmatprep.mubr.f32.mxu0 0.0
    %7656 = vmatmul.mubr.f32.gmra.mxu0 %v7584
    %v7657 = vpop.f32.mrf.mxu0
    %v7658 = vadd.f32 0.0, %v7657
    %v7659 = vpop.f32.mrf.mxu0
    %7660 = vdwg.mxu0
    %v7661 = vadd.f32 %v7570, %v7653
    %v7662 = vadd.f32 %v7575, %v7658
    %s7663 = scalar_lea.vmem [#allocation5], 120
    %v7664 = vld [vmem:[%s7663] sm:$0xff]
    %v7666 = vsel %vm255, %v7333, 0
    %v7669 = vsel %vm255, %v7409, 0
    %7671 = vmatprep.subr.mxu0 0.0
    %7672 = vmatpush1.msra.mxu0 0.0
    %7673 = vmatprep.subr.mxu0 0.0
    %7674 = vmatpush1.msra.mxu0 0.0
    %7675 = vmatprep.subr.mxu0 0.0
    %7676 = vmatpush1.msra.mxu0 0.0
    %7677 = vmatprep.subr.mxu0 0.0
    %7678 = vmatpush1.msra.mxu0 0.0
    %7679 = vmatprep.subr.mxu0 0.0
    %7680 = vmatpush1.msra.mxu0 0.0
    %7681 = vmatprep.subr.mxu0 0.0
    %7682 = vmatpush1.msra.mxu0 0.0
    %7683 = vmatprep.subr.mxu0 0.0
    %7684 = vmatpush1.msra.mxu0 0.0
    %7685 = vmatprep.subr.mxu0 0.0
    %7686 = vmatpush1.msra.mxu0 0.0
    %7687 = vmatprep.subr.mxu0 0.0
    %7688 = vmatpush1.msra.mxu0 0.0
    %7689 = vmatprep.subr.mxu0 0.0
    %7690 = vmatpush1.msra.mxu0 0.0
    %7691 = vmatprep.subr.mxu0 0.0
    %7692 = vmatpush1.msra.mxu0 0.0
    %7693 = vmatprep.subr.mxu0 0.0
    %7694 = vmatpush1.msra.mxu0 0.0
    %7695 = vmatprep.subr.mxu0 0.0
    %7696 = vmatpush1.msra.mxu0 0.0
    %7697 = vmatprep.subr.mxu0 0.0
    %7698 = vmatpush1.msra.mxu0 0.0
    %7699 = vmatprep.subr.mxu0 0.0
    %7700 = vmatpush1.msra.mxu0 0.0
    %7701 = vmatprep.subr.mxu0 0.0
    %7702 = vmatpush1.msra.mxu0 %v7664
    %7703 = vmatprep.subr.mxu0 0.0
    %7704 = vmatpush2.msra.mxu0 0.0
    %7705 = vmatprep.subr.mxu0 0.0
    %7706 = vmatpush2.msra.mxu0 0.0
    %7707 = vmatprep.subr.mxu0 0.0
    %7708 = vmatpush2.msra.mxu0 0.0
    %7709 = vmatprep.subr.mxu0 0.0
    %7710 = vmatpush2.msra.mxu0 0.0
    %7711 = vmatprep.subr.mxu0 0.0
    %7712 = vmatpush2.msra.mxu0 0.0
    %7713 = vmatprep.subr.mxu0 0.0
    %7714 = vmatpush2.msra.mxu0 0.0
    %7715 = vmatprep.subr.mxu0 0.0
    %7716 = vmatpush2.msra.mxu0 0.0
    %7717 = vmatprep.subr.mxu0 0.0
    %7718 = vmatpush2.msra.mxu0 0.0
    %7719 = vmatprep.subr.mxu0 0.0
    %7720 = vmatpush2.msra.mxu0 0.0
    %7721 = vmatprep.subr.mxu0 0.0
    %7722 = vmatpush2.msra.mxu0 0.0
    %7723 = vmatprep.subr.mxu0 0.0
    %7724 = vmatpush2.msra.mxu0 0.0
    %7725 = vmatprep.subr.mxu0 0.0
    %7726 = vmatpush2.msra.mxu0 0.0
    %7727 = vmatprep.subr.mxu0 0.0
    %7728 = vmatpush2.msra.mxu0 0.0
    %7729 = vmatprep.subr.mxu0 0.0
    %7730 = vmatpush2.msra.mxu0 0.0
    %7731 = vmatprep.subr.mxu0 0.0
    %7732 = vmatpush2.msra.mxu0 0.0
    %7733 = vmatprep.subr.mxu0 0.0
    %7734 = vmatpush2.msra.mxu0 0.0
    %7735 = vmatprep.mubr.f32.mxu0 0.0
    %7736 = vmatmul.mubr.f32.gmra.mxu0 %v7666
    %v7737 = vpop.f32.mrf.mxu0
    %v7738 = vadd.f32 0.0, %v7737
    %v7739 = vpop.f32.mrf.mxu0
    %7740 = vmatprep.mubr.f32.mxu0 0.0
    %7741 = vmatmul.mubr.f32.gmra.mxu0 %v7669
    %v7742 = vpop.f32.mrf.mxu0
    %v7743 = vadd.f32 0.0, %v7742
    %v7744 = vpop.f32.mrf.mxu0
    %7745 = vdwg.mxu0
    %v7746 = vadd.f32 %v7661, %v7738
    %v7747 = vadd.f32 %v7662, %v7743
    %v7748 = vld [vmem:[%s3813 + $0x1] sm:$0x1]
    %v7749 = vlaneseq
    %v7750 = vshrl.u32 %v7749, 7
    %v7751 = vsub.s32 0, %v7750
    %v7752 = vrot.slane %v7748, %v7751
    %v7753 = vadd.f32 %v7746, %v7752
    %v7754 = vadd.f32 %v7747, %v7752
    %v7755 = vadd.f32 %v5900, %v7753
    %v7756 = vadd.f32 %v5901, %v7754
    %v7757 = vld [vmem:[%s11 + $0x4] sm:$0x1]
    %v7758 = vld [vmem:[%s1919 + $0x4] sm:$0x1]
    %v7759 = vsel %vm157, %v7755, 0.0
    %7760 = vadd.xlane.f32.xlu0 %v7759
    %v7761 = vpop.xlane.xlu0 %7760
    %v7762 = vsel %vm157, %v7756, 0.0
    %7763 = vadd.xlane.f32.xlu0 %v7762
    %v7764 = vpop.xlane.xlu0 %7763
    %v7765 = vmul.f32 %v7761, %v1927
    %v7766 = vmul.f32 %v7764, %v1927
    %v7767 = vsub.f32 %v7755, %v7765
    %v7768 = vsub.f32 %v7756, %v7766
    %v7769 = vmul.f32 %v7767, %v7767
    %v7770 = vmul.f32 %v7768, %v7768
    %v7771 = vsel %vm157, %v7769, 0.0
    %7772 = vadd.xlane.f32.xlu0 %v7771
    %v7773 = vpop.xlane.xlu0 %7772
    %v7774 = vsel %vm157, %v7770, 0.0
    %7775 = vadd.xlane.f32.xlu0 %v7774
    %v7776 = vpop.xlane.xlu0 %7775
    %v7777 = vmul.f32 %v7773, %v1927
    %v7778 = vmul.f32 %v7776, %v1927
    %v7779 = vadd.f32 %v7777, 1e-05
    %v7780 = vadd.f32 %v7778, 1e-05
    %v7781 = vrsqrt.pop %v7779
    %v7782 = vrsqrt.pop %v7780
    %v7783 = vmul.f32 %v7767, %v7781
    %v7784 = vmul.f32 %v7768, %v7782
    %v7785 = vlaneseq
    %v7786 = vshrl.u32 %v7785, 7
    %v7787 = vsub.s32 0, %v7786
    %v7788 = vrot.slane %v7757, %v7787
    %v7789 = vmul.f32 %v7783, %v7788
    %v7790 = vmul.f32 %v7784, %v7788
    %v7791 = vlaneseq
    %v7792 = vshrl.u32 %v7791, 7
    %v7793 = vsub.s32 0, %v7792
    %v7794 = vrot.slane %v7758, %v7793
    %v7795 = vadd.f32 %v7789, %v7794
    %v7796 = vadd.f32 %v7790, %v7794
    %s7797 = scalar_lea.vmem %s7, 32
    %v7798 = vld [vmem:[%s7797] sm:$0xff]
    %v7799 = vld [vmem:[%s7797 + $0x8] sm:$0xff]
    %v7800 = vld [vmem:[%s7797 + $0x10] sm:$0xff]
    %v7801 = vld [vmem:[%s7797 + $0x18] sm:$0xff]
    %v7802 = vld [vmem:[#allocation8 + $0x1] sm:$0x1]
    %v7803 = vlaneseq
    %v7804 = vshrl.u32 %v7803, 7
    %v7805 = vsub.s32 0, %v7804
    %v7806 = vrot.slane %v7802, %v7805
    %v7808 = vsel %vm157, %v7795, 0
    %v7811 = vsel %vm157, %v7796, 0
    %7813 = vmatprep.subr.mxu0 0.0
    %7814 = vmatpush1.msra.mxu0 0.0
    %7815 = vmatprep.subr.mxu0 0.0
    %7816 = vmatpush1.msra.mxu0 0.0
    %7817 = vmatprep.subr.mxu0 0.0
    %7818 = vmatpush1.msra.mxu0 0.0
    %7819 = vmatprep.subr.mxu0 0.0
    %7820 = vmatpush1.msra.mxu0 0.0
    %7821 = vmatprep.subr.mxu0 0.0
    %7822 = vmatpush1.msra.mxu0 0.0
    %7823 = vmatprep.subr.mxu0 0.0
    %7824 = vmatpush1.msra.mxu0 0.0
    %7825 = vmatprep.subr.mxu0 0.0
    %7826 = vmatpush1.msra.mxu0 0.0
    %7827 = vmatprep.subr.mxu0 0.0
    %7828 = vmatpush1.msra.mxu0 0.0
    %7829 = vmatprep.subr.mxu0 0.0
    %7830 = vmatpush1.msra.mxu0 0.0
    %7831 = vmatprep.subr.mxu0 0.0
    %7832 = vmatpush1.msra.mxu0 0.0
    %7833 = vmatprep.subr.mxu0 0.0
    %7834 = vmatpush1.msra.mxu0 0.0
    %7835 = vmatprep.subr.mxu0 0.0
    %7836 = vmatpush1.msra.mxu0 0.0
    %7837 = vmatprep.subr.mxu0 0.0
    %7838 = vmatpush1.msra.mxu0 %v7801
    %7839 = vmatprep.subr.mxu0 0.0
    %7840 = vmatpush1.msra.mxu0 %v7800
    %7841 = vmatprep.subr.mxu0 0.0
    %7842 = vmatpush1.msra.mxu0 %v7799
    %7843 = vmatprep.subr.mxu0 0.0
    %7844 = vmatpush1.msra.mxu0 %v7798
    %7845 = vmatprep.subr.mxu0 0.0
    %7846 = vmatpush2.msra.mxu0 0.0
    %7847 = vmatprep.subr.mxu0 0.0
    %7848 = vmatpush2.msra.mxu0 0.0
    %7849 = vmatprep.subr.mxu0 0.0
    %7850 = vmatpush2.msra.mxu0 0.0
    %7851 = vmatprep.subr.mxu0 0.0
    %7852 = vmatpush2.msra.mxu0 0.0
    %7853 = vmatprep.subr.mxu0 0.0
    %7854 = vmatpush2.msra.mxu0 0.0
    %7855 = vmatprep.subr.mxu0 0.0
    %7856 = vmatpush2.msra.mxu0 0.0
    %7857 = vmatprep.subr.mxu0 0.0
    %7858 = vmatpush2.msra.mxu0 0.0
    %7859 = vmatprep.subr.mxu0 0.0
    %7860 = vmatpush2.msra.mxu0 0.0
    %7861 = vmatprep.subr.mxu0 0.0
    %7862 = vmatpush2.msra.mxu0 0.0
    %7863 = vmatprep.subr.mxu0 0.0
    %7864 = vmatpush2.msra.mxu0 0.0
    %7865 = vmatprep.subr.mxu0 0.0
    %7866 = vmatpush2.msra.mxu0 0.0
    %7867 = vmatprep.subr.mxu0 0.0
    %7868 = vmatpush2.msra.mxu0 0.0
    %7869 = vmatprep.subr.mxu0 0.0
    %7870 = vmatpush2.msra.mxu0 0.0
    %7871 = vmatprep.subr.mxu0 0.0
    %7872 = vmatpush2.msra.mxu0 0.0
    %7873 = vmatprep.subr.mxu0 0.0
    %7874 = vmatpush2.msra.mxu0 0.0
    %7875 = vmatprep.subr.mxu0 0.0
    %7876 = vmatpush2.msra.mxu0 0.0
    %7877 = vmatprep.mubr.f32.mxu0 0.0
    %7878 = vmatmul.mubr.f32.gmra.mxu0 %v7808
    %v7879 = vpop.f32.mrf.mxu0
    %v7880 = vadd.f32 %v7806, %v7879
    %v7881 = vpop.f32.mrf.mxu0
    %7882 = vmatprep.mubr.f32.mxu0 0.0
    %7883 = vmatmul.mubr.f32.gmra.mxu0 %v7811
    %v7884 = vpop.f32.mrf.mxu0
    %v7885 = vadd.f32 %v7806, %v7884
    %v7886 = vpop.f32.mrf.mxu0
    %7887 = vdwg.mxu0
    %v7888 = vmax.f32 %v7880, 0.0
    %v7889 = vmax.f32 %v7885, 0.0
    %s7890 = scalar_lea.vmem %s9, 64
    %v7891 = vld [vmem:[%s7890] sm:$0xff]
    %v7892 = vld [vmem:[%s7890 + $0x8] sm:$0xff]
    %v7893 = vld [vmem:[%s7890 + $0x10] sm:$0xff]
    %v7894 = vld [vmem:[%s7890 + $0x18] sm:$0xff]
    %v7895 = vld [vmem:[%s7890 + $0x20] sm:$0xff]
    %v7896 = vld [vmem:[%s7890 + $0x28] sm:$0xff]
    %v7897 = vld [vmem:[%s7890 + $0x30] sm:$0xff]
    %v7898 = vld [vmem:[%s7890 + $0x38] sm:$0xff]
    %v7899 = vld [vmem:[#allocation10 + $0x1] sm:$0x1]
    %v7900 = vlaneseq
    %v7901 = vshrl.u32 %v7900, 7
    %v7902 = vsub.s32 0, %v7901
    %v7903 = vrot.slane %v7899, %v7902
    %v7905 = vsel %vm3968, %v7888, 0
    %v7908 = vsel %vm3968, %v7889, 0
    %7910 = vmatprep.subr.mxu0 0.0
    %7911 = vmatpush1.msra.mxu0 0.0
    %7912 = vmatprep.subr.mxu0 0.0
    %7913 = vmatpush1.msra.mxu0 0.0
    %7914 = vmatprep.subr.mxu0 0.0
    %7915 = vmatpush1.msra.mxu0 0.0
    %7916 = vmatprep.subr.mxu0 0.0
    %7917 = vmatpush1.msra.mxu0 0.0
    %7918 = vmatprep.subr.mxu0 0.0
    %7919 = vmatpush1.msra.mxu0 0.0
    %7920 = vmatprep.subr.mxu0 0.0
    %7921 = vmatpush1.msra.mxu0 0.0
    %7922 = vmatprep.subr.mxu0 0.0
    %7923 = vmatpush1.msra.mxu0 0.0
    %7924 = vmatprep.subr.mxu0 0.0
    %7925 = vmatpush1.msra.mxu0 0.0
    %7926 = vmatprep.subr.mxu0 0.0
    %7927 = vmatpush1.msra.mxu0 %v7898
    %7928 = vmatprep.subr.mxu0 0.0
    %7929 = vmatpush1.msra.mxu0 %v7897
    %7930 = vmatprep.subr.mxu0 0.0
    %7931 = vmatpush1.msra.mxu0 %v7896
    %7932 = vmatprep.subr.mxu0 0.0
    %7933 = vmatpush1.msra.mxu0 %v7895
    %7934 = vmatprep.subr.mxu0 0.0
    %7935 = vmatpush1.msra.mxu0 %v7894
    %7936 = vmatprep.subr.mxu0 0.0
    %7937 = vmatpush1.msra.mxu0 %v7893
    %7938 = vmatprep.subr.mxu0 0.0
    %7939 = vmatpush1.msra.mxu0 %v7892
    %7940 = vmatprep.subr.mxu0 0.0
    %7941 = vmatpush1.msra.mxu0 %v7891
    %7942 = vmatprep.subr.mxu0 0.0
    %7943 = vmatpush2.msra.mxu0 0.0
    %7944 = vmatprep.subr.mxu0 0.0
    %7945 = vmatpush2.msra.mxu0 0.0
    %7946 = vmatprep.subr.mxu0 0.0
    %7947 = vmatpush2.msra.mxu0 0.0
    %7948 = vmatprep.subr.mxu0 0.0
    %7949 = vmatpush2.msra.mxu0 0.0
    %7950 = vmatprep.subr.mxu0 0.0
    %7951 = vmatpush2.msra.mxu0 0.0
    %7952 = vmatprep.subr.mxu0 0.0
    %7953 = vmatpush2.msra.mxu0 0.0
    %7954 = vmatprep.subr.mxu0 0.0
    %7955 = vmatpush2.msra.mxu0 0.0
    %7956 = vmatprep.subr.mxu0 0.0
    %7957 = vmatpush2.msra.mxu0 0.0
    %7958 = vmatprep.subr.mxu0 0.0
    %7959 = vmatpush2.msra.mxu0 0.0
    %7960 = vmatprep.subr.mxu0 0.0
    %7961 = vmatpush2.msra.mxu0 0.0
    %7962 = vmatprep.subr.mxu0 0.0
    %7963 = vmatpush2.msra.mxu0 0.0
    %7964 = vmatprep.subr.mxu0 0.0
    %7965 = vmatpush2.msra.mxu0 0.0
    %7966 = vmatprep.subr.mxu0 0.0
    %7967 = vmatpush2.msra.mxu0 0.0
    %7968 = vmatprep.subr.mxu0 0.0
    %7969 = vmatpush2.msra.mxu0 0.0
    %7970 = vmatprep.subr.mxu0 0.0
    %7971 = vmatpush2.msra.mxu0 0.0
    %7972 = vmatprep.subr.mxu0 0.0
    %7973 = vmatpush2.msra.mxu0 0.0
    %7974 = vmatprep.mubr.f32.mxu0 0.0
    %7975 = vmatmul.mubr.f32.gmra.mxu0 %v7905
    %v7976 = vpop.f32.mrf.mxu0
    %v7977 = vadd.f32 %v7903, %v7976
    %v7978 = vpop.f32.mrf.mxu0
    %7979 = vmatprep.mubr.f32.mxu0 0.0
    %7980 = vmatmul.mubr.f32.gmra.mxu0 %v7908
    %v7981 = vpop.f32.mrf.mxu0
    %v7982 = vadd.f32 %v7903, %v7981
    %v7983 = vpop.f32.mrf.mxu0
    %7984 = vdwg.mxu0
    %v7985 = vadd.f32 %v7795, %v7977
    %v7986 = vadd.f32 %v7796, %v7982
    %v7987 = vld [vmem:[%s11 + $0x5] sm:$0x1]
    %v7988 = vld [vmem:[%s1919 + $0x5] sm:$0x1]
    %v7989 = vsel %vm157, %v7985, 0.0
    %7990 = vadd.xlane.f32.xlu0 %v7989
    %v7991 = vpop.xlane.xlu0 %7990
    %v7992 = vsel %vm157, %v7986, 0.0
    %7993 = vadd.xlane.f32.xlu0 %v7992
    %v7994 = vpop.xlane.xlu0 %7993
    %v7995 = vmul.f32 %v7991, %v1927
    %v7996 = vmul.f32 %v7994, %v1927
    %v7997 = vsub.f32 %v7985, %v7995
    %v7998 = vsub.f32 %v7986, %v7996
    %v7999 = vmul.f32 %v7997, %v7997
    %v8000 = vmul.f32 %v7998, %v7998
    %v8001 = vsel %vm157, %v7999, 0.0
    %8002 = vadd.xlane.f32.xlu0 %v8001
    %v8003 = vpop.xlane.xlu0 %8002
    %v8004 = vsel %vm157, %v8000, 0.0
    %8005 = vadd.xlane.f32.xlu0 %v8004
    %v8006 = vpop.xlane.xlu0 %8005
    %v8007 = vmul.f32 %v8003, %v1927
    %v8008 = vmul.f32 %v8006, %v1927
    %v8009 = vadd.f32 %v8007, 1e-05
    %v8010 = vadd.f32 %v8008, 1e-05
    %v8011 = vrsqrt.pop %v8009
    %v8012 = vrsqrt.pop %v8010
    %v8013 = vmul.f32 %v7997, %v8011
    %v8014 = vmul.f32 %v7998, %v8012
    %v8015 = vlaneseq
    %v8016 = vshrl.u32 %v8015, 7
    %v8017 = vsub.s32 0, %v8016
    %v8018 = vrot.slane %v7987, %v8017
    %v8019 = vmul.f32 %v8013, %v8018
    %v8020 = vmul.f32 %v8014, %v8018
    %v8021 = vlaneseq
    %v8022 = vshrl.u32 %v8021, 7
    %v8023 = vsub.s32 0, %v8022
    %v8024 = vrot.slane %v7988, %v8023
    %v8025 = vadd.f32 %v8019, %v8024
    %v8026 = vadd.f32 %v8020, %v8024
    %v8027 = vld [vmem:[%s11 + $0x6] sm:$0x1]
    %v8028 = vld [vmem:[%s1919 + $0x6] sm:$0x1]
    %v8029 = vsel %vm157, %v8025, 0.0
    %8030 = vadd.xlane.f32.xlu0 %v8029
    %v8031 = vpop.xlane.xlu0 %8030
    %v8032 = vsel %vm157, %v8026, 0.0
    %8033 = vadd.xlane.f32.xlu0 %v8032
    %v8034 = vpop.xlane.xlu0 %8033
    %v8035 = vmul.f32 %v8031, %v1927
    %v8036 = vmul.f32 %v8034, %v1927
    %v8037 = vsub.f32 %v8025, %v8035
    %v8038 = vsub.f32 %v8026, %v8036
    %v8039 = vmul.f32 %v8037, %v8037
    %v8040 = vmul.f32 %v8038, %v8038
    %v8041 = vsel %vm157, %v8039, 0.0
    %8042 = vadd.xlane.f32.xlu0 %v8041
    %v8043 = vpop.xlane.xlu0 %8042
    %v8044 = vsel %vm157, %v8040, 0.0
    %8045 = vadd.xlane.f32.xlu0 %v8044
    %v8046 = vpop.xlane.xlu0 %8045
    %v8047 = vmul.f32 %v8043, %v1927
    %v8048 = vmul.f32 %v8046, %v1927
    %v8049 = vadd.f32 %v8047, 1e-05
    %v8050 = vadd.f32 %v8048, 1e-05
    %v8051 = vrsqrt.pop %v8049
    %v8052 = vrsqrt.pop %v8050
    %v8053 = vmul.f32 %v8037, %v8051
    %v8054 = vmul.f32 %v8038, %v8052
    %v8055 = vlaneseq
    %v8056 = vshrl.u32 %v8055, 7
    %v8057 = vsub.s32 0, %v8056
    %v8058 = vrot.slane %v8027, %v8057
    %v8059 = vmul.f32 %v8053, %v8058
    %v8060 = vmul.f32 %v8054, %v8058
    %v8061 = vlaneseq
    %v8062 = vshrl.u32 %v8061, 7
    %v8063 = vsub.s32 0, %v8062
    %v8064 = vrot.slane %v8028, %v8063
    %v8065 = vadd.f32 %v8059, %v8064
    %v8066 = vadd.f32 %v8060, %v8064
    %v8067 = vld [vmem:[#allocation11] sm:$0xff]
    %v8068 = vld [vmem:[#allocation11 + $0x8] sm:$0xff]
    %v8069 = vld [vmem:[#allocation11 + $0x10] sm:$0xff]
    %v8070 = vld [vmem:[#allocation11 + $0x18] sm:$0xff]
    %v8071 = vld [vmem:[#allocation11 + $0x20] sm:$0xff]
    %v8072 = vld [vmem:[#allocation11 + $0x28] sm:$0xff]
    %v8073 = vld [vmem:[#allocation11 + $0x30] sm:$0xff]
    %v8074 = vld [vmem:[#allocation11 + $0x38] sm:$0xff]
    %v8075 = vld [vmem:[#allocation11 + $0x40] sm:$0xff]
    %v8076 = vld [vmem:[#allocation11 + $0x48] sm:$0xff]
    %v8077 = vld [vmem:[#allocation11 + $0x50] sm:$0xff]
    %v8078 = vld [vmem:[#allocation11 + $0x58] sm:$0xff]
    %v8079 = vld [vmem:[#allocation11 + $0x60] sm:$0xff]
    %v8080 = vld [vmem:[#allocation11 + $0x68] sm:$0xff]
    %v8081 = vld [vmem:[#allocation11 + $0x70] sm:$0xff]
    %v8082 = vld [vmem:[#allocation11 + $0x78] sm:$0xff]
    %v8083 = vld [vmem:[#allocation13] sm:$0xf]
    %v8085 = vlaneseq
    %v8086 = vshrl.u32 %v8085, 7
    %v8087 = vsub.s32 0, %v8086
    %v8088 = vrot.slane %v8083, %v8087
    %v8089 = vlaneseq
    %v8090 = vshrl.u32 %v8089, 7
    %v8091 = vsub.s32 1, %v8090
    %v8092 = vrot.slane %v8083, %v8091
    %v8093 = vlaneseq
    %v8094 = vshrl.u32 %v8093, 7
    %v8095 = vsub.s32 2, %v8094
    %v8096 = vrot.slane %v8083, %v8095
    %v8097 = vlaneseq
    %v8098 = vshrl.u32 %v8097, 7
    %v8099 = vsub.s32 3, %v8098
    %v8100 = vrot.slane %v8083, %v8099
    %v8106 = vsel %vm157, %v8065, 0
    %v8109 = vsel %vm157, %v8066, 0
    %8111 = vmatprep.subr.mxu0 0.0
    %8112 = vmatpush1.msra.mxu0 0.0
    %8113 = vmatprep.subr.mxu0 0.0
    %8114 = vmatpush1.msra.mxu0 0.0
    %8115 = vmatprep.subr.mxu0 0.0
    %8116 = vmatpush1.msra.mxu0 0.0
    %8117 = vmatprep.subr.mxu0 0.0
    %8118 = vmatpush1.msra.mxu0 0.0
    %8119 = vmatprep.subr.mxu0 0.0
    %8120 = vmatpush1.msra.mxu0 0.0
    %8121 = vmatprep.subr.mxu0 0.0
    %8122 = vmatpush1.msra.mxu0 0.0
    %8123 = vmatprep.subr.mxu0 0.0
    %8124 = vmatpush1.msra.mxu0 0.0
    %8125 = vmatprep.subr.mxu0 0.0
    %8126 = vmatpush1.msra.mxu0 0.0
    %8127 = vmatprep.subr.mxu0 0.0
    %8128 = vmatpush1.msra.mxu0 0.0
    %8129 = vmatprep.subr.mxu0 0.0
    %8130 = vmatpush1.msra.mxu0 0.0
    %8131 = vmatprep.subr.mxu0 0.0
    %8132 = vmatpush1.msra.mxu0 0.0
    %8133 = vmatprep.subr.mxu0 0.0
    %8134 = vmatpush1.msra.mxu0 0.0
    %8135 = vmatprep.subr.mxu0 %v8080
    %8136 = vmatpush1.msra.mxu0 %v8079
    %8137 = vmatprep.subr.mxu0 %v8076
    %8138 = vmatpush1.msra.mxu0 %v8075
    %8139 = vmatprep.subr.mxu0 %v8072
    %8140 = vmatpush1.msra.mxu0 %v8071
    %8141 = vmatprep.subr.mxu0 %v8068
    %8142 = vmatpush1.msra.mxu0 %v8067
    %8143 = vmatprep.subr.mxu0 0.0
    %8144 = vmatpush2.msra.mxu0 0.0
    %8145 = vmatprep.subr.mxu0 0.0
    %8146 = vmatpush2.msra.mxu0 0.0
    %8147 = vmatprep.subr.mxu0 0.0
    %8148 = vmatpush2.msra.mxu0 0.0
    %8149 = vmatprep.subr.mxu0 0.0
    %8150 = vmatpush2.msra.mxu0 0.0
    %8151 = vmatprep.subr.mxu0 0.0
    %8152 = vmatpush2.msra.mxu0 0.0
    %8153 = vmatprep.subr.mxu0 0.0
    %8154 = vmatpush2.msra.mxu0 0.0
    %8155 = vmatprep.subr.mxu0 0.0
    %8156 = vmatpush2.msra.mxu0 0.0
    %8157 = vmatprep.subr.mxu0 0.0
    %8158 = vmatpush2.msra.mxu0 0.0
    %8159 = vmatprep.subr.mxu0 0.0
    %8160 = vmatpush2.msra.mxu0 0.0
    %8161 = vmatprep.subr.mxu0 0.0
    %8162 = vmatpush2.msra.mxu0 0.0
    %8163 = vmatprep.subr.mxu0 0.0
    %8164 = vmatpush2.msra.mxu0 0.0
    %8165 = vmatprep.subr.mxu0 0.0
    %8166 = vmatpush2.msra.mxu0 0.0
    %8167 = vmatprep.subr.mxu0 0.0
    %8168 = vmatpush2.msra.mxu0 0.0
    %8169 = vmatprep.subr.mxu0 0.0
    %8170 = vmatpush2.msra.mxu0 0.0
    %8171 = vmatprep.subr.mxu0 0.0
    %8172 = vmatpush2.msra.mxu0 0.0
    %8173 = vmatprep.subr.mxu0 0.0
    %8174 = vmatpush2.msra.mxu0 0.0
    %8175 = vmatprep.mubr.f32.mxu0 0.0
    %8176 = vmatmul.mubr.f32.gmra.mxu0 %v8106
    %v8177 = vpop.f32.mrf.mxu0
    %v8178 = vadd.f32 %v8088, %v8177
    %v8179 = vpop.f32.mrf.mxu0
    %v8180 = vadd.f32 %v8092, %v8179
    %8181 = vmatprep.mubr.f32.mxu0 0.0
    %8182 = vmatmul.mubr.f32.gmra.mxu0 %v8109
    %v8183 = vpop.f32.mrf.mxu0
    %v8184 = vadd.f32 %v8088, %v8183
    %v8185 = vpop.f32.mrf.mxu0
    %v8186 = vadd.f32 %v8092, %v8185
    %8187 = vdwg.mxu0
    %8188 = vmatprep.subr.mxu0 0.0
    %8189 = vmatpush1.msra.mxu0 0.0
    %8190 = vmatprep.subr.mxu0 0.0
    %8191 = vmatpush1.msra.mxu0 0.0
    %8192 = vmatprep.subr.mxu0 0.0
    %8193 = vmatpush1.msra.mxu0 0.0
    %8194 = vmatprep.subr.mxu0 0.0
    %8195 = vmatpush1.msra.mxu0 0.0
    %8196 = vmatprep.subr.mxu0 0.0
    %8197 = vmatpush1.msra.mxu0 0.0
    %8198 = vmatprep.subr.mxu0 0.0
    %8199 = vmatpush1.msra.mxu0 0.0
    %8200 = vmatprep.subr.mxu0 0.0
    %8201 = vmatpush1.msra.mxu0 0.0
    %8202 = vmatprep.subr.mxu0 0.0
    %8203 = vmatpush1.msra.mxu0 0.0
    %8204 = vmatprep.subr.mxu0 0.0
    %8205 = vmatpush1.msra.mxu0 0.0
    %8206 = vmatprep.subr.mxu0 0.0
    %8207 = vmatpush1.msra.mxu0 0.0
    %8208 = vmatprep.subr.mxu0 0.0
    %8209 = vmatpush1.msra.mxu0 0.0
    %8210 = vmatprep.subr.mxu0 0.0
    %8211 = vmatpush1.msra.mxu0 0.0
    %8212 = vmatprep.subr.mxu0 %v8082
    %8213 = vmatpush1.msra.mxu0 %v8081
    %8214 = vmatprep.subr.mxu0 %v8078
    %8215 = vmatpush1.msra.mxu0 %v8077
    %8216 = vmatprep.subr.mxu0 %v8074
    %8217 = vmatpush1.msra.mxu0 %v8073
    %8218 = vmatprep.subr.mxu0 %v8070
    %8219 = vmatpush1.msra.mxu0 %v8069
    %8220 = vmatprep.subr.mxu0 0.0
    %8221 = vmatpush2.msra.mxu0 0.0
    %8222 = vmatprep.subr.mxu0 0.0
    %8223 = vmatpush2.msra.mxu0 0.0
    %8224 = vmatprep.subr.mxu0 0.0
    %8225 = vmatpush2.msra.mxu0 0.0
    %8226 = vmatprep.subr.mxu0 0.0
    %8227 = vmatpush2.msra.mxu0 0.0
    %8228 = vmatprep.subr.mxu0 0.0
    %8229 = vmatpush2.msra.mxu0 0.0
    %8230 = vmatprep.subr.mxu0 0.0
    %8231 = vmatpush2.msra.mxu0 0.0
    %8232 = vmatprep.subr.mxu0 0.0
    %8233 = vmatpush2.msra.mxu0 0.0
    %8234 = vmatprep.subr.mxu0 0.0
    %8235 = vmatpush2.msra.mxu0 0.0
    %8236 = vmatprep.subr.mxu0 0.0
    %8237 = vmatpush2.msra.mxu0 0.0
    %8238 = vmatprep.subr.mxu0 0.0
    %8239 = vmatpush2.msra.mxu0 0.0
    %8240 = vmatprep.subr.mxu0 0.0
    %8241 = vmatpush2.msra.mxu0 0.0
    %8242 = vmatprep.subr.mxu0 0.0
    %8243 = vmatpush2.msra.mxu0 0.0
    %8244 = vmatprep.subr.mxu0 0.0
    %8245 = vmatpush2.msra.mxu0 0.0
    %8246 = vmatprep.subr.mxu0 0.0
    %8247 = vmatpush2.msra.mxu0 0.0
    %8248 = vmatprep.subr.mxu0 0.0
    %8249 = vmatpush2.msra.mxu0 0.0
    %8250 = vmatprep.subr.mxu0 0.0
    %8251 = vmatpush2.msra.mxu0 0.0
    %8252 = vmatprep.mubr.f32.mxu0 0.0
    %8253 = vmatmul.mubr.f32.gmra.mxu0 %v8106
    %v8254 = vpop.f32.mrf.mxu0
    %v8255 = vadd.f32 %v8096, %v8254
    %v8256 = vpop.f32.mrf.mxu0
    %v8257 = vadd.f32 %v8100, %v8256
    %8258 = vmatprep.mubr.f32.mxu0 0.0
    %8259 = vmatmul.mubr.f32.gmra.mxu0 %v8109
    %v8260 = vpop.f32.mrf.mxu0
    %v8261 = vadd.f32 %v8096, %v8260
    %v8262 = vpop.f32.mrf.mxu0
    %v8263 = vadd.f32 %v8100, %v8262
    %8264 = vdwg.mxu0
    %8265 = vst [vmem:[#allocation14] sm:$0xff] %v8178
    %8266 = vst [vmem:[#allocation14 + $0x8] sm:$0xff] %v8180
    %8267 = vst [vmem:[#allocation14 + $0x10] sm:$0xff] %v8255
    %8268 = vst [vmem:[#allocation14 + $0x18] sm:$0xff] %v8257
    %8269 = vst [vmem:[#allocation14 + $0x20] sm:$0xff] %v8184
    %8270 = vst [vmem:[#allocation14 + $0x28] sm:$0xff] %v8186
    %8271 = vst [vmem:[#allocation14 + $0x30] sm:$0xff] %v8261
    %8272 = vst [vmem:[#allocation14 + $0x38] sm:$0xff] %v8263
    // Predicated region
    $region86: #{tpu_custom_call.1} parent=1 // pred_check
      _
    $region87: #{tpu_custom_call.1} parent=1 // pred_check_branch
      %8274 = sbr.rel (0) target = $region89
    $region88: #{tpu_custom_call.1} parent=1 // pred_region
      %s8276 = ssub.s32 1024, 1024
      %8277 = vsyncadd [#allocation4], %s8276
      %s8278 = sshll.u32 [#allocation14], 4
      %s8279 = int_to_ptr.vmem [resolvable:$true] %s8278
      %8284 = dma.vmem_to_hbm [thread:$0]  %s8279, 1024, %s14, [#allocation4], 512, 512, 32
    $region89: #{tpu_custom_call.1} parent=1 // pred_fallthru
      _
    // Predicated region
    $region90: #{tpu_custom_call.1} parent=1 // pred_check
      _
    $region91: #{tpu_custom_call.1} parent=1 // pred_check_branch
      %8286 = sbr.rel (0) target = $region93
    $region92: #{tpu_custom_call.1} parent=1 // pred_region
      %8287 = dma.done [#allocation4], 1024
    $region93: #{tpu_custom_call.1} parent=1 // pred_fallthru
      _
    %8288 = vsyncpa [#allocation3], 1
    %8289 = vsyncpa [#allocation6], 1
    %8290 = vsyncpa [#allocation9], 1
    %8291 = vsyncpa [#allocation12], 1
    %8292 = vsyncpa [#allocation4], 1

</llo_original>
